<compile_context>
chip_gen: v7x
topology: tpu7x:2x2x1
jax: 0.10.0
libtpu: 0.0.40
codegen_flags: <defaults>
</compile_context>

<pallas_src>
import functools

import numpy as np
import jax
import jax.numpy as jnp
from jax import lax
from jax.experimental import pallas as pl
from jax.experimental.pallas import tpu as pltpu

B, S, D, H = 2, 128, 128, 4
HD = D // H
DH = D              # ffn hidden dim (hidden_dim=args.dim, multiple_of=1)
M = B * S           # 256 rows for every dense matmul
NORM_EPS = 1e-5     # args.norm_eps
SCALE = 1.0 / float(np.sqrt(HD))
NEG_INF = -1e9


def _bf16_transcendentals_ok():
    """bf16 EUP/VPU paths exist on v6e / v7x but not on v5e."""
    try:
        kind = jax.devices()[0].device_kind.lower()
    except Exception:
        return False
    return ("v6" in kind) or ("v7" in kind)


def transformer_block_kernel(x_ref, wqkv_ref, wo_ref, w13_ref, w2_ref, out_ref,
                             qkv_ref, attn_ref, mask_ref, *, exp_dtype):
    # x_ref:    (B*S, D)   f32   activations (batch rows stacked)
    # wqkv_ref: (D, 3D)    bf16  attention_norm weight + 1/sqrt(HD) (Q cols) folded in
    # wo_ref:   (D, D)     bf16
    # w13_ref:  (D, 2*DH)  bf16  ffn_norm weight folded in
    # w2_ref:   (DH, D)    bf16
    # qkv_ref:  (B*S, 3D)  bf16  VMEM scratch (keeps q/k/v out of vregs)
    # attn_ref: (B*S, D)   bf16  VMEM scratch (per-head outputs at static lane offsets)
    # mask_ref: (S, S)     f32   VMEM scratch (causal additive mask)

    # Causal additive mask built once into VMEM (read per head; never pinned in vregs).
    # TODO(synk): the PyTorch module accepts an arbitrary additive mask; pass it as an
    # extra (S, S) input if a non-causal mask is ever needed.
    row = lax.broadcasted_iota(jnp.int32, (S, S), 0)
    col = lax.broadcasted_iota(jnp.int32, (S, S), 1)
    mask_ref[...] = jnp.where(col <= row, 0.0, NEG_INF).astype(jnp.float32)

    # ---- attention_norm (RMSNorm; weight folded into wqkv rows) ----
    x = x_ref[...]                                                       # (M, D) f32
    xn = (x * lax.rsqrt(jnp.mean(x * x, axis=-1, keepdims=True) + NORM_EPS)
          ).astype(jnp.bfloat16)

    # ---- fused QKV projection: one M=256, K=128 bf16 MXU pass ----
    qkv_ref[...] = jnp.dot(xn, wqkv_ref[...],
                           preferred_element_type=jnp.float32).astype(jnp.bfloat16)

    # ---- per (batch, head) attention; outputs assembled at static lane offsets ----
    for b in range(B):                      # B, H small & static -> fully unrolled
        rlo = b * S
        for h in range(H):
            lo = h * HD
            qh = qkv_ref[rlo:rlo + S, lo:lo + HD]                    # (S, HD) bf16
            kh = qkv_ref[rlo:rlo + S, D + lo:D + lo + HD]
            vh = qkv_ref[rlo:rlo + S, 2 * D + lo:2 * D + lo + HD]
            # q @ k^T without materializing a transpose (scale already in Q weights).
            s = lax.dot_general(qh, kh, (((1,), (1,)), ((), ())),
                                preferred_element_type=jnp.float32) + mask_ref[...]
            s = s - jnp.max(s, axis=-1, keepdims=True)
            p = jnp.exp(s.astype(exp_dtype)).astype(jnp.float32)
            inv = pl.reciprocal(jnp.sum(p, axis=-1, keepdims=True), approx=True)
            pbf = (p * inv).astype(jnp.bfloat16)
            oh = jnp.dot(pbf, vh, preferred_element_type=jnp.float32)  # (S, HD)
            attn_ref[rlo:rlo + S, lo:lo + HD] = oh.astype(jnp.bfloat16)

    # ---- single K=128 output projection + residual 1 (x re-read from VMEM) ----
    attn = jnp.dot(attn_ref[...], wo_ref[...], preferred_element_type=jnp.float32)
    h1 = x_ref[...] + attn                                               # (M, D) f32
    out_ref[...] = h1          # park h1 in the output block; re-read for residual 2

    # ---- ffn_norm (RMSNorm; weight folded into w13 rows) ----
    hn = (h1 * lax.rsqrt(jnp.mean(h1 * h1, axis=-1, keepdims=True) + NORM_EPS)
          ).astype(jnp.bfloat16)

    # ---- fused SwiGLU: one (D, 2*DH) bf16 matmul, split in-kernel ----
    gu = jnp.dot(hn, w13_ref[...], preferred_element_type=jnp.float32)   # (M, 2*DH)
    g, u = gu[:, :DH], gu[:, DH:]
    sig = jax.nn.sigmoid(g.astype(exp_dtype)).astype(jnp.float32)
    ff = jnp.dot((g * sig * u).astype(jnp.bfloat16), w2_ref[...],
                 preferred_element_type=jnp.float32)

    out_ref[...] = out_ref[...] + ff                                     # residual 2


def transformer_block(x, wq, wk, wv, wo, w1, w2, w3, anw, fnw):
    # Fold RMSNorm weights into projection rows, fold 1/sqrt(HD) into the Q columns,
    # fuse QKV and w1|w3, and cast MXU-facing weights to bf16 (f32 accumulation inside).
    anw_col = anw.reshape(D, 1)
    fnw_col = fnw.reshape(D, 1)
    wqkv = (anw_col * jnp.concatenate([wq * SCALE, wk, wv], axis=1)
            ).astype(jnp.bfloat16)                                        # (D, 3D)
    w13 = (fnw_col * jnp.concatenate([w1, w3], axis=1)).astype(jnp.bfloat16)  # (D, 2DH)
    wo_b = wo.astype(jnp.bfloat16)
    w2_b = w2.astype(jnp.bfloat16)

    x2d = x.reshape(M, D)
    exp_dtype = jnp.bfloat16 if _bf16_transcendentals_ok() else jnp.float32
    kernel = functools.partial(transformer_block_kernel, exp_dtype=exp_dtype)

    flops = (2 * M * D * 3 * D                    # fused QKV
             + B * H * (4 * S * S * HD)           # q@k^T + p@v per head
             + 2 * M * D * D                      # single Wo matmul
             + 2 * M * D * 2 * DH                 # fused w1|w3
             + 2 * M * DH * D)                    # w2
    transcendentals = B * H * S * S + M * DH      # softmax exp + sigmoid
    bytes_accessed = (2 * M * D * 4               # x in + out (f32)
                      + 2 * (D * 3 * D + D * D + D * 2 * DH + DH * D))  # bf16 weights

    # TODO(synk): on v7x (2 TCs/chip) a per-core batch split via
    # pl.core_map(pltpu.create_tensorcore_mesh(...)) / CORE_PARALLEL could halve
    # wall time; single-step layout here is optimal for single-TC v5e/v6e.
    out2d = pl.pallas_call(
        kernel,
        out_shape=jax.ShapeDtypeStruct((M, D), jnp.float32),
        grid_spec=pltpu.PrefetchScalarGridSpec(
            num_scalar_prefetch=0,
            grid=(1,),
            in_specs=[
                pl.BlockSpec((M, D), lambda i: (0, 0)),        # x (all rows)
                pl.BlockSpec((D, 3 * D), lambda i: (0, 0)),    # fused Wqkv (bf16)
                pl.BlockSpec((D, D), lambda i: (0, 0)),        # Wo (bf16)
                pl.BlockSpec((D, 2 * DH), lambda i: (0, 0)),   # fused W1|W3 (bf16)
                pl.BlockSpec((DH, D), lambda i: (0, 0)),       # W2 (bf16)
            ],
            out_specs=pl.BlockSpec((M, D), lambda i: (0, 0)),
            scratch_shapes=[
                pltpu.VMEM((M, 3 * D), jnp.bfloat16),   # qkv
                pltpu.VMEM((M, D), jnp.bfloat16),       # assembled head outputs
                pltpu.VMEM((S, S), jnp.float32),        # causal additive mask
            ],
        ),
        compiler_params=pltpu.CompilerParams(
            dimension_semantics=("arbitrary",)),
        cost_estimate=pl.CostEstimate(flops=flops,
                                      transcendentals=transcendentals,
                                      bytes_accessed=bytes_accessed),
    )(x2d, wqkv, wo_b, w13, w2_b)
    return out2d.reshape(B, S, D)


def reference(x, mask, wq, wk, wv, wo, w1, w2, w3, anw, fnw):
    """Pure-JAX f32 reference matching the PyTorch forward semantics."""
    def rms(z, w):
        return z * lax.rsqrt(jnp.mean(z * z, -1, keepdims=True) + NORM_EPS) * w
    xn = rms(x, anw)
    q = (xn @ wq).reshape(B, S, H, HD).transpose(0, 2, 1, 3)
    k = (xn @ wk).reshape(B, S, H, HD).transpose(0, 2, 1, 3)
    v = (xn @ wv).reshape(B, S, H, HD).transpose(0, 2, 1, 3)
    s = jnp.einsum('bhqd,bhkd->bhqk', q, k) / np.sqrt(HD) + mask
    p = jax.nn.softmax(s, axis=-1)
    o = jnp.einsum('bhqk,bhkd->bhqd', p, v).transpose(0, 2, 1, 3).reshape(B, S, D)
    h1 = x + o @ wo
    hn = rms(h1, fnw)
    ff = (jax.nn.silu(hn @ w1) * (hn @ w3)) @ w2
    return h1 + ff


if __name__ == "__main__":
    key = jax.random.PRNGKey(0)
    ks = jax.random.split(key, 9)

    x = jax.random.normal(ks[0], (B, S, D), dtype=jnp.float32)

    # Causal additive mask (what the caller of TransformerBlock would pass).
    idx = jnp.arange(S)
    mask = jnp.where(idx[None, :] <= idx[:, None], 0.0, NEG_INF).astype(jnp.float32)

    init = lambda k, shape: (0.02 * jax.random.normal(k, shape)).astype(jnp.float32)
    # Linear weights, stored pre-transposed as (in_features, out_features).
    wq = init(ks[1], (D, D))
    wk = init(ks[2], (D, D))
    wv = init(ks[3], (D, D))
    wo = init(ks[4], (D, D))
    w1 = init(ks[5], (D, DH))
    w2 = init(ks[6], (DH, D))
    w3 = init(ks[7], (D, DH))
    anw = jnp.ones((1, D), dtype=jnp.float32)   # attention_norm weight
    fnw = jnp.ones((1, D), dtype=jnp.float32)   # ffn_norm weight

    out = transformer_block(x, wq, wk, wv, wo, w1, w2, w3, anw, fnw)
    out = jax.block_until_ready(out)

    ref = reference(x, mask, wq, wk, wv, wo, w1, w2, w3, anw, fnw)
    # bf16 matmul inputs + approx reciprocal (+ bf16 exp on v6e/v7x) -> looser
    # tolerance than pure f32.
    np.testing.assert_allclose(np.asarray(out), np.asarray(ref), rtol=2e-2, atol=2e-2)

    print("KERNEL_OK")
</pallas_src>

<mosaic_0001>
module attributes {stable_mosaic.version = 11 : i64} {
  func.func @transformer_block_kernel(%arg0: i32, %arg1: memref<256x128xf32, #tpu.memory_space<vmem>>, %arg2: memref<128x384xbf16, #tpu.memory_space<vmem>>, %arg3: memref<128x128xbf16, #tpu.memory_space<vmem>>, %arg4: memref<128x256xbf16, #tpu.memory_space<vmem>>, %arg5: memref<128x128xbf16, #tpu.memory_space<vmem>>, %arg6: memref<256x128xf32, #tpu.memory_space<vmem>>, %arg7: memref<256x384xbf16, #tpu.memory_space<vmem>>, %arg8: memref<256x128xbf16, #tpu.memory_space<vmem>>, %arg9: memref<128x128xf32, #tpu.memory_space<vmem>>) attributes {dimension_semantics = [#tpu.dimension_semantics<arbitrary>], iteration_bounds = array<i64: 1>, scalar_prefetch = 0 : i64, scratch_operands = 3 : i64, tpu.core_type = #tpu.core_type<tc>, window_params = [{pipeline_mode = #tpu.pipeline_mode<synchronous>, transform_indices = @transform_0, window_bounds = array<i64: 256, 128>}, {pipeline_mode = #tpu.pipeline_mode<synchronous>, transform_indices = @transform_1, window_bounds = array<i64: 128, 384>}, {pipeline_mode = #tpu.pipeline_mode<synchronous>, transform_indices = @transform_2, window_bounds = array<i64: 128, 128>}, {pipeline_mode = #tpu.pipeline_mode<synchronous>, transform_indices = @transform_3, window_bounds = array<i64: 128, 256>}, {pipeline_mode = #tpu.pipeline_mode<synchronous>, transform_indices = @transform_4, window_bounds = array<i64: 128, 128>}, {pipeline_mode = #tpu.pipeline_mode<synchronous>, transform_indices = @transform_5, window_bounds = array<i64: 256, 128>}]} {
    %0 = tpu.iota {dimensions = array<i32: 0>} : vector<128x128xi32>
    %1 = tpu.iota {dimensions = array<i32: 1>} : vector<128x128xi32>
    %2 = arith.cmpi sle, %1, %0 : vector<128x128xi32>
    %cst = arith.constant 0.000000e+00 : f32
    %cst_0 = arith.constant -1.000000e+09 : f32
    %3 = vector.broadcast %cst : f32 to vector<128x128xf32>
    %4 = vector.broadcast %cst_0 : f32 to vector<128x128xf32>
    %5 = arith.select %2, %3, %4 : vector<128x128xi1>, vector<128x128xf32>
    %c0 = arith.constant 0 : index
    %c0_1 = arith.constant 0 : index
    %6 = vector.load %arg9[%c0, %c0_1] : memref<128x128xf32, #tpu.memory_space<vmem>>, vector<128x128xf32>
    tpu.vector_store %arg9[%c0, %c0_1], %5 {strides = array<i32>} : memref<128x128xf32, #tpu.memory_space<vmem>>, vector<128x128xf32>,
    %c0_2 = arith.constant 0 : index
    %c0_3 = arith.constant 0 : index
    %7 = vector.load %arg1[%c0_2, %c0_3] : memref<256x128xf32, #tpu.memory_space<vmem>>, vector<256x128xf32>
    %8 = arith.mulf %7, %7 : vector<256x128xf32>
    %cst_4 = arith.constant dense<0.000000e+00> : vector<256xf32>
    %9 = vector.multi_reduction <add>, %8, %cst_4 [1] : vector<256x128xf32> to vector<256xf32>
    %10 = vector.shape_cast %9 : vector<256xf32> to vector<256x1xf32>
    %cst_5 = arith.constant 1.280000e+02 : f32
    %11 = vector.broadcast %cst_5 : f32 to vector<256x1xf32>
    %12 = arith.divf %10, %11 : vector<256x1xf32>
    %cst_6 = arith.constant 9.99999974E-6 : f32
    %13 = vector.broadcast %cst_6 : f32 to vector<256x1xf32>
    %14 = arith.addf %12, %13 : vector<256x1xf32>
    %15 = math.rsqrt %14 : vector<256x1xf32>
    %16 = vector.broadcast %15 : vector<256x1xf32> to vector<256x128xf32>
    %17 = arith.mulf %7, %16 : vector<256x128xf32>
    %18 = arith.truncf %17 : vector<256x128xf32> to vector<256x128xbf16>
    %c0_7 = arith.constant 0 : index
    %c0_8 = arith.constant 0 : index
    %19 = vector.load %arg2[%c0_7, %c0_8] : memref<128x384xbf16, #tpu.memory_space<vmem>>, vector<128x384xbf16>
    %cst_9 = arith.constant dense<0.000000e+00> : vector<256x384xf32>
    %20 = tpu.matmul %18, %19, %cst_9 {dimension_numbers = #tpu.dot_dimension_numbers<[1], [0], [0], [1], [0, 0, 1, 1], [], []>} : vector<256x128xbf16>, vector<128x384xbf16>, vector<256x384xf32> -> vector<256x384xf32>
    %21 = arith.truncf %20 : vector<256x384xf32> to vector<256x384xbf16>
    %c0_10 = arith.constant 0 : index
    %c0_11 = arith.constant 0 : index
    %22 = vector.load %arg7[%c0_10, %c0_11] : memref<256x384xbf16, #tpu.memory_space<vmem>>, vector<256x384xbf16>
    tpu.vector_store %arg7[%c0_10, %c0_11], %21 {strides = array<i32>} : memref<256x384xbf16, #tpu.memory_space<vmem>>, vector<256x384xbf16>,
    %c0_12 = arith.constant 0 : index
    %c0_13 = arith.constant 0 : index
    %23 = vector.load %arg7[%c0_12, %c0_13] : memref<256x384xbf16, #tpu.memory_space<vmem>>, vector<128x32xbf16>
    %c0_14 = arith.constant 0 : index
    %c128 = arith.constant 128 : index
    %24 = vector.load %arg7[%c0_14, %c128] : memref<256x384xbf16, #tpu.memory_space<vmem>>, vector<128x32xbf16>
    %c0_15 = arith.constant 0 : index
    %c256 = arith.constant 256 : index
    %25 = vector.load %arg7[%c0_15, %c256] : memref<256x384xbf16, #tpu.memory_space<vmem>>, vector<128x32xbf16>
    %cst_16 = arith.constant dense<0.000000e+00> : vector<128x128xf32>
    %26 = tpu.matmul %23, %24, %cst_16 {dimension_numbers = #tpu.dot_dimension_numbers<[1], [1], [0], [0], [0, 0, 1, 0], [], []>} : vector<128x32xbf16>, vector<128x32xbf16>, vector<128x128xf32> -> vector<128x128xf32>
    %c0_17 = arith.constant 0 : index
    %c0_18 = arith.constant 0 : index
    %27 = vector.load %arg9[%c0_17, %c0_18] : memref<128x128xf32, #tpu.memory_space<vmem>>, vector<128x128xf32>
    %28 = arith.addf %26, %27 : vector<128x128xf32>
    %cst_19 = arith.constant dense<0xFF800000> : vector<128xf32>
    %29 = vector.multi_reduction <maximumf>, %28, %cst_19 [1] : vector<128x128xf32> to vector<128xf32>
    %30 = vector.shape_cast %29 : vector<128xf32> to vector<128x1xf32>
    %31 = vector.broadcast %30 : vector<128x1xf32> to vector<128x128xf32>
    %32 = arith.subf %28, %31 : vector<128x128xf32>
    %33 = math.exp %32 : vector<128x128xf32>
    %cst_20 = arith.constant dense<0.000000e+00> : vector<128xf32>
    %34 = vector.multi_reduction <add>, %33, %cst_20 [1] : vector<128x128xf32> to vector<128xf32>
    %35 = vector.shape_cast %34 : vector<128xf32> to vector<128x1xf32>
    %36 = tpu.reciprocal %35 {approx = true} : vector<128x1xf32> -> vector<128x1xf32>
    %37 = vector.broadcast %36 : vector<128x1xf32> to vector<128x128xf32>
    %38 = arith.mulf %33, %37 : vector<128x128xf32>
    %39 = arith.truncf %38 : vector<128x128xf32> to vector<128x128xbf16>
    %cst_21 = arith.constant dense<0.000000e+00> : vector<128x32xf32>
    %40 = tpu.matmul %39, %25, %cst_21 {dimension_numbers = #tpu.dot_dimension_numbers<[1], [0], [0], [1], [0, 0, 1, 1], [], []>} : vector<128x128xbf16>, vector<128x32xbf16>, vector<128x32xf32> -> vector<128x32xf32>
    %41 = arith.truncf %40 : vector<128x32xf32> to vector<128x32xbf16>
    %c0_22 = arith.constant 0 : index
    %c0_23 = arith.constant 0 : index
    %42 = vector.load %arg8[%c0_22, %c0_23] : memref<256x128xbf16, #tpu.memory_space<vmem>>, vector<128x32xbf16>
    tpu.vector_store %arg8[%c0_22, %c0_23], %41 {strides = array<i32>} : memref<256x128xbf16, #tpu.memory_space<vmem>>, vector<128x32xbf16>,
    %c0_24 = arith.constant 0 : index
    %c32 = arith.constant 32 : index
    %43 = vector.load %arg7[%c0_24, %c32] : memref<256x384xbf16, #tpu.memory_space<vmem>>, vector<128x32xbf16>
    %c0_25 = arith.constant 0 : index
    %c160 = arith.constant 160 : index
    %44 = vector.load %arg7[%c0_25, %c160] : memref<256x384xbf16, #tpu.memory_space<vmem>>, vector<128x32xbf16>
    %c0_26 = arith.constant 0 : index
    %c288 = arith.constant 288 : index
    %45 = vector.load %arg7[%c0_26, %c288] : memref<256x384xbf16, #tpu.memory_space<vmem>>, vector<128x32xbf16>
    %cst_27 = arith.constant dense<0.000000e+00> : vector<128x128xf32>
    %46 = tpu.matmul %43, %44, %cst_27 {dimension_numbers = #tpu.dot_dimension_numbers<[1], [1], [0], [0], [0, 0, 1, 0], [], []>} : vector<128x32xbf16>, vector<128x32xbf16>, vector<128x128xf32> -> vector<128x128xf32>
    %c0_28 = arith.constant 0 : index
    %c0_29 = arith.constant 0 : index
    %47 = vector.load %arg9[%c0_28, %c0_29] : memref<128x128xf32, #tpu.memory_space<vmem>>, vector<128x128xf32>
    %48 = arith.addf %46, %47 : vector<128x128xf32>
    %cst_30 = arith.constant dense<0xFF800000> : vector<128xf32>
    %49 = vector.multi_reduction <maximumf>, %48, %cst_30 [1] : vector<128x128xf32> to vector<128xf32>
    %50 = vector.shape_cast %49 : vector<128xf32> to vector<128x1xf32>
    %51 = vector.broadcast %50 : vector<128x1xf32> to vector<128x128xf32>
    %52 = arith.subf %48, %51 : vector<128x128xf32>
    %53 = math.exp %52 : vector<128x128xf32>
    %cst_31 = arith.constant dense<0.000000e+00> : vector<128xf32>
    %54 = vector.multi_reduction <add>, %53, %cst_31 [1] : vector<128x128xf32> to vector<128xf32>
    %55 = vector.shape_cast %54 : vector<128xf32> to vector<128x1xf32>
    %56 = tpu.reciprocal %55 {approx = true} : vector<128x1xf32> -> vector<128x1xf32>
    %57 = vector.broadcast %56 : vector<128x1xf32> to vector<128x128xf32>
    %58 = arith.mulf %53, %57 : vector<128x128xf32>
    %59 = arith.truncf %58 : vector<128x128xf32> to vector<128x128xbf16>
    %cst_32 = arith.constant dense<0.000000e+00> : vector<128x32xf32>
    %60 = tpu.matmul %59, %45, %cst_32 {dimension_numbers = #tpu.dot_dimension_numbers<[1], [0], [0], [1], [0, 0, 1, 1], [], []>} : vector<128x128xbf16>, vector<128x32xbf16>, vector<128x32xf32> -> vector<128x32xf32>
    %61 = arith.truncf %60 : vector<128x32xf32> to vector<128x32xbf16>
    %c0_33 = arith.constant 0 : index
    %c32_34 = arith.constant 32 : index
    %62 = vector.load %arg8[%c0_33, %c32_34] : memref<256x128xbf16, #tpu.memory_space<vmem>>, vector<128x32xbf16>
    tpu.vector_store %arg8[%c0_33, %c32_34], %61 {strides = array<i32>} : memref<256x128xbf16, #tpu.memory_space<vmem>>, vector<128x32xbf16>,
    %c0_35 = arith.constant 0 : index
    %c64 = arith.constant 64 : index
    %63 = vector.load %arg7[%c0_35, %c64] : memref<256x384xbf16, #tpu.memory_space<vmem>>, vector<128x32xbf16>
    %c0_36 = arith.constant 0 : index
    %c192 = arith.constant 192 : index
    %64 = vector.load %arg7[%c0_36, %c192] : memref<256x384xbf16, #tpu.memory_space<vmem>>, vector<128x32xbf16>
    %c0_37 = arith.constant 0 : index
    %c320 = arith.constant 320 : index
    %65 = vector.load %arg7[%c0_37, %c320] : memref<256x384xbf16, #tpu.memory_space<vmem>>, vector<128x32xbf16>
    %cst_38 = arith.constant dense<0.000000e+00> : vector<128x128xf32>
    %66 = tpu.matmul %63, %64, %cst_38 {dimension_numbers = #tpu.dot_dimension_numbers<[1], [1], [0], [0], [0, 0, 1, 0], [], []>} : vector<128x32xbf16>, vector<128x32xbf16>, vector<128x128xf32> -> vector<128x128xf32>
    %c0_39 = arith.constant 0 : index
    %c0_40 = arith.constant 0 : index
    %67 = vector.load %arg9[%c0_39, %c0_40] : memref<128x128xf32, #tpu.memory_space<vmem>>, vector<128x128xf32>
    %68 = arith.addf %66, %67 : vector<128x128xf32>
    %cst_41 = arith.constant dense<0xFF800000> : vector<128xf32>
    %69 = vector.multi_reduction <maximumf>, %68, %cst_41 [1] : vector<128x128xf32> to vector<128xf32>
    %70 = vector.shape_cast %69 : vector<128xf32> to vector<128x1xf32>
    %71 = vector.broadcast %70 : vector<128x1xf32> to vector<128x128xf32>
    %72 = arith.subf %68, %71 : vector<128x128xf32>
    %73 = math.exp %72 : vector<128x128xf32>
    %cst_42 = arith.constant dense<0.000000e+00> : vector<128xf32>
    %74 = vector.multi_reduction <add>, %73, %cst_42 [1] : vector<128x128xf32> to vector<128xf32>
    %75 = vector.shape_cast %74 : vector<128xf32> to vector<128x1xf32>
    %76 = tpu.reciprocal %75 {approx = true} : vector<128x1xf32> -> vector<128x1xf32>
    %77 = vector.broadcast %76 : vector<128x1xf32> to vector<128x128xf32>
    %78 = arith.mulf %73, %77 : vector<128x128xf32>
    %79 = arith.truncf %78 : vector<128x128xf32> to vector<128x128xbf16>
    %cst_43 = arith.constant dense<0.000000e+00> : vector<128x32xf32>
    %80 = tpu.matmul %79, %65, %cst_43 {dimension_numbers = #tpu.dot_dimension_numbers<[1], [0], [0], [1], [0, 0, 1, 1], [], []>} : vector<128x128xbf16>, vector<128x32xbf16>, vector<128x32xf32> -> vector<128x32xf32>
    %81 = arith.truncf %80 : vector<128x32xf32> to vector<128x32xbf16>
    %c0_44 = arith.constant 0 : index
    %c64_45 = arith.constant 64 : index
    %82 = vector.load %arg8[%c0_44, %c64_45] : memref<256x128xbf16, #tpu.memory_space<vmem>>, vector<128x32xbf16>
    tpu.vector_store %arg8[%c0_44, %c64_45], %81 {strides = array<i32>} : memref<256x128xbf16, #tpu.memory_space<vmem>>, vector<128x32xbf16>,
    %c0_46 = arith.constant 0 : index
    %c96 = arith.constant 96 : index
    %83 = vector.load %arg7[%c0_46, %c96] : memref<256x384xbf16, #tpu.memory_space<vmem>>, vector<128x32xbf16>
    %c0_47 = arith.constant 0 : index
    %c224 = arith.constant 224 : index
    %84 = vector.load %arg7[%c0_47, %c224] : memref<256x384xbf16, #tpu.memory_space<vmem>>, vector<128x32xbf16>
    %c0_48 = arith.constant 0 : index
    %c352 = arith.constant 352 : index
    %85 = vector.load %arg7[%c0_48, %c352] : memref<256x384xbf16, #tpu.memory_space<vmem>>, vector<128x32xbf16>
    %cst_49 = arith.constant dense<0.000000e+00> : vector<128x128xf32>
    %86 = tpu.matmul %83, %84, %cst_49 {dimension_numbers = #tpu.dot_dimension_numbers<[1], [1], [0], [0], [0, 0, 1, 0], [], []>} : vector<128x32xbf16>, vector<128x32xbf16>, vector<128x128xf32> -> vector<128x128xf32>
    %c0_50 = arith.constant 0 : index
    %c0_51 = arith.constant 0 : index
    %87 = vector.load %arg9[%c0_50, %c0_51] : memref<128x128xf32, #tpu.memory_space<vmem>>, vector<128x128xf32>
    %88 = arith.addf %86, %87 : vector<128x128xf32>
    %cst_52 = arith.constant dense<0xFF800000> : vector<128xf32>
    %89 = vector.multi_reduction <maximumf>, %88, %cst_52 [1] : vector<128x128xf32> to vector<128xf32>
    %90 = vector.shape_cast %89 : vector<128xf32> to vector<128x1xf32>
    %91 = vector.broadcast %90 : vector<128x1xf32> to vector<128x128xf32>
    %92 = arith.subf %88, %91 : vector<128x128xf32>
    %93 = math.exp %92 : vector<128x128xf32>
    %cst_53 = arith.constant dense<0.000000e+00> : vector<128xf32>
    %94 = vector.multi_reduction <add>, %93, %cst_53 [1] : vector<128x128xf32> to vector<128xf32>
    %95 = vector.shape_cast %94 : vector<128xf32> to vector<128x1xf32>
    %96 = tpu.reciprocal %95 {approx = true} : vector<128x1xf32> -> vector<128x1xf32>
    %97 = vector.broadcast %96 : vector<128x1xf32> to vector<128x128xf32>
    %98 = arith.mulf %93, %97 : vector<128x128xf32>
    %99 = arith.truncf %98 : vector<128x128xf32> to vector<128x128xbf16>
    %cst_54 = arith.constant dense<0.000000e+00> : vector<128x32xf32>
    %100 = tpu.matmul %99, %85, %cst_54 {dimension_numbers = #tpu.dot_dimension_numbers<[1], [0], [0], [1], [0, 0, 1, 1], [], []>} : vector<128x128xbf16>, vector<128x32xbf16>, vector<128x32xf32> -> vector<128x32xf32>
    %101 = arith.truncf %100 : vector<128x32xf32> to vector<128x32xbf16>
    %c0_55 = arith.constant 0 : index
    %c96_56 = arith.constant 96 : index
    %102 = vector.load %arg8[%c0_55, %c96_56] : memref<256x128xbf16, #tpu.memory_space<vmem>>, vector<128x32xbf16>
    tpu.vector_store %arg8[%c0_55, %c96_56], %101 {strides = array<i32>} : memref<256x128xbf16, #tpu.memory_space<vmem>>, vector<128x32xbf16>,
    %c128_57 = arith.constant 128 : index
    %c0_58 = arith.constant 0 : index
    %103 = vector.load %arg7[%c128_57, %c0_58] : memref<256x384xbf16, #tpu.memory_space<vmem>>, vector<128x32xbf16>
    %c128_59 = arith.constant 128 : index
    %c128_60 = arith.constant 128 : index
    %104 = vector.load %arg7[%c128_59, %c128_60] : memref<256x384xbf16, #tpu.memory_space<vmem>>, vector<128x32xbf16>
    %c128_61 = arith.constant 128 : index
    %c256_62 = arith.constant 256 : index
    %105 = vector.load %arg7[%c128_61, %c256_62] : memref<256x384xbf16, #tpu.memory_space<vmem>>, vector<128x32xbf16>
    %cst_63 = arith.constant dense<0.000000e+00> : vector<128x128xf32>
    %106 = tpu.matmul %103, %104, %cst_63 {dimension_numbers = #tpu.dot_dimension_numbers<[1], [1], [0], [0], [0, 0, 1, 0], [], []>} : vector<128x32xbf16>, vector<128x32xbf16>, vector<128x128xf32> -> vector<128x128xf32>
    %c0_64 = arith.constant 0 : index
    %c0_65 = arith.constant 0 : index
    %107 = vector.load %arg9[%c0_64, %c0_65] : memref<128x128xf32, #tpu.memory_space<vmem>>, vector<128x128xf32>
    %108 = arith.addf %106, %107 : vector<128x128xf32>
    %cst_66 = arith.constant dense<0xFF800000> : vector<128xf32>
    %109 = vector.multi_reduction <maximumf>, %108, %cst_66 [1] : vector<128x128xf32> to vector<128xf32>
    %110 = vector.shape_cast %109 : vector<128xf32> to vector<128x1xf32>
    %111 = vector.broadcast %110 : vector<128x1xf32> to vector<128x128xf32>
    %112 = arith.subf %108, %111 : vector<128x128xf32>
    %113 = math.exp %112 : vector<128x128xf32>
    %cst_67 = arith.constant dense<0.000000e+00> : vector<128xf32>
    %114 = vector.multi_reduction <add>, %113, %cst_67 [1] : vector<128x128xf32> to vector<128xf32>
    %115 = vector.shape_cast %114 : vector<128xf32> to vector<128x1xf32>
    %116 = tpu.reciprocal %115 {approx = true} : vector<128x1xf32> -> vector<128x1xf32>
    %117 = vector.broadcast %116 : vector<128x1xf32> to vector<128x128xf32>
    %118 = arith.mulf %113, %117 : vector<128x128xf32>
    %119 = arith.truncf %118 : vector<128x128xf32> to vector<128x128xbf16>
    %cst_68 = arith.constant dense<0.000000e+00> : vector<128x32xf32>
    %120 = tpu.matmul %119, %105, %cst_68 {dimension_numbers = #tpu.dot_dimension_numbers<[1], [0], [0], [1], [0, 0, 1, 1], [], []>} : vector<128x128xbf16>, vector<128x32xbf16>, vector<128x32xf32> -> vector<128x32xf32>
    %121 = arith.truncf %120 : vector<128x32xf32> to vector<128x32xbf16>
    %c128_69 = arith.constant 128 : index
    %c0_70 = arith.constant 0 : index
    %122 = vector.load %arg8[%c128_69, %c0_70] : memref<256x128xbf16, #tpu.memory_space<vmem>>, vector<128x32xbf16>
    tpu.vector_store %arg8[%c128_69, %c0_70], %121 {strides = array<i32>} : memref<256x128xbf16, #tpu.memory_space<vmem>>, vector<128x32xbf16>,
    %c128_71 = arith.constant 128 : index
    %c32_72 = arith.constant 32 : index
    %123 = vector.load %arg7[%c128_71, %c32_72] : memref<256x384xbf16, #tpu.memory_space<vmem>>, vector<128x32xbf16>
    %c128_73 = arith.constant 128 : index
    %c160_74 = arith.constant 160 : index
    %124 = vector.load %arg7[%c128_73, %c160_74] : memref<256x384xbf16, #tpu.memory_space<vmem>>, vector<128x32xbf16>
    %c128_75 = arith.constant 128 : index
    %c288_76 = arith.constant 288 : index
    %125 = vector.load %arg7[%c128_75, %c288_76] : memref<256x384xbf16, #tpu.memory_space<vmem>>, vector<128x32xbf16>
    %cst_77 = arith.constant dense<0.000000e+00> : vector<128x128xf32>
    %126 = tpu.matmul %123, %124, %cst_77 {dimension_numbers = #tpu.dot_dimension_numbers<[1], [1], [0], [0], [0, 0, 1, 0], [], []>} : vector<128x32xbf16>, vector<128x32xbf16>, vector<128x128xf32> -> vector<128x128xf32>
    %c0_78 = arith.constant 0 : index
    %c0_79 = arith.constant 0 : index
    %127 = vector.load %arg9[%c0_78, %c0_79] : memref<128x128xf32, #tpu.memory_space<vmem>>, vector<128x128xf32>
    %128 = arith.addf %126, %127 : vector<128x128xf32>
    %cst_80 = arith.constant dense<0xFF800000> : vector<128xf32>
    %129 = vector.multi_reduction <maximumf>, %128, %cst_80 [1] : vector<128x128xf32> to vector<128xf32>
    %130 = vector.shape_cast %129 : vector<128xf32> to vector<128x1xf32>
    %131 = vector.broadcast %130 : vector<128x1xf32> to vector<128x128xf32>
    %132 = arith.subf %128, %131 : vector<128x128xf32>
    %133 = math.exp %132 : vector<128x128xf32>
    %cst_81 = arith.constant dense<0.000000e+00> : vector<128xf32>
    %134 = vector.multi_reduction <add>, %133, %cst_81 [1] : vector<128x128xf32> to vector<128xf32>
    %135 = vector.shape_cast %134 : vector<128xf32> to vector<128x1xf32>
    %136 = tpu.reciprocal %135 {approx = true} : vector<128x1xf32> -> vector<128x1xf32>
    %137 = vector.broadcast %136 : vector<128x1xf32> to vector<128x128xf32>
    %138 = arith.mulf %133, %137 : vector<128x128xf32>
    %139 = arith.truncf %138 : vector<128x128xf32> to vector<128x128xbf16>
    %cst_82 = arith.constant dense<0.000000e+00> : vector<128x32xf32>
    %140 = tpu.matmul %139, %125, %cst_82 {dimension_numbers = #tpu.dot_dimension_numbers<[1], [0], [0], [1], [0, 0, 1, 1], [], []>} : vector<128x128xbf16>, vector<128x32xbf16>, vector<128x32xf32> -> vector<128x32xf32>
    %141 = arith.truncf %140 : vector<128x32xf32> to vector<128x32xbf16>
    %c128_83 = arith.constant 128 : index
    %c32_84 = arith.constant 32 : index
    %142 = vector.load %arg8[%c128_83, %c32_84] : memref<256x128xbf16, #tpu.memory_space<vmem>>, vector<128x32xbf16>
    tpu.vector_store %arg8[%c128_83, %c32_84], %141 {strides = array<i32>} : memref<256x128xbf16, #tpu.memory_space<vmem>>, vector<128x32xbf16>,
    %c128_85 = arith.constant 128 : index
    %c64_86 = arith.constant 64 : index
    %143 = vector.load %arg7[%c128_85, %c64_86] : memref<256x384xbf16, #tpu.memory_space<vmem>>, vector<128x32xbf16>
    %c128_87 = arith.constant 128 : index
    %c192_88 = arith.constant 192 : index
    %144 = vector.load %arg7[%c128_87, %c192_88] : memref<256x384xbf16, #tpu.memory_space<vmem>>, vector<128x32xbf16>
    %c128_89 = arith.constant 128 : index
    %c320_90 = arith.constant 320 : index
    %145 = vector.load %arg7[%c128_89, %c320_90] : memref<256x384xbf16, #tpu.memory_space<vmem>>, vector<128x32xbf16>
    %cst_91 = arith.constant dense<0.000000e+00> : vector<128x128xf32>
    %146 = tpu.matmul %143, %144, %cst_91 {dimension_numbers = #tpu.dot_dimension_numbers<[1], [1], [0], [0], [0, 0, 1, 0], [], []>} : vector<128x32xbf16>, vector<128x32xbf16>, vector<128x128xf32> -> vector<128x128xf32>
    %c0_92 = arith.constant 0 : index
    %c0_93 = arith.constant 0 : index
    %147 = vector.load %arg9[%c0_92, %c0_93] : memref<128x128xf32, #tpu.memory_space<vmem>>, vector<128x128xf32>
    %148 = arith.addf %146, %147 : vector<128x128xf32>
    %cst_94 = arith.constant dense<0xFF800000> : vector<128xf32>
    %149 = vector.multi_reduction <maximumf>, %148, %cst_94 [1] : vector<128x128xf32> to vector<128xf32>
    %150 = vector.shape_cast %149 : vector<128xf32> to vector<128x1xf32>
    %151 = vector.broadcast %150 : vector<128x1xf32> to vector<128x128xf32>
    %152 = arith.subf %148, %151 : vector<128x128xf32>
    %153 = math.exp %152 : vector<128x128xf32>
    %cst_95 = arith.constant dense<0.000000e+00> : vector<128xf32>
    %154 = vector.multi_reduction <add>, %153, %cst_95 [1] : vector<128x128xf32> to vector<128xf32>
    %155 = vector.shape_cast %154 : vector<128xf32> to vector<128x1xf32>
    %156 = tpu.reciprocal %155 {approx = true} : vector<128x1xf32> -> vector<128x1xf32>
    %157 = vector.broadcast %156 : vector<128x1xf32> to vector<128x128xf32>
    %158 = arith.mulf %153, %157 : vector<128x128xf32>
    %159 = arith.truncf %158 : vector<128x128xf32> to vector<128x128xbf16>
    %cst_96 = arith.constant dense<0.000000e+00> : vector<128x32xf32>
    %160 = tpu.matmul %159, %145, %cst_96 {dimension_numbers = #tpu.dot_dimension_numbers<[1], [0], [0], [1], [0, 0, 1, 1], [], []>} : vector<128x128xbf16>, vector<128x32xbf16>, vector<128x32xf32> -> vector<128x32xf32>
    %161 = arith.truncf %160 : vector<128x32xf32> to vector<128x32xbf16>
    %c128_97 = arith.constant 128 : index
    %c64_98 = arith.constant 64 : index
    %162 = vector.load %arg8[%c128_97, %c64_98] : memref<256x128xbf16, #tpu.memory_space<vmem>>, vector<128x32xbf16>
    tpu.vector_store %arg8[%c128_97, %c64_98], %161 {strides = array<i32>} : memref<256x128xbf16, #tpu.memory_space<vmem>>, vector<128x32xbf16>,
    %c128_99 = arith.constant 128 : index
    %c96_100 = arith.constant 96 : index
    %163 = vector.load %arg7[%c128_99, %c96_100] : memref<256x384xbf16, #tpu.memory_space<vmem>>, vector<128x32xbf16>
    %c128_101 = arith.constant 128 : index
    %c224_102 = arith.constant 224 : index
    %164 = vector.load %arg7[%c128_101, %c224_102] : memref<256x384xbf16, #tpu.memory_space<vmem>>, vector<128x32xbf16>
    %c128_103 = arith.constant 128 : index
    %c352_104 = arith.constant 352 : index
    %165 = vector.load %arg7[%c128_103, %c352_104] : memref<256x384xbf16, #tpu.memory_space<vmem>>, vector<128x32xbf16>
    %cst_105 = arith.constant dense<0.000000e+00> : vector<128x128xf32>
    %166 = tpu.matmul %163, %164, %cst_105 {dimension_numbers = #tpu.dot_dimension_numbers<[1], [1], [0], [0], [0, 0, 1, 0], [], []>} : vector<128x32xbf16>, vector<128x32xbf16>, vector<128x128xf32> -> vector<128x128xf32>
    %c0_106 = arith.constant 0 : index
    %c0_107 = arith.constant 0 : index
    %167 = vector.load %arg9[%c0_106, %c0_107] : memref<128x128xf32, #tpu.memory_space<vmem>>, vector<128x128xf32>
    %168 = arith.addf %166, %167 : vector<128x128xf32>
    %cst_108 = arith.constant dense<0xFF800000> : vector<128xf32>
    %169 = vector.multi_reduction <maximumf>, %168, %cst_108 [1] : vector<128x128xf32> to vector<128xf32>
    %170 = vector.shape_cast %169 : vector<128xf32> to vector<128x1xf32>
    %171 = vector.broadcast %170 : vector<128x1xf32> to vector<128x128xf32>
    %172 = arith.subf %168, %171 : vector<128x128xf32>
    %173 = math.exp %172 : vector<128x128xf32>
    %cst_109 = arith.constant dense<0.000000e+00> : vector<128xf32>
    %174 = vector.multi_reduction <add>, %173, %cst_109 [1] : vector<128x128xf32> to vector<128xf32>
    %175 = vector.shape_cast %174 : vector<128xf32> to vector<128x1xf32>
    %176 = tpu.reciprocal %175 {approx = true} : vector<128x1xf32> -> vector<128x1xf32>
    %177 = vector.broadcast %176 : vector<128x1xf32> to vector<128x128xf32>
    %178 = arith.mulf %173, %177 : vector<128x128xf32>
    %179 = arith.truncf %178 : vector<128x128xf32> to vector<128x128xbf16>
    %cst_110 = arith.constant dense<0.000000e+00> : vector<128x32xf32>
    %180 = tpu.matmul %179, %165, %cst_110 {dimension_numbers = #tpu.dot_dimension_numbers<[1], [0], [0], [1], [0, 0, 1, 1], [], []>} : vector<128x128xbf16>, vector<128x32xbf16>, vector<128x32xf32> -> vector<128x32xf32>
    %181 = arith.truncf %180 : vector<128x32xf32> to vector<128x32xbf16>
    %c128_111 = arith.constant 128 : index
    %c96_112 = arith.constant 96 : index
    %182 = vector.load %arg8[%c128_111, %c96_112] : memref<256x128xbf16, #tpu.memory_space<vmem>>, vector<128x32xbf16>
    tpu.vector_store %arg8[%c128_111, %c96_112], %181 {strides = array<i32>} : memref<256x128xbf16, #tpu.memory_space<vmem>>, vector<128x32xbf16>,
    %c0_113 = arith.constant 0 : index
    %c0_114 = arith.constant 0 : index
    %183 = vector.load %arg8[%c0_113, %c0_114] : memref<256x128xbf16, #tpu.memory_space<vmem>>, vector<256x128xbf16>
    %c0_115 = arith.constant 0 : index
    %c0_116 = arith.constant 0 : index
    %184 = vector.load %arg3[%c0_115, %c0_116] : memref<128x128xbf16, #tpu.memory_space<vmem>>, vector<128x128xbf16>
    %cst_117 = arith.constant dense<0.000000e+00> : vector<256x128xf32>
    %185 = tpu.matmul %183, %184, %cst_117 {dimension_numbers = #tpu.dot_dimension_numbers<[1], [0], [0], [1], [0, 0, 1, 1], [], []>} : vector<256x128xbf16>, vector<128x128xbf16>, vector<256x128xf32> -> vector<256x128xf32>
    %c0_118 = arith.constant 0 : index
    %c0_119 = arith.constant 0 : index
    %186 = vector.load %arg1[%c0_118, %c0_119] : memref<256x128xf32, #tpu.memory_space<vmem>>, vector<256x128xf32>
    %187 = arith.addf %186, %185 : vector<256x128xf32>
    %c0_120 = arith.constant 0 : index
    %c0_121 = arith.constant 0 : index
    %188 = vector.load %arg6[%c0_120, %c0_121] : memref<256x128xf32, #tpu.memory_space<vmem>>, vector<256x128xf32>
    tpu.vector_store %arg6[%c0_120, %c0_121], %187 {strides = array<i32>} : memref<256x128xf32, #tpu.memory_space<vmem>>, vector<256x128xf32>,
    %189 = arith.mulf %187, %187 : vector<256x128xf32>
    %cst_122 = arith.constant dense<0.000000e+00> : vector<256xf32>
    %190 = vector.multi_reduction <add>, %189, %cst_122 [1] : vector<256x128xf32> to vector<256xf32>
    %191 = vector.shape_cast %190 : vector<256xf32> to vector<256x1xf32>
    %cst_123 = arith.constant 1.280000e+02 : f32
    %192 = vector.broadcast %cst_123 : f32 to vector<256x1xf32>
    %193 = arith.divf %191, %192 : vector<256x1xf32>
    %cst_124 = arith.constant 9.99999974E-6 : f32
    %194 = vector.broadcast %cst_124 : f32 to vector<256x1xf32>
    %195 = arith.addf %193, %194 : vector<256x1xf32>
    %196 = math.rsqrt %195 : vector<256x1xf32>
    %197 = vector.broadcast %196 : vector<256x1xf32> to vector<256x128xf32>
    %198 = arith.mulf %187, %197 : vector<256x128xf32>
    %199 = arith.truncf %198 : vector<256x128xf32> to vector<256x128xbf16>
    %c0_125 = arith.constant 0 : index
    %c0_126 = arith.constant 0 : index
    %200 = vector.load %arg4[%c0_125, %c0_126] : memref<128x256xbf16, #tpu.memory_space<vmem>>, vector<128x256xbf16>
    %cst_127 = arith.constant dense<0.000000e+00> : vector<256x256xf32>
    %201 = tpu.matmul %199, %200, %cst_127 {dimension_numbers = #tpu.dot_dimension_numbers<[1], [0], [0], [1], [0, 0, 1, 1], [], []>} : vector<256x128xbf16>, vector<128x256xbf16>, vector<256x256xf32> -> vector<256x256xf32>
    %202 = vector.extract_strided_slice %201 {offsets = [0, 0], sizes = [256, 128], strides = [1, 1]} : vector<256x256xf32> to vector<256x128xf32>
    %203 = vector.extract_strided_slice %201 {offsets = [0, 128], sizes = [256, 128], strides = [1, 1]} : vector<256x256xf32> to vector<256x128xf32>
    %204 = arith.negf %202 : vector<256x128xf32>
    %205 = math.exp %204 : vector<256x128xf32>
    %cst_128 = arith.constant 1.000000e+00 : f32
    %206 = vector.broadcast %cst_128 : f32 to vector<256x128xf32>
    %207 = arith.addf %206, %205 : vector<256x128xf32>
    %208 = arith.divf %206, %207 : vector<256x128xf32>
    %209 = arith.mulf %202, %208 : vector<256x128xf32>
    %210 = arith.mulf %209, %203 : vector<256x128xf32>
    %211 = arith.truncf %210 : vector<256x128xf32> to vector<256x128xbf16>
    %c0_129 = arith.constant 0 : index
    %c0_130 = arith.constant 0 : index
    %212 = vector.load %arg5[%c0_129, %c0_130] : memref<128x128xbf16, #tpu.memory_space<vmem>>, vector<128x128xbf16>
    %cst_131 = arith.constant dense<0.000000e+00> : vector<256x128xf32>
    %213 = tpu.matmul %211, %212, %cst_131 {dimension_numbers = #tpu.dot_dimension_numbers<[1], [0], [0], [1], [0, 0, 1, 1], [], []>} : vector<256x128xbf16>, vector<128x128xbf16>, vector<256x128xf32> -> vector<256x128xf32>
    %c0_132 = arith.constant 0 : index
    %c0_133 = arith.constant 0 : index
    %214 = vector.load %arg6[%c0_132, %c0_133] : memref<256x128xf32, #tpu.memory_space<vmem>>, vector<256x128xf32>
    %215 = arith.addf %214, %213 : vector<256x128xf32>
    %c0_134 = arith.constant 0 : index
    %c0_135 = arith.constant 0 : index
    %216 = vector.load %arg6[%c0_134, %c0_135] : memref<256x128xf32, #tpu.memory_space<vmem>>, vector<256x128xf32>
    tpu.vector_store %arg6[%c0_134, %c0_135], %215 {strides = array<i32>} : memref<256x128xf32, #tpu.memory_space<vmem>>, vector<256x128xf32>,
    return
  }
  func.func @transform_0(%arg0: i32) -> (i32, i32) {
    %c0_i32 = arith.constant 0 : i32
    %c0_i32_0 = arith.constant 0 : i32
    %c0_i32_1 = arith.constant 0 : i32
    return %c0_i32, %c0_i32_0 : i32, i32
  }
  func.func @transform_1(%arg0: i32) -> (i32, i32) {
    %c0_i32 = arith.constant 0 : i32
    %c0_i32_0 = arith.constant 0 : i32
    %c0_i32_1 = arith.constant 0 : i32
    return %c0_i32, %c0_i32_0 : i32, i32
  }
  func.func @transform_2(%arg0: i32) -> (i32, i32) {
    %c0_i32 = arith.constant 0 : i32
    %c0_i32_0 = arith.constant 0 : i32
    %c0_i32_1 = arith.constant 0 : i32
    return %c0_i32, %c0_i32_0 : i32, i32
  }
  func.func @transform_3(%arg0: i32) -> (i32, i32) {
    %c0_i32 = arith.constant 0 : i32
    %c0_i32_0 = arith.constant 0 : i32
    %c0_i32_1 = arith.constant 0 : i32
    return %c0_i32, %c0_i32_0 : i32, i32
  }
  func.func @transform_4(%arg0: i32) -> (i32, i32) {
    %c0_i32 = arith.constant 0 : i32
    %c0_i32_0 = arith.constant 0 : i32
    %c0_i32_1 = arith.constant 0 : i32
    return %c0_i32, %c0_i32_0 : i32, i32
  }
  func.func @transform_5(%arg0: i32) -> (i32, i32) {
    %c0_i32 = arith.constant 0 : i32
    %c0_i32_0 = arith.constant 0 : i32
    %c0_i32_1 = arith.constant 0 : i32
    return %c0_i32, %c0_i32_0 : i32, i32
  }
}

</mosaic_0001>

<llo_original>
// kernel: tpu_custom_call.1
$region0: #{tpu_custom_call.1}
  #allocation0 [shape = 'u32[]', space=smem, size = 0x4, offset = 0x4, fixed_abs, tag = 'smem constant byte address 0x4 - core index']
  #allocation1 [shape = 'u32[144,128]{1,0:T(1,128)}', space=vmem, size = 0x12000, scoped, tag = 'internal scratch']
  #allocation2 [shape = 'bf16[256,384]{1,0:T(16,128)(2,1)}', space=vmem, size = 0x30000, scoped, tag = 'scratch operand']
  #allocation3 [shape = 'bf16[256,128]{1,0:T(16,128)(2,1)}', space=vmem, size = 0x10000, scoped, tag = 'scratch operand']
  #allocation4 [shape = 'f32[128,128]{1,0:T(8,128)}', space=vmem, size = 0x10000, scoped, tag = 'scratch operand']
  %s0 = inlined_call_operand.hbm [shape: f32[256,128], index: 0, kind: input, shape index: {}]
  %s1 = inlined_call_operand.hbm [shape: bf16[128,384], index: 1, kind: input, shape index: {}]
  %s2 = inlined_call_operand.hbm [shape: bf16[128,128], index: 2, kind: input, shape index: {}]
  %s3 = inlined_call_operand.hbm [shape: bf16[128,256], index: 3, kind: input, shape index: {}]
  %s4 = inlined_call_operand.hbm [shape: bf16[128,128], index: 4, kind: input, shape index: {}]
  %s5 = inlined_call_operand.hbm [shape: f32[256,128], index: 5, kind: output, shape index: {}]
  %s6 = sld [smem:[#allocation0]]
  $region50: #{tpu_custom_call.1} parent=0
    _
  %s8 = ssub.s32 1, %s6
  %s9 = scalar_select 0, %s8, %s6
  $region1: #{tpu_custom_call.1} parent=0
    #allocation5 [shape = 'u8[131072]{0}', space=vmem, size = 0x20000, scoped, tag = 'input window, operand 0, single buffered']
    #allocation6 [shape = 's32[1]{0}', space=sflag, size = 0x4, scoped, tag = 'scoped memory for tpu_custom_call.1']
    #allocation7 [shape = 's32[1]{0}', space=sflag, size = 0x4, scoped, tag = 'scoped memory for tpu_custom_call.1']
    #allocation8 [shape = 'u8[98304]{0}', space=vmem, size = 0x18000, scoped, tag = 'input window, operand 1, single buffered']
    #allocation9 [shape = 's32[1]{0}', space=sflag, size = 0x4, scoped, tag = 'scoped memory for tpu_custom_call.1']
    #allocation10 [shape = 'u8[32768]{0}', space=vmem, size = 0x8000, scoped, tag = 'input window, operand 2, single buffered']
    #allocation11 [shape = 'u8[65536]{0}', space=vmem, size = 0x10000, scoped, tag = 'input window, operand 3, single buffered']
    #allocation12 [shape = 's32[1]{0}', space=sflag, size = 0x4, scoped, tag = 'scoped memory for tpu_custom_call.1']
    #allocation13 [shape = 'u8[32768]{0}', space=vmem, size = 0x8000, scoped, tag = 'input window, operand 4, single buffered']
    #allocation14 [shape = 'u8[131072]{0}', space=vmem, size = 0x20000, scoped, tag = 'output window, operand 0, single buffered']
    %10 = vsyncpa [#allocation6], 0
    %11 = vsyncpa [#allocation9], 0
    %12 = vsyncpa [#allocation12], 0
    %13 = vsyncpa [#allocation7], 0
    // Predicated region
    $region2: #{tpu_custom_call.1} parent=1 // pred_check
      _
    $region3: #{tpu_custom_call.1} parent=1 // pred_check_branch
      %15 = sbr.rel (0) target = $region5
    $region4: #{tpu_custom_call.1} parent=1 // pred_region
      %s17 = ssub.s32 4096, 4096
      %18 = vsyncadd [#allocation6], %s17
      %s19 = sshll.u32 [#allocation5], 4
      %s20 = int_to_ptr.vmem [resolvable:$true] %s19
      %25 = dma.hbm_to_vmem [thread:$0]  %s0, 4096, %s20, [#allocation6], 128, 128, 8
    $region5: #{tpu_custom_call.1} parent=1 // pred_fallthru
      _
    // Predicated region
    $region6: #{tpu_custom_call.1} parent=1 // pred_check
      _
    $region7: #{tpu_custom_call.1} parent=1 // pred_check_branch
      %27 = sbr.rel (0) target = $region9
    $region8: #{tpu_custom_call.1} parent=1 // pred_region
      %s29 = ssub.s32 3072, 3072
      %30 = vsyncadd [#allocation9], %s29
      %s31 = sshll.u32 [#allocation8], 4
      %s32 = int_to_ptr.vmem [resolvable:$true] %s31
      %37 = dma.hbm_to_vmem [thread:$0]  %s1, 3072, %s32, [#allocation9], 192, 192, 12
    $region9: #{tpu_custom_call.1} parent=1 // pred_fallthru
      _
    // Predicated region
    $region10: #{tpu_custom_call.1} parent=1 // pred_check
      _
    $region11: #{tpu_custom_call.1} parent=1 // pred_check_branch
      %39 = sbr.rel (0) target = $region13
    $region12: #{tpu_custom_call.1} parent=1 // pred_region
      %s41 = ssub.s32 1024, 1024
      %42 = vsyncadd [#allocation9], %s41
      %s43 = sshll.u32 [#allocation10], 4
      %s44 = int_to_ptr.vmem [resolvable:$true] %s43
      %49 = dma.hbm_to_vmem [thread:$0]  %s2, 1024, %s44, [#allocation9], 64, 64, 4
    $region13: #{tpu_custom_call.1} parent=1 // pred_fallthru
      _
    // Predicated region
    $region14: #{tpu_custom_call.1} parent=1 // pred_check
      _
    $region15: #{tpu_custom_call.1} parent=1 // pred_check_branch
      %51 = sbr.rel (0) target = $region17
    $region16: #{tpu_custom_call.1} parent=1 // pred_region
      %s53 = ssub.s32 2048, 2048
      %54 = vsyncadd [#allocation12], %s53
      %s55 = sshll.u32 [#allocation11], 4
      %s56 = int_to_ptr.vmem [resolvable:$true] %s55
      %61 = dma.hbm_to_vmem [thread:$0]  %s3, 2048, %s56, [#allocation12], 128, 128, 8
    $region17: #{tpu_custom_call.1} parent=1 // pred_fallthru
      _
    // Predicated region
    $region18: #{tpu_custom_call.1} parent=1 // pred_check
      _
    $region19: #{tpu_custom_call.1} parent=1 // pred_check_branch
      %63 = sbr.rel (0) target = $region21
    $region20: #{tpu_custom_call.1} parent=1 // pred_region
      %s65 = ssub.s32 1024, 1024
      %66 = vsyncadd [#allocation12], %s65
      %s67 = sshll.u32 [#allocation13], 4
      %s68 = int_to_ptr.vmem [resolvable:$true] %s67
      %73 = dma.hbm_to_vmem [thread:$0]  %s4, 1024, %s68, [#allocation12], 64, 64, 4
    $region21: #{tpu_custom_call.1} parent=1 // pred_fallthru
      _
    // Predicated region
    $region22: #{tpu_custom_call.1} parent=1 // pred_check
      _
    $region23: #{tpu_custom_call.1} parent=1 // pred_check_branch
      %75 = sbr.rel (0) target = $region25
    $region24: #{tpu_custom_call.1} parent=1 // pred_region
      %76 = dma.done [#allocation6], 4096
    $region25: #{tpu_custom_call.1} parent=1 // pred_fallthru
      _
    // Predicated region
    $region26: #{tpu_custom_call.1} parent=1 // pred_check
      _
    $region27: #{tpu_custom_call.1} parent=1 // pred_check_branch
      %78 = sbr.rel (0) target = $region29
    $region28: #{tpu_custom_call.1} parent=1 // pred_region
      %79 = dma.done [#allocation9], 3072
    $region29: #{tpu_custom_call.1} parent=1 // pred_fallthru
      _
    // Predicated region
    $region30: #{tpu_custom_call.1} parent=1 // pred_check
      _
    $region31: #{tpu_custom_call.1} parent=1 // pred_check_branch
      %81 = sbr.rel (0) target = $region33
    $region32: #{tpu_custom_call.1} parent=1 // pred_region
      %82 = dma.done [#allocation9], 1024
    $region33: #{tpu_custom_call.1} parent=1 // pred_fallthru
      _
    // Predicated region
    $region34: #{tpu_custom_call.1} parent=1 // pred_check
      _
    $region35: #{tpu_custom_call.1} parent=1 // pred_check_branch
      %84 = sbr.rel (0) target = $region37
    $region36: #{tpu_custom_call.1} parent=1 // pred_region
      %85 = dma.done [#allocation12], 2048
    $region37: #{tpu_custom_call.1} parent=1 // pred_fallthru
      _
    // Predicated region
    $region38: #{tpu_custom_call.1} parent=1 // pred_check
      _
    $region39: #{tpu_custom_call.1} parent=1 // pred_check_branch
      %87 = sbr.rel (0) target = $region41
    $region40: #{tpu_custom_call.1} parent=1 // pred_region
      %88 = dma.done [#allocation12], 1024
    $region41: #{tpu_custom_call.1} parent=1 // pred_fallthru
      _
    %v90 = vlaneseq
    %v91 = vshrl.u32 %v90, 7
    %v92 = vadd.s32 %v91, 8
    %v93 = vadd.s32 %v91, 16
    %v94 = vadd.s32 %v91, 24
    %v95 = vadd.s32 %v91, 32
    %v96 = vadd.s32 %v91, 40
    %v97 = vadd.s32 %v91, 48
    %v98 = vadd.s32 %v91, 56
    %v99 = vadd.s32 %v91, 64
    %v100 = vadd.s32 %v91, 72
    %v101 = vadd.s32 %v91, 80
    %v102 = vadd.s32 %v91, 88
    %v103 = vadd.s32 %v91, 96
    %v104 = vadd.s32 %v91, 104
    %v105 = vadd.s32 %v91, 112
    %v106 = vadd.s32 %v91, 120
    %v107 = vlaneseq
    %v108 = vand.u32 %v107, 127
    %vm109 = vcmp.le.s32.totalorder %v108, %v91
    %vm110 = vcmp.le.s32.totalorder %v108, %v92
    %vm111 = vcmp.le.s32.totalorder %v108, %v93
    %vm112 = vcmp.le.s32.totalorder %v108, %v94
    %vm113 = vcmp.le.s32.totalorder %v108, %v95
    %vm114 = vcmp.le.s32.totalorder %v108, %v96
    %vm115 = vcmp.le.s32.totalorder %v108, %v97
    %vm116 = vcmp.le.s32.totalorder %v108, %v98
    %vm117 = vcmp.le.s32.totalorder %v108, %v99
    %vm118 = vcmp.le.s32.totalorder %v108, %v100
    %vm119 = vcmp.le.s32.totalorder %v108, %v101
    %vm120 = vcmp.le.s32.totalorder %v108, %v102
    %vm121 = vcmp.le.s32.totalorder %v108, %v103
    %vm122 = vcmp.le.s32.totalorder %v108, %v104
    %vm123 = vcmp.le.s32.totalorder %v108, %v105
    %vm124 = vcmp.le.s32.totalorder %v108, %v106
    %v125 = vsel %vm109, 0.0, -1e+09
    %v126 = vsel %vm110, 0.0, -1e+09
    %v127 = vsel %vm111, 0.0, -1e+09
    %v128 = vsel %vm112, 0.0, -1e+09
    %v129 = vsel %vm113, 0.0, -1e+09
    %v130 = vsel %vm114, 0.0, -1e+09
    %v131 = vsel %vm115, 0.0, -1e+09
    %v132 = vsel %vm116, 0.0, -1e+09
    %v133 = vsel %vm117, 0.0, -1e+09
    %v134 = vsel %vm118, 0.0, -1e+09
    %v135 = vsel %vm119, 0.0, -1e+09
    %v136 = vsel %vm120, 0.0, -1e+09
    %v137 = vsel %vm121, 0.0, -1e+09
    %v138 = vsel %vm122, 0.0, -1e+09
    %v139 = vsel %vm123, 0.0, -1e+09
    %v140 = vsel %vm124, 0.0, -1e+09
    %141 = vst [vmem:[#allocation4] sm:$0xff] %v125
    %142 = vst [vmem:[#allocation4 + $0x8] sm:$0xff] %v126
    %143 = vst [vmem:[#allocation4 + $0x10] sm:$0xff] %v127
    %144 = vst [vmem:[#allocation4 + $0x18] sm:$0xff] %v128
    %145 = vst [vmem:[#allocation4 + $0x20] sm:$0xff] %v129
    %146 = vst [vmem:[#allocation4 + $0x28] sm:$0xff] %v130
    %147 = vst [vmem:[#allocation4 + $0x30] sm:$0xff] %v131
    %148 = vst [vmem:[#allocation4 + $0x38] sm:$0xff] %v132
    %149 = vst [vmem:[#allocation4 + $0x40] sm:$0xff] %v133
    %150 = vst [vmem:[#allocation4 + $0x48] sm:$0xff] %v134
    %151 = vst [vmem:[#allocation4 + $0x50] sm:$0xff] %v135
    %152 = vst [vmem:[#allocation4 + $0x58] sm:$0xff] %v136
    %153 = vst [vmem:[#allocation4 + $0x60] sm:$0xff] %v137
    %154 = vst [vmem:[#allocation4 + $0x68] sm:$0xff] %v138
    %155 = vst [vmem:[#allocation4 + $0x70] sm:$0xff] %v139
    %156 = vst [vmem:[#allocation4 + $0x78] sm:$0xff] %v140
    %v157 = vld [vmem:[#allocation5] sm:$0xff]
    %v158 = vld [vmem:[#allocation5 + $0x8] sm:$0xff]
    %v159 = vld [vmem:[#allocation5 + $0x10] sm:$0xff]
    %v160 = vld [vmem:[#allocation5 + $0x18] sm:$0xff]
    %v161 = vld [vmem:[#allocation5 + $0x20] sm:$0xff]
    %v162 = vld [vmem:[#allocation5 + $0x28] sm:$0xff]
    %v163 = vld [vmem:[#allocation5 + $0x30] sm:$0xff]
    %v164 = vld [vmem:[#allocation5 + $0x38] sm:$0xff]
    %v165 = vld [vmem:[#allocation5 + $0x40] sm:$0xff]
    %v166 = vld [vmem:[#allocation5 + $0x48] sm:$0xff]
    %v167 = vld [vmem:[#allocation5 + $0x50] sm:$0xff]
    %v168 = vld [vmem:[#allocation5 + $0x58] sm:$0xff]
    %v169 = vld [vmem:[#allocation5 + $0x60] sm:$0xff]
    %v170 = vld [vmem:[#allocation5 + $0x68] sm:$0xff]
    %v171 = vld [vmem:[#allocation5 + $0x70] sm:$0xff]
    %v172 = vld [vmem:[#allocation5 + $0x78] sm:$0xff]
    %v173 = vld [vmem:[#allocation5 + $0x80] sm:$0xff]
    %v174 = vld [vmem:[#allocation5 + $0x88] sm:$0xff]
    %v175 = vld [vmem:[#allocation5 + $0x90] sm:$0xff]
    %v176 = vld [vmem:[#allocation5 + $0x98] sm:$0xff]
    %v177 = vld [vmem:[#allocation5 + $0xa0] sm:$0xff]
    %v178 = vld [vmem:[#allocation5 + $0xa8] sm:$0xff]
    %v179 = vld [vmem:[#allocation5 + $0xb0] sm:$0xff]
    %v180 = vld [vmem:[#allocation5 + $0xb8] sm:$0xff]
    %v181 = vld [vmem:[#allocation5 + $0xc0] sm:$0xff]
    %v182 = vld [vmem:[#allocation5 + $0xc8] sm:$0xff]
    %v183 = vld [vmem:[#allocation5 + $0xd0] sm:$0xff]
    %v184 = vld [vmem:[#allocation5 + $0xd8] sm:$0xff]
    %v185 = vld [vmem:[#allocation5 + $0xe0] sm:$0xff]
    %v186 = vld [vmem:[#allocation5 + $0xe8] sm:$0xff]
    %v187 = vld [vmem:[#allocation5 + $0xf0] sm:$0xff]
    %v188 = vld [vmem:[#allocation5 + $0xf8] sm:$0xff]
    %v189 = vmul.f32 %v157, %v157
    %v190 = vmul.f32 %v158, %v158
    %v191 = vmul.f32 %v159, %v159
    %v192 = vmul.f32 %v160, %v160
    %v193 = vmul.f32 %v161, %v161
    %v194 = vmul.f32 %v162, %v162
    %v195 = vmul.f32 %v163, %v163
    %v196 = vmul.f32 %v164, %v164
    %v197 = vmul.f32 %v165, %v165
    %v198 = vmul.f32 %v166, %v166
    %v199 = vmul.f32 %v167, %v167
    %v200 = vmul.f32 %v168, %v168
    %v201 = vmul.f32 %v169, %v169
    %v202 = vmul.f32 %v170, %v170
    %v203 = vmul.f32 %v171, %v171
    %v204 = vmul.f32 %v172, %v172
    %v205 = vmul.f32 %v173, %v173
    %v206 = vmul.f32 %v174, %v174
    %v207 = vmul.f32 %v175, %v175
    %v208 = vmul.f32 %v176, %v176
    %v209 = vmul.f32 %v177, %v177
    %v210 = vmul.f32 %v178, %v178
    %v211 = vmul.f32 %v179, %v179
    %v212 = vmul.f32 %v180, %v180
    %v213 = vmul.f32 %v181, %v181
    %v214 = vmul.f32 %v182, %v182
    %v215 = vmul.f32 %v183, %v183
    %v216 = vmul.f32 %v184, %v184
    %v217 = vmul.f32 %v185, %v185
    %v218 = vmul.f32 %v186, %v186
    %v219 = vmul.f32 %v187, %v187
    %v220 = vmul.f32 %v188, %v188
    %221 = vadd.xlane.f32.xlu0 %v189
    %v222 = vpop.xlane.xlu0 %221
    %223 = vadd.xlane.f32.xlu0 %v190
    %v224 = vpop.xlane.xlu0 %223
    %225 = vadd.xlane.f32.xlu0 %v191
    %v226 = vpop.xlane.xlu0 %225
    %227 = vadd.xlane.f32.xlu0 %v192
    %v228 = vpop.xlane.xlu0 %227
    %229 = vadd.xlane.f32.xlu0 %v193
    %v230 = vpop.xlane.xlu0 %229
    %231 = vadd.xlane.f32.xlu0 %v194
    %v232 = vpop.xlane.xlu0 %231
    %233 = vadd.xlane.f32.xlu0 %v195
    %v234 = vpop.xlane.xlu0 %233
    %235 = vadd.xlane.f32.xlu0 %v196
    %v236 = vpop.xlane.xlu0 %235
    %237 = vadd.xlane.f32.xlu0 %v197
    %v238 = vpop.xlane.xlu0 %237
    %239 = vadd.xlane.f32.xlu0 %v198
    %v240 = vpop.xlane.xlu0 %239
    %241 = vadd.xlane.f32.xlu0 %v199
    %v242 = vpop.xlane.xlu0 %241
    %243 = vadd.xlane.f32.xlu0 %v200
    %v244 = vpop.xlane.xlu0 %243
    %245 = vadd.xlane.f32.xlu0 %v201
    %v246 = vpop.xlane.xlu0 %245
    %247 = vadd.xlane.f32.xlu0 %v202
    %v248 = vpop.xlane.xlu0 %247
    %249 = vadd.xlane.f32.xlu0 %v203
    %v250 = vpop.xlane.xlu0 %249
    %251 = vadd.xlane.f32.xlu0 %v204
    %v252 = vpop.xlane.xlu0 %251
    %253 = vadd.xlane.f32.xlu0 %v205
    %v254 = vpop.xlane.xlu0 %253
    %255 = vadd.xlane.f32.xlu0 %v206
    %v256 = vpop.xlane.xlu0 %255
    %257 = vadd.xlane.f32.xlu0 %v207
    %v258 = vpop.xlane.xlu0 %257
    %259 = vadd.xlane.f32.xlu0 %v208
    %v260 = vpop.xlane.xlu0 %259
    %261 = vadd.xlane.f32.xlu0 %v209
    %v262 = vpop.xlane.xlu0 %261
    %263 = vadd.xlane.f32.xlu0 %v210
    %v264 = vpop.xlane.xlu0 %263
    %265 = vadd.xlane.f32.xlu0 %v211
    %v266 = vpop.xlane.xlu0 %265
    %267 = vadd.xlane.f32.xlu0 %v212
    %v268 = vpop.xlane.xlu0 %267
    %269 = vadd.xlane.f32.xlu0 %v213
    %v270 = vpop.xlane.xlu0 %269
    %271 = vadd.xlane.f32.xlu0 %v214
    %v272 = vpop.xlane.xlu0 %271
    %273 = vadd.xlane.f32.xlu0 %v215
    %v274 = vpop.xlane.xlu0 %273
    %275 = vadd.xlane.f32.xlu0 %v216
    %v276 = vpop.xlane.xlu0 %275
    %277 = vadd.xlane.f32.xlu0 %v217
    %v278 = vpop.xlane.xlu0 %277
    %279 = vadd.xlane.f32.xlu0 %v218
    %v280 = vpop.xlane.xlu0 %279
    %281 = vadd.xlane.f32.xlu0 %v219
    %v282 = vpop.xlane.xlu0 %281
    %283 = vadd.xlane.f32.xlu0 %v220
    %v284 = vpop.xlane.xlu0 %283
    %v285 = vrcp.pop 128.0
    %v286 = vmul.f32 %v222, %v285
    %v287 = vmul.f32 %v224, %v285
    %v288 = vmul.f32 %v226, %v285
    %v289 = vmul.f32 %v228, %v285
    %v290 = vmul.f32 %v230, %v285
    %v291 = vmul.f32 %v232, %v285
    %v292 = vmul.f32 %v234, %v285
    %v293 = vmul.f32 %v236, %v285
    %v294 = vmul.f32 %v238, %v285
    %v295 = vmul.f32 %v240, %v285
    %v296 = vmul.f32 %v242, %v285
    %v297 = vmul.f32 %v244, %v285
    %v298 = vmul.f32 %v246, %v285
    %v299 = vmul.f32 %v248, %v285
    %v300 = vmul.f32 %v250, %v285
    %v301 = vmul.f32 %v252, %v285
    %v302 = vmul.f32 %v254, %v285
    %v303 = vmul.f32 %v256, %v285
    %v304 = vmul.f32 %v258, %v285
    %v305 = vmul.f32 %v260, %v285
    %v306 = vmul.f32 %v262, %v285
    %v307 = vmul.f32 %v264, %v285
    %v308 = vmul.f32 %v266, %v285
    %v309 = vmul.f32 %v268, %v285
    %v310 = vmul.f32 %v270, %v285
    %v311 = vmul.f32 %v272, %v285
    %v312 = vmul.f32 %v274, %v285
    %v313 = vmul.f32 %v276, %v285
    %v314 = vmul.f32 %v278, %v285
    %v315 = vmul.f32 %v280, %v285
    %v316 = vmul.f32 %v282, %v285
    %v317 = vmul.f32 %v284, %v285
    %v318 = vadd.f32 %v286, 1e-05
    %v319 = vadd.f32 %v287, 1e-05
    %v320 = vadd.f32 %v288, 1e-05
    %v321 = vadd.f32 %v289, 1e-05
    %v322 = vadd.f32 %v290, 1e-05
    %v323 = vadd.f32 %v291, 1e-05
    %v324 = vadd.f32 %v292, 1e-05
    %v325 = vadd.f32 %v293, 1e-05
    %v326 = vadd.f32 %v294, 1e-05
    %v327 = vadd.f32 %v295, 1e-05
    %v328 = vadd.f32 %v296, 1e-05
    %v329 = vadd.f32 %v297, 1e-05
    %v330 = vadd.f32 %v298, 1e-05
    %v331 = vadd.f32 %v299, 1e-05
    %v332 = vadd.f32 %v300, 1e-05
    %v333 = vadd.f32 %v301, 1e-05
    %v334 = vadd.f32 %v302, 1e-05
    %v335 = vadd.f32 %v303, 1e-05
    %v336 = vadd.f32 %v304, 1e-05
    %v337 = vadd.f32 %v305, 1e-05
    %v338 = vadd.f32 %v306, 1e-05
    %v339 = vadd.f32 %v307, 1e-05
    %v340 = vadd.f32 %v308, 1e-05
    %v341 = vadd.f32 %v309, 1e-05
    %v342 = vadd.f32 %v310, 1e-05
    %v343 = vadd.f32 %v311, 1e-05
    %v344 = vadd.f32 %v312, 1e-05
    %v345 = vadd.f32 %v313, 1e-05
    %v346 = vadd.f32 %v314, 1e-05
    %v347 = vadd.f32 %v315, 1e-05
    %v348 = vadd.f32 %v316, 1e-05
    %v349 = vadd.f32 %v317, 1e-05
    %v350 = vrsqrt.pop %v318
    %v351 = vrsqrt.pop %v319
    %v352 = vrsqrt.pop %v320
    %v353 = vrsqrt.pop %v321
    %v354 = vrsqrt.pop %v322
    %v355 = vrsqrt.pop %v323
    %v356 = vrsqrt.pop %v324
    %v357 = vrsqrt.pop %v325
    %v358 = vrsqrt.pop %v326
    %v359 = vrsqrt.pop %v327
    %v360 = vrsqrt.pop %v328
    %v361 = vrsqrt.pop %v329
    %v362 = vrsqrt.pop %v330
    %v363 = vrsqrt.pop %v331
    %v364 = vrsqrt.pop %v332
    %v365 = vrsqrt.pop %v333
    %v366 = vrsqrt.pop %v334
    %v367 = vrsqrt.pop %v335
    %v368 = vrsqrt.pop %v336
    %v369 = vrsqrt.pop %v337
    %v370 = vrsqrt.pop %v338
    %v371 = vrsqrt.pop %v339
    %v372 = vrsqrt.pop %v340
    %v373 = vrsqrt.pop %v341
    %v374 = vrsqrt.pop %v342
    %v375 = vrsqrt.pop %v343
    %v376 = vrsqrt.pop %v344
    %v377 = vrsqrt.pop %v345
    %v378 = vrsqrt.pop %v346
    %v379 = vrsqrt.pop %v347
    %v380 = vrsqrt.pop %v348
    %v381 = vrsqrt.pop %v349
    %v382 = vmul.f32 %v157, %v350
    %v383 = vmul.f32 %v158, %v351
    %v384 = vmul.f32 %v159, %v352
    %v385 = vmul.f32 %v160, %v353
    %v386 = vmul.f32 %v161, %v354
    %v387 = vmul.f32 %v162, %v355
    %v388 = vmul.f32 %v163, %v356
    %v389 = vmul.f32 %v164, %v357
    %v390 = vmul.f32 %v165, %v358
    %v391 = vmul.f32 %v166, %v359
    %v392 = vmul.f32 %v167, %v360
    %v393 = vmul.f32 %v168, %v361
    %v394 = vmul.f32 %v169, %v362
    %v395 = vmul.f32 %v170, %v363
    %v396 = vmul.f32 %v171, %v364
    %v397 = vmul.f32 %v172, %v365
    %v398 = vmul.f32 %v173, %v366
    %v399 = vmul.f32 %v174, %v367
    %v400 = vmul.f32 %v175, %v368
    %v401 = vmul.f32 %v176, %v369
    %v402 = vmul.f32 %v177, %v370
    %v403 = vmul.f32 %v178, %v371
    %v404 = vmul.f32 %v179, %v372
    %v405 = vmul.f32 %v180, %v373
    %v406 = vmul.f32 %v181, %v374
    %v407 = vmul.f32 %v182, %v375
    %v408 = vmul.f32 %v183, %v376
    %v409 = vmul.f32 %v184, %v377
    %v410 = vmul.f32 %v185, %v378
    %v411 = vmul.f32 %v186, %v379
    %v412 = vmul.f32 %v187, %v380
    %v413 = vmul.f32 %v188, %v381
    %v414 = vpack.c.bf16 %v383, %v382
    %v415 = vpack.c.bf16 %v385, %v384
    %v416 = vpack.c.bf16 %v387, %v386
    %v417 = vpack.c.bf16 %v389, %v388
    %v418 = vpack.c.bf16 %v391, %v390
    %v419 = vpack.c.bf16 %v393, %v392
    %v420 = vpack.c.bf16 %v395, %v394
    %v421 = vpack.c.bf16 %v397, %v396
    %v422 = vpack.c.bf16 %v399, %v398
    %v423 = vpack.c.bf16 %v401, %v400
    %v424 = vpack.c.bf16 %v403, %v402
    %v425 = vpack.c.bf16 %v405, %v404
    %v426 = vpack.c.bf16 %v407, %v406
    %v427 = vpack.c.bf16 %v409, %v408
    %v428 = vpack.c.bf16 %v411, %v410
    %v429 = vpack.c.bf16 %v413, %v412
    %v430 = vld [vmem:[#allocation8] sm:$0xff]
    %v431 = vld [vmem:[#allocation8 + $0x8] sm:$0xf]
    %v432 = vld [vmem:[#allocation8 + $0xc] sm:$0xff]
    %v433 = vld [vmem:[#allocation8 + $0x14] sm:$0xf]
    %v434 = vld [vmem:[#allocation8 + $0x18] sm:$0xff]
    %v435 = vld [vmem:[#allocation8 + $0x20] sm:$0xf]
    %v436 = vld [vmem:[#allocation8 + $0x24] sm:$0xff]
    %v437 = vld [vmem:[#allocation8 + $0x2c] sm:$0xf]
    %v438 = vld [vmem:[#allocation8 + $0x30] sm:$0xff]
    %v439 = vld [vmem:[#allocation8 + $0x38] sm:$0xf]
    %v440 = vld [vmem:[#allocation8 + $0x3c] sm:$0xff]
    %v441 = vld [vmem:[#allocation8 + $0x44] sm:$0xf]
    %v442 = vld [vmem:[#allocation8 + $0x48] sm:$0xff]
    %v443 = vld [vmem:[#allocation8 + $0x50] sm:$0xf]
    %v444 = vld [vmem:[#allocation8 + $0x54] sm:$0xff]
    %v445 = vld [vmem:[#allocation8 + $0x5c] sm:$0xf]
    %v446 = vld [vmem:[#allocation8 + $0x60] sm:$0xff]
    %v447 = vld [vmem:[#allocation8 + $0x68] sm:$0xf]
    %v448 = vld [vmem:[#allocation8 + $0x6c] sm:$0xff]
    %v449 = vld [vmem:[#allocation8 + $0x74] sm:$0xf]
    %v450 = vld [vmem:[#allocation8 + $0x78] sm:$0xff]
    %v451 = vld [vmem:[#allocation8 + $0x80] sm:$0xf]
    %v452 = vld [vmem:[#allocation8 + $0x84] sm:$0xff]
    %v453 = vld [vmem:[#allocation8 + $0x8c] sm:$0xf]
    %v454 = vld [vmem:[#allocation8 + $0x90] sm:$0xff]
    %v455 = vld [vmem:[#allocation8 + $0x98] sm:$0xf]
    %v456 = vld [vmem:[#allocation8 + $0x9c] sm:$0xff]
    %v457 = vld [vmem:[#allocation8 + $0xa4] sm:$0xf]
    %v458 = vld [vmem:[#allocation8 + $0xa8] sm:$0xff]
    %v459 = vld [vmem:[#allocation8 + $0xb0] sm:$0xf]
    %v460 = vld [vmem:[#allocation8 + $0xb4] sm:$0xff]
    %v461 = vld [vmem:[#allocation8 + $0xbc] sm:$0xf]
    %v494 = vunpack.c.l.b16 %v430
    %v495 = vunpack.c.h.b16 %v430
    %v496 = vunpack.c.l.b16 %v431
    %v497 = vunpack.c.l.b16 %v432
    %v498 = vunpack.c.h.b16 %v432
    %v499 = vunpack.c.l.b16 %v433
    %v500 = vunpack.c.l.b16 %v434
    %v501 = vunpack.c.h.b16 %v434
    %v502 = vunpack.c.l.b16 %v435
    %v503 = vunpack.c.l.b16 %v436
    %v504 = vunpack.c.h.b16 %v436
    %v505 = vunpack.c.l.b16 %v437
    %v506 = vunpack.c.l.b16 %v438
    %v507 = vunpack.c.h.b16 %v438
    %v508 = vunpack.c.l.b16 %v439
    %v509 = vunpack.c.l.b16 %v440
    %v510 = vunpack.c.h.b16 %v440
    %v511 = vunpack.c.l.b16 %v441
    %v512 = vunpack.c.l.b16 %v442
    %v513 = vunpack.c.h.b16 %v442
    %v514 = vunpack.c.l.b16 %v443
    %v515 = vunpack.c.l.b16 %v444
    %v516 = vunpack.c.h.b16 %v444
    %v517 = vunpack.c.l.b16 %v445
    %v518 = vunpack.c.l.b16 %v446
    %v519 = vunpack.c.h.b16 %v446
    %v520 = vunpack.c.l.b16 %v447
    %v521 = vunpack.c.l.b16 %v448
    %v522 = vunpack.c.h.b16 %v448
    %v523 = vunpack.c.l.b16 %v449
    %v524 = vunpack.c.l.b16 %v450
    %v525 = vunpack.c.h.b16 %v450
    %v526 = vunpack.c.l.b16 %v451
    %v527 = vunpack.c.l.b16 %v452
    %v528 = vunpack.c.h.b16 %v452
    %v529 = vunpack.c.l.b16 %v453
    %v530 = vunpack.c.l.b16 %v454
    %v531 = vunpack.c.h.b16 %v454
    %v532 = vunpack.c.l.b16 %v455
    %v533 = vunpack.c.l.b16 %v456
    %v534 = vunpack.c.h.b16 %v456
    %v535 = vunpack.c.l.b16 %v457
    %v536 = vunpack.c.l.b16 %v458
    %v537 = vunpack.c.h.b16 %v458
    %v538 = vunpack.c.l.b16 %v459
    %v539 = vunpack.c.l.b16 %v460
    %v540 = vunpack.c.h.b16 %v460
    %v541 = vunpack.c.l.b16 %v461
    %v542 = vpack.c.b16 %v497, %v494
    %v543 = vpack.c.b16 %v498, %v495
    %v544 = vpack.c.b16 %v499, %v496
    %v545 = vpack.c.b16 %v503, %v500
    %v546 = vpack.c.b16 %v504, %v501
    %v547 = vpack.c.b16 %v505, %v502
    %v548 = vpack.c.b16 %v509, %v506
    %v549 = vpack.c.b16 %v510, %v507
    %v550 = vpack.c.b16 %v511, %v508
    %v551 = vpack.c.b16 %v515, %v512
    %v552 = vpack.c.b16 %v516, %v513
    %v553 = vpack.c.b16 %v517, %v514
    %v554 = vpack.c.b16 %v521, %v518
    %v555 = vpack.c.b16 %v522, %v519
    %v556 = vpack.c.b16 %v523, %v520
    %v557 = vpack.c.b16 %v527, %v524
    %v558 = vpack.c.b16 %v528, %v525
    %v559 = vpack.c.b16 %v529, %v526
    %v560 = vpack.c.b16 %v533, %v530
    %v561 = vpack.c.b16 %v534, %v531
    %v562 = vpack.c.b16 %v535, %v532
    %v563 = vpack.c.b16 %v539, %v536
    %v564 = vpack.c.b16 %v540, %v537
    %v565 = vpack.c.b16 %v541, %v538
    %590 = vmatprep.subr.bf16.mxu0 %v543
    %591 = vmatpush1.bf16.msra.mxu0 %v542
    %592 = vmatprep.subr.bf16.mxu0 %v546
    %593 = vmatpush1.bf16.msra.mxu0 %v545
    %594 = vmatprep.subr.bf16.mxu0 %v549
    %595 = vmatpush1.bf16.msra.mxu0 %v548
    %596 = vmatprep.subr.bf16.mxu0 %v552
    %597 = vmatpush1.bf16.msra.mxu0 %v551
    %598 = vmatprep.subr.bf16.mxu0 %v555
    %599 = vmatpush1.bf16.msra.mxu0 %v554
    %600 = vmatprep.subr.bf16.mxu0 %v558
    %601 = vmatpush1.bf16.msra.mxu0 %v557
    %602 = vmatprep.subr.bf16.mxu0 %v561
    %603 = vmatpush1.bf16.msra.mxu0 %v560
    %604 = vmatprep.subr.bf16.mxu0 %v564
    %605 = vmatpush1.bf16.msra.mxu0 %v563
    %606 = vmatprep.subr.bf16.mxu0 0
    %607 = vmatpush1.bf16.msra.mxu0 0
    %608 = vmatprep.subr.bf16.mxu0 0
    %609 = vmatpush1.bf16.msra.mxu0 0
    %610 = vmatprep.subr.bf16.mxu0 0
    %611 = vmatpush1.bf16.msra.mxu0 0
    %612 = vmatprep.subr.bf16.mxu0 0
    %613 = vmatpush1.bf16.msra.mxu0 0
    %614 = vmatprep.subr.bf16.mxu0 0
    %615 = vmatpush1.bf16.msra.mxu0 0
    %616 = vmatprep.subr.bf16.mxu0 0
    %617 = vmatpush1.bf16.msra.mxu0 0
    %618 = vmatprep.subr.bf16.mxu0 0
    %619 = vmatpush1.bf16.msra.mxu0 0
    %620 = vmatprep.subr.bf16.mxu0 0
    %621 = vmatpush1.bf16.msra.mxu0 0
    %622 = vmatprep.mubr.bf16.mxu0 0
    %623 = vmatmul.mubr.bf16.gmra.mrb[0].mxu0 %v414
    %v624 = vpop.f32.mrb[0].mxu0
    %v625 = vadd.f32 0.0, %v624
    %v626 = vpop.f32.mrb[0].mxu0
    %v627 = vadd.f32 0.0, %v626
    %v628 = vpop.f32.mrb[0].mxu0
    %v629 = vadd.f32 0.0, %v628
    %v630 = vpop.f32.mrb[0].mxu0
    %v631 = vadd.f32 0.0, %v630
    %632 = vmatprep.mubr.bf16.mxu0 0
    %633 = vmatmul.mubr.bf16.gmra.mrb[0].mxu0 %v415
    %v634 = vpop.f32.mrb[0].mxu0
    %v635 = vadd.f32 0.0, %v634
    %v636 = vpop.f32.mrb[0].mxu0
    %v637 = vadd.f32 0.0, %v636
    %v638 = vpop.f32.mrb[0].mxu0
    %v639 = vadd.f32 0.0, %v638
    %v640 = vpop.f32.mrb[0].mxu0
    %v641 = vadd.f32 0.0, %v640
    %642 = vmatprep.mubr.bf16.mxu0 0
    %643 = vmatmul.mubr.bf16.gmra.mrb[0].mxu0 %v416
    %v644 = vpop.f32.mrb[0].mxu0
    %v645 = vadd.f32 0.0, %v644
    %v646 = vpop.f32.mrb[0].mxu0
    %v647 = vadd.f32 0.0, %v646
    %v648 = vpop.f32.mrb[0].mxu0
    %v649 = vadd.f32 0.0, %v648
    %v650 = vpop.f32.mrb[0].mxu0
    %v651 = vadd.f32 0.0, %v650
    %652 = vmatprep.mubr.bf16.mxu0 0
    %653 = vmatmul.mubr.bf16.gmra.mrb[0].mxu0 %v417
    %v654 = vpop.f32.mrb[0].mxu0
    %v655 = vadd.f32 0.0, %v654
    %v656 = vpop.f32.mrb[0].mxu0
    %v657 = vadd.f32 0.0, %v656
    %v658 = vpop.f32.mrb[0].mxu0
    %v659 = vadd.f32 0.0, %v658
    %v660 = vpop.f32.mrb[0].mxu0
    %v661 = vadd.f32 0.0, %v660
    %662 = vmatprep.mubr.bf16.mxu0 0
    %663 = vmatmul.mubr.bf16.gmra.mrb[0].mxu0 %v418
    %v664 = vpop.f32.mrb[0].mxu0
    %v665 = vadd.f32 0.0, %v664
    %v666 = vpop.f32.mrb[0].mxu0
    %v667 = vadd.f32 0.0, %v666
    %v668 = vpop.f32.mrb[0].mxu0
    %v669 = vadd.f32 0.0, %v668
    %v670 = vpop.f32.mrb[0].mxu0
    %v671 = vadd.f32 0.0, %v670
    %672 = vmatprep.mubr.bf16.mxu0 0
    %673 = vmatmul.mubr.bf16.gmra.mrb[0].mxu0 %v419
    %v674 = vpop.f32.mrb[0].mxu0
    %v675 = vadd.f32 0.0, %v674
    %v676 = vpop.f32.mrb[0].mxu0
    %v677 = vadd.f32 0.0, %v676
    %v678 = vpop.f32.mrb[0].mxu0
    %v679 = vadd.f32 0.0, %v678
    %v680 = vpop.f32.mrb[0].mxu0
    %v681 = vadd.f32 0.0, %v680
    %682 = vmatprep.mubr.bf16.mxu0 0
    %683 = vmatmul.mubr.bf16.gmra.mrb[0].mxu0 %v420
    %v684 = vpop.f32.mrb[0].mxu0
    %v685 = vadd.f32 0.0, %v684
    %v686 = vpop.f32.mrb[0].mxu0
    %v687 = vadd.f32 0.0, %v686
    %v688 = vpop.f32.mrb[0].mxu0
    %v689 = vadd.f32 0.0, %v688
    %v690 = vpop.f32.mrb[0].mxu0
    %v691 = vadd.f32 0.0, %v690
    %692 = vmatprep.mubr.bf16.mxu0 0
    %693 = vmatmul.mubr.bf16.gmra.mrb[0].mxu0 %v421
    %v694 = vpop.f32.mrb[0].mxu0
    %v695 = vadd.f32 0.0, %v694
    %v696 = vpop.f32.mrb[0].mxu0
    %v697 = vadd.f32 0.0, %v696
    %v698 = vpop.f32.mrb[0].mxu0
    %v699 = vadd.f32 0.0, %v698
    %v700 = vpop.f32.mrb[0].mxu0
    %v701 = vadd.f32 0.0, %v700
    %702 = vmatprep.mubr.bf16.mxu0 0
    %703 = vmatmul.mubr.bf16.gmra.mrb[0].mxu0 %v422
    %v704 = vpop.f32.mrb[0].mxu0
    %v705 = vadd.f32 0.0, %v704
    %v706 = vpop.f32.mrb[0].mxu0
    %v707 = vadd.f32 0.0, %v706
    %v708 = vpop.f32.mrb[0].mxu0
    %v709 = vadd.f32 0.0, %v708
    %v710 = vpop.f32.mrb[0].mxu0
    %v711 = vadd.f32 0.0, %v710
    %712 = vmatprep.mubr.bf16.mxu0 0
    %713 = vmatmul.mubr.bf16.gmra.mrb[0].mxu0 %v423
    %v714 = vpop.f32.mrb[0].mxu0
    %v715 = vadd.f32 0.0, %v714
    %v716 = vpop.f32.mrb[0].mxu0
    %v717 = vadd.f32 0.0, %v716
    %v718 = vpop.f32.mrb[0].mxu0
    %v719 = vadd.f32 0.0, %v718
    %v720 = vpop.f32.mrb[0].mxu0
    %v721 = vadd.f32 0.0, %v720
    %722 = vmatprep.mubr.bf16.mxu0 0
    %723 = vmatmul.mubr.bf16.gmra.mrb[0].mxu0 %v424
    %v724 = vpop.f32.mrb[0].mxu0
    %v725 = vadd.f32 0.0, %v724
    %v726 = vpop.f32.mrb[0].mxu0
    %v727 = vadd.f32 0.0, %v726
    %v728 = vpop.f32.mrb[0].mxu0
    %v729 = vadd.f32 0.0, %v728
    %v730 = vpop.f32.mrb[0].mxu0
    %v731 = vadd.f32 0.0, %v730
    %732 = vmatprep.mubr.bf16.mxu0 0
    %733 = vmatmul.mubr.bf16.gmra.mrb[0].mxu0 %v425
    %v734 = vpop.f32.mrb[0].mxu0
    %v735 = vadd.f32 0.0, %v734
    %v736 = vpop.f32.mrb[0].mxu0
    %v737 = vadd.f32 0.0, %v736
    %v738 = vpop.f32.mrb[0].mxu0
    %v739 = vadd.f32 0.0, %v738
    %v740 = vpop.f32.mrb[0].mxu0
    %v741 = vadd.f32 0.0, %v740
    %742 = vmatprep.mubr.bf16.mxu0 0
    %743 = vmatmul.mubr.bf16.gmra.mrb[0].mxu0 %v426
    %v744 = vpop.f32.mrb[0].mxu0
    %v745 = vadd.f32 0.0, %v744
    %v746 = vpop.f32.mrb[0].mxu0
    %v747 = vadd.f32 0.0, %v746
    %v748 = vpop.f32.mrb[0].mxu0
    %v749 = vadd.f32 0.0, %v748
    %v750 = vpop.f32.mrb[0].mxu0
    %v751 = vadd.f32 0.0, %v750
    %752 = vmatprep.mubr.bf16.mxu0 0
    %753 = vmatmul.mubr.bf16.gmra.mrb[0].mxu0 %v427
    %v754 = vpop.f32.mrb[0].mxu0
    %v755 = vadd.f32 0.0, %v754
    %v756 = vpop.f32.mrb[0].mxu0
    %v757 = vadd.f32 0.0, %v756
    %v758 = vpop.f32.mrb[0].mxu0
    %v759 = vadd.f32 0.0, %v758
    %v760 = vpop.f32.mrb[0].mxu0
    %v761 = vadd.f32 0.0, %v760
    %762 = vmatprep.mubr.bf16.mxu0 0
    %763 = vmatmul.mubr.bf16.gmra.mrb[0].mxu0 %v428
    %v764 = vpop.f32.mrb[0].mxu0
    %v765 = vadd.f32 0.0, %v764
    %v766 = vpop.f32.mrb[0].mxu0
    %v767 = vadd.f32 0.0, %v766
    %v768 = vpop.f32.mrb[0].mxu0
    %v769 = vadd.f32 0.0, %v768
    %v770 = vpop.f32.mrb[0].mxu0
    %v771 = vadd.f32 0.0, %v770
    %772 = vmatprep.mubr.bf16.mxu0 0
    %773 = vmatmul.mubr.bf16.gmra.mrb[0].mxu0 %v429
    %v774 = vpop.f32.mrb[0].mxu0
    %v775 = vadd.f32 0.0, %v774
    %v776 = vpop.f32.mrb[0].mxu0
    %v777 = vadd.f32 0.0, %v776
    %v778 = vpop.f32.mrb[0].mxu0
    %v779 = vadd.f32 0.0, %v778
    %v780 = vpop.f32.mrb[0].mxu0
    %v781 = vadd.f32 0.0, %v780
    %782 = vdwg.mxu0
    %783 = vmatprep.subr.bf16.mxu0 0
    %784 = vmatpush1.bf16.msra.mxu0 %v544
    %785 = vmatprep.subr.bf16.mxu0 0
    %786 = vmatpush1.bf16.msra.mxu0 %v547
    %787 = vmatprep.subr.bf16.mxu0 0
    %788 = vmatpush1.bf16.msra.mxu0 %v550
    %789 = vmatprep.subr.bf16.mxu0 0
    %790 = vmatpush1.bf16.msra.mxu0 %v553
    %791 = vmatprep.subr.bf16.mxu0 0
    %792 = vmatpush1.bf16.msra.mxu0 %v556
    %793 = vmatprep.subr.bf16.mxu0 0
    %794 = vmatpush1.bf16.msra.mxu0 %v559
    %795 = vmatprep.subr.bf16.mxu0 0
    %796 = vmatpush1.bf16.msra.mxu0 %v562
    %797 = vmatprep.subr.bf16.mxu0 0
    %798 = vmatpush1.bf16.msra.mxu0 %v565
    %799 = vmatprep.subr.bf16.mxu0 0
    %800 = vmatpush1.bf16.msra.mxu0 0
    %801 = vmatprep.subr.bf16.mxu0 0
    %802 = vmatpush1.bf16.msra.mxu0 0
    %803 = vmatprep.subr.bf16.mxu0 0
    %804 = vmatpush1.bf16.msra.mxu0 0
    %805 = vmatprep.subr.bf16.mxu0 0
    %806 = vmatpush1.bf16.msra.mxu0 0
    %807 = vmatprep.subr.bf16.mxu0 0
    %808 = vmatpush1.bf16.msra.mxu0 0
    %809 = vmatprep.subr.bf16.mxu0 0
    %810 = vmatpush1.bf16.msra.mxu0 0
    %811 = vmatprep.subr.bf16.mxu0 0
    %812 = vmatpush1.bf16.msra.mxu0 0
    %813 = vmatprep.subr.bf16.mxu0 0
    %814 = vmatpush1.bf16.msra.mxu0 0
    %815 = vmatprep.mubr.bf16.mxu0 0
    %816 = vmatmul.mubr.bf16.gmra.mrb[0].mxu0 %v414
    %v817 = vpop.f32.mrb[0].mxu0
    %v818 = vadd.f32 0.0, %v817
    %v819 = vpop.f32.mrb[0].mxu0
    %v820 = vpop.f32.mrb[0].mxu0
    %v821 = vadd.f32 0.0, %v820
    %v822 = vpop.f32.mrb[0].mxu0
    %823 = vmatprep.mubr.bf16.mxu0 0
    %824 = vmatmul.mubr.bf16.gmra.mrb[0].mxu0 %v415
    %v825 = vpop.f32.mrb[0].mxu0
    %v826 = vadd.f32 0.0, %v825
    %v827 = vpop.f32.mrb[0].mxu0
    %v828 = vpop.f32.mrb[0].mxu0
    %v829 = vadd.f32 0.0, %v828
    %v830 = vpop.f32.mrb[0].mxu0
    %831 = vmatprep.mubr.bf16.mxu0 0
    %832 = vmatmul.mubr.bf16.gmra.mrb[0].mxu0 %v416
    %v833 = vpop.f32.mrb[0].mxu0
    %v834 = vadd.f32 0.0, %v833
    %v835 = vpop.f32.mrb[0].mxu0
    %v836 = vpop.f32.mrb[0].mxu0
    %v837 = vadd.f32 0.0, %v836
    %v838 = vpop.f32.mrb[0].mxu0
    %839 = vmatprep.mubr.bf16.mxu0 0
    %840 = vmatmul.mubr.bf16.gmra.mrb[0].mxu0 %v417
    %v841 = vpop.f32.mrb[0].mxu0
    %v842 = vadd.f32 0.0, %v841
    %v843 = vpop.f32.mrb[0].mxu0
    %v844 = vpop.f32.mrb[0].mxu0
    %v845 = vadd.f32 0.0, %v844
    %v846 = vpop.f32.mrb[0].mxu0
    %847 = vmatprep.mubr.bf16.mxu0 0
    %848 = vmatmul.mubr.bf16.gmra.mrb[0].mxu0 %v418
    %v849 = vpop.f32.mrb[0].mxu0
    %v850 = vadd.f32 0.0, %v849
    %v851 = vpop.f32.mrb[0].mxu0
    %v852 = vpop.f32.mrb[0].mxu0
    %v853 = vadd.f32 0.0, %v852
    %v854 = vpop.f32.mrb[0].mxu0
    %855 = vmatprep.mubr.bf16.mxu0 0
    %856 = vmatmul.mubr.bf16.gmra.mrb[0].mxu0 %v419
    %v857 = vpop.f32.mrb[0].mxu0
    %v858 = vadd.f32 0.0, %v857
    %v859 = vpop.f32.mrb[0].mxu0
    %v860 = vpop.f32.mrb[0].mxu0
    %v861 = vadd.f32 0.0, %v860
    %v862 = vpop.f32.mrb[0].mxu0
    %863 = vmatprep.mubr.bf16.mxu0 0
    %864 = vmatmul.mubr.bf16.gmra.mrb[0].mxu0 %v420
    %v865 = vpop.f32.mrb[0].mxu0
    %v866 = vadd.f32 0.0, %v865
    %v867 = vpop.f32.mrb[0].mxu0
    %v868 = vpop.f32.mrb[0].mxu0
    %v869 = vadd.f32 0.0, %v868
    %v870 = vpop.f32.mrb[0].mxu0
    %871 = vmatprep.mubr.bf16.mxu0 0
    %872 = vmatmul.mubr.bf16.gmra.mrb[0].mxu0 %v421
    %v873 = vpop.f32.mrb[0].mxu0
    %v874 = vadd.f32 0.0, %v873
    %v875 = vpop.f32.mrb[0].mxu0
    %v876 = vpop.f32.mrb[0].mxu0
    %v877 = vadd.f32 0.0, %v876
    %v878 = vpop.f32.mrb[0].mxu0
    %879 = vmatprep.mubr.bf16.mxu0 0
    %880 = vmatmul.mubr.bf16.gmra.mrb[0].mxu0 %v422
    %v881 = vpop.f32.mrb[0].mxu0
    %v882 = vadd.f32 0.0, %v881
    %v883 = vpop.f32.mrb[0].mxu0
    %v884 = vpop.f32.mrb[0].mxu0
    %v885 = vadd.f32 0.0, %v884
    %v886 = vpop.f32.mrb[0].mxu0
    %887 = vmatprep.mubr.bf16.mxu0 0
    %888 = vmatmul.mubr.bf16.gmra.mrb[0].mxu0 %v423
    %v889 = vpop.f32.mrb[0].mxu0
    %v890 = vadd.f32 0.0, %v889
    %v891 = vpop.f32.mrb[0].mxu0
    %v892 = vpop.f32.mrb[0].mxu0
    %v893 = vadd.f32 0.0, %v892
    %v894 = vpop.f32.mrb[0].mxu0
    %895 = vmatprep.mubr.bf16.mxu0 0
    %896 = vmatmul.mubr.bf16.gmra.mrb[0].mxu0 %v424
    %v897 = vpop.f32.mrb[0].mxu0
    %v898 = vadd.f32 0.0, %v897
    %v899 = vpop.f32.mrb[0].mxu0
    %v900 = vpop.f32.mrb[0].mxu0
    %v901 = vadd.f32 0.0, %v900
    %v902 = vpop.f32.mrb[0].mxu0
    %903 = vmatprep.mubr.bf16.mxu0 0
    %904 = vmatmul.mubr.bf16.gmra.mrb[0].mxu0 %v425
    %v905 = vpop.f32.mrb[0].mxu0
    %v906 = vadd.f32 0.0, %v905
    %v907 = vpop.f32.mrb[0].mxu0
    %v908 = vpop.f32.mrb[0].mxu0
    %v909 = vadd.f32 0.0, %v908
    %v910 = vpop.f32.mrb[0].mxu0
    %911 = vmatprep.mubr.bf16.mxu0 0
    %912 = vmatmul.mubr.bf16.gmra.mrb[0].mxu0 %v426
    %v913 = vpop.f32.mrb[0].mxu0
    %v914 = vadd.f32 0.0, %v913
    %v915 = vpop.f32.mrb[0].mxu0
    %v916 = vpop.f32.mrb[0].mxu0
    %v917 = vadd.f32 0.0, %v916
    %v918 = vpop.f32.mrb[0].mxu0
    %919 = vmatprep.mubr.bf16.mxu0 0
    %920 = vmatmul.mubr.bf16.gmra.mrb[0].mxu0 %v427
    %v921 = vpop.f32.mrb[0].mxu0
    %v922 = vadd.f32 0.0, %v921
    %v923 = vpop.f32.mrb[0].mxu0
    %v924 = vpop.f32.mrb[0].mxu0
    %v925 = vadd.f32 0.0, %v924
    %v926 = vpop.f32.mrb[0].mxu0
    %927 = vmatprep.mubr.bf16.mxu0 0
    %928 = vmatmul.mubr.bf16.gmra.mrb[0].mxu0 %v428
    %v929 = vpop.f32.mrb[0].mxu0
    %v930 = vadd.f32 0.0, %v929
    %v931 = vpop.f32.mrb[0].mxu0
    %v932 = vpop.f32.mrb[0].mxu0
    %v933 = vadd.f32 0.0, %v932
    %v934 = vpop.f32.mrb[0].mxu0
    %935 = vmatprep.mubr.bf16.mxu0 0
    %936 = vmatmul.mubr.bf16.gmra.mrb[0].mxu0 %v429
    %v937 = vpop.f32.mrb[0].mxu0
    %v938 = vadd.f32 0.0, %v937
    %v939 = vpop.f32.mrb[0].mxu0
    %v940 = vpop.f32.mrb[0].mxu0
    %v941 = vadd.f32 0.0, %v940
    %v942 = vpop.f32.mrb[0].mxu0
    %943 = vdwg.mxu0
    %v944 = vpack.c.bf16 %v629, %v625
    %v945 = vpack.c.bf16 %v631, %v627
    %v946 = vpack.c.bf16 %v821, %v818
    %v947 = vpack.c.bf16 %v639, %v635
    %v948 = vpack.c.bf16 %v641, %v637
    %v949 = vpack.c.bf16 %v829, %v826
    %v950 = vpack.c.bf16 %v649, %v645
    %v951 = vpack.c.bf16 %v651, %v647
    %v952 = vpack.c.bf16 %v837, %v834
    %v953 = vpack.c.bf16 %v659, %v655
    %v954 = vpack.c.bf16 %v661, %v657
    %v955 = vpack.c.bf16 %v845, %v842
    %v956 = vpack.c.bf16 %v669, %v665
    %v957 = vpack.c.bf16 %v671, %v667
    %v958 = vpack.c.bf16 %v853, %v850
    %v959 = vpack.c.bf16 %v679, %v675
    %v960 = vpack.c.bf16 %v681, %v677
    %v961 = vpack.c.bf16 %v861, %v858
    %v962 = vpack.c.bf16 %v689, %v685
    %v963 = vpack.c.bf16 %v691, %v687
    %v964 = vpack.c.bf16 %v869, %v866
    %v965 = vpack.c.bf16 %v699, %v695
    %v966 = vpack.c.bf16 %v701, %v697
    %v967 = vpack.c.bf16 %v877, %v874
    %v968 = vpack.c.bf16 %v709, %v705
    %v969 = vpack.c.bf16 %v711, %v707
    %v970 = vpack.c.bf16 %v885, %v882
    %v971 = vpack.c.bf16 %v719, %v715
    %v972 = vpack.c.bf16 %v721, %v717
    %v973 = vpack.c.bf16 %v893, %v890
    %v974 = vpack.c.bf16 %v729, %v725
    %v975 = vpack.c.bf16 %v731, %v727
    %v976 = vpack.c.bf16 %v901, %v898
    %v977 = vpack.c.bf16 %v739, %v735
    %v978 = vpack.c.bf16 %v741, %v737
    %v979 = vpack.c.bf16 %v909, %v906
    %v980 = vpack.c.bf16 %v749, %v745
    %v981 = vpack.c.bf16 %v751, %v747
    %v982 = vpack.c.bf16 %v917, %v914
    %v983 = vpack.c.bf16 %v759, %v755
    %v984 = vpack.c.bf16 %v761, %v757
    %v985 = vpack.c.bf16 %v925, %v922
    %v986 = vpack.c.bf16 %v769, %v765
    %v987 = vpack.c.bf16 %v771, %v767
    %v988 = vpack.c.bf16 %v933, %v930
    %v989 = vpack.c.bf16 %v779, %v775
    %v990 = vpack.c.bf16 %v781, %v777
    %v991 = vpack.c.bf16 %v941, %v938
    %992 = vst [vmem:[#allocation2] sm:$0xff] %v944
    %993 = vst [vmem:[#allocation2 + $0x8] sm:$0xff] %v945
    %994 = vst [vmem:[#allocation2 + $0x10] sm:$0xff] %v946
    %995 = vst [vmem:[#allocation2 + $0x18] sm:$0xff] %v947
    %996 = vst [vmem:[#allocation2 + $0x20] sm:$0xff] %v948
    %997 = vst [vmem:[#allocation2 + $0x28] sm:$0xff] %v949
    %998 = vst [vmem:[#allocation2 + $0x30] sm:$0xff] %v950
    %999 = vst [vmem:[#allocation2 + $0x38] sm:$0xff] %v951
    %1000 = vst [vmem:[#allocation2 + $0x40] sm:$0xff] %v952
    %1001 = vst [vmem:[#allocation2 + $0x48] sm:$0xff] %v953
    %1002 = vst [vmem:[#allocation2 + $0x50] sm:$0xff] %v954
    %1003 = vst [vmem:[#allocation2 + $0x58] sm:$0xff] %v955
    %1004 = vst [vmem:[#allocation2 + $0x60] sm:$0xff] %v956
    %1005 = vst [vmem:[#allocation2 + $0x68] sm:$0xff] %v957
    %1006 = vst [vmem:[#allocation2 + $0x70] sm:$0xff] %v958
    %1007 = vst [vmem:[#allocation2 + $0x78] sm:$0xff] %v959
    %1008 = vst [vmem:[#allocation2 + $0x80] sm:$0xff] %v960
    %1009 = vst [vmem:[#allocation2 + $0x88] sm:$0xff] %v961
    %1010 = vst [vmem:[#allocation2 + $0x90] sm:$0xff] %v962
    %1011 = vst [vmem:[#allocation2 + $0x98] sm:$0xff] %v963
    %1012 = vst [vmem:[#allocation2 + $0xa0] sm:$0xff] %v964
    %1013 = vst [vmem:[#allocation2 + $0xa8] sm:$0xff] %v965
    %1014 = vst [vmem:[#allocation2 + $0xb0] sm:$0xff] %v966
    %1015 = vst [vmem:[#allocation2 + $0xb8] sm:$0xff] %v967
    %1016 = vst [vmem:[#allocation2 + $0xc0] sm:$0xff] %v968
    %1017 = vst [vmem:[#allocation2 + $0xc8] sm:$0xff] %v969
    %1018 = vst [vmem:[#allocation2 + $0xd0] sm:$0xff] %v970
    %1019 = vst [vmem:[#allocation2 + $0xd8] sm:$0xff] %v971
    %1020 = vst [vmem:[#allocation2 + $0xe0] sm:$0xff] %v972
    %1021 = vst [vmem:[#allocation2 + $0xe8] sm:$0xff] %v973
    %1022 = vst [vmem:[#allocation2 + $0xf0] sm:$0xff] %v974
    %1023 = vst [vmem:[#allocation2 + $0xf8] sm:$0xff] %v975
    %1024 = vst [vmem:[#allocation2 + $0x100] sm:$0xff] %v976
    %1025 = vst [vmem:[#allocation2 + $0x108] sm:$0xff] %v977
    %1026 = vst [vmem:[#allocation2 + $0x110] sm:$0xff] %v978
    %1027 = vst [vmem:[#allocation2 + $0x118] sm:$0xff] %v979
    %1028 = vst [vmem:[#allocation2 + $0x120] sm:$0xff] %v980
    %1029 = vst [vmem:[#allocation2 + $0x128] sm:$0xff] %v981
    %1030 = vst [vmem:[#allocation2 + $0x130] sm:$0xff] %v982
    %1031 = vst [vmem:[#allocation2 + $0x138] sm:$0xff] %v983
    %1032 = vst [vmem:[#allocation2 + $0x140] sm:$0xff] %v984
    %1033 = vst [vmem:[#allocation2 + $0x148] sm:$0xff] %v985
    %1034 = vst [vmem:[#allocation2 + $0x150] sm:$0xff] %v986
    %1035 = vst [vmem:[#allocation2 + $0x158] sm:$0xff] %v987
    %1036 = vst [vmem:[#allocation2 + $0x160] sm:$0xff] %v988
    %1037 = vst [vmem:[#allocation2 + $0x168] sm:$0xff] %v989
    %1038 = vst [vmem:[#allocation2 + $0x170] sm:$0xff] %v990
    %1039 = vst [vmem:[#allocation2 + $0x178] sm:$0xff] %v991
    %v1040 = vld [vmem:[#allocation2] sm:$0xff]
    %v1041 = vld [vmem:[#allocation2 + $0x18] sm:$0xff]
    %v1042 = vld [vmem:[#allocation2 + $0x30] sm:$0xff]
    %v1043 = vld [vmem:[#allocation2 + $0x48] sm:$0xff]
    %v1044 = vld [vmem:[#allocation2 + $0x60] sm:$0xff]
    %v1045 = vld [vmem:[#allocation2 + $0x78] sm:$0xff]
    %v1046 = vld [vmem:[#allocation2 + $0x90] sm:$0xff]
    %v1047 = vld [vmem:[#allocation2 + $0xa8] sm:$0xff]
    %v1048 = vld [vmem:[#allocation2 + $0x8] sm:$0xff]
    %v1049 = vld [vmem:[#allocation2 + $0x20] sm:$0xff]
    %v1050 = vld [vmem:[#allocation2 + $0x38] sm:$0xff]
    %v1051 = vld [vmem:[#allocation2 + $0x50] sm:$0xff]
    %v1052 = vld [vmem:[#allocation2 + $0x68] sm:$0xff]
    %v1053 = vld [vmem:[#allocation2 + $0x80] sm:$0xff]
    %v1054 = vld [vmem:[#allocation2 + $0x98] sm:$0xff]
    %v1055 = vld [vmem:[#allocation2 + $0xb0] sm:$0xff]
    %v1056 = vld [vmem:[#allocation2 + $0x10] sm:$0xff]
    %v1057 = vld [vmem:[#allocation2 + $0x28] sm:$0xff]
    %v1058 = vld [vmem:[#allocation2 + $0x40] sm:$0xff]
    %v1059 = vld [vmem:[#allocation2 + $0x58] sm:$0xff]
    %v1060 = vld [vmem:[#allocation2 + $0x70] sm:$0xff]
    %v1061 = vld [vmem:[#allocation2 + $0x88] sm:$0xff]
    %v1062 = vld [vmem:[#allocation2 + $0xa0] sm:$0xff]
    %v1063 = vld [vmem:[#allocation2 + $0xb8] sm:$0xff]
    %v1064 = vld [vmem:[#allocation4] sm:$0xff]
    %v1065 = vld [vmem:[#allocation4 + $0x8] sm:$0xff]
    %v1066 = vld [vmem:[#allocation4 + $0x10] sm:$0xff]
    %v1067 = vld [vmem:[#allocation4 + $0x18] sm:$0xff]
    %v1068 = vld [vmem:[#allocation4 + $0x20] sm:$0xff]
    %v1069 = vld [vmem:[#allocation4 + $0x28] sm:$0xff]
    %v1070 = vld [vmem:[#allocation4 + $0x30] sm:$0xff]
    %v1071 = vld [vmem:[#allocation4 + $0x38] sm:$0xff]
    %v1072 = vld [vmem:[#allocation4 + $0x40] sm:$0xff]
    %v1073 = vld [vmem:[#allocation4 + $0x48] sm:$0xff]
    %v1074 = vld [vmem:[#allocation4 + $0x50] sm:$0xff]
    %v1075 = vld [vmem:[#allocation4 + $0x58] sm:$0xff]
    %v1076 = vld [vmem:[#allocation4 + $0x60] sm:$0xff]
    %v1077 = vld [vmem:[#allocation4 + $0x68] sm:$0xff]
    %v1078 = vld [vmem:[#allocation4 + $0x70] sm:$0xff]
    %v1079 = vld [vmem:[#allocation4 + $0x78] sm:$0xff]
    %vm1080 = vcmask 261120
    %v1082 = vsel %vm1080, %v1040, 0
    %v1085 = vsel %vm1080, %v1041, 0
    %v1088 = vsel %vm1080, %v1042, 0
    %v1091 = vsel %vm1080, %v1043, 0
    %v1094 = vsel %vm1080, %v1044, 0
    %v1097 = vsel %vm1080, %v1045, 0
    %v1100 = vsel %vm1080, %v1046, 0
    %v1103 = vsel %vm1080, %v1047, 0
    %v1106 = vsel %vm1080, %v1048, 0
    %v1109 = vsel %vm1080, %v1049, 0
    %v1112 = vsel %vm1080, %v1050, 0
    %v1115 = vsel %vm1080, %v1051, 0
    %v1118 = vsel %vm1080, %v1052, 0
    %v1121 = vsel %vm1080, %v1053, 0
    %v1124 = vsel %vm1080, %v1054, 0
    %v1127 = vsel %vm1080, %v1055, 0
    %1129 = vmatprep.subr.bf16.mxu0 0
    %1130 = vmatpush1.bf16.xpose.msra.mxu0 %v1106
    %1131 = vmatprep.subr.bf16.mxu0 0
    %1132 = vmatpush1.bf16.xpose.msra.mxu0 %v1109
    %1133 = vmatprep.subr.bf16.mxu0 0
    %1134 = vmatpush1.bf16.xpose.msra.mxu0 %v1112
    %1135 = vmatprep.subr.bf16.mxu0 0
    %1136 = vmatpush1.bf16.xpose.msra.mxu0 %v1115
    %1137 = vmatprep.subr.bf16.mxu0 0
    %1138 = vmatpush1.bf16.xpose.msra.mxu0 %v1118
    %1139 = vmatprep.subr.bf16.mxu0 0
    %1140 = vmatpush1.bf16.xpose.msra.mxu0 %v1121
    %1141 = vmatprep.subr.bf16.mxu0 0
    %1142 = vmatpush1.bf16.xpose.msra.mxu0 %v1124
    %1143 = vmatprep.subr.bf16.mxu0 0
    %1144 = vmatpush1.bf16.xpose.msra.mxu0 %v1127
    %1145 = vmatprep.subr.bf16.mxu0 0
    %1146 = vmatpush1.bf16.xpose.msra.mxu0 0
    %1147 = vmatprep.subr.bf16.mxu0 0
    %1148 = vmatpush1.bf16.xpose.msra.mxu0 0
    %1149 = vmatprep.subr.bf16.mxu0 0
    %1150 = vmatpush1.bf16.xpose.msra.mxu0 0
    %1151 = vmatprep.subr.bf16.mxu0 0
    %1152 = vmatpush1.bf16.xpose.msra.mxu0 0
    %1153 = vmatprep.subr.bf16.mxu0 0
    %1154 = vmatpush1.bf16.xpose.msra.mxu0 0
    %1155 = vmatprep.subr.bf16.mxu0 0
    %1156 = vmatpush1.bf16.xpose.msra.mxu0 0
    %1157 = vmatprep.subr.bf16.mxu0 0
    %1158 = vmatpush1.bf16.xpose.msra.mxu0 0
    %1159 = vmatprep.subr.bf16.mxu0 0
    %1160 = vmatpush1.bf16.xpose.msra.mxu0 0
    %1161 = vmatprep.mubr.bf16.mxu0 0
    %1162 = vmatmul.mubr.bf16.gmra.mrb[0].mxu0 %v1082
    %v1163 = vpop.f32.mrb[0].mxu0
    %v1164 = vadd.f32 %v1064, %v1163
    %v1165 = vpop.f32.mrb[0].mxu0
    %v1166 = vpop.f32.mrb[0].mxu0
    %v1167 = vadd.f32 %v1065, %v1166
    %v1168 = vpop.f32.mrb[0].mxu0
    %1169 = vmatprep.mubr.bf16.mxu0 0
    %1170 = vmatmul.mubr.bf16.gmra.mrb[0].mxu0 %v1085
    %v1171 = vpop.f32.mrb[0].mxu0
    %v1172 = vadd.f32 %v1066, %v1171
    %v1173 = vpop.f32.mrb[0].mxu0
    %v1174 = vpop.f32.mrb[0].mxu0
    %v1175 = vadd.f32 %v1067, %v1174
    %v1176 = vpop.f32.mrb[0].mxu0
    %1177 = vmatprep.mubr.bf16.mxu0 0
    %1178 = vmatmul.mubr.bf16.gmra.mrb[0].mxu0 %v1088
    %v1179 = vpop.f32.mrb[0].mxu0
    %v1180 = vadd.f32 %v1068, %v1179
    %v1181 = vpop.f32.mrb[0].mxu0
    %v1182 = vpop.f32.mrb[0].mxu0
    %v1183 = vadd.f32 %v1069, %v1182
    %v1184 = vpop.f32.mrb[0].mxu0
    %1185 = vmatprep.mubr.bf16.mxu0 0
    %1186 = vmatmul.mubr.bf16.gmra.mrb[0].mxu0 %v1091
    %v1187 = vpop.f32.mrb[0].mxu0
    %v1188 = vadd.f32 %v1070, %v1187
    %v1189 = vpop.f32.mrb[0].mxu0
    %v1190 = vpop.f32.mrb[0].mxu0
    %v1191 = vadd.f32 %v1071, %v1190
    %v1192 = vpop.f32.mrb[0].mxu0
    %1193 = vmatprep.mubr.bf16.mxu0 0
    %1194 = vmatmul.mubr.bf16.gmra.mrb[0].mxu0 %v1094
    %v1195 = vpop.f32.mrb[0].mxu0
    %v1196 = vadd.f32 %v1072, %v1195
    %v1197 = vpop.f32.mrb[0].mxu0
    %v1198 = vpop.f32.mrb[0].mxu0
    %v1199 = vadd.f32 %v1073, %v1198
    %v1200 = vpop.f32.mrb[0].mxu0
    %1201 = vmatprep.mubr.bf16.mxu0 0
    %1202 = vmatmul.mubr.bf16.gmra.mrb[0].mxu0 %v1097
    %v1203 = vpop.f32.mrb[0].mxu0
    %v1204 = vadd.f32 %v1074, %v1203
    %v1205 = vpop.f32.mrb[0].mxu0
    %v1206 = vpop.f32.mrb[0].mxu0
    %v1207 = vadd.f32 %v1075, %v1206
    %v1208 = vpop.f32.mrb[0].mxu0
    %1209 = vmatprep.mubr.bf16.mxu0 0
    %1210 = vmatmul.mubr.bf16.gmra.mrb[0].mxu0 %v1100
    %v1211 = vpop.f32.mrb[0].mxu0
    %v1212 = vadd.f32 %v1076, %v1211
    %v1213 = vpop.f32.mrb[0].mxu0
    %v1214 = vpop.f32.mrb[0].mxu0
    %v1215 = vadd.f32 %v1077, %v1214
    %v1216 = vpop.f32.mrb[0].mxu0
    %1217 = vmatprep.mubr.bf16.mxu0 0
    %1218 = vmatmul.mubr.bf16.gmra.mrb[0].mxu0 %v1103
    %v1219 = vpop.f32.mrb[0].mxu0
    %v1220 = vadd.f32 %v1078, %v1219
    %v1221 = vpop.f32.mrb[0].mxu0
    %v1222 = vpop.f32.mrb[0].mxu0
    %v1223 = vadd.f32 %v1079, %v1222
    %v1224 = vpop.f32.mrb[0].mxu0
    %1225 = vdwg.mxu0
    %1226 = vmax.xlane.f32.xlu0 %v1164
    %v1227 = vpop.xlane.xlu0 %1226
    %1228 = vmax.xlane.f32.xlu0 %v1167
    %v1229 = vpop.xlane.xlu0 %1228
    %1230 = vmax.xlane.f32.xlu0 %v1172
    %v1231 = vpop.xlane.xlu0 %1230
    %1232 = vmax.xlane.f32.xlu0 %v1175
    %v1233 = vpop.xlane.xlu0 %1232
    %1234 = vmax.xlane.f32.xlu0 %v1180
    %v1235 = vpop.xlane.xlu0 %1234
    %1236 = vmax.xlane.f32.xlu0 %v1183
    %v1237 = vpop.xlane.xlu0 %1236
    %1238 = vmax.xlane.f32.xlu0 %v1188
    %v1239 = vpop.xlane.xlu0 %1238
    %1240 = vmax.xlane.f32.xlu0 %v1191
    %v1241 = vpop.xlane.xlu0 %1240
    %1242 = vmax.xlane.f32.xlu0 %v1196
    %v1243 = vpop.xlane.xlu0 %1242
    %1244 = vmax.xlane.f32.xlu0 %v1199
    %v1245 = vpop.xlane.xlu0 %1244
    %1246 = vmax.xlane.f32.xlu0 %v1204
    %v1247 = vpop.xlane.xlu0 %1246
    %1248 = vmax.xlane.f32.xlu0 %v1207
    %v1249 = vpop.xlane.xlu0 %1248
    %1250 = vmax.xlane.f32.xlu0 %v1212
    %v1251 = vpop.xlane.xlu0 %1250
    %1252 = vmax.xlane.f32.xlu0 %v1215
    %v1253 = vpop.xlane.xlu0 %1252
    %1254 = vmax.xlane.f32.xlu0 %v1220
    %v1255 = vpop.xlane.xlu0 %1254
    %1256 = vmax.xlane.f32.xlu0 %v1223
    %v1257 = vpop.xlane.xlu0 %1256
    %v1258 = vsub.f32 %v1164, %v1227
    %v1259 = vsub.f32 %v1167, %v1229
    %v1260 = vsub.f32 %v1172, %v1231
    %v1261 = vsub.f32 %v1175, %v1233
    %v1262 = vsub.f32 %v1180, %v1235
    %v1263 = vsub.f32 %v1183, %v1237
    %v1264 = vsub.f32 %v1188, %v1239
    %v1265 = vsub.f32 %v1191, %v1241
    %v1266 = vsub.f32 %v1196, %v1243
    %v1267 = vsub.f32 %v1199, %v1245
    %v1268 = vsub.f32 %v1204, %v1247
    %v1269 = vsub.f32 %v1207, %v1249
    %v1270 = vsub.f32 %v1212, %v1251
    %v1271 = vsub.f32 %v1215, %v1253
    %v1272 = vsub.f32 %v1220, %v1255
    %v1273 = vsub.f32 %v1223, %v1257
    %v1274 = vmul.f32 %v1258, 1.442695
    %v1275 = vpow.pop %v1274
    %v1276 = vmul.f32 %v1259, 1.442695
    %v1277 = vpow.pop %v1276
    %v1278 = vmul.f32 %v1260, 1.442695
    %v1279 = vpow.pop %v1278
    %v1280 = vmul.f32 %v1261, 1.442695
    %v1281 = vpow.pop %v1280
    %v1282 = vmul.f32 %v1262, 1.442695
    %v1283 = vpow.pop %v1282
    %v1284 = vmul.f32 %v1263, 1.442695
    %v1285 = vpow.pop %v1284
    %v1286 = vmul.f32 %v1264, 1.442695
    %v1287 = vpow.pop %v1286
    %v1288 = vmul.f32 %v1265, 1.442695
    %v1289 = vpow.pop %v1288
    %v1290 = vmul.f32 %v1266, 1.442695
    %v1291 = vpow.pop %v1290
    %v1292 = vmul.f32 %v1267, 1.442695
    %v1293 = vpow.pop %v1292
    %v1294 = vmul.f32 %v1268, 1.442695
    %v1295 = vpow.pop %v1294
    %v1296 = vmul.f32 %v1269, 1.442695
    %v1297 = vpow.pop %v1296
    %v1298 = vmul.f32 %v1270, 1.442695
    %v1299 = vpow.pop %v1298
    %v1300 = vmul.f32 %v1271, 1.442695
    %v1301 = vpow.pop %v1300
    %v1302 = vmul.f32 %v1272, 1.442695
    %v1303 = vpow.pop %v1302
    %v1304 = vmul.f32 %v1273, 1.442695
    %v1305 = vpow.pop %v1304
    %1306 = vadd.xlane.f32.xlu0 %v1275
    %v1307 = vpop.xlane.xlu0 %1306
    %1308 = vadd.xlane.f32.xlu0 %v1277
    %v1309 = vpop.xlane.xlu0 %1308
    %1310 = vadd.xlane.f32.xlu0 %v1279
    %v1311 = vpop.xlane.xlu0 %1310
    %1312 = vadd.xlane.f32.xlu0 %v1281
    %v1313 = vpop.xlane.xlu0 %1312
    %1314 = vadd.xlane.f32.xlu0 %v1283
    %v1315 = vpop.xlane.xlu0 %1314
    %1316 = vadd.xlane.f32.xlu0 %v1285
    %v1317 = vpop.xlane.xlu0 %1316
    %1318 = vadd.xlane.f32.xlu0 %v1287
    %v1319 = vpop.xlane.xlu0 %1318
    %1320 = vadd.xlane.f32.xlu0 %v1289
    %v1321 = vpop.xlane.xlu0 %1320
    %1322 = vadd.xlane.f32.xlu0 %v1291
    %v1323 = vpop.xlane.xlu0 %1322
    %1324 = vadd.xlane.f32.xlu0 %v1293
    %v1325 = vpop.xlane.xlu0 %1324
    %1326 = vadd.xlane.f32.xlu0 %v1295
    %v1327 = vpop.xlane.xlu0 %1326
    %1328 = vadd.xlane.f32.xlu0 %v1297
    %v1329 = vpop.xlane.xlu0 %1328
    %1330 = vadd.xlane.f32.xlu0 %v1299
    %v1331 = vpop.xlane.xlu0 %1330
    %1332 = vadd.xlane.f32.xlu0 %v1301
    %v1333 = vpop.xlane.xlu0 %1332
    %1334 = vadd.xlane.f32.xlu0 %v1303
    %v1335 = vpop.xlane.xlu0 %1334
    %1336 = vadd.xlane.f32.xlu0 %v1305
    %v1337 = vpop.xlane.xlu0 %1336
    %v1338 = vrcp.pop %v1307
    %v1339 = vrcp.pop %v1309
    %v1340 = vrcp.pop %v1311
    %v1341 = vrcp.pop %v1313
    %v1342 = vrcp.pop %v1315
    %v1343 = vrcp.pop %v1317
    %v1344 = vrcp.pop %v1319
    %v1345 = vrcp.pop %v1321
    %v1346 = vrcp.pop %v1323
    %v1347 = vrcp.pop %v1325
    %v1348 = vrcp.pop %v1327
    %v1349 = vrcp.pop %v1329
    %v1350 = vrcp.pop %v1331
    %v1351 = vrcp.pop %v1333
    %v1352 = vrcp.pop %v1335
    %v1353 = vrcp.pop %v1337
    %v1354 = vmul.f32 %v1275, %v1338
    %v1355 = vmul.f32 %v1277, %v1339
    %v1356 = vmul.f32 %v1279, %v1340
    %v1357 = vmul.f32 %v1281, %v1341
    %v1358 = vmul.f32 %v1283, %v1342
    %v1359 = vmul.f32 %v1285, %v1343
    %v1360 = vmul.f32 %v1287, %v1344
    %v1361 = vmul.f32 %v1289, %v1345
    %v1362 = vmul.f32 %v1291, %v1346
    %v1363 = vmul.f32 %v1293, %v1347
    %v1364 = vmul.f32 %v1295, %v1348
    %v1365 = vmul.f32 %v1297, %v1349
    %v1366 = vmul.f32 %v1299, %v1350
    %v1367 = vmul.f32 %v1301, %v1351
    %v1368 = vmul.f32 %v1303, %v1352
    %v1369 = vmul.f32 %v1305, %v1353
    %v1370 = vpack.c.bf16 %v1355, %v1354
    %v1371 = vpack.c.bf16 %v1357, %v1356
    %v1372 = vpack.c.bf16 %v1359, %v1358
    %v1373 = vpack.c.bf16 %v1361, %v1360
    %v1374 = vpack.c.bf16 %v1363, %v1362
    %v1375 = vpack.c.bf16 %v1365, %v1364
    %v1376 = vpack.c.bf16 %v1367, %v1366
    %v1377 = vpack.c.bf16 %v1369, %v1368
    %1378 = vmatprep.subr.bf16.mxu0 0
    %1379 = vmatpush1.bf16.msra.mxu0 %v1056
    %1380 = vmatprep.subr.bf16.mxu0 0
    %1381 = vmatpush1.bf16.msra.mxu0 %v1057
    %1382 = vmatprep.subr.bf16.mxu0 0
    %1383 = vmatpush1.bf16.msra.mxu0 %v1058
    %1384 = vmatprep.subr.bf16.mxu0 0
    %1385 = vmatpush1.bf16.msra.mxu0 %v1059
    %1386 = vmatprep.subr.bf16.mxu0 0
    %1387 = vmatpush1.bf16.msra.mxu0 %v1060
    %1388 = vmatprep.subr.bf16.mxu0 0
    %1389 = vmatpush1.bf16.msra.mxu0 %v1061
    %1390 = vmatprep.subr.bf16.mxu0 0
    %1391 = vmatpush1.bf16.msra.mxu0 %v1062
    %1392 = vmatprep.subr.bf16.mxu0 0
    %1393 = vmatpush1.bf16.msra.mxu0 %v1063
    %1394 = vmatprep.subr.bf16.mxu0 0
    %1395 = vmatpush1.bf16.msra.mxu0 0
    %1396 = vmatprep.subr.bf16.mxu0 0
    %1397 = vmatpush1.bf16.msra.mxu0 0
    %1398 = vmatprep.subr.bf16.mxu0 0
    %1399 = vmatpush1.bf16.msra.mxu0 0
    %1400 = vmatprep.subr.bf16.mxu0 0
    %1401 = vmatpush1.bf16.msra.mxu0 0
    %1402 = vmatprep.subr.bf16.mxu0 0
    %1403 = vmatpush1.bf16.msra.mxu0 0
    %1404 = vmatprep.subr.bf16.mxu0 0
    %1405 = vmatpush1.bf16.msra.mxu0 0
    %1406 = vmatprep.subr.bf16.mxu0 0
    %1407 = vmatpush1.bf16.msra.mxu0 0
    %1408 = vmatprep.subr.bf16.mxu0 0
    %1409 = vmatpush1.bf16.msra.mxu0 0
    %1410 = vmatprep.mubr.bf16.mxu0 0
    %1411 = vmatmul.mubr.bf16.gmra.mrb[0].mxu0 %v1370
    %v1412 = vpop.f32.mrb[0].mxu0
    %v1413 = vadd.f32 0.0, %v1412
    %v1414 = vpop.f32.mrb[0].mxu0
    %v1415 = vpop.f32.mrb[0].mxu0
    %v1416 = vadd.f32 0.0, %v1415
    %v1417 = vpop.f32.mrb[0].mxu0
    %1418 = vmatprep.mubr.bf16.mxu0 0
    %1419 = vmatmul.mubr.bf16.gmra.mrb[0].mxu0 %v1371
    %v1420 = vpop.f32.mrb[0].mxu0
    %v1421 = vadd.f32 0.0, %v1420
    %v1422 = vpop.f32.mrb[0].mxu0
    %v1423 = vpop.f32.mrb[0].mxu0
    %v1424 = vadd.f32 0.0, %v1423
    %v1425 = vpop.f32.mrb[0].mxu0
    %1426 = vmatprep.mubr.bf16.mxu0 0
    %1427 = vmatmul.mubr.bf16.gmra.mrb[0].mxu0 %v1372
    %v1428 = vpop.f32.mrb[0].mxu0
    %v1429 = vadd.f32 0.0, %v1428
    %v1430 = vpop.f32.mrb[0].mxu0
    %v1431 = vpop.f32.mrb[0].mxu0
    %v1432 = vadd.f32 0.0, %v1431
    %v1433 = vpop.f32.mrb[0].mxu0
    %1434 = vmatprep.mubr.bf16.mxu0 0
    %1435 = vmatmul.mubr.bf16.gmra.mrb[0].mxu0 %v1373
    %v1436 = vpop.f32.mrb[0].mxu0
    %v1437 = vadd.f32 0.0, %v1436
    %v1438 = vpop.f32.mrb[0].mxu0
    %v1439 = vpop.f32.mrb[0].mxu0
    %v1440 = vadd.f32 0.0, %v1439
    %v1441 = vpop.f32.mrb[0].mxu0
    %1442 = vmatprep.mubr.bf16.mxu0 0
    %1443 = vmatmul.mubr.bf16.gmra.mrb[0].mxu0 %v1374
    %v1444 = vpop.f32.mrb[0].mxu0
    %v1445 = vadd.f32 0.0, %v1444
    %v1446 = vpop.f32.mrb[0].mxu0
    %v1447 = vpop.f32.mrb[0].mxu0
    %v1448 = vadd.f32 0.0, %v1447
    %v1449 = vpop.f32.mrb[0].mxu0
    %1450 = vmatprep.mubr.bf16.mxu0 0
    %1451 = vmatmul.mubr.bf16.gmra.mrb[0].mxu0 %v1375
    %v1452 = vpop.f32.mrb[0].mxu0
    %v1453 = vadd.f32 0.0, %v1452
    %v1454 = vpop.f32.mrb[0].mxu0
    %v1455 = vpop.f32.mrb[0].mxu0
    %v1456 = vadd.f32 0.0, %v1455
    %v1457 = vpop.f32.mrb[0].mxu0
    %1458 = vmatprep.mubr.bf16.mxu0 0
    %1459 = vmatmul.mubr.bf16.gmra.mrb[0].mxu0 %v1376
    %v1460 = vpop.f32.mrb[0].mxu0
    %v1461 = vadd.f32 0.0, %v1460
    %v1462 = vpop.f32.mrb[0].mxu0
    %v1463 = vpop.f32.mrb[0].mxu0
    %v1464 = vadd.f32 0.0, %v1463
    %v1465 = vpop.f32.mrb[0].mxu0
    %1466 = vmatprep.mubr.bf16.mxu0 0
    %1467 = vmatmul.mubr.bf16.gmra.mrb[0].mxu0 %v1377
    %v1468 = vpop.f32.mrb[0].mxu0
    %v1469 = vadd.f32 0.0, %v1468
    %v1470 = vpop.f32.mrb[0].mxu0
    %v1471 = vpop.f32.mrb[0].mxu0
    %v1472 = vadd.f32 0.0, %v1471
    %v1473 = vpop.f32.mrb[0].mxu0
    %1474 = vdwg.mxu0
    %v1475 = vpack.c.bf16 %v1416, %v1413
    %v1476 = vpack.c.bf16 %v1424, %v1421
    %v1477 = vpack.c.bf16 %v1432, %v1429
    %v1478 = vpack.c.bf16 %v1440, %v1437
    %v1479 = vpack.c.bf16 %v1448, %v1445
    %v1480 = vpack.c.bf16 %v1456, %v1453
    %v1481 = vpack.c.bf16 %v1464, %v1461
    %v1482 = vpack.c.bf16 %v1472, %v1469
    %1483 = vst.msk [vmem:[#allocation3] sm:$0xff] %vm1080, %v1475
    %1484 = vst.msk [vmem:[#allocation3 + $0x8] sm:$0xff] %vm1080, %v1476
    %1485 = vst.msk [vmem:[#allocation3 + $0x10] sm:$0xff] %vm1080, %v1477
    %1486 = vst.msk [vmem:[#allocation3 + $0x18] sm:$0xff] %vm1080, %v1478
    %1487 = vst.msk [vmem:[#allocation3 + $0x20] sm:$0xff] %vm1080, %v1479
    %1488 = vst.msk [vmem:[#allocation3 + $0x28] sm:$0xff] %vm1080, %v1480
    %1489 = vst.msk [vmem:[#allocation3 + $0x30] sm:$0xff] %vm1080, %v1481
    %1490 = vst.msk [vmem:[#allocation3 + $0x38] sm:$0xff] %vm1080, %v1482
    %v1491 = vld [vmem:[#allocation2] sm:$0xff]
    %v1492 = vld [vmem:[#allocation2 + $0x18] sm:$0xff]
    %v1493 = vld [vmem:[#allocation2 + $0x30] sm:$0xff]
    %v1494 = vld [vmem:[#allocation2 + $0x48] sm:$0xff]
    %v1495 = vld [vmem:[#allocation2 + $0x60] sm:$0xff]
    %v1496 = vld [vmem:[#allocation2 + $0x78] sm:$0xff]
    %v1497 = vld [vmem:[#allocation2 + $0x90] sm:$0xff]
    %v1498 = vld [vmem:[#allocation2 + $0xa8] sm:$0xff]
    %v1499 = vld [vmem:[#allocation2 + $0x8] sm:$0xff]
    %v1500 = vld [vmem:[#allocation2 + $0x20] sm:$0xff]
    %v1501 = vld [vmem:[#allocation2 + $0x38] sm:$0xff]
    %v1502 = vld [vmem:[#allocation2 + $0x50] sm:$0xff]
    %v1503 = vld [vmem:[#allocation2 + $0x68] sm:$0xff]
    %v1504 = vld [vmem:[#allocation2 + $0x80] sm:$0xff]
    %v1505 = vld [vmem:[#allocation2 + $0x98] sm:$0xff]
    %v1506 = vld [vmem:[#allocation2 + $0xb0] sm:$0xff]
    %v1507 = vld [vmem:[#allocation2 + $0x10] sm:$0xff]
    %v1508 = vld [vmem:[#allocation2 + $0x28] sm:$0xff]
    %v1509 = vld [vmem:[#allocation2 + $0x40] sm:$0xff]
    %v1510 = vld [vmem:[#allocation2 + $0x58] sm:$0xff]
    %v1511 = vld [vmem:[#allocation2 + $0x70] sm:$0xff]
    %v1512 = vld [vmem:[#allocation2 + $0x88] sm:$0xff]
    %v1513 = vld [vmem:[#allocation2 + $0xa0] sm:$0xff]
    %v1514 = vld [vmem:[#allocation2 + $0xb8] sm:$0xff]
    %v1515 = vld [vmem:[#allocation4] sm:$0xff]
    %v1516 = vld [vmem:[#allocation4 + $0x8] sm:$0xff]
    %v1517 = vld [vmem:[#allocation4 + $0x10] sm:$0xff]
    %v1518 = vld [vmem:[#allocation4 + $0x18] sm:$0xff]
    %v1519 = vld [vmem:[#allocation4 + $0x20] sm:$0xff]
    %v1520 = vld [vmem:[#allocation4 + $0x28] sm:$0xff]
    %v1521 = vld [vmem:[#allocation4 + $0x30] sm:$0xff]
    %v1522 = vld [vmem:[#allocation4 + $0x38] sm:$0xff]
    %v1523 = vld [vmem:[#allocation4 + $0x40] sm:$0xff]
    %v1524 = vld [vmem:[#allocation4 + $0x48] sm:$0xff]
    %v1525 = vld [vmem:[#allocation4 + $0x50] sm:$0xff]
    %v1526 = vld [vmem:[#allocation4 + $0x58] sm:$0xff]
    %v1527 = vld [vmem:[#allocation4 + $0x60] sm:$0xff]
    %v1528 = vld [vmem:[#allocation4 + $0x68] sm:$0xff]
    %v1529 = vld [vmem:[#allocation4 + $0x70] sm:$0xff]
    %v1530 = vld [vmem:[#allocation4 + $0x78] sm:$0xff]
    %1539 = vrot.lane.b32.xlu0 %v1491, 96
    %v1540 = vpop.permute.xlu0 %1539
    %1541 = vrot.lane.b32.xlu0 %v1492, 96
    %v1542 = vpop.permute.xlu0 %1541
    %1543 = vrot.lane.b32.xlu0 %v1493, 96
    %v1544 = vpop.permute.xlu0 %1543
    %1545 = vrot.lane.b32.xlu0 %v1494, 96
    %v1546 = vpop.permute.xlu0 %1545
    %1547 = vrot.lane.b32.xlu0 %v1495, 96
    %v1548 = vpop.permute.xlu0 %1547
    %1549 = vrot.lane.b32.xlu0 %v1496, 96
    %v1550 = vpop.permute.xlu0 %1549
    %1551 = vrot.lane.b32.xlu0 %v1497, 96
    %v1552 = vpop.permute.xlu0 %1551
    %1553 = vrot.lane.b32.xlu0 %v1498, 96
    %v1554 = vpop.permute.xlu0 %1553
    %1563 = vrot.lane.b32.xlu0 %v1499, 96
    %v1564 = vpop.permute.xlu0 %1563
    %1565 = vrot.lane.b32.xlu0 %v1500, 96
    %v1566 = vpop.permute.xlu0 %1565
    %1567 = vrot.lane.b32.xlu0 %v1501, 96
    %v1568 = vpop.permute.xlu0 %1567
    %1569 = vrot.lane.b32.xlu0 %v1502, 96
    %v1570 = vpop.permute.xlu0 %1569
    %1571 = vrot.lane.b32.xlu0 %v1503, 96
    %v1572 = vpop.permute.xlu0 %1571
    %1573 = vrot.lane.b32.xlu0 %v1504, 96
    %v1574 = vpop.permute.xlu0 %1573
    %1575 = vrot.lane.b32.xlu0 %v1505, 96
    %v1576 = vpop.permute.xlu0 %1575
    %1577 = vrot.lane.b32.xlu0 %v1506, 96
    %v1578 = vpop.permute.xlu0 %1577
    %v1580 = vsel %vm1080, %v1540, 0
    %v1583 = vsel %vm1080, %v1542, 0
    %v1586 = vsel %vm1080, %v1544, 0
    %v1589 = vsel %vm1080, %v1546, 0
    %v1592 = vsel %vm1080, %v1548, 0
    %v1595 = vsel %vm1080, %v1550, 0
    %v1598 = vsel %vm1080, %v1552, 0
    %v1601 = vsel %vm1080, %v1554, 0
    %v1604 = vsel %vm1080, %v1564, 0
    %v1607 = vsel %vm1080, %v1566, 0
    %v1610 = vsel %vm1080, %v1568, 0
    %v1613 = vsel %vm1080, %v1570, 0
    %v1616 = vsel %vm1080, %v1572, 0
    %v1619 = vsel %vm1080, %v1574, 0
    %v1622 = vsel %vm1080, %v1576, 0
    %v1625 = vsel %vm1080, %v1578, 0
    %1627 = vmatprep.subr.bf16.mxu0 0
    %1628 = vmatpush1.bf16.xpose.msra.mxu0 %v1604
    %1629 = vmatprep.subr.bf16.mxu0 0
    %1630 = vmatpush1.bf16.xpose.msra.mxu0 %v1607
    %1631 = vmatprep.subr.bf16.mxu0 0
    %1632 = vmatpush1.bf16.xpose.msra.mxu0 %v1610
    %1633 = vmatprep.subr.bf16.mxu0 0
    %1634 = vmatpush1.bf16.xpose.msra.mxu0 %v1613
    %1635 = vmatprep.subr.bf16.mxu0 0
    %1636 = vmatpush1.bf16.xpose.msra.mxu0 %v1616
    %1637 = vmatprep.subr.bf16.mxu0 0
    %1638 = vmatpush1.bf16.xpose.msra.mxu0 %v1619
    %1639 = vmatprep.subr.bf16.mxu0 0
    %1640 = vmatpush1.bf16.xpose.msra.mxu0 %v1622
    %1641 = vmatprep.subr.bf16.mxu0 0
    %1642 = vmatpush1.bf16.xpose.msra.mxu0 %v1625
    %1643 = vmatprep.subr.bf16.mxu0 0
    %1644 = vmatpush1.bf16.xpose.msra.mxu0 0
    %1645 = vmatprep.subr.bf16.mxu0 0
    %1646 = vmatpush1.bf16.xpose.msra.mxu0 0
    %1647 = vmatprep.subr.bf16.mxu0 0
    %1648 = vmatpush1.bf16.xpose.msra.mxu0 0
    %1649 = vmatprep.subr.bf16.mxu0 0
    %1650 = vmatpush1.bf16.xpose.msra.mxu0 0
    %1651 = vmatprep.subr.bf16.mxu0 0
    %1652 = vmatpush1.bf16.xpose.msra.mxu0 0
    %1653 = vmatprep.subr.bf16.mxu0 0
    %1654 = vmatpush1.bf16.xpose.msra.mxu0 0
    %1655 = vmatprep.subr.bf16.mxu0 0
    %1656 = vmatpush1.bf16.xpose.msra.mxu0 0
    %1657 = vmatprep.subr.bf16.mxu0 0
    %1658 = vmatpush1.bf16.xpose.msra.mxu0 0
    %1659 = vmatprep.mubr.bf16.mxu0 0
    %1660 = vmatmul.mubr.bf16.gmra.mrb[0].mxu0 %v1580
    %v1661 = vpop.f32.mrb[0].mxu0
    %v1662 = vadd.f32 %v1515, %v1661
    %v1663 = vpop.f32.mrb[0].mxu0
    %v1664 = vpop.f32.mrb[0].mxu0
    %v1665 = vadd.f32 %v1516, %v1664
    %v1666 = vpop.f32.mrb[0].mxu0
    %1667 = vmatprep.mubr.bf16.mxu0 0
    %1668 = vmatmul.mubr.bf16.gmra.mrb[0].mxu0 %v1583
    %v1669 = vpop.f32.mrb[0].mxu0
    %v1670 = vadd.f32 %v1517, %v1669
    %v1671 = vpop.f32.mrb[0].mxu0
    %v1672 = vpop.f32.mrb[0].mxu0
    %v1673 = vadd.f32 %v1518, %v1672
    %v1674 = vpop.f32.mrb[0].mxu0
    %1675 = vmatprep.mubr.bf16.mxu0 0
    %1676 = vmatmul.mubr.bf16.gmra.mrb[0].mxu0 %v1586
    %v1677 = vpop.f32.mrb[0].mxu0
    %v1678 = vadd.f32 %v1519, %v1677
    %v1679 = vpop.f32.mrb[0].mxu0
    %v1680 = vpop.f32.mrb[0].mxu0
    %v1681 = vadd.f32 %v1520, %v1680
    %v1682 = vpop.f32.mrb[0].mxu0
    %1683 = vmatprep.mubr.bf16.mxu0 0
    %1684 = vmatmul.mubr.bf16.gmra.mrb[0].mxu0 %v1589
    %v1685 = vpop.f32.mrb[0].mxu0
    %v1686 = vadd.f32 %v1521, %v1685
    %v1687 = vpop.f32.mrb[0].mxu0
    %v1688 = vpop.f32.mrb[0].mxu0
    %v1689 = vadd.f32 %v1522, %v1688
    %v1690 = vpop.f32.mrb[0].mxu0
    %1691 = vmatprep.mubr.bf16.mxu0 0
    %1692 = vmatmul.mubr.bf16.gmra.mrb[0].mxu0 %v1592
    %v1693 = vpop.f32.mrb[0].mxu0
    %v1694 = vadd.f32 %v1523, %v1693
    %v1695 = vpop.f32.mrb[0].mxu0
    %v1696 = vpop.f32.mrb[0].mxu0
    %v1697 = vadd.f32 %v1524, %v1696
    %v1698 = vpop.f32.mrb[0].mxu0
    %1699 = vmatprep.mubr.bf16.mxu0 0
    %1700 = vmatmul.mubr.bf16.gmra.mrb[0].mxu0 %v1595
    %v1701 = vpop.f32.mrb[0].mxu0
    %v1702 = vadd.f32 %v1525, %v1701
    %v1703 = vpop.f32.mrb[0].mxu0
    %v1704 = vpop.f32.mrb[0].mxu0
    %v1705 = vadd.f32 %v1526, %v1704
    %v1706 = vpop.f32.mrb[0].mxu0
    %1707 = vmatprep.mubr.bf16.mxu0 0
    %1708 = vmatmul.mubr.bf16.gmra.mrb[0].mxu0 %v1598
    %v1709 = vpop.f32.mrb[0].mxu0
    %v1710 = vadd.f32 %v1527, %v1709
    %v1711 = vpop.f32.mrb[0].mxu0
    %v1712 = vpop.f32.mrb[0].mxu0
    %v1713 = vadd.f32 %v1528, %v1712
    %v1714 = vpop.f32.mrb[0].mxu0
    %1715 = vmatprep.mubr.bf16.mxu0 0
    %1716 = vmatmul.mubr.bf16.gmra.mrb[0].mxu0 %v1601
    %v1717 = vpop.f32.mrb[0].mxu0
    %v1718 = vadd.f32 %v1529, %v1717
    %v1719 = vpop.f32.mrb[0].mxu0
    %v1720 = vpop.f32.mrb[0].mxu0
    %v1721 = vadd.f32 %v1530, %v1720
    %v1722 = vpop.f32.mrb[0].mxu0
    %1723 = vdwg.mxu0
    %1724 = vmax.xlane.f32.xlu0 %v1662
    %v1725 = vpop.xlane.xlu0 %1724
    %1726 = vmax.xlane.f32.xlu0 %v1665
    %v1727 = vpop.xlane.xlu0 %1726
    %1728 = vmax.xlane.f32.xlu0 %v1670
    %v1729 = vpop.xlane.xlu0 %1728
    %1730 = vmax.xlane.f32.xlu0 %v1673
    %v1731 = vpop.xlane.xlu0 %1730
    %1732 = vmax.xlane.f32.xlu0 %v1678
    %v1733 = vpop.xlane.xlu0 %1732
    %1734 = vmax.xlane.f32.xlu0 %v1681
    %v1735 = vpop.xlane.xlu0 %1734
    %1736 = vmax.xlane.f32.xlu0 %v1686
    %v1737 = vpop.xlane.xlu0 %1736
    %1738 = vmax.xlane.f32.xlu0 %v1689
    %v1739 = vpop.xlane.xlu0 %1738
    %1740 = vmax.xlane.f32.xlu0 %v1694
    %v1741 = vpop.xlane.xlu0 %1740
    %1742 = vmax.xlane.f32.xlu0 %v1697
    %v1743 = vpop.xlane.xlu0 %1742
    %1744 = vmax.xlane.f32.xlu0 %v1702
    %v1745 = vpop.xlane.xlu0 %1744
    %1746 = vmax.xlane.f32.xlu0 %v1705
    %v1747 = vpop.xlane.xlu0 %1746
    %1748 = vmax.xlane.f32.xlu0 %v1710
    %v1749 = vpop.xlane.xlu0 %1748
    %1750 = vmax.xlane.f32.xlu0 %v1713
    %v1751 = vpop.xlane.xlu0 %1750
    %1752 = vmax.xlane.f32.xlu0 %v1718
    %v1753 = vpop.xlane.xlu0 %1752
    %1754 = vmax.xlane.f32.xlu0 %v1721
    %v1755 = vpop.xlane.xlu0 %1754
    %v1756 = vsub.f32 %v1662, %v1725
    %v1757 = vsub.f32 %v1665, %v1727
    %v1758 = vsub.f32 %v1670, %v1729
    %v1759 = vsub.f32 %v1673, %v1731
    %v1760 = vsub.f32 %v1678, %v1733
    %v1761 = vsub.f32 %v1681, %v1735
    %v1762 = vsub.f32 %v1686, %v1737
    %v1763 = vsub.f32 %v1689, %v1739
    %v1764 = vsub.f32 %v1694, %v1741
    %v1765 = vsub.f32 %v1697, %v1743
    %v1766 = vsub.f32 %v1702, %v1745
    %v1767 = vsub.f32 %v1705, %v1747
    %v1768 = vsub.f32 %v1710, %v1749
    %v1769 = vsub.f32 %v1713, %v1751
    %v1770 = vsub.f32 %v1718, %v1753
    %v1771 = vsub.f32 %v1721, %v1755
    %v1772 = vmul.f32 %v1756, 1.442695
    %v1773 = vpow.pop %v1772
    %v1774 = vmul.f32 %v1757, 1.442695
    %v1775 = vpow.pop %v1774
    %v1776 = vmul.f32 %v1758, 1.442695
    %v1777 = vpow.pop %v1776
    %v1778 = vmul.f32 %v1759, 1.442695
    %v1779 = vpow.pop %v1778
    %v1780 = vmul.f32 %v1760, 1.442695
    %v1781 = vpow.pop %v1780
    %v1782 = vmul.f32 %v1761, 1.442695
    %v1783 = vpow.pop %v1782
    %v1784 = vmul.f32 %v1762, 1.442695
    %v1785 = vpow.pop %v1784
    %v1786 = vmul.f32 %v1763, 1.442695
    %v1787 = vpow.pop %v1786
    %v1788 = vmul.f32 %v1764, 1.442695
    %v1789 = vpow.pop %v1788
    %v1790 = vmul.f32 %v1765, 1.442695
    %v1791 = vpow.pop %v1790
    %v1792 = vmul.f32 %v1766, 1.442695
    %v1793 = vpow.pop %v1792
    %v1794 = vmul.f32 %v1767, 1.442695
    %v1795 = vpow.pop %v1794
    %v1796 = vmul.f32 %v1768, 1.442695
    %v1797 = vpow.pop %v1796
    %v1798 = vmul.f32 %v1769, 1.442695
    %v1799 = vpow.pop %v1798
    %v1800 = vmul.f32 %v1770, 1.442695
    %v1801 = vpow.pop %v1800
    %v1802 = vmul.f32 %v1771, 1.442695
    %v1803 = vpow.pop %v1802
    %1804 = vadd.xlane.f32.xlu0 %v1773
    %v1805 = vpop.xlane.xlu0 %1804
    %1806 = vadd.xlane.f32.xlu0 %v1775
    %v1807 = vpop.xlane.xlu0 %1806
    %1808 = vadd.xlane.f32.xlu0 %v1777
    %v1809 = vpop.xlane.xlu0 %1808
    %1810 = vadd.xlane.f32.xlu0 %v1779
    %v1811 = vpop.xlane.xlu0 %1810
    %1812 = vadd.xlane.f32.xlu0 %v1781
    %v1813 = vpop.xlane.xlu0 %1812
    %1814 = vadd.xlane.f32.xlu0 %v1783
    %v1815 = vpop.xlane.xlu0 %1814
    %1816 = vadd.xlane.f32.xlu0 %v1785
    %v1817 = vpop.xlane.xlu0 %1816
    %1818 = vadd.xlane.f32.xlu0 %v1787
    %v1819 = vpop.xlane.xlu0 %1818
    %1820 = vadd.xlane.f32.xlu0 %v1789
    %v1821 = vpop.xlane.xlu0 %1820
    %1822 = vadd.xlane.f32.xlu0 %v1791
    %v1823 = vpop.xlane.xlu0 %1822
    %1824 = vadd.xlane.f32.xlu0 %v1793
    %v1825 = vpop.xlane.xlu0 %1824
    %1826 = vadd.xlane.f32.xlu0 %v1795
    %v1827 = vpop.xlane.xlu0 %1826
    %1828 = vadd.xlane.f32.xlu0 %v1797
    %v1829 = vpop.xlane.xlu0 %1828
    %1830 = vadd.xlane.f32.xlu0 %v1799
    %v1831 = vpop.xlane.xlu0 %1830
    %1832 = vadd.xlane.f32.xlu0 %v1801
    %v1833 = vpop.xlane.xlu0 %1832
    %1834 = vadd.xlane.f32.xlu0 %v1803
    %v1835 = vpop.xlane.xlu0 %1834
    %v1836 = vrcp.pop %v1805
    %v1837 = vrcp.pop %v1807
    %v1838 = vrcp.pop %v1809
    %v1839 = vrcp.pop %v1811
    %v1840 = vrcp.pop %v1813
    %v1841 = vrcp.pop %v1815
    %v1842 = vrcp.pop %v1817
    %v1843 = vrcp.pop %v1819
    %v1844 = vrcp.pop %v1821
    %v1845 = vrcp.pop %v1823
    %v1846 = vrcp.pop %v1825
    %v1847 = vrcp.pop %v1827
    %v1848 = vrcp.pop %v1829
    %v1849 = vrcp.pop %v1831
    %v1850 = vrcp.pop %v1833
    %v1851 = vrcp.pop %v1835
    %v1852 = vmul.f32 %v1773, %v1836
    %v1853 = vmul.f32 %v1775, %v1837
    %v1854 = vmul.f32 %v1777, %v1838
    %v1855 = vmul.f32 %v1779, %v1839
    %v1856 = vmul.f32 %v1781, %v1840
    %v1857 = vmul.f32 %v1783, %v1841
    %v1858 = vmul.f32 %v1785, %v1842
    %v1859 = vmul.f32 %v1787, %v1843
    %v1860 = vmul.f32 %v1789, %v1844
    %v1861 = vmul.f32 %v1791, %v1845
    %v1862 = vmul.f32 %v1793, %v1846
    %v1863 = vmul.f32 %v1795, %v1847
    %v1864 = vmul.f32 %v1797, %v1848
    %v1865 = vmul.f32 %v1799, %v1849
    %v1866 = vmul.f32 %v1801, %v1850
    %v1867 = vmul.f32 %v1803, %v1851
    %v1868 = vpack.c.bf16 %v1853, %v1852
    %v1869 = vpack.c.bf16 %v1855, %v1854
    %v1870 = vpack.c.bf16 %v1857, %v1856
    %v1871 = vpack.c.bf16 %v1859, %v1858
    %v1872 = vpack.c.bf16 %v1861, %v1860
    %v1873 = vpack.c.bf16 %v1863, %v1862
    %v1874 = vpack.c.bf16 %v1865, %v1864
    %v1875 = vpack.c.bf16 %v1867, %v1866
    %1884 = vrot.lane.b32.xlu0 %v1507, 96
    %v1885 = vpop.permute.xlu0 %1884
    %1886 = vrot.lane.b32.xlu0 %v1508, 96
    %v1887 = vpop.permute.xlu0 %1886
    %1888 = vrot.lane.b32.xlu0 %v1509, 96
    %v1889 = vpop.permute.xlu0 %1888
    %1890 = vrot.lane.b32.xlu0 %v1510, 96
    %v1891 = vpop.permute.xlu0 %1890
    %1892 = vrot.lane.b32.xlu0 %v1511, 96
    %v1893 = vpop.permute.xlu0 %1892
    %1894 = vrot.lane.b32.xlu0 %v1512, 96
    %v1895 = vpop.permute.xlu0 %1894
    %1896 = vrot.lane.b32.xlu0 %v1513, 96
    %v1897 = vpop.permute.xlu0 %1896
    %1898 = vrot.lane.b32.xlu0 %v1514, 96
    %v1899 = vpop.permute.xlu0 %1898
    %1908 = vmatprep.subr.bf16.mxu0 0
    %1909 = vmatpush1.bf16.msra.mxu0 %v1885
    %1910 = vmatprep.subr.bf16.mxu0 0
    %1911 = vmatpush1.bf16.msra.mxu0 %v1887
    %1912 = vmatprep.subr.bf16.mxu0 0
    %1913 = vmatpush1.bf16.msra.mxu0 %v1889
    %1914 = vmatprep.subr.bf16.mxu0 0
    %1915 = vmatpush1.bf16.msra.mxu0 %v1891
    %1916 = vmatprep.subr.bf16.mxu0 0
    %1917 = vmatpush1.bf16.msra.mxu0 %v1893
    %1918 = vmatprep.subr.bf16.mxu0 0
    %1919 = vmatpush1.bf16.msra.mxu0 %v1895
    %1920 = vmatprep.subr.bf16.mxu0 0
    %1921 = vmatpush1.bf16.msra.mxu0 %v1897
    %1922 = vmatprep.subr.bf16.mxu0 0
    %1923 = vmatpush1.bf16.msra.mxu0 %v1899
    %1924 = vmatprep.subr.bf16.mxu0 0
    %1925 = vmatpush1.bf16.msra.mxu0 0
    %1926 = vmatprep.subr.bf16.mxu0 0
    %1927 = vmatpush1.bf16.msra.mxu0 0
    %1928 = vmatprep.subr.bf16.mxu0 0
    %1929 = vmatpush1.bf16.msra.mxu0 0
    %1930 = vmatprep.subr.bf16.mxu0 0
    %1931 = vmatpush1.bf16.msra.mxu0 0
    %1932 = vmatprep.subr.bf16.mxu0 0
    %1933 = vmatpush1.bf16.msra.mxu0 0
    %1934 = vmatprep.subr.bf16.mxu0 0
    %1935 = vmatpush1.bf16.msra.mxu0 0
    %1936 = vmatprep.subr.bf16.mxu0 0
    %1937 = vmatpush1.bf16.msra.mxu0 0
    %1938 = vmatprep.subr.bf16.mxu0 0
    %1939 = vmatpush1.bf16.msra.mxu0 0
    %1940 = vmatprep.mubr.bf16.mxu0 0
    %1941 = vmatmul.mubr.bf16.gmra.mrb[0].mxu0 %v1868
    %v1942 = vpop.f32.mrb[0].mxu0
    %v1943 = vadd.f32 0.0, %v1942
    %v1944 = vpop.f32.mrb[0].mxu0
    %v1945 = vpop.f32.mrb[0].mxu0
    %v1946 = vadd.f32 0.0, %v1945
    %v1947 = vpop.f32.mrb[0].mxu0
    %1948 = vmatprep.mubr.bf16.mxu0 0
    %1949 = vmatmul.mubr.bf16.gmra.mrb[0].mxu0 %v1869
    %v1950 = vpop.f32.mrb[0].mxu0
    %v1951 = vadd.f32 0.0, %v1950
    %v1952 = vpop.f32.mrb[0].mxu0
    %v1953 = vpop.f32.mrb[0].mxu0
    %v1954 = vadd.f32 0.0, %v1953
    %v1955 = vpop.f32.mrb[0].mxu0
    %1956 = vmatprep.mubr.bf16.mxu0 0
    %1957 = vmatmul.mubr.bf16.gmra.mrb[0].mxu0 %v1870
    %v1958 = vpop.f32.mrb[0].mxu0
    %v1959 = vadd.f32 0.0, %v1958
    %v1960 = vpop.f32.mrb[0].mxu0
    %v1961 = vpop.f32.mrb[0].mxu0
    %v1962 = vadd.f32 0.0, %v1961
    %v1963 = vpop.f32.mrb[0].mxu0
    %1964 = vmatprep.mubr.bf16.mxu0 0
    %1965 = vmatmul.mubr.bf16.gmra.mrb[0].mxu0 %v1871
    %v1966 = vpop.f32.mrb[0].mxu0
    %v1967 = vadd.f32 0.0, %v1966
    %v1968 = vpop.f32.mrb[0].mxu0
    %v1969 = vpop.f32.mrb[0].mxu0
    %v1970 = vadd.f32 0.0, %v1969
    %v1971 = vpop.f32.mrb[0].mxu0
    %1972 = vmatprep.mubr.bf16.mxu0 0
    %1973 = vmatmul.mubr.bf16.gmra.mrb[0].mxu0 %v1872
    %v1974 = vpop.f32.mrb[0].mxu0
    %v1975 = vadd.f32 0.0, %v1974
    %v1976 = vpop.f32.mrb[0].mxu0
    %v1977 = vpop.f32.mrb[0].mxu0
    %v1978 = vadd.f32 0.0, %v1977
    %v1979 = vpop.f32.mrb[0].mxu0
    %1980 = vmatprep.mubr.bf16.mxu0 0
    %1981 = vmatmul.mubr.bf16.gmra.mrb[0].mxu0 %v1873
    %v1982 = vpop.f32.mrb[0].mxu0
    %v1983 = vadd.f32 0.0, %v1982
    %v1984 = vpop.f32.mrb[0].mxu0
    %v1985 = vpop.f32.mrb[0].mxu0
    %v1986 = vadd.f32 0.0, %v1985
    %v1987 = vpop.f32.mrb[0].mxu0
    %1988 = vmatprep.mubr.bf16.mxu0 0
    %1989 = vmatmul.mubr.bf16.gmra.mrb[0].mxu0 %v1874
    %v1990 = vpop.f32.mrb[0].mxu0
    %v1991 = vadd.f32 0.0, %v1990
    %v1992 = vpop.f32.mrb[0].mxu0
    %v1993 = vpop.f32.mrb[0].mxu0
    %v1994 = vadd.f32 0.0, %v1993
    %v1995 = vpop.f32.mrb[0].mxu0
    %1996 = vmatprep.mubr.bf16.mxu0 0
    %1997 = vmatmul.mubr.bf16.gmra.mrb[0].mxu0 %v1875
    %v1998 = vpop.f32.mrb[0].mxu0
    %v1999 = vadd.f32 0.0, %v1998
    %v2000 = vpop.f32.mrb[0].mxu0
    %v2001 = vpop.f32.mrb[0].mxu0
    %v2002 = vadd.f32 0.0, %v2001
    %v2003 = vpop.f32.mrb[0].mxu0
    %2004 = vdwg.mxu0
    %v2005 = vpack.c.bf16 %v1946, %v1943
    %v2006 = vpack.c.bf16 %v1954, %v1951
    %v2007 = vpack.c.bf16 %v1962, %v1959
    %v2008 = vpack.c.bf16 %v1970, %v1967
    %v2009 = vpack.c.bf16 %v1978, %v1975
    %v2010 = vpack.c.bf16 %v1986, %v1983
    %v2011 = vpack.c.bf16 %v1994, %v1991
    %v2012 = vpack.c.bf16 %v2002, %v1999
    %2021 = vrot.lane.b32.xlu0 %v2005, 32
    %v2022 = vpop.permute.xlu0 %2021
    %2023 = vrot.lane.b32.xlu0 %v2006, 32
    %v2024 = vpop.permute.xlu0 %2023
    %2025 = vrot.lane.b32.xlu0 %v2007, 32
    %v2026 = vpop.permute.xlu0 %2025
    %2027 = vrot.lane.b32.xlu0 %v2008, 32
    %v2028 = vpop.permute.xlu0 %2027
    %2029 = vrot.lane.b32.xlu0 %v2009, 32
    %v2030 = vpop.permute.xlu0 %2029
    %2031 = vrot.lane.b32.xlu0 %v2010, 32
    %v2032 = vpop.permute.xlu0 %2031
    %2033 = vrot.lane.b32.xlu0 %v2011, 32
    %v2034 = vpop.permute.xlu0 %2033
    %2035 = vrot.lane.b32.xlu0 %v2012, 32
    %v2036 = vpop.permute.xlu0 %2035
    %vm2045 = vcmask 523520
    %2046 = vst.msk [vmem:[#allocation3] sm:$0xff] %vm2045, %v2022
    %2047 = vst.msk [vmem:[#allocation3 + $0x8] sm:$0xff] %vm2045, %v2024
    %2048 = vst.msk [vmem:[#allocation3 + $0x10] sm:$0xff] %vm2045, %v2026
    %2049 = vst.msk [vmem:[#allocation3 + $0x18] sm:$0xff] %vm2045, %v2028
    %2050 = vst.msk [vmem:[#allocation3 + $0x20] sm:$0xff] %vm2045, %v2030
    %2051 = vst.msk [vmem:[#allocation3 + $0x28] sm:$0xff] %vm2045, %v2032
    %2052 = vst.msk [vmem:[#allocation3 + $0x30] sm:$0xff] %vm2045, %v2034
    %2053 = vst.msk [vmem:[#allocation3 + $0x38] sm:$0xff] %vm2045, %v2036
    %v2054 = vld [vmem:[#allocation2] sm:$0xff]
    %v2055 = vld [vmem:[#allocation2 + $0x18] sm:$0xff]
    %v2056 = vld [vmem:[#allocation2 + $0x30] sm:$0xff]
    %v2057 = vld [vmem:[#allocation2 + $0x48] sm:$0xff]
    %v2058 = vld [vmem:[#allocation2 + $0x60] sm:$0xff]
    %v2059 = vld [vmem:[#allocation2 + $0x78] sm:$0xff]
    %v2060 = vld [vmem:[#allocation2 + $0x90] sm:$0xff]
    %v2061 = vld [vmem:[#allocation2 + $0xa8] sm:$0xff]
    %v2062 = vld [vmem:[#allocation2 + $0x8] sm:$0xff]
    %v2063 = vld [vmem:[#allocation2 + $0x20] sm:$0xff]
    %v2064 = vld [vmem:[#allocation2 + $0x38] sm:$0xff]
    %v2065 = vld [vmem:[#allocation2 + $0x50] sm:$0xff]
    %v2066 = vld [vmem:[#allocation2 + $0x68] sm:$0xff]
    %v2067 = vld [vmem:[#allocation2 + $0x80] sm:$0xff]
    %v2068 = vld [vmem:[#allocation2 + $0x98] sm:$0xff]
    %v2069 = vld [vmem:[#allocation2 + $0xb0] sm:$0xff]
    %v2070 = vld [vmem:[#allocation2 + $0x10] sm:$0xff]
    %v2071 = vld [vmem:[#allocation2 + $0x28] sm:$0xff]
    %v2072 = vld [vmem:[#allocation2 + $0x40] sm:$0xff]
    %v2073 = vld [vmem:[#allocation2 + $0x58] sm:$0xff]
    %v2074 = vld [vmem:[#allocation2 + $0x70] sm:$0xff]
    %v2075 = vld [vmem:[#allocation2 + $0x88] sm:$0xff]
    %v2076 = vld [vmem:[#allocation2 + $0xa0] sm:$0xff]
    %v2077 = vld [vmem:[#allocation2 + $0xb8] sm:$0xff]
    %v2078 = vld [vmem:[#allocation4] sm:$0xff]
    %v2079 = vld [vmem:[#allocation4 + $0x8] sm:$0xff]
    %v2080 = vld [vmem:[#allocation4 + $0x10] sm:$0xff]
    %v2081 = vld [vmem:[#allocation4 + $0x18] sm:$0xff]
    %v2082 = vld [vmem:[#allocation4 + $0x20] sm:$0xff]
    %v2083 = vld [vmem:[#allocation4 + $0x28] sm:$0xff]
    %v2084 = vld [vmem:[#allocation4 + $0x30] sm:$0xff]
    %v2085 = vld [vmem:[#allocation4 + $0x38] sm:$0xff]
    %v2086 = vld [vmem:[#allocation4 + $0x40] sm:$0xff]
    %v2087 = vld [vmem:[#allocation4 + $0x48] sm:$0xff]
    %v2088 = vld [vmem:[#allocation4 + $0x50] sm:$0xff]
    %v2089 = vld [vmem:[#allocation4 + $0x58] sm:$0xff]
    %v2090 = vld [vmem:[#allocation4 + $0x60] sm:$0xff]
    %v2091 = vld [vmem:[#allocation4 + $0x68] sm:$0xff]
    %v2092 = vld [vmem:[#allocation4 + $0x70] sm:$0xff]
    %v2093 = vld [vmem:[#allocation4 + $0x78] sm:$0xff]
    %2102 = vrot.lane.b32.xlu0 %v2054, 64
    %v2103 = vpop.permute.xlu0 %2102
    %2104 = vrot.lane.b32.xlu0 %v2055, 64
    %v2105 = vpop.permute.xlu0 %2104
    %2106 = vrot.lane.b32.xlu0 %v2056, 64
    %v2107 = vpop.permute.xlu0 %2106
    %2108 = vrot.lane.b32.xlu0 %v2057, 64
    %v2109 = vpop.permute.xlu0 %2108
    %2110 = vrot.lane.b32.xlu0 %v2058, 64
    %v2111 = vpop.permute.xlu0 %2110
    %2112 = vrot.lane.b32.xlu0 %v2059, 64
    %v2113 = vpop.permute.xlu0 %2112
    %2114 = vrot.lane.b32.xlu0 %v2060, 64
    %v2115 = vpop.permute.xlu0 %2114
    %2116 = vrot.lane.b32.xlu0 %v2061, 64
    %v2117 = vpop.permute.xlu0 %2116
    %2126 = vrot.lane.b32.xlu0 %v2062, 64
    %v2127 = vpop.permute.xlu0 %2126
    %2128 = vrot.lane.b32.xlu0 %v2063, 64
    %v2129 = vpop.permute.xlu0 %2128
    %2130 = vrot.lane.b32.xlu0 %v2064, 64
    %v2131 = vpop.permute.xlu0 %2130
    %2132 = vrot.lane.b32.xlu0 %v2065, 64
    %v2133 = vpop.permute.xlu0 %2132
    %2134 = vrot.lane.b32.xlu0 %v2066, 64
    %v2135 = vpop.permute.xlu0 %2134
    %2136 = vrot.lane.b32.xlu0 %v2067, 64
    %v2137 = vpop.permute.xlu0 %2136
    %2138 = vrot.lane.b32.xlu0 %v2068, 64
    %v2139 = vpop.permute.xlu0 %2138
    %2140 = vrot.lane.b32.xlu0 %v2069, 64
    %v2141 = vpop.permute.xlu0 %2140
    %v2143 = vsel %vm1080, %v2103, 0
    %v2146 = vsel %vm1080, %v2105, 0
    %v2149 = vsel %vm1080, %v2107, 0
    %v2152 = vsel %vm1080, %v2109, 0
    %v2155 = vsel %vm1080, %v2111, 0
    %v2158 = vsel %vm1080, %v2113, 0
    %v2161 = vsel %vm1080, %v2115, 0
    %v2164 = vsel %vm1080, %v2117, 0
    %v2167 = vsel %vm1080, %v2127, 0
    %v2170 = vsel %vm1080, %v2129, 0
    %v2173 = vsel %vm1080, %v2131, 0
    %v2176 = vsel %vm1080, %v2133, 0
    %v2179 = vsel %vm1080, %v2135, 0
    %v2182 = vsel %vm1080, %v2137, 0
    %v2185 = vsel %vm1080, %v2139, 0
    %v2188 = vsel %vm1080, %v2141, 0
    %2190 = vmatprep.subr.bf16.mxu0 0
    %2191 = vmatpush1.bf16.xpose.msra.mxu0 %v2167
    %2192 = vmatprep.subr.bf16.mxu0 0
    %2193 = vmatpush1.bf16.xpose.msra.mxu0 %v2170
    %2194 = vmatprep.subr.bf16.mxu0 0
    %2195 = vmatpush1.bf16.xpose.msra.mxu0 %v2173
    %2196 = vmatprep.subr.bf16.mxu0 0
    %2197 = vmatpush1.bf16.xpose.msra.mxu0 %v2176
    %2198 = vmatprep.subr.bf16.mxu0 0
    %2199 = vmatpush1.bf16.xpose.msra.mxu0 %v2179
    %2200 = vmatprep.subr.bf16.mxu0 0
    %2201 = vmatpush1.bf16.xpose.msra.mxu0 %v2182
    %2202 = vmatprep.subr.bf16.mxu0 0
    %2203 = vmatpush1.bf16.xpose.msra.mxu0 %v2185
    %2204 = vmatprep.subr.bf16.mxu0 0
    %2205 = vmatpush1.bf16.xpose.msra.mxu0 %v2188
    %2206 = vmatprep.subr.bf16.mxu0 0
    %2207 = vmatpush1.bf16.xpose.msra.mxu0 0
    %2208 = vmatprep.subr.bf16.mxu0 0
    %2209 = vmatpush1.bf16.xpose.msra.mxu0 0
    %2210 = vmatprep.subr.bf16.mxu0 0
    %2211 = vmatpush1.bf16.xpose.msra.mxu0 0
    %2212 = vmatprep.subr.bf16.mxu0 0
    %2213 = vmatpush1.bf16.xpose.msra.mxu0 0
    %2214 = vmatprep.subr.bf16.mxu0 0
    %2215 = vmatpush1.bf16.xpose.msra.mxu0 0
    %2216 = vmatprep.subr.bf16.mxu0 0
    %2217 = vmatpush1.bf16.xpose.msra.mxu0 0
    %2218 = vmatprep.subr.bf16.mxu0 0
    %2219 = vmatpush1.bf16.xpose.msra.mxu0 0
    %2220 = vmatprep.subr.bf16.mxu0 0
    %2221 = vmatpush1.bf16.xpose.msra.mxu0 0
    %2222 = vmatprep.mubr.bf16.mxu0 0
    %2223 = vmatmul.mubr.bf16.gmra.mrb[0].mxu0 %v2143
    %v2224 = vpop.f32.mrb[0].mxu0
    %v2225 = vadd.f32 %v2078, %v2224
    %v2226 = vpop.f32.mrb[0].mxu0
    %v2227 = vpop.f32.mrb[0].mxu0
    %v2228 = vadd.f32 %v2079, %v2227
    %v2229 = vpop.f32.mrb[0].mxu0
    %2230 = vmatprep.mubr.bf16.mxu0 0
    %2231 = vmatmul.mubr.bf16.gmra.mrb[0].mxu0 %v2146
    %v2232 = vpop.f32.mrb[0].mxu0
    %v2233 = vadd.f32 %v2080, %v2232
    %v2234 = vpop.f32.mrb[0].mxu0
    %v2235 = vpop.f32.mrb[0].mxu0
    %v2236 = vadd.f32 %v2081, %v2235
    %v2237 = vpop.f32.mrb[0].mxu0
    %2238 = vmatprep.mubr.bf16.mxu0 0
    %2239 = vmatmul.mubr.bf16.gmra.mrb[0].mxu0 %v2149
    %v2240 = vpop.f32.mrb[0].mxu0
    %v2241 = vadd.f32 %v2082, %v2240
    %v2242 = vpop.f32.mrb[0].mxu0
    %v2243 = vpop.f32.mrb[0].mxu0
    %v2244 = vadd.f32 %v2083, %v2243
    %v2245 = vpop.f32.mrb[0].mxu0
    %2246 = vmatprep.mubr.bf16.mxu0 0
    %2247 = vmatmul.mubr.bf16.gmra.mrb[0].mxu0 %v2152
    %v2248 = vpop.f32.mrb[0].mxu0
    %v2249 = vadd.f32 %v2084, %v2248
    %v2250 = vpop.f32.mrb[0].mxu0
    %v2251 = vpop.f32.mrb[0].mxu0
    %v2252 = vadd.f32 %v2085, %v2251
    %v2253 = vpop.f32.mrb[0].mxu0
    %2254 = vmatprep.mubr.bf16.mxu0 0
    %2255 = vmatmul.mubr.bf16.gmra.mrb[0].mxu0 %v2155
    %v2256 = vpop.f32.mrb[0].mxu0
    %v2257 = vadd.f32 %v2086, %v2256
    %v2258 = vpop.f32.mrb[0].mxu0
    %v2259 = vpop.f32.mrb[0].mxu0
    %v2260 = vadd.f32 %v2087, %v2259
    %v2261 = vpop.f32.mrb[0].mxu0
    %2262 = vmatprep.mubr.bf16.mxu0 0
    %2263 = vmatmul.mubr.bf16.gmra.mrb[0].mxu0 %v2158
    %v2264 = vpop.f32.mrb[0].mxu0
    %v2265 = vadd.f32 %v2088, %v2264
    %v2266 = vpop.f32.mrb[0].mxu0
    %v2267 = vpop.f32.mrb[0].mxu0
    %v2268 = vadd.f32 %v2089, %v2267
    %v2269 = vpop.f32.mrb[0].mxu0
    %2270 = vmatprep.mubr.bf16.mxu0 0
    %2271 = vmatmul.mubr.bf16.gmra.mrb[0].mxu0 %v2161
    %v2272 = vpop.f32.mrb[0].mxu0
    %v2273 = vadd.f32 %v2090, %v2272
    %v2274 = vpop.f32.mrb[0].mxu0
    %v2275 = vpop.f32.mrb[0].mxu0
    %v2276 = vadd.f32 %v2091, %v2275
    %v2277 = vpop.f32.mrb[0].mxu0
    %2278 = vmatprep.mubr.bf16.mxu0 0
    %2279 = vmatmul.mubr.bf16.gmra.mrb[0].mxu0 %v2164
    %v2280 = vpop.f32.mrb[0].mxu0
    %v2281 = vadd.f32 %v2092, %v2280
    %v2282 = vpop.f32.mrb[0].mxu0
    %v2283 = vpop.f32.mrb[0].mxu0
    %v2284 = vadd.f32 %v2093, %v2283
    %v2285 = vpop.f32.mrb[0].mxu0
    %2286 = vdwg.mxu0
    %2287 = vmax.xlane.f32.xlu0 %v2225
    %v2288 = vpop.xlane.xlu0 %2287
    %2289 = vmax.xlane.f32.xlu0 %v2228
    %v2290 = vpop.xlane.xlu0 %2289
    %2291 = vmax.xlane.f32.xlu0 %v2233
    %v2292 = vpop.xlane.xlu0 %2291
    %2293 = vmax.xlane.f32.xlu0 %v2236
    %v2294 = vpop.xlane.xlu0 %2293
    %2295 = vmax.xlane.f32.xlu0 %v2241
    %v2296 = vpop.xlane.xlu0 %2295
    %2297 = vmax.xlane.f32.xlu0 %v2244
    %v2298 = vpop.xlane.xlu0 %2297
    %2299 = vmax.xlane.f32.xlu0 %v2249
    %v2300 = vpop.xlane.xlu0 %2299
    %2301 = vmax.xlane.f32.xlu0 %v2252
    %v2302 = vpop.xlane.xlu0 %2301
    %2303 = vmax.xlane.f32.xlu0 %v2257
    %v2304 = vpop.xlane.xlu0 %2303
    %2305 = vmax.xlane.f32.xlu0 %v2260
    %v2306 = vpop.xlane.xlu0 %2305
    %2307 = vmax.xlane.f32.xlu0 %v2265
    %v2308 = vpop.xlane.xlu0 %2307
    %2309 = vmax.xlane.f32.xlu0 %v2268
    %v2310 = vpop.xlane.xlu0 %2309
    %2311 = vmax.xlane.f32.xlu0 %v2273
    %v2312 = vpop.xlane.xlu0 %2311
    %2313 = vmax.xlane.f32.xlu0 %v2276
    %v2314 = vpop.xlane.xlu0 %2313
    %2315 = vmax.xlane.f32.xlu0 %v2281
    %v2316 = vpop.xlane.xlu0 %2315
    %2317 = vmax.xlane.f32.xlu0 %v2284
    %v2318 = vpop.xlane.xlu0 %2317
    %v2319 = vsub.f32 %v2225, %v2288
    %v2320 = vsub.f32 %v2228, %v2290
    %v2321 = vsub.f32 %v2233, %v2292
    %v2322 = vsub.f32 %v2236, %v2294
    %v2323 = vsub.f32 %v2241, %v2296
    %v2324 = vsub.f32 %v2244, %v2298
    %v2325 = vsub.f32 %v2249, %v2300
    %v2326 = vsub.f32 %v2252, %v2302
    %v2327 = vsub.f32 %v2257, %v2304
    %v2328 = vsub.f32 %v2260, %v2306
    %v2329 = vsub.f32 %v2265, %v2308
    %v2330 = vsub.f32 %v2268, %v2310
    %v2331 = vsub.f32 %v2273, %v2312
    %v2332 = vsub.f32 %v2276, %v2314
    %v2333 = vsub.f32 %v2281, %v2316
    %v2334 = vsub.f32 %v2284, %v2318
    %v2335 = vmul.f32 %v2319, 1.442695
    %v2336 = vpow.pop %v2335
    %v2337 = vmul.f32 %v2320, 1.442695
    %v2338 = vpow.pop %v2337
    %v2339 = vmul.f32 %v2321, 1.442695
    %v2340 = vpow.pop %v2339
    %v2341 = vmul.f32 %v2322, 1.442695
    %v2342 = vpow.pop %v2341
    %v2343 = vmul.f32 %v2323, 1.442695
    %v2344 = vpow.pop %v2343
    %v2345 = vmul.f32 %v2324, 1.442695
    %v2346 = vpow.pop %v2345
    %v2347 = vmul.f32 %v2325, 1.442695
    %v2348 = vpow.pop %v2347
    %v2349 = vmul.f32 %v2326, 1.442695
    %v2350 = vpow.pop %v2349
    %v2351 = vmul.f32 %v2327, 1.442695
    %v2352 = vpow.pop %v2351
    %v2353 = vmul.f32 %v2328, 1.442695
    %v2354 = vpow.pop %v2353
    %v2355 = vmul.f32 %v2329, 1.442695
    %v2356 = vpow.pop %v2355
    %v2357 = vmul.f32 %v2330, 1.442695
    %v2358 = vpow.pop %v2357
    %v2359 = vmul.f32 %v2331, 1.442695
    %v2360 = vpow.pop %v2359
    %v2361 = vmul.f32 %v2332, 1.442695
    %v2362 = vpow.pop %v2361
    %v2363 = vmul.f32 %v2333, 1.442695
    %v2364 = vpow.pop %v2363
    %v2365 = vmul.f32 %v2334, 1.442695
    %v2366 = vpow.pop %v2365
    %2367 = vadd.xlane.f32.xlu0 %v2336
    %v2368 = vpop.xlane.xlu0 %2367
    %2369 = vadd.xlane.f32.xlu0 %v2338
    %v2370 = vpop.xlane.xlu0 %2369
    %2371 = vadd.xlane.f32.xlu0 %v2340
    %v2372 = vpop.xlane.xlu0 %2371
    %2373 = vadd.xlane.f32.xlu0 %v2342
    %v2374 = vpop.xlane.xlu0 %2373
    %2375 = vadd.xlane.f32.xlu0 %v2344
    %v2376 = vpop.xlane.xlu0 %2375
    %2377 = vadd.xlane.f32.xlu0 %v2346
    %v2378 = vpop.xlane.xlu0 %2377
    %2379 = vadd.xlane.f32.xlu0 %v2348
    %v2380 = vpop.xlane.xlu0 %2379
    %2381 = vadd.xlane.f32.xlu0 %v2350
    %v2382 = vpop.xlane.xlu0 %2381
    %2383 = vadd.xlane.f32.xlu0 %v2352
    %v2384 = vpop.xlane.xlu0 %2383
    %2385 = vadd.xlane.f32.xlu0 %v2354
    %v2386 = vpop.xlane.xlu0 %2385
    %2387 = vadd.xlane.f32.xlu0 %v2356
    %v2388 = vpop.xlane.xlu0 %2387
    %2389 = vadd.xlane.f32.xlu0 %v2358
    %v2390 = vpop.xlane.xlu0 %2389
    %2391 = vadd.xlane.f32.xlu0 %v2360
    %v2392 = vpop.xlane.xlu0 %2391
    %2393 = vadd.xlane.f32.xlu0 %v2362
    %v2394 = vpop.xlane.xlu0 %2393
    %2395 = vadd.xlane.f32.xlu0 %v2364
    %v2396 = vpop.xlane.xlu0 %2395
    %2397 = vadd.xlane.f32.xlu0 %v2366
    %v2398 = vpop.xlane.xlu0 %2397
    %v2399 = vrcp.pop %v2368
    %v2400 = vrcp.pop %v2370
    %v2401 = vrcp.pop %v2372
    %v2402 = vrcp.pop %v2374
    %v2403 = vrcp.pop %v2376
    %v2404 = vrcp.pop %v2378
    %v2405 = vrcp.pop %v2380
    %v2406 = vrcp.pop %v2382
    %v2407 = vrcp.pop %v2384
    %v2408 = vrcp.pop %v2386
    %v2409 = vrcp.pop %v2388
    %v2410 = vrcp.pop %v2390
    %v2411 = vrcp.pop %v2392
    %v2412 = vrcp.pop %v2394
    %v2413 = vrcp.pop %v2396
    %v2414 = vrcp.pop %v2398
    %v2415 = vmul.f32 %v2336, %v2399
    %v2416 = vmul.f32 %v2338, %v2400
    %v2417 = vmul.f32 %v2340, %v2401
    %v2418 = vmul.f32 %v2342, %v2402
    %v2419 = vmul.f32 %v2344, %v2403
    %v2420 = vmul.f32 %v2346, %v2404
    %v2421 = vmul.f32 %v2348, %v2405
    %v2422 = vmul.f32 %v2350, %v2406
    %v2423 = vmul.f32 %v2352, %v2407
    %v2424 = vmul.f32 %v2354, %v2408
    %v2425 = vmul.f32 %v2356, %v2409
    %v2426 = vmul.f32 %v2358, %v2410
    %v2427 = vmul.f32 %v2360, %v2411
    %v2428 = vmul.f32 %v2362, %v2412
    %v2429 = vmul.f32 %v2364, %v2413
    %v2430 = vmul.f32 %v2366, %v2414
    %v2431 = vpack.c.bf16 %v2416, %v2415
    %v2432 = vpack.c.bf16 %v2418, %v2417
    %v2433 = vpack.c.bf16 %v2420, %v2419
    %v2434 = vpack.c.bf16 %v2422, %v2421
    %v2435 = vpack.c.bf16 %v2424, %v2423
    %v2436 = vpack.c.bf16 %v2426, %v2425
    %v2437 = vpack.c.bf16 %v2428, %v2427
    %v2438 = vpack.c.bf16 %v2430, %v2429
    %2447 = vrot.lane.b32.xlu0 %v2070, 64
    %v2448 = vpop.permute.xlu0 %2447
    %2449 = vrot.lane.b32.xlu0 %v2071, 64
    %v2450 = vpop.permute.xlu0 %2449
    %2451 = vrot.lane.b32.xlu0 %v2072, 64
    %v2452 = vpop.permute.xlu0 %2451
    %2453 = vrot.lane.b32.xlu0 %v2073, 64
    %v2454 = vpop.permute.xlu0 %2453
    %2455 = vrot.lane.b32.xlu0 %v2074, 64
    %v2456 = vpop.permute.xlu0 %2455
    %2457 = vrot.lane.b32.xlu0 %v2075, 64
    %v2458 = vpop.permute.xlu0 %2457
    %2459 = vrot.lane.b32.xlu0 %v2076, 64
    %v2460 = vpop.permute.xlu0 %2459
    %2461 = vrot.lane.b32.xlu0 %v2077, 64
    %v2462 = vpop.permute.xlu0 %2461
    %2471 = vmatprep.subr.bf16.mxu0 0
    %2472 = vmatpush1.bf16.msra.mxu0 %v2448
    %2473 = vmatprep.subr.bf16.mxu0 0
    %2474 = vmatpush1.bf16.msra.mxu0 %v2450
    %2475 = vmatprep.subr.bf16.mxu0 0
    %2476 = vmatpush1.bf16.msra.mxu0 %v2452
    %2477 = vmatprep.subr.bf16.mxu0 0
    %2478 = vmatpush1.bf16.msra.mxu0 %v2454
    %2479 = vmatprep.subr.bf16.mxu0 0
    %2480 = vmatpush1.bf16.msra.mxu0 %v2456
    %2481 = vmatprep.subr.bf16.mxu0 0
    %2482 = vmatpush1.bf16.msra.mxu0 %v2458
    %2483 = vmatprep.subr.bf16.mxu0 0
    %2484 = vmatpush1.bf16.msra.mxu0 %v2460
    %2485 = vmatprep.subr.bf16.mxu0 0
    %2486 = vmatpush1.bf16.msra.mxu0 %v2462
    %2487 = vmatprep.subr.bf16.mxu0 0
    %2488 = vmatpush1.bf16.msra.mxu0 0
    %2489 = vmatprep.subr.bf16.mxu0 0
    %2490 = vmatpush1.bf16.msra.mxu0 0
    %2491 = vmatprep.subr.bf16.mxu0 0
    %2492 = vmatpush1.bf16.msra.mxu0 0
    %2493 = vmatprep.subr.bf16.mxu0 0
    %2494 = vmatpush1.bf16.msra.mxu0 0
    %2495 = vmatprep.subr.bf16.mxu0 0
    %2496 = vmatpush1.bf16.msra.mxu0 0
    %2497 = vmatprep.subr.bf16.mxu0 0
    %2498 = vmatpush1.bf16.msra.mxu0 0
    %2499 = vmatprep.subr.bf16.mxu0 0
    %2500 = vmatpush1.bf16.msra.mxu0 0
    %2501 = vmatprep.subr.bf16.mxu0 0
    %2502 = vmatpush1.bf16.msra.mxu0 0
    %2503 = vmatprep.mubr.bf16.mxu0 0
    %2504 = vmatmul.mubr.bf16.gmra.mrb[0].mxu0 %v2431
    %v2505 = vpop.f32.mrb[0].mxu0
    %v2506 = vadd.f32 0.0, %v2505
    %v2507 = vpop.f32.mrb[0].mxu0
    %v2508 = vpop.f32.mrb[0].mxu0
    %v2509 = vadd.f32 0.0, %v2508
    %v2510 = vpop.f32.mrb[0].mxu0
    %2511 = vmatprep.mubr.bf16.mxu0 0
    %2512 = vmatmul.mubr.bf16.gmra.mrb[0].mxu0 %v2432
    %v2513 = vpop.f32.mrb[0].mxu0
    %v2514 = vadd.f32 0.0, %v2513
    %v2515 = vpop.f32.mrb[0].mxu0
    %v2516 = vpop.f32.mrb[0].mxu0
    %v2517 = vadd.f32 0.0, %v2516
    %v2518 = vpop.f32.mrb[0].mxu0
    %2519 = vmatprep.mubr.bf16.mxu0 0
    %2520 = vmatmul.mubr.bf16.gmra.mrb[0].mxu0 %v2433
    %v2521 = vpop.f32.mrb[0].mxu0
    %v2522 = vadd.f32 0.0, %v2521
    %v2523 = vpop.f32.mrb[0].mxu0
    %v2524 = vpop.f32.mrb[0].mxu0
    %v2525 = vadd.f32 0.0, %v2524
    %v2526 = vpop.f32.mrb[0].mxu0
    %2527 = vmatprep.mubr.bf16.mxu0 0
    %2528 = vmatmul.mubr.bf16.gmra.mrb[0].mxu0 %v2434
    %v2529 = vpop.f32.mrb[0].mxu0
    %v2530 = vadd.f32 0.0, %v2529
    %v2531 = vpop.f32.mrb[0].mxu0
    %v2532 = vpop.f32.mrb[0].mxu0
    %v2533 = vadd.f32 0.0, %v2532
    %v2534 = vpop.f32.mrb[0].mxu0
    %2535 = vmatprep.mubr.bf16.mxu0 0
    %2536 = vmatmul.mubr.bf16.gmra.mrb[0].mxu0 %v2435
    %v2537 = vpop.f32.mrb[0].mxu0
    %v2538 = vadd.f32 0.0, %v2537
    %v2539 = vpop.f32.mrb[0].mxu0
    %v2540 = vpop.f32.mrb[0].mxu0
    %v2541 = vadd.f32 0.0, %v2540
    %v2542 = vpop.f32.mrb[0].mxu0
    %2543 = vmatprep.mubr.bf16.mxu0 0
    %2544 = vmatmul.mubr.bf16.gmra.mrb[0].mxu0 %v2436
    %v2545 = vpop.f32.mrb[0].mxu0
    %v2546 = vadd.f32 0.0, %v2545
    %v2547 = vpop.f32.mrb[0].mxu0
    %v2548 = vpop.f32.mrb[0].mxu0
    %v2549 = vadd.f32 0.0, %v2548
    %v2550 = vpop.f32.mrb[0].mxu0
    %2551 = vmatprep.mubr.bf16.mxu0 0
    %2552 = vmatmul.mubr.bf16.gmra.mrb[0].mxu0 %v2437
    %v2553 = vpop.f32.mrb[0].mxu0
    %v2554 = vadd.f32 0.0, %v2553
    %v2555 = vpop.f32.mrb[0].mxu0
    %v2556 = vpop.f32.mrb[0].mxu0
    %v2557 = vadd.f32 0.0, %v2556
    %v2558 = vpop.f32.mrb[0].mxu0
    %2559 = vmatprep.mubr.bf16.mxu0 0
    %2560 = vmatmul.mubr.bf16.gmra.mrb[0].mxu0 %v2438
    %v2561 = vpop.f32.mrb[0].mxu0
    %v2562 = vadd.f32 0.0, %v2561
    %v2563 = vpop.f32.mrb[0].mxu0
    %v2564 = vpop.f32.mrb[0].mxu0
    %v2565 = vadd.f32 0.0, %v2564
    %v2566 = vpop.f32.mrb[0].mxu0
    %2567 = vdwg.mxu0
    %v2568 = vpack.c.bf16 %v2509, %v2506
    %v2569 = vpack.c.bf16 %v2517, %v2514
    %v2570 = vpack.c.bf16 %v2525, %v2522
    %v2571 = vpack.c.bf16 %v2533, %v2530
    %v2572 = vpack.c.bf16 %v2541, %v2538
    %v2573 = vpack.c.bf16 %v2549, %v2546
    %v2574 = vpack.c.bf16 %v2557, %v2554
    %v2575 = vpack.c.bf16 %v2565, %v2562
    %2584 = vrot.lane.b32.xlu0 %v2568, 64
    %v2585 = vpop.permute.xlu0 %2584
    %2586 = vrot.lane.b32.xlu0 %v2569, 64
    %v2587 = vpop.permute.xlu0 %2586
    %2588 = vrot.lane.b32.xlu0 %v2570, 64
    %v2589 = vpop.permute.xlu0 %2588
    %2590 = vrot.lane.b32.xlu0 %v2571, 64
    %v2591 = vpop.permute.xlu0 %2590
    %2592 = vrot.lane.b32.xlu0 %v2572, 64
    %v2593 = vpop.permute.xlu0 %2592
    %2594 = vrot.lane.b32.xlu0 %v2573, 64
    %v2595 = vpop.permute.xlu0 %2594
    %2596 = vrot.lane.b32.xlu0 %v2574, 64
    %v2597 = vpop.permute.xlu0 %2596
    %2598 = vrot.lane.b32.xlu0 %v2575, 64
    %v2599 = vpop.permute.xlu0 %2598
    %vm2608 = vcmask 785920
    %2609 = vst.msk [vmem:[#allocation3] sm:$0xff] %vm2608, %v2585
    %2610 = vst.msk [vmem:[#allocation3 + $0x8] sm:$0xff] %vm2608, %v2587
    %2611 = vst.msk [vmem:[#allocation3 + $0x10] sm:$0xff] %vm2608, %v2589
    %2612 = vst.msk [vmem:[#allocation3 + $0x18] sm:$0xff] %vm2608, %v2591
    %2613 = vst.msk [vmem:[#allocation3 + $0x20] sm:$0xff] %vm2608, %v2593
    %2614 = vst.msk [vmem:[#allocation3 + $0x28] sm:$0xff] %vm2608, %v2595
    %2615 = vst.msk [vmem:[#allocation3 + $0x30] sm:$0xff] %vm2608, %v2597
    %2616 = vst.msk [vmem:[#allocation3 + $0x38] sm:$0xff] %vm2608, %v2599
    %v2617 = vld [vmem:[#allocation2] sm:$0xff]
    %v2618 = vld [vmem:[#allocation2 + $0x18] sm:$0xff]
    %v2619 = vld [vmem:[#allocation2 + $0x30] sm:$0xff]
    %v2620 = vld [vmem:[#allocation2 + $0x48] sm:$0xff]
    %v2621 = vld [vmem:[#allocation2 + $0x60] sm:$0xff]
    %v2622 = vld [vmem:[#allocation2 + $0x78] sm:$0xff]
    %v2623 = vld [vmem:[#allocation2 + $0x90] sm:$0xff]
    %v2624 = vld [vmem:[#allocation2 + $0xa8] sm:$0xff]
    %v2625 = vld [vmem:[#allocation2 + $0x8] sm:$0xff]
    %v2626 = vld [vmem:[#allocation2 + $0x20] sm:$0xff]
    %v2627 = vld [vmem:[#allocation2 + $0x38] sm:$0xff]
    %v2628 = vld [vmem:[#allocation2 + $0x50] sm:$0xff]
    %v2629 = vld [vmem:[#allocation2 + $0x68] sm:$0xff]
    %v2630 = vld [vmem:[#allocation2 + $0x80] sm:$0xff]
    %v2631 = vld [vmem:[#allocation2 + $0x98] sm:$0xff]
    %v2632 = vld [vmem:[#allocation2 + $0xb0] sm:$0xff]
    %v2633 = vld [vmem:[#allocation2 + $0x10] sm:$0xff]
    %v2634 = vld [vmem:[#allocation2 + $0x28] sm:$0xff]
    %v2635 = vld [vmem:[#allocation2 + $0x40] sm:$0xff]
    %v2636 = vld [vmem:[#allocation2 + $0x58] sm:$0xff]
    %v2637 = vld [vmem:[#allocation2 + $0x70] sm:$0xff]
    %v2638 = vld [vmem:[#allocation2 + $0x88] sm:$0xff]
    %v2639 = vld [vmem:[#allocation2 + $0xa0] sm:$0xff]
    %v2640 = vld [vmem:[#allocation2 + $0xb8] sm:$0xff]
    %v2641 = vld [vmem:[#allocation4] sm:$0xff]
    %v2642 = vld [vmem:[#allocation4 + $0x8] sm:$0xff]
    %v2643 = vld [vmem:[#allocation4 + $0x10] sm:$0xff]
    %v2644 = vld [vmem:[#allocation4 + $0x18] sm:$0xff]
    %v2645 = vld [vmem:[#allocation4 + $0x20] sm:$0xff]
    %v2646 = vld [vmem:[#allocation4 + $0x28] sm:$0xff]
    %v2647 = vld [vmem:[#allocation4 + $0x30] sm:$0xff]
    %v2648 = vld [vmem:[#allocation4 + $0x38] sm:$0xff]
    %v2649 = vld [vmem:[#allocation4 + $0x40] sm:$0xff]
    %v2650 = vld [vmem:[#allocation4 + $0x48] sm:$0xff]
    %v2651 = vld [vmem:[#allocation4 + $0x50] sm:$0xff]
    %v2652 = vld [vmem:[#allocation4 + $0x58] sm:$0xff]
    %v2653 = vld [vmem:[#allocation4 + $0x60] sm:$0xff]
    %v2654 = vld [vmem:[#allocation4 + $0x68] sm:$0xff]
    %v2655 = vld [vmem:[#allocation4 + $0x70] sm:$0xff]
    %v2656 = vld [vmem:[#allocation4 + $0x78] sm:$0xff]
    %2665 = vrot.lane.b32.xlu0 %v2617, 32
    %v2666 = vpop.permute.xlu0 %2665
    %2667 = vrot.lane.b32.xlu0 %v2618, 32
    %v2668 = vpop.permute.xlu0 %2667
    %2669 = vrot.lane.b32.xlu0 %v2619, 32
    %v2670 = vpop.permute.xlu0 %2669
    %2671 = vrot.lane.b32.xlu0 %v2620, 32
    %v2672 = vpop.permute.xlu0 %2671
    %2673 = vrot.lane.b32.xlu0 %v2621, 32
    %v2674 = vpop.permute.xlu0 %2673
    %2675 = vrot.lane.b32.xlu0 %v2622, 32
    %v2676 = vpop.permute.xlu0 %2675
    %2677 = vrot.lane.b32.xlu0 %v2623, 32
    %v2678 = vpop.permute.xlu0 %2677
    %2679 = vrot.lane.b32.xlu0 %v2624, 32
    %v2680 = vpop.permute.xlu0 %2679
    %2689 = vrot.lane.b32.xlu0 %v2625, 32
    %v2690 = vpop.permute.xlu0 %2689
    %2691 = vrot.lane.b32.xlu0 %v2626, 32
    %v2692 = vpop.permute.xlu0 %2691
    %2693 = vrot.lane.b32.xlu0 %v2627, 32
    %v2694 = vpop.permute.xlu0 %2693
    %2695 = vrot.lane.b32.xlu0 %v2628, 32
    %v2696 = vpop.permute.xlu0 %2695
    %2697 = vrot.lane.b32.xlu0 %v2629, 32
    %v2698 = vpop.permute.xlu0 %2697
    %2699 = vrot.lane.b32.xlu0 %v2630, 32
    %v2700 = vpop.permute.xlu0 %2699
    %2701 = vrot.lane.b32.xlu0 %v2631, 32
    %v2702 = vpop.permute.xlu0 %2701
    %2703 = vrot.lane.b32.xlu0 %v2632, 32
    %v2704 = vpop.permute.xlu0 %2703
    %v2706 = vsel %vm1080, %v2666, 0
    %v2709 = vsel %vm1080, %v2668, 0
    %v2712 = vsel %vm1080, %v2670, 0
    %v2715 = vsel %vm1080, %v2672, 0
    %v2718 = vsel %vm1080, %v2674, 0
    %v2721 = vsel %vm1080, %v2676, 0
    %v2724 = vsel %vm1080, %v2678, 0
    %v2727 = vsel %vm1080, %v2680, 0
    %v2730 = vsel %vm1080, %v2690, 0
    %v2733 = vsel %vm1080, %v2692, 0
    %v2736 = vsel %vm1080, %v2694, 0
    %v2739 = vsel %vm1080, %v2696, 0
    %v2742 = vsel %vm1080, %v2698, 0
    %v2745 = vsel %vm1080, %v2700, 0
    %v2748 = vsel %vm1080, %v2702, 0
    %v2751 = vsel %vm1080, %v2704, 0
    %2753 = vmatprep.subr.bf16.mxu0 0
    %2754 = vmatpush1.bf16.xpose.msra.mxu0 %v2730
    %2755 = vmatprep.subr.bf16.mxu0 0
    %2756 = vmatpush1.bf16.xpose.msra.mxu0 %v2733
    %2757 = vmatprep.subr.bf16.mxu0 0
    %2758 = vmatpush1.bf16.xpose.msra.mxu0 %v2736
    %2759 = vmatprep.subr.bf16.mxu0 0
    %2760 = vmatpush1.bf16.xpose.msra.mxu0 %v2739
    %2761 = vmatprep.subr.bf16.mxu0 0
    %2762 = vmatpush1.bf16.xpose.msra.mxu0 %v2742
    %2763 = vmatprep.subr.bf16.mxu0 0
    %2764 = vmatpush1.bf16.xpose.msra.mxu0 %v2745
    %2765 = vmatprep.subr.bf16.mxu0 0
    %2766 = vmatpush1.bf16.xpose.msra.mxu0 %v2748
    %2767 = vmatprep.subr.bf16.mxu0 0
    %2768 = vmatpush1.bf16.xpose.msra.mxu0 %v2751
    %2769 = vmatprep.subr.bf16.mxu0 0
    %2770 = vmatpush1.bf16.xpose.msra.mxu0 0
    %2771 = vmatprep.subr.bf16.mxu0 0
    %2772 = vmatpush1.bf16.xpose.msra.mxu0 0
    %2773 = vmatprep.subr.bf16.mxu0 0
    %2774 = vmatpush1.bf16.xpose.msra.mxu0 0
    %2775 = vmatprep.subr.bf16.mxu0 0
    %2776 = vmatpush1.bf16.xpose.msra.mxu0 0
    %2777 = vmatprep.subr.bf16.mxu0 0
    %2778 = vmatpush1.bf16.xpose.msra.mxu0 0
    %2779 = vmatprep.subr.bf16.mxu0 0
    %2780 = vmatpush1.bf16.xpose.msra.mxu0 0
    %2781 = vmatprep.subr.bf16.mxu0 0
    %2782 = vmatpush1.bf16.xpose.msra.mxu0 0
    %2783 = vmatprep.subr.bf16.mxu0 0
    %2784 = vmatpush1.bf16.xpose.msra.mxu0 0
    %2785 = vmatprep.mubr.bf16.mxu0 0
    %2786 = vmatmul.mubr.bf16.gmra.mrb[0].mxu0 %v2706
    %v2787 = vpop.f32.mrb[0].mxu0
    %v2788 = vadd.f32 %v2641, %v2787
    %v2789 = vpop.f32.mrb[0].mxu0
    %v2790 = vpop.f32.mrb[0].mxu0
    %v2791 = vadd.f32 %v2642, %v2790
    %v2792 = vpop.f32.mrb[0].mxu0
    %2793 = vmatprep.mubr.bf16.mxu0 0
    %2794 = vmatmul.mubr.bf16.gmra.mrb[0].mxu0 %v2709
    %v2795 = vpop.f32.mrb[0].mxu0
    %v2796 = vadd.f32 %v2643, %v2795
    %v2797 = vpop.f32.mrb[0].mxu0
    %v2798 = vpop.f32.mrb[0].mxu0
    %v2799 = vadd.f32 %v2644, %v2798
    %v2800 = vpop.f32.mrb[0].mxu0
    %2801 = vmatprep.mubr.bf16.mxu0 0
    %2802 = vmatmul.mubr.bf16.gmra.mrb[0].mxu0 %v2712
    %v2803 = vpop.f32.mrb[0].mxu0
    %v2804 = vadd.f32 %v2645, %v2803
    %v2805 = vpop.f32.mrb[0].mxu0
    %v2806 = vpop.f32.mrb[0].mxu0
    %v2807 = vadd.f32 %v2646, %v2806
    %v2808 = vpop.f32.mrb[0].mxu0
    %2809 = vmatprep.mubr.bf16.mxu0 0
    %2810 = vmatmul.mubr.bf16.gmra.mrb[0].mxu0 %v2715
    %v2811 = vpop.f32.mrb[0].mxu0
    %v2812 = vadd.f32 %v2647, %v2811
    %v2813 = vpop.f32.mrb[0].mxu0
    %v2814 = vpop.f32.mrb[0].mxu0
    %v2815 = vadd.f32 %v2648, %v2814
    %v2816 = vpop.f32.mrb[0].mxu0
    %2817 = vmatprep.mubr.bf16.mxu0 0
    %2818 = vmatmul.mubr.bf16.gmra.mrb[0].mxu0 %v2718
    %v2819 = vpop.f32.mrb[0].mxu0
    %v2820 = vadd.f32 %v2649, %v2819
    %v2821 = vpop.f32.mrb[0].mxu0
    %v2822 = vpop.f32.mrb[0].mxu0
    %v2823 = vadd.f32 %v2650, %v2822
    %v2824 = vpop.f32.mrb[0].mxu0
    %2825 = vmatprep.mubr.bf16.mxu0 0
    %2826 = vmatmul.mubr.bf16.gmra.mrb[0].mxu0 %v2721
    %v2827 = vpop.f32.mrb[0].mxu0
    %v2828 = vadd.f32 %v2651, %v2827
    %v2829 = vpop.f32.mrb[0].mxu0
    %v2830 = vpop.f32.mrb[0].mxu0
    %v2831 = vadd.f32 %v2652, %v2830
    %v2832 = vpop.f32.mrb[0].mxu0
    %2833 = vmatprep.mubr.bf16.mxu0 0
    %2834 = vmatmul.mubr.bf16.gmra.mrb[0].mxu0 %v2724
    %v2835 = vpop.f32.mrb[0].mxu0
    %v2836 = vadd.f32 %v2653, %v2835
    %v2837 = vpop.f32.mrb[0].mxu0
    %v2838 = vpop.f32.mrb[0].mxu0
    %v2839 = vadd.f32 %v2654, %v2838
    %v2840 = vpop.f32.mrb[0].mxu0
    %2841 = vmatprep.mubr.bf16.mxu0 0
    %2842 = vmatmul.mubr.bf16.gmra.mrb[0].mxu0 %v2727
    %v2843 = vpop.f32.mrb[0].mxu0
    %v2844 = vadd.f32 %v2655, %v2843
    %v2845 = vpop.f32.mrb[0].mxu0
    %v2846 = vpop.f32.mrb[0].mxu0
    %v2847 = vadd.f32 %v2656, %v2846
    %v2848 = vpop.f32.mrb[0].mxu0
    %2849 = vdwg.mxu0
    %2850 = vmax.xlane.f32.xlu0 %v2788
    %v2851 = vpop.xlane.xlu0 %2850
    %2852 = vmax.xlane.f32.xlu0 %v2791
    %v2853 = vpop.xlane.xlu0 %2852
    %2854 = vmax.xlane.f32.xlu0 %v2796
    %v2855 = vpop.xlane.xlu0 %2854
    %2856 = vmax.xlane.f32.xlu0 %v2799
    %v2857 = vpop.xlane.xlu0 %2856
    %2858 = vmax.xlane.f32.xlu0 %v2804
    %v2859 = vpop.xlane.xlu0 %2858
    %2860 = vmax.xlane.f32.xlu0 %v2807
    %v2861 = vpop.xlane.xlu0 %2860
    %2862 = vmax.xlane.f32.xlu0 %v2812
    %v2863 = vpop.xlane.xlu0 %2862
    %2864 = vmax.xlane.f32.xlu0 %v2815
    %v2865 = vpop.xlane.xlu0 %2864
    %2866 = vmax.xlane.f32.xlu0 %v2820
    %v2867 = vpop.xlane.xlu0 %2866
    %2868 = vmax.xlane.f32.xlu0 %v2823
    %v2869 = vpop.xlane.xlu0 %2868
    %2870 = vmax.xlane.f32.xlu0 %v2828
    %v2871 = vpop.xlane.xlu0 %2870
    %2872 = vmax.xlane.f32.xlu0 %v2831
    %v2873 = vpop.xlane.xlu0 %2872
    %2874 = vmax.xlane.f32.xlu0 %v2836
    %v2875 = vpop.xlane.xlu0 %2874
    %2876 = vmax.xlane.f32.xlu0 %v2839
    %v2877 = vpop.xlane.xlu0 %2876
    %2878 = vmax.xlane.f32.xlu0 %v2844
    %v2879 = vpop.xlane.xlu0 %2878
    %2880 = vmax.xlane.f32.xlu0 %v2847
    %v2881 = vpop.xlane.xlu0 %2880
    %v2882 = vsub.f32 %v2788, %v2851
    %v2883 = vsub.f32 %v2791, %v2853
    %v2884 = vsub.f32 %v2796, %v2855
    %v2885 = vsub.f32 %v2799, %v2857
    %v2886 = vsub.f32 %v2804, %v2859
    %v2887 = vsub.f32 %v2807, %v2861
    %v2888 = vsub.f32 %v2812, %v2863
    %v2889 = vsub.f32 %v2815, %v2865
    %v2890 = vsub.f32 %v2820, %v2867
    %v2891 = vsub.f32 %v2823, %v2869
    %v2892 = vsub.f32 %v2828, %v2871
    %v2893 = vsub.f32 %v2831, %v2873
    %v2894 = vsub.f32 %v2836, %v2875
    %v2895 = vsub.f32 %v2839, %v2877
    %v2896 = vsub.f32 %v2844, %v2879
    %v2897 = vsub.f32 %v2847, %v2881
    %v2898 = vmul.f32 %v2882, 1.442695
    %v2899 = vpow.pop %v2898
    %v2900 = vmul.f32 %v2883, 1.442695
    %v2901 = vpow.pop %v2900
    %v2902 = vmul.f32 %v2884, 1.442695
    %v2903 = vpow.pop %v2902
    %v2904 = vmul.f32 %v2885, 1.442695
    %v2905 = vpow.pop %v2904
    %v2906 = vmul.f32 %v2886, 1.442695
    %v2907 = vpow.pop %v2906
    %v2908 = vmul.f32 %v2887, 1.442695
    %v2909 = vpow.pop %v2908
    %v2910 = vmul.f32 %v2888, 1.442695
    %v2911 = vpow.pop %v2910
    %v2912 = vmul.f32 %v2889, 1.442695
    %v2913 = vpow.pop %v2912
    %v2914 = vmul.f32 %v2890, 1.442695
    %v2915 = vpow.pop %v2914
    %v2916 = vmul.f32 %v2891, 1.442695
    %v2917 = vpow.pop %v2916
    %v2918 = vmul.f32 %v2892, 1.442695
    %v2919 = vpow.pop %v2918
    %v2920 = vmul.f32 %v2893, 1.442695
    %v2921 = vpow.pop %v2920
    %v2922 = vmul.f32 %v2894, 1.442695
    %v2923 = vpow.pop %v2922
    %v2924 = vmul.f32 %v2895, 1.442695
    %v2925 = vpow.pop %v2924
    %v2926 = vmul.f32 %v2896, 1.442695
    %v2927 = vpow.pop %v2926
    %v2928 = vmul.f32 %v2897, 1.442695
    %v2929 = vpow.pop %v2928
    %2930 = vadd.xlane.f32.xlu0 %v2899
    %v2931 = vpop.xlane.xlu0 %2930
    %2932 = vadd.xlane.f32.xlu0 %v2901
    %v2933 = vpop.xlane.xlu0 %2932
    %2934 = vadd.xlane.f32.xlu0 %v2903
    %v2935 = vpop.xlane.xlu0 %2934
    %2936 = vadd.xlane.f32.xlu0 %v2905
    %v2937 = vpop.xlane.xlu0 %2936
    %2938 = vadd.xlane.f32.xlu0 %v2907
    %v2939 = vpop.xlane.xlu0 %2938
    %2940 = vadd.xlane.f32.xlu0 %v2909
    %v2941 = vpop.xlane.xlu0 %2940
    %2942 = vadd.xlane.f32.xlu0 %v2911
    %v2943 = vpop.xlane.xlu0 %2942
    %2944 = vadd.xlane.f32.xlu0 %v2913
    %v2945 = vpop.xlane.xlu0 %2944
    %2946 = vadd.xlane.f32.xlu0 %v2915
    %v2947 = vpop.xlane.xlu0 %2946
    %2948 = vadd.xlane.f32.xlu0 %v2917
    %v2949 = vpop.xlane.xlu0 %2948
    %2950 = vadd.xlane.f32.xlu0 %v2919
    %v2951 = vpop.xlane.xlu0 %2950
    %2952 = vadd.xlane.f32.xlu0 %v2921
    %v2953 = vpop.xlane.xlu0 %2952
    %2954 = vadd.xlane.f32.xlu0 %v2923
    %v2955 = vpop.xlane.xlu0 %2954
    %2956 = vadd.xlane.f32.xlu0 %v2925
    %v2957 = vpop.xlane.xlu0 %2956
    %2958 = vadd.xlane.f32.xlu0 %v2927
    %v2959 = vpop.xlane.xlu0 %2958
    %2960 = vadd.xlane.f32.xlu0 %v2929
    %v2961 = vpop.xlane.xlu0 %2960
    %v2962 = vrcp.pop %v2931
    %v2963 = vrcp.pop %v2933
    %v2964 = vrcp.pop %v2935
    %v2965 = vrcp.pop %v2937
    %v2966 = vrcp.pop %v2939
    %v2967 = vrcp.pop %v2941
    %v2968 = vrcp.pop %v2943
    %v2969 = vrcp.pop %v2945
    %v2970 = vrcp.pop %v2947
    %v2971 = vrcp.pop %v2949
    %v2972 = vrcp.pop %v2951
    %v2973 = vrcp.pop %v2953
    %v2974 = vrcp.pop %v2955
    %v2975 = vrcp.pop %v2957
    %v2976 = vrcp.pop %v2959
    %v2977 = vrcp.pop %v2961
    %v2978 = vmul.f32 %v2899, %v2962
    %v2979 = vmul.f32 %v2901, %v2963
    %v2980 = vmul.f32 %v2903, %v2964
    %v2981 = vmul.f32 %v2905, %v2965
    %v2982 = vmul.f32 %v2907, %v2966
    %v2983 = vmul.f32 %v2909, %v2967
    %v2984 = vmul.f32 %v2911, %v2968
    %v2985 = vmul.f32 %v2913, %v2969
    %v2986 = vmul.f32 %v2915, %v2970
    %v2987 = vmul.f32 %v2917, %v2971
    %v2988 = vmul.f32 %v2919, %v2972
    %v2989 = vmul.f32 %v2921, %v2973
    %v2990 = vmul.f32 %v2923, %v2974
    %v2991 = vmul.f32 %v2925, %v2975
    %v2992 = vmul.f32 %v2927, %v2976
    %v2993 = vmul.f32 %v2929, %v2977
    %v2994 = vpack.c.bf16 %v2979, %v2978
    %v2995 = vpack.c.bf16 %v2981, %v2980
    %v2996 = vpack.c.bf16 %v2983, %v2982
    %v2997 = vpack.c.bf16 %v2985, %v2984
    %v2998 = vpack.c.bf16 %v2987, %v2986
    %v2999 = vpack.c.bf16 %v2989, %v2988
    %v3000 = vpack.c.bf16 %v2991, %v2990
    %v3001 = vpack.c.bf16 %v2993, %v2992
    %3010 = vrot.lane.b32.xlu0 %v2633, 32
    %v3011 = vpop.permute.xlu0 %3010
    %3012 = vrot.lane.b32.xlu0 %v2634, 32
    %v3013 = vpop.permute.xlu0 %3012
    %3014 = vrot.lane.b32.xlu0 %v2635, 32
    %v3015 = vpop.permute.xlu0 %3014
    %3016 = vrot.lane.b32.xlu0 %v2636, 32
    %v3017 = vpop.permute.xlu0 %3016
    %3018 = vrot.lane.b32.xlu0 %v2637, 32
    %v3019 = vpop.permute.xlu0 %3018
    %3020 = vrot.lane.b32.xlu0 %v2638, 32
    %v3021 = vpop.permute.xlu0 %3020
    %3022 = vrot.lane.b32.xlu0 %v2639, 32
    %v3023 = vpop.permute.xlu0 %3022
    %3024 = vrot.lane.b32.xlu0 %v2640, 32
    %v3025 = vpop.permute.xlu0 %3024
    %3034 = vmatprep.subr.bf16.mxu0 0
    %3035 = vmatpush1.bf16.msra.mxu0 %v3011
    %3036 = vmatprep.subr.bf16.mxu0 0
    %3037 = vmatpush1.bf16.msra.mxu0 %v3013
    %3038 = vmatprep.subr.bf16.mxu0 0
    %3039 = vmatpush1.bf16.msra.mxu0 %v3015
    %3040 = vmatprep.subr.bf16.mxu0 0
    %3041 = vmatpush1.bf16.msra.mxu0 %v3017
    %3042 = vmatprep.subr.bf16.mxu0 0
    %3043 = vmatpush1.bf16.msra.mxu0 %v3019
    %3044 = vmatprep.subr.bf16.mxu0 0
    %3045 = vmatpush1.bf16.msra.mxu0 %v3021
    %3046 = vmatprep.subr.bf16.mxu0 0
    %3047 = vmatpush1.bf16.msra.mxu0 %v3023
    %3048 = vmatprep.subr.bf16.mxu0 0
    %3049 = vmatpush1.bf16.msra.mxu0 %v3025
    %3050 = vmatprep.subr.bf16.mxu0 0
    %3051 = vmatpush1.bf16.msra.mxu0 0
    %3052 = vmatprep.subr.bf16.mxu0 0
    %3053 = vmatpush1.bf16.msra.mxu0 0
    %3054 = vmatprep.subr.bf16.mxu0 0
    %3055 = vmatpush1.bf16.msra.mxu0 0
    %3056 = vmatprep.subr.bf16.mxu0 0
    %3057 = vmatpush1.bf16.msra.mxu0 0
    %3058 = vmatprep.subr.bf16.mxu0 0
    %3059 = vmatpush1.bf16.msra.mxu0 0
    %3060 = vmatprep.subr.bf16.mxu0 0
    %3061 = vmatpush1.bf16.msra.mxu0 0
    %3062 = vmatprep.subr.bf16.mxu0 0
    %3063 = vmatpush1.bf16.msra.mxu0 0
    %3064 = vmatprep.subr.bf16.mxu0 0
    %3065 = vmatpush1.bf16.msra.mxu0 0
    %3066 = vmatprep.mubr.bf16.mxu0 0
    %3067 = vmatmul.mubr.bf16.gmra.mrb[0].mxu0 %v2994
    %v3068 = vpop.f32.mrb[0].mxu0
    %v3069 = vadd.f32 0.0, %v3068
    %v3070 = vpop.f32.mrb[0].mxu0
    %v3071 = vpop.f32.mrb[0].mxu0
    %v3072 = vadd.f32 0.0, %v3071
    %v3073 = vpop.f32.mrb[0].mxu0
    %3074 = vmatprep.mubr.bf16.mxu0 0
    %3075 = vmatmul.mubr.bf16.gmra.mrb[0].mxu0 %v2995
    %v3076 = vpop.f32.mrb[0].mxu0
    %v3077 = vadd.f32 0.0, %v3076
    %v3078 = vpop.f32.mrb[0].mxu0
    %v3079 = vpop.f32.mrb[0].mxu0
    %v3080 = vadd.f32 0.0, %v3079
    %v3081 = vpop.f32.mrb[0].mxu0
    %3082 = vmatprep.mubr.bf16.mxu0 0
    %3083 = vmatmul.mubr.bf16.gmra.mrb[0].mxu0 %v2996
    %v3084 = vpop.f32.mrb[0].mxu0
    %v3085 = vadd.f32 0.0, %v3084
    %v3086 = vpop.f32.mrb[0].mxu0
    %v3087 = vpop.f32.mrb[0].mxu0
    %v3088 = vadd.f32 0.0, %v3087
    %v3089 = vpop.f32.mrb[0].mxu0
    %3090 = vmatprep.mubr.bf16.mxu0 0
    %3091 = vmatmul.mubr.bf16.gmra.mrb[0].mxu0 %v2997
    %v3092 = vpop.f32.mrb[0].mxu0
    %v3093 = vadd.f32 0.0, %v3092
    %v3094 = vpop.f32.mrb[0].mxu0
    %v3095 = vpop.f32.mrb[0].mxu0
    %v3096 = vadd.f32 0.0, %v3095
    %v3097 = vpop.f32.mrb[0].mxu0
    %3098 = vmatprep.mubr.bf16.mxu0 0
    %3099 = vmatmul.mubr.bf16.gmra.mrb[0].mxu0 %v2998
    %v3100 = vpop.f32.mrb[0].mxu0
    %v3101 = vadd.f32 0.0, %v3100
    %v3102 = vpop.f32.mrb[0].mxu0
    %v3103 = vpop.f32.mrb[0].mxu0
    %v3104 = vadd.f32 0.0, %v3103
    %v3105 = vpop.f32.mrb[0].mxu0
    %3106 = vmatprep.mubr.bf16.mxu0 0
    %3107 = vmatmul.mubr.bf16.gmra.mrb[0].mxu0 %v2999
    %v3108 = vpop.f32.mrb[0].mxu0
    %v3109 = vadd.f32 0.0, %v3108
    %v3110 = vpop.f32.mrb[0].mxu0
    %v3111 = vpop.f32.mrb[0].mxu0
    %v3112 = vadd.f32 0.0, %v3111
    %v3113 = vpop.f32.mrb[0].mxu0
    %3114 = vmatprep.mubr.bf16.mxu0 0
    %3115 = vmatmul.mubr.bf16.gmra.mrb[0].mxu0 %v3000
    %v3116 = vpop.f32.mrb[0].mxu0
    %v3117 = vadd.f32 0.0, %v3116
    %v3118 = vpop.f32.mrb[0].mxu0
    %v3119 = vpop.f32.mrb[0].mxu0
    %v3120 = vadd.f32 0.0, %v3119
    %v3121 = vpop.f32.mrb[0].mxu0
    %3122 = vmatprep.mubr.bf16.mxu0 0
    %3123 = vmatmul.mubr.bf16.gmra.mrb[0].mxu0 %v3001
    %v3124 = vpop.f32.mrb[0].mxu0
    %v3125 = vadd.f32 0.0, %v3124
    %v3126 = vpop.f32.mrb[0].mxu0
    %v3127 = vpop.f32.mrb[0].mxu0
    %v3128 = vadd.f32 0.0, %v3127
    %v3129 = vpop.f32.mrb[0].mxu0
    %3130 = vdwg.mxu0
    %v3131 = vpack.c.bf16 %v3072, %v3069
    %v3132 = vpack.c.bf16 %v3080, %v3077
    %v3133 = vpack.c.bf16 %v3088, %v3085
    %v3134 = vpack.c.bf16 %v3096, %v3093
    %v3135 = vpack.c.bf16 %v3104, %v3101
    %v3136 = vpack.c.bf16 %v3112, %v3109
    %v3137 = vpack.c.bf16 %v3120, %v3117
    %v3138 = vpack.c.bf16 %v3128, %v3125
    %3147 = vrot.lane.b32.xlu0 %v3131, 96
    %v3148 = vpop.permute.xlu0 %3147
    %3149 = vrot.lane.b32.xlu0 %v3132, 96
    %v3150 = vpop.permute.xlu0 %3149
    %3151 = vrot.lane.b32.xlu0 %v3133, 96
    %v3152 = vpop.permute.xlu0 %3151
    %3153 = vrot.lane.b32.xlu0 %v3134, 96
    %v3154 = vpop.permute.xlu0 %3153
    %3155 = vrot.lane.b32.xlu0 %v3135, 96
    %v3156 = vpop.permute.xlu0 %3155
    %3157 = vrot.lane.b32.xlu0 %v3136, 96
    %v3158 = vpop.permute.xlu0 %3157
    %3159 = vrot.lane.b32.xlu0 %v3137, 96
    %v3160 = vpop.permute.xlu0 %3159
    %3161 = vrot.lane.b32.xlu0 %v3138, 96
    %v3162 = vpop.permute.xlu0 %3161
    %vm3171 = vcmask 1048320
    %3172 = vst.msk [vmem:[#allocation3] sm:$0xff] %vm3171, %v3148
    %3173 = vst.msk [vmem:[#allocation3 + $0x8] sm:$0xff] %vm3171, %v3150
    %3174 = vst.msk [vmem:[#allocation3 + $0x10] sm:$0xff] %vm3171, %v3152
    %3175 = vst.msk [vmem:[#allocation3 + $0x18] sm:$0xff] %vm3171, %v3154
    %3176 = vst.msk [vmem:[#allocation3 + $0x20] sm:$0xff] %vm3171, %v3156
    %3177 = vst.msk [vmem:[#allocation3 + $0x28] sm:$0xff] %vm3171, %v3158
    %3178 = vst.msk [vmem:[#allocation3 + $0x30] sm:$0xff] %vm3171, %v3160
    %3179 = vst.msk [vmem:[#allocation3 + $0x38] sm:$0xff] %vm3171, %v3162
    %v3180 = vld [vmem:[#allocation2 + $0xc0] sm:$0xff]
    %v3181 = vld [vmem:[#allocation2 + $0xd8] sm:$0xff]
    %v3182 = vld [vmem:[#allocation2 + $0xf0] sm:$0xff]
    %v3183 = vld [vmem:[#allocation2 + $0x108] sm:$0xff]
    %v3184 = vld [vmem:[#allocation2 + $0x120] sm:$0xff]
    %v3185 = vld [vmem:[#allocation2 + $0x138] sm:$0xff]
    %v3186 = vld [vmem:[#allocation2 + $0x150] sm:$0xff]
    %v3187 = vld [vmem:[#allocation2 + $0x168] sm:$0xff]
    %v3188 = vld [vmem:[#allocation2 + $0xc8] sm:$0xff]
    %v3189 = vld [vmem:[#allocation2 + $0xe0] sm:$0xff]
    %v3190 = vld [vmem:[#allocation2 + $0xf8] sm:$0xff]
    %v3191 = vld [vmem:[#allocation2 + $0x110] sm:$0xff]
    %v3192 = vld [vmem:[#allocation2 + $0x128] sm:$0xff]
    %v3193 = vld [vmem:[#allocation2 + $0x140] sm:$0xff]
    %v3194 = vld [vmem:[#allocation2 + $0x158] sm:$0xff]
    %v3195 = vld [vmem:[#allocation2 + $0x170] sm:$0xff]
    %v3196 = vld [vmem:[#allocation2 + $0xd0] sm:$0xff]
    %v3197 = vld [vmem:[#allocation2 + $0xe8] sm:$0xff]
    %v3198 = vld [vmem:[#allocation2 + $0x100] sm:$0xff]
    %v3199 = vld [vmem:[#allocation2 + $0x118] sm:$0xff]
    %v3200 = vld [vmem:[#allocation2 + $0x130] sm:$0xff]
    %v3201 = vld [vmem:[#allocation2 + $0x148] sm:$0xff]
    %v3202 = vld [vmem:[#allocation2 + $0x160] sm:$0xff]
    %v3203 = vld [vmem:[#allocation2 + $0x178] sm:$0xff]
    %v3204 = vld [vmem:[#allocation4] sm:$0xff]
    %v3205 = vld [vmem:[#allocation4 + $0x8] sm:$0xff]
    %v3206 = vld [vmem:[#allocation4 + $0x10] sm:$0xff]
    %v3207 = vld [vmem:[#allocation4 + $0x18] sm:$0xff]
    %v3208 = vld [vmem:[#allocation4 + $0x20] sm:$0xff]
    %v3209 = vld [vmem:[#allocation4 + $0x28] sm:$0xff]
    %v3210 = vld [vmem:[#allocation4 + $0x30] sm:$0xff]
    %v3211 = vld [vmem:[#allocation4 + $0x38] sm:$0xff]
    %v3212 = vld [vmem:[#allocation4 + $0x40] sm:$0xff]
    %v3213 = vld [vmem:[#allocation4 + $0x48] sm:$0xff]
    %v3214 = vld [vmem:[#allocation4 + $0x50] sm:$0xff]
    %v3215 = vld [vmem:[#allocation4 + $0x58] sm:$0xff]
    %v3216 = vld [vmem:[#allocation4 + $0x60] sm:$0xff]
    %v3217 = vld [vmem:[#allocation4 + $0x68] sm:$0xff]
    %v3218 = vld [vmem:[#allocation4 + $0x70] sm:$0xff]
    %v3219 = vld [vmem:[#allocation4 + $0x78] sm:$0xff]
    %v3221 = vsel %vm1080, %v3180, 0
    %v3224 = vsel %vm1080, %v3181, 0
    %v3227 = vsel %vm1080, %v3182, 0
    %v3230 = vsel %vm1080, %v3183, 0
    %v3233 = vsel %vm1080, %v3184, 0
    %v3236 = vsel %vm1080, %v3185, 0
    %v3239 = vsel %vm1080, %v3186, 0
    %v3242 = vsel %vm1080, %v3187, 0
    %v3245 = vsel %vm1080, %v3188, 0
    %v3248 = vsel %vm1080, %v3189, 0
    %v3251 = vsel %vm1080, %v3190, 0
    %v3254 = vsel %vm1080, %v3191, 0
    %v3257 = vsel %vm1080, %v3192, 0
    %v3260 = vsel %vm1080, %v3193, 0
    %v3263 = vsel %vm1080, %v3194, 0
    %v3266 = vsel %vm1080, %v3195, 0
    %3268 = vmatprep.subr.bf16.mxu0 0
    %3269 = vmatpush1.bf16.xpose.msra.mxu0 %v3245
    %3270 = vmatprep.subr.bf16.mxu0 0
    %3271 = vmatpush1.bf16.xpose.msra.mxu0 %v3248
    %3272 = vmatprep.subr.bf16.mxu0 0
    %3273 = vmatpush1.bf16.xpose.msra.mxu0 %v3251
    %3274 = vmatprep.subr.bf16.mxu0 0
    %3275 = vmatpush1.bf16.xpose.msra.mxu0 %v3254
    %3276 = vmatprep.subr.bf16.mxu0 0
    %3277 = vmatpush1.bf16.xpose.msra.mxu0 %v3257
    %3278 = vmatprep.subr.bf16.mxu0 0
    %3279 = vmatpush1.bf16.xpose.msra.mxu0 %v3260
    %3280 = vmatprep.subr.bf16.mxu0 0
    %3281 = vmatpush1.bf16.xpose.msra.mxu0 %v3263
    %3282 = vmatprep.subr.bf16.mxu0 0
    %3283 = vmatpush1.bf16.xpose.msra.mxu0 %v3266
    %3284 = vmatprep.subr.bf16.mxu0 0
    %3285 = vmatpush1.bf16.xpose.msra.mxu0 0
    %3286 = vmatprep.subr.bf16.mxu0 0
    %3287 = vmatpush1.bf16.xpose.msra.mxu0 0
    %3288 = vmatprep.subr.bf16.mxu0 0
    %3289 = vmatpush1.bf16.xpose.msra.mxu0 0
    %3290 = vmatprep.subr.bf16.mxu0 0
    %3291 = vmatpush1.bf16.xpose.msra.mxu0 0
    %3292 = vmatprep.subr.bf16.mxu0 0
    %3293 = vmatpush1.bf16.xpose.msra.mxu0 0
    %3294 = vmatprep.subr.bf16.mxu0 0
    %3295 = vmatpush1.bf16.xpose.msra.mxu0 0
    %3296 = vmatprep.subr.bf16.mxu0 0
    %3297 = vmatpush1.bf16.xpose.msra.mxu0 0
    %3298 = vmatprep.subr.bf16.mxu0 0
    %3299 = vmatpush1.bf16.xpose.msra.mxu0 0
    %3300 = vmatprep.mubr.bf16.mxu0 0
    %3301 = vmatmul.mubr.bf16.gmra.mrb[0].mxu0 %v3221
    %v3302 = vpop.f32.mrb[0].mxu0
    %v3303 = vadd.f32 %v3204, %v3302
    %v3304 = vpop.f32.mrb[0].mxu0
    %v3305 = vpop.f32.mrb[0].mxu0
    %v3306 = vadd.f32 %v3205, %v3305
    %v3307 = vpop.f32.mrb[0].mxu0
    %3308 = vmatprep.mubr.bf16.mxu0 0
    %3309 = vmatmul.mubr.bf16.gmra.mrb[0].mxu0 %v3224
    %v3310 = vpop.f32.mrb[0].mxu0
    %v3311 = vadd.f32 %v3206, %v3310
    %v3312 = vpop.f32.mrb[0].mxu0
    %v3313 = vpop.f32.mrb[0].mxu0
    %v3314 = vadd.f32 %v3207, %v3313
    %v3315 = vpop.f32.mrb[0].mxu0
    %3316 = vmatprep.mubr.bf16.mxu0 0
    %3317 = vmatmul.mubr.bf16.gmra.mrb[0].mxu0 %v3227
    %v3318 = vpop.f32.mrb[0].mxu0
    %v3319 = vadd.f32 %v3208, %v3318
    %v3320 = vpop.f32.mrb[0].mxu0
    %v3321 = vpop.f32.mrb[0].mxu0
    %v3322 = vadd.f32 %v3209, %v3321
    %v3323 = vpop.f32.mrb[0].mxu0
    %3324 = vmatprep.mubr.bf16.mxu0 0
    %3325 = vmatmul.mubr.bf16.gmra.mrb[0].mxu0 %v3230
    %v3326 = vpop.f32.mrb[0].mxu0
    %v3327 = vadd.f32 %v3210, %v3326
    %v3328 = vpop.f32.mrb[0].mxu0
    %v3329 = vpop.f32.mrb[0].mxu0
    %v3330 = vadd.f32 %v3211, %v3329
    %v3331 = vpop.f32.mrb[0].mxu0
    %3332 = vmatprep.mubr.bf16.mxu0 0
    %3333 = vmatmul.mubr.bf16.gmra.mrb[0].mxu0 %v3233
    %v3334 = vpop.f32.mrb[0].mxu0
    %v3335 = vadd.f32 %v3212, %v3334
    %v3336 = vpop.f32.mrb[0].mxu0
    %v3337 = vpop.f32.mrb[0].mxu0
    %v3338 = vadd.f32 %v3213, %v3337
    %v3339 = vpop.f32.mrb[0].mxu0
    %3340 = vmatprep.mubr.bf16.mxu0 0
    %3341 = vmatmul.mubr.bf16.gmra.mrb[0].mxu0 %v3236
    %v3342 = vpop.f32.mrb[0].mxu0
    %v3343 = vadd.f32 %v3214, %v3342
    %v3344 = vpop.f32.mrb[0].mxu0
    %v3345 = vpop.f32.mrb[0].mxu0
    %v3346 = vadd.f32 %v3215, %v3345
    %v3347 = vpop.f32.mrb[0].mxu0
    %3348 = vmatprep.mubr.bf16.mxu0 0
    %3349 = vmatmul.mubr.bf16.gmra.mrb[0].mxu0 %v3239
    %v3350 = vpop.f32.mrb[0].mxu0
    %v3351 = vadd.f32 %v3216, %v3350
    %v3352 = vpop.f32.mrb[0].mxu0
    %v3353 = vpop.f32.mrb[0].mxu0
    %v3354 = vadd.f32 %v3217, %v3353
    %v3355 = vpop.f32.mrb[0].mxu0
    %3356 = vmatprep.mubr.bf16.mxu0 0
    %3357 = vmatmul.mubr.bf16.gmra.mrb[0].mxu0 %v3242
    %v3358 = vpop.f32.mrb[0].mxu0
    %v3359 = vadd.f32 %v3218, %v3358
    %v3360 = vpop.f32.mrb[0].mxu0
    %v3361 = vpop.f32.mrb[0].mxu0
    %v3362 = vadd.f32 %v3219, %v3361
    %v3363 = vpop.f32.mrb[0].mxu0
    %3364 = vdwg.mxu0
    %3365 = vmax.xlane.f32.xlu0 %v3303
    %v3366 = vpop.xlane.xlu0 %3365
    %3367 = vmax.xlane.f32.xlu0 %v3306
    %v3368 = vpop.xlane.xlu0 %3367
    %3369 = vmax.xlane.f32.xlu0 %v3311
    %v3370 = vpop.xlane.xlu0 %3369
    %3371 = vmax.xlane.f32.xlu0 %v3314
    %v3372 = vpop.xlane.xlu0 %3371
    %3373 = vmax.xlane.f32.xlu0 %v3319
    %v3374 = vpop.xlane.xlu0 %3373
    %3375 = vmax.xlane.f32.xlu0 %v3322
    %v3376 = vpop.xlane.xlu0 %3375
    %3377 = vmax.xlane.f32.xlu0 %v3327
    %v3378 = vpop.xlane.xlu0 %3377
    %3379 = vmax.xlane.f32.xlu0 %v3330
    %v3380 = vpop.xlane.xlu0 %3379
    %3381 = vmax.xlane.f32.xlu0 %v3335
    %v3382 = vpop.xlane.xlu0 %3381
    %3383 = vmax.xlane.f32.xlu0 %v3338
    %v3384 = vpop.xlane.xlu0 %3383
    %3385 = vmax.xlane.f32.xlu0 %v3343
    %v3386 = vpop.xlane.xlu0 %3385
    %3387 = vmax.xlane.f32.xlu0 %v3346
    %v3388 = vpop.xlane.xlu0 %3387
    %3389 = vmax.xlane.f32.xlu0 %v3351
    %v3390 = vpop.xlane.xlu0 %3389
    %3391 = vmax.xlane.f32.xlu0 %v3354
    %v3392 = vpop.xlane.xlu0 %3391
    %3393 = vmax.xlane.f32.xlu0 %v3359
    %v3394 = vpop.xlane.xlu0 %3393
    %3395 = vmax.xlane.f32.xlu0 %v3362
    %v3396 = vpop.xlane.xlu0 %3395
    %v3397 = vsub.f32 %v3303, %v3366
    %v3398 = vsub.f32 %v3306, %v3368
    %v3399 = vsub.f32 %v3311, %v3370
    %v3400 = vsub.f32 %v3314, %v3372
    %v3401 = vsub.f32 %v3319, %v3374
    %v3402 = vsub.f32 %v3322, %v3376
    %v3403 = vsub.f32 %v3327, %v3378
    %v3404 = vsub.f32 %v3330, %v3380
    %v3405 = vsub.f32 %v3335, %v3382
    %v3406 = vsub.f32 %v3338, %v3384
    %v3407 = vsub.f32 %v3343, %v3386
    %v3408 = vsub.f32 %v3346, %v3388
    %v3409 = vsub.f32 %v3351, %v3390
    %v3410 = vsub.f32 %v3354, %v3392
    %v3411 = vsub.f32 %v3359, %v3394
    %v3412 = vsub.f32 %v3362, %v3396
    %v3413 = vmul.f32 %v3397, 1.442695
    %v3414 = vpow.pop %v3413
    %v3415 = vmul.f32 %v3398, 1.442695
    %v3416 = vpow.pop %v3415
    %v3417 = vmul.f32 %v3399, 1.442695
    %v3418 = vpow.pop %v3417
    %v3419 = vmul.f32 %v3400, 1.442695
    %v3420 = vpow.pop %v3419
    %v3421 = vmul.f32 %v3401, 1.442695
    %v3422 = vpow.pop %v3421
    %v3423 = vmul.f32 %v3402, 1.442695
    %v3424 = vpow.pop %v3423
    %v3425 = vmul.f32 %v3403, 1.442695
    %v3426 = vpow.pop %v3425
    %v3427 = vmul.f32 %v3404, 1.442695
    %v3428 = vpow.pop %v3427
    %v3429 = vmul.f32 %v3405, 1.442695
    %v3430 = vpow.pop %v3429
    %v3431 = vmul.f32 %v3406, 1.442695
    %v3432 = vpow.pop %v3431
    %v3433 = vmul.f32 %v3407, 1.442695
    %v3434 = vpow.pop %v3433
    %v3435 = vmul.f32 %v3408, 1.442695
    %v3436 = vpow.pop %v3435
    %v3437 = vmul.f32 %v3409, 1.442695
    %v3438 = vpow.pop %v3437
    %v3439 = vmul.f32 %v3410, 1.442695
    %v3440 = vpow.pop %v3439
    %v3441 = vmul.f32 %v3411, 1.442695
    %v3442 = vpow.pop %v3441
    %v3443 = vmul.f32 %v3412, 1.442695
    %v3444 = vpow.pop %v3443
    %3445 = vadd.xlane.f32.xlu0 %v3414
    %v3446 = vpop.xlane.xlu0 %3445
    %3447 = vadd.xlane.f32.xlu0 %v3416
    %v3448 = vpop.xlane.xlu0 %3447
    %3449 = vadd.xlane.f32.xlu0 %v3418
    %v3450 = vpop.xlane.xlu0 %3449
    %3451 = vadd.xlane.f32.xlu0 %v3420
    %v3452 = vpop.xlane.xlu0 %3451
    %3453 = vadd.xlane.f32.xlu0 %v3422
    %v3454 = vpop.xlane.xlu0 %3453
    %3455 = vadd.xlane.f32.xlu0 %v3424
    %v3456 = vpop.xlane.xlu0 %3455
    %3457 = vadd.xlane.f32.xlu0 %v3426
    %v3458 = vpop.xlane.xlu0 %3457
    %3459 = vadd.xlane.f32.xlu0 %v3428
    %v3460 = vpop.xlane.xlu0 %3459
    %3461 = vadd.xlane.f32.xlu0 %v3430
    %v3462 = vpop.xlane.xlu0 %3461
    %3463 = vadd.xlane.f32.xlu0 %v3432
    %v3464 = vpop.xlane.xlu0 %3463
    %3465 = vadd.xlane.f32.xlu0 %v3434
    %v3466 = vpop.xlane.xlu0 %3465
    %3467 = vadd.xlane.f32.xlu0 %v3436
    %v3468 = vpop.xlane.xlu0 %3467
    %3469 = vadd.xlane.f32.xlu0 %v3438
    %v3470 = vpop.xlane.xlu0 %3469
    %3471 = vadd.xlane.f32.xlu0 %v3440
    %v3472 = vpop.xlane.xlu0 %3471
    %3473 = vadd.xlane.f32.xlu0 %v3442
    %v3474 = vpop.xlane.xlu0 %3473
    %3475 = vadd.xlane.f32.xlu0 %v3444
    %v3476 = vpop.xlane.xlu0 %3475
    %v3477 = vrcp.pop %v3446
    %v3478 = vrcp.pop %v3448
    %v3479 = vrcp.pop %v3450
    %v3480 = vrcp.pop %v3452
    %v3481 = vrcp.pop %v3454
    %v3482 = vrcp.pop %v3456
    %v3483 = vrcp.pop %v3458
    %v3484 = vrcp.pop %v3460
    %v3485 = vrcp.pop %v3462
    %v3486 = vrcp.pop %v3464
    %v3487 = vrcp.pop %v3466
    %v3488 = vrcp.pop %v3468
    %v3489 = vrcp.pop %v3470
    %v3490 = vrcp.pop %v3472
    %v3491 = vrcp.pop %v3474
    %v3492 = vrcp.pop %v3476
    %v3493 = vmul.f32 %v3414, %v3477
    %v3494 = vmul.f32 %v3416, %v3478
    %v3495 = vmul.f32 %v3418, %v3479
    %v3496 = vmul.f32 %v3420, %v3480
    %v3497 = vmul.f32 %v3422, %v3481
    %v3498 = vmul.f32 %v3424, %v3482
    %v3499 = vmul.f32 %v3426, %v3483
    %v3500 = vmul.f32 %v3428, %v3484
    %v3501 = vmul.f32 %v3430, %v3485
    %v3502 = vmul.f32 %v3432, %v3486
    %v3503 = vmul.f32 %v3434, %v3487
    %v3504 = vmul.f32 %v3436, %v3488
    %v3505 = vmul.f32 %v3438, %v3489
    %v3506 = vmul.f32 %v3440, %v3490
    %v3507 = vmul.f32 %v3442, %v3491
    %v3508 = vmul.f32 %v3444, %v3492
    %v3509 = vpack.c.bf16 %v3494, %v3493
    %v3510 = vpack.c.bf16 %v3496, %v3495
    %v3511 = vpack.c.bf16 %v3498, %v3497
    %v3512 = vpack.c.bf16 %v3500, %v3499
    %v3513 = vpack.c.bf16 %v3502, %v3501
    %v3514 = vpack.c.bf16 %v3504, %v3503
    %v3515 = vpack.c.bf16 %v3506, %v3505
    %v3516 = vpack.c.bf16 %v3508, %v3507
    %3517 = vmatprep.subr.bf16.mxu0 0
    %3518 = vmatpush1.bf16.msra.mxu0 %v3196
    %3519 = vmatprep.subr.bf16.mxu0 0
    %3520 = vmatpush1.bf16.msra.mxu0 %v3197
    %3521 = vmatprep.subr.bf16.mxu0 0
    %3522 = vmatpush1.bf16.msra.mxu0 %v3198
    %3523 = vmatprep.subr.bf16.mxu0 0
    %3524 = vmatpush1.bf16.msra.mxu0 %v3199
    %3525 = vmatprep.subr.bf16.mxu0 0
    %3526 = vmatpush1.bf16.msra.mxu0 %v3200
    %3527 = vmatprep.subr.bf16.mxu0 0
    %3528 = vmatpush1.bf16.msra.mxu0 %v3201
    %3529 = vmatprep.subr.bf16.mxu0 0
    %3530 = vmatpush1.bf16.msra.mxu0 %v3202
    %3531 = vmatprep.subr.bf16.mxu0 0
    %3532 = vmatpush1.bf16.msra.mxu0 %v3203
    %3533 = vmatprep.subr.bf16.mxu0 0
    %3534 = vmatpush1.bf16.msra.mxu0 0
    %3535 = vmatprep.subr.bf16.mxu0 0
    %3536 = vmatpush1.bf16.msra.mxu0 0
    %3537 = vmatprep.subr.bf16.mxu0 0
    %3538 = vmatpush1.bf16.msra.mxu0 0
    %3539 = vmatprep.subr.bf16.mxu0 0
    %3540 = vmatpush1.bf16.msra.mxu0 0
    %3541 = vmatprep.subr.bf16.mxu0 0
    %3542 = vmatpush1.bf16.msra.mxu0 0
    %3543 = vmatprep.subr.bf16.mxu0 0
    %3544 = vmatpush1.bf16.msra.mxu0 0
    %3545 = vmatprep.subr.bf16.mxu0 0
    %3546 = vmatpush1.bf16.msra.mxu0 0
    %3547 = vmatprep.subr.bf16.mxu0 0
    %3548 = vmatpush1.bf16.msra.mxu0 0
    %3549 = vmatprep.mubr.bf16.mxu0 0
    %3550 = vmatmul.mubr.bf16.gmra.mrb[0].mxu0 %v3509
    %v3551 = vpop.f32.mrb[0].mxu0
    %v3552 = vadd.f32 0.0, %v3551
    %v3553 = vpop.f32.mrb[0].mxu0
    %v3554 = vpop.f32.mrb[0].mxu0
    %v3555 = vadd.f32 0.0, %v3554
    %v3556 = vpop.f32.mrb[0].mxu0
    %3557 = vmatprep.mubr.bf16.mxu0 0
    %3558 = vmatmul.mubr.bf16.gmra.mrb[0].mxu0 %v3510
    %v3559 = vpop.f32.mrb[0].mxu0
    %v3560 = vadd.f32 0.0, %v3559
    %v3561 = vpop.f32.mrb[0].mxu0
    %v3562 = vpop.f32.mrb[0].mxu0
    %v3563 = vadd.f32 0.0, %v3562
    %v3564 = vpop.f32.mrb[0].mxu0
    %3565 = vmatprep.mubr.bf16.mxu0 0
    %3566 = vmatmul.mubr.bf16.gmra.mrb[0].mxu0 %v3511
    %v3567 = vpop.f32.mrb[0].mxu0
    %v3568 = vadd.f32 0.0, %v3567
    %v3569 = vpop.f32.mrb[0].mxu0
    %v3570 = vpop.f32.mrb[0].mxu0
    %v3571 = vadd.f32 0.0, %v3570
    %v3572 = vpop.f32.mrb[0].mxu0
    %3573 = vmatprep.mubr.bf16.mxu0 0
    %3574 = vmatmul.mubr.bf16.gmra.mrb[0].mxu0 %v3512
    %v3575 = vpop.f32.mrb[0].mxu0
    %v3576 = vadd.f32 0.0, %v3575
    %v3577 = vpop.f32.mrb[0].mxu0
    %v3578 = vpop.f32.mrb[0].mxu0
    %v3579 = vadd.f32 0.0, %v3578
    %v3580 = vpop.f32.mrb[0].mxu0
    %3581 = vmatprep.mubr.bf16.mxu0 0
    %3582 = vmatmul.mubr.bf16.gmra.mrb[0].mxu0 %v3513
    %v3583 = vpop.f32.mrb[0].mxu0
    %v3584 = vadd.f32 0.0, %v3583
    %v3585 = vpop.f32.mrb[0].mxu0
    %v3586 = vpop.f32.mrb[0].mxu0
    %v3587 = vadd.f32 0.0, %v3586
    %v3588 = vpop.f32.mrb[0].mxu0
    %3589 = vmatprep.mubr.bf16.mxu0 0
    %3590 = vmatmul.mubr.bf16.gmra.mrb[0].mxu0 %v3514
    %v3591 = vpop.f32.mrb[0].mxu0
    %v3592 = vadd.f32 0.0, %v3591
    %v3593 = vpop.f32.mrb[0].mxu0
    %v3594 = vpop.f32.mrb[0].mxu0
    %v3595 = vadd.f32 0.0, %v3594
    %v3596 = vpop.f32.mrb[0].mxu0
    %3597 = vmatprep.mubr.bf16.mxu0 0
    %3598 = vmatmul.mubr.bf16.gmra.mrb[0].mxu0 %v3515
    %v3599 = vpop.f32.mrb[0].mxu0
    %v3600 = vadd.f32 0.0, %v3599
    %v3601 = vpop.f32.mrb[0].mxu0
    %v3602 = vpop.f32.mrb[0].mxu0
    %v3603 = vadd.f32 0.0, %v3602
    %v3604 = vpop.f32.mrb[0].mxu0
    %3605 = vmatprep.mubr.bf16.mxu0 0
    %3606 = vmatmul.mubr.bf16.gmra.mrb[0].mxu0 %v3516
    %v3607 = vpop.f32.mrb[0].mxu0
    %v3608 = vadd.f32 0.0, %v3607
    %v3609 = vpop.f32.mrb[0].mxu0
    %v3610 = vpop.f32.mrb[0].mxu0
    %v3611 = vadd.f32 0.0, %v3610
    %v3612 = vpop.f32.mrb[0].mxu0
    %3613 = vdwg.mxu0
    %v3614 = vpack.c.bf16 %v3555, %v3552
    %v3615 = vpack.c.bf16 %v3563, %v3560
    %v3616 = vpack.c.bf16 %v3571, %v3568
    %v3617 = vpack.c.bf16 %v3579, %v3576
    %v3618 = vpack.c.bf16 %v3587, %v3584
    %v3619 = vpack.c.bf16 %v3595, %v3592
    %v3620 = vpack.c.bf16 %v3603, %v3600
    %v3621 = vpack.c.bf16 %v3611, %v3608
    %3622 = vst.msk [vmem:[#allocation3 + $0x40] sm:$0xff] %vm1080, %v3614
    %3623 = vst.msk [vmem:[#allocation3 + $0x48] sm:$0xff] %vm1080, %v3615
    %3624 = vst.msk [vmem:[#allocation3 + $0x50] sm:$0xff] %vm1080, %v3616
    %3625 = vst.msk [vmem:[#allocation3 + $0x58] sm:$0xff] %vm1080, %v3617
    %3626 = vst.msk [vmem:[#allocation3 + $0x60] sm:$0xff] %vm1080, %v3618
    %3627 = vst.msk [vmem:[#allocation3 + $0x68] sm:$0xff] %vm1080, %v3619
    %3628 = vst.msk [vmem:[#allocation3 + $0x70] sm:$0xff] %vm1080, %v3620
    %3629 = vst.msk [vmem:[#allocation3 + $0x78] sm:$0xff] %vm1080, %v3621
    %v3630 = vld [vmem:[#allocation2 + $0xc0] sm:$0xff]
    %v3631 = vld [vmem:[#allocation2 + $0xd8] sm:$0xff]
    %v3632 = vld [vmem:[#allocation2 + $0xf0] sm:$0xff]
    %v3633 = vld [vmem:[#allocation2 + $0x108] sm:$0xff]
    %v3634 = vld [vmem:[#allocation2 + $0x120] sm:$0xff]
    %v3635 = vld [vmem:[#allocation2 + $0x138] sm:$0xff]
    %v3636 = vld [vmem:[#allocation2 + $0x150] sm:$0xff]
    %v3637 = vld [vmem:[#allocation2 + $0x168] sm:$0xff]
    %v3638 = vld [vmem:[#allocation2 + $0xc8] sm:$0xff]
    %v3639 = vld [vmem:[#allocation2 + $0xe0] sm:$0xff]
    %v3640 = vld [vmem:[#allocation2 + $0xf8] sm:$0xff]
    %v3641 = vld [vmem:[#allocation2 + $0x110] sm:$0xff]
    %v3642 = vld [vmem:[#allocation2 + $0x128] sm:$0xff]
    %v3643 = vld [vmem:[#allocation2 + $0x140] sm:$0xff]
    %v3644 = vld [vmem:[#allocation2 + $0x158] sm:$0xff]
    %v3645 = vld [vmem:[#allocation2 + $0x170] sm:$0xff]
    %v3646 = vld [vmem:[#allocation2 + $0xd0] sm:$0xff]
    %v3647 = vld [vmem:[#allocation2 + $0xe8] sm:$0xff]
    %v3648 = vld [vmem:[#allocation2 + $0x100] sm:$0xff]
    %v3649 = vld [vmem:[#allocation2 + $0x118] sm:$0xff]
    %v3650 = vld [vmem:[#allocation2 + $0x130] sm:$0xff]
    %v3651 = vld [vmem:[#allocation2 + $0x148] sm:$0xff]
    %v3652 = vld [vmem:[#allocation2 + $0x160] sm:$0xff]
    %v3653 = vld [vmem:[#allocation2 + $0x178] sm:$0xff]
    %v3654 = vld [vmem:[#allocation4] sm:$0xff]
    %v3655 = vld [vmem:[#allocation4 + $0x8] sm:$0xff]
    %v3656 = vld [vmem:[#allocation4 + $0x10] sm:$0xff]
    %v3657 = vld [vmem:[#allocation4 + $0x18] sm:$0xff]
    %v3658 = vld [vmem:[#allocation4 + $0x20] sm:$0xff]
    %v3659 = vld [vmem:[#allocation4 + $0x28] sm:$0xff]
    %v3660 = vld [vmem:[#allocation4 + $0x30] sm:$0xff]
    %v3661 = vld [vmem:[#allocation4 + $0x38] sm:$0xff]
    %v3662 = vld [vmem:[#allocation4 + $0x40] sm:$0xff]
    %v3663 = vld [vmem:[#allocation4 + $0x48] sm:$0xff]
    %v3664 = vld [vmem:[#allocation4 + $0x50] sm:$0xff]
    %v3665 = vld [vmem:[#allocation4 + $0x58] sm:$0xff]
    %v3666 = vld [vmem:[#allocation4 + $0x60] sm:$0xff]
    %v3667 = vld [vmem:[#allocation4 + $0x68] sm:$0xff]
    %v3668 = vld [vmem:[#allocation4 + $0x70] sm:$0xff]
    %v3669 = vld [vmem:[#allocation4 + $0x78] sm:$0xff]
    %3678 = vrot.lane.b32.xlu0 %v3630, 96
    %v3679 = vpop.permute.xlu0 %3678
    %3680 = vrot.lane.b32.xlu0 %v3631, 96
    %v3681 = vpop.permute.xlu0 %3680
    %3682 = vrot.lane.b32.xlu0 %v3632, 96
    %v3683 = vpop.permute.xlu0 %3682
    %3684 = vrot.lane.b32.xlu0 %v3633, 96
    %v3685 = vpop.permute.xlu0 %3684
    %3686 = vrot.lane.b32.xlu0 %v3634, 96
    %v3687 = vpop.permute.xlu0 %3686
    %3688 = vrot.lane.b32.xlu0 %v3635, 96
    %v3689 = vpop.permute.xlu0 %3688
    %3690 = vrot.lane.b32.xlu0 %v3636, 96
    %v3691 = vpop.permute.xlu0 %3690
    %3692 = vrot.lane.b32.xlu0 %v3637, 96
    %v3693 = vpop.permute.xlu0 %3692
    %3702 = vrot.lane.b32.xlu0 %v3638, 96
    %v3703 = vpop.permute.xlu0 %3702
    %3704 = vrot.lane.b32.xlu0 %v3639, 96
    %v3705 = vpop.permute.xlu0 %3704
    %3706 = vrot.lane.b32.xlu0 %v3640, 96
    %v3707 = vpop.permute.xlu0 %3706
    %3708 = vrot.lane.b32.xlu0 %v3641, 96
    %v3709 = vpop.permute.xlu0 %3708
    %3710 = vrot.lane.b32.xlu0 %v3642, 96
    %v3711 = vpop.permute.xlu0 %3710
    %3712 = vrot.lane.b32.xlu0 %v3643, 96
    %v3713 = vpop.permute.xlu0 %3712
    %3714 = vrot.lane.b32.xlu0 %v3644, 96
    %v3715 = vpop.permute.xlu0 %3714
    %3716 = vrot.lane.b32.xlu0 %v3645, 96
    %v3717 = vpop.permute.xlu0 %3716
    %v3719 = vsel %vm1080, %v3679, 0
    %v3722 = vsel %vm1080, %v3681, 0
    %v3725 = vsel %vm1080, %v3683, 0
    %v3728 = vsel %vm1080, %v3685, 0
    %v3731 = vsel %vm1080, %v3687, 0
    %v3734 = vsel %vm1080, %v3689, 0
    %v3737 = vsel %vm1080, %v3691, 0
    %v3740 = vsel %vm1080, %v3693, 0
    %v3743 = vsel %vm1080, %v3703, 0
    %v3746 = vsel %vm1080, %v3705, 0
    %v3749 = vsel %vm1080, %v3707, 0
    %v3752 = vsel %vm1080, %v3709, 0
    %v3755 = vsel %vm1080, %v3711, 0
    %v3758 = vsel %vm1080, %v3713, 0
    %v3761 = vsel %vm1080, %v3715, 0
    %v3764 = vsel %vm1080, %v3717, 0
    %3766 = vmatprep.subr.bf16.mxu0 0
    %3767 = vmatpush1.bf16.xpose.msra.mxu0 %v3743
    %3768 = vmatprep.subr.bf16.mxu0 0
    %3769 = vmatpush1.bf16.xpose.msra.mxu0 %v3746
    %3770 = vmatprep.subr.bf16.mxu0 0
    %3771 = vmatpush1.bf16.xpose.msra.mxu0 %v3749
    %3772 = vmatprep.subr.bf16.mxu0 0
    %3773 = vmatpush1.bf16.xpose.msra.mxu0 %v3752
    %3774 = vmatprep.subr.bf16.mxu0 0
    %3775 = vmatpush1.bf16.xpose.msra.mxu0 %v3755
    %3776 = vmatprep.subr.bf16.mxu0 0
    %3777 = vmatpush1.bf16.xpose.msra.mxu0 %v3758
    %3778 = vmatprep.subr.bf16.mxu0 0
    %3779 = vmatpush1.bf16.xpose.msra.mxu0 %v3761
    %3780 = vmatprep.subr.bf16.mxu0 0
    %3781 = vmatpush1.bf16.xpose.msra.mxu0 %v3764
    %3782 = vmatprep.subr.bf16.mxu0 0
    %3783 = vmatpush1.bf16.xpose.msra.mxu0 0
    %3784 = vmatprep.subr.bf16.mxu0 0
    %3785 = vmatpush1.bf16.xpose.msra.mxu0 0
    %3786 = vmatprep.subr.bf16.mxu0 0
    %3787 = vmatpush1.bf16.xpose.msra.mxu0 0
    %3788 = vmatprep.subr.bf16.mxu0 0
    %3789 = vmatpush1.bf16.xpose.msra.mxu0 0
    %3790 = vmatprep.subr.bf16.mxu0 0
    %3791 = vmatpush1.bf16.xpose.msra.mxu0 0
    %3792 = vmatprep.subr.bf16.mxu0 0
    %3793 = vmatpush1.bf16.xpose.msra.mxu0 0
    %3794 = vmatprep.subr.bf16.mxu0 0
    %3795 = vmatpush1.bf16.xpose.msra.mxu0 0
    %3796 = vmatprep.subr.bf16.mxu0 0
    %3797 = vmatpush1.bf16.xpose.msra.mxu0 0
    %3798 = vmatprep.mubr.bf16.mxu0 0
    %3799 = vmatmul.mubr.bf16.gmra.mrb[0].mxu0 %v3719
    %v3800 = vpop.f32.mrb[0].mxu0
    %v3801 = vadd.f32 %v3654, %v3800
    %v3802 = vpop.f32.mrb[0].mxu0
    %v3803 = vpop.f32.mrb[0].mxu0
    %v3804 = vadd.f32 %v3655, %v3803
    %v3805 = vpop.f32.mrb[0].mxu0
    %3806 = vmatprep.mubr.bf16.mxu0 0
    %3807 = vmatmul.mubr.bf16.gmra.mrb[0].mxu0 %v3722
    %v3808 = vpop.f32.mrb[0].mxu0
    %v3809 = vadd.f32 %v3656, %v3808
    %v3810 = vpop.f32.mrb[0].mxu0
    %v3811 = vpop.f32.mrb[0].mxu0
    %v3812 = vadd.f32 %v3657, %v3811
    %v3813 = vpop.f32.mrb[0].mxu0
    %3814 = vmatprep.mubr.bf16.mxu0 0
    %3815 = vmatmul.mubr.bf16.gmra.mrb[0].mxu0 %v3725
    %v3816 = vpop.f32.mrb[0].mxu0
    %v3817 = vadd.f32 %v3658, %v3816
    %v3818 = vpop.f32.mrb[0].mxu0
    %v3819 = vpop.f32.mrb[0].mxu0
    %v3820 = vadd.f32 %v3659, %v3819
    %v3821 = vpop.f32.mrb[0].mxu0
    %3822 = vmatprep.mubr.bf16.mxu0 0
    %3823 = vmatmul.mubr.bf16.gmra.mrb[0].mxu0 %v3728
    %v3824 = vpop.f32.mrb[0].mxu0
    %v3825 = vadd.f32 %v3660, %v3824
    %v3826 = vpop.f32.mrb[0].mxu0
    %v3827 = vpop.f32.mrb[0].mxu0
    %v3828 = vadd.f32 %v3661, %v3827
    %v3829 = vpop.f32.mrb[0].mxu0
    %3830 = vmatprep.mubr.bf16.mxu0 0
    %3831 = vmatmul.mubr.bf16.gmra.mrb[0].mxu0 %v3731
    %v3832 = vpop.f32.mrb[0].mxu0
    %v3833 = vadd.f32 %v3662, %v3832
    %v3834 = vpop.f32.mrb[0].mxu0
    %v3835 = vpop.f32.mrb[0].mxu0
    %v3836 = vadd.f32 %v3663, %v3835
    %v3837 = vpop.f32.mrb[0].mxu0
    %3838 = vmatprep.mubr.bf16.mxu0 0
    %3839 = vmatmul.mubr.bf16.gmra.mrb[0].mxu0 %v3734
    %v3840 = vpop.f32.mrb[0].mxu0
    %v3841 = vadd.f32 %v3664, %v3840
    %v3842 = vpop.f32.mrb[0].mxu0
    %v3843 = vpop.f32.mrb[0].mxu0
    %v3844 = vadd.f32 %v3665, %v3843
    %v3845 = vpop.f32.mrb[0].mxu0
    %3846 = vmatprep.mubr.bf16.mxu0 0
    %3847 = vmatmul.mubr.bf16.gmra.mrb[0].mxu0 %v3737
    %v3848 = vpop.f32.mrb[0].mxu0
    %v3849 = vadd.f32 %v3666, %v3848
    %v3850 = vpop.f32.mrb[0].mxu0
    %v3851 = vpop.f32.mrb[0].mxu0
    %v3852 = vadd.f32 %v3667, %v3851
    %v3853 = vpop.f32.mrb[0].mxu0
    %3854 = vmatprep.mubr.bf16.mxu0 0
    %3855 = vmatmul.mubr.bf16.gmra.mrb[0].mxu0 %v3740
    %v3856 = vpop.f32.mrb[0].mxu0
    %v3857 = vadd.f32 %v3668, %v3856
    %v3858 = vpop.f32.mrb[0].mxu0
    %v3859 = vpop.f32.mrb[0].mxu0
    %v3860 = vadd.f32 %v3669, %v3859
    %v3861 = vpop.f32.mrb[0].mxu0
    %3862 = vdwg.mxu0
    %3863 = vmax.xlane.f32.xlu0 %v3801
    %v3864 = vpop.xlane.xlu0 %3863
    %3865 = vmax.xlane.f32.xlu0 %v3804
    %v3866 = vpop.xlane.xlu0 %3865
    %3867 = vmax.xlane.f32.xlu0 %v3809
    %v3868 = vpop.xlane.xlu0 %3867
    %3869 = vmax.xlane.f32.xlu0 %v3812
    %v3870 = vpop.xlane.xlu0 %3869
    %3871 = vmax.xlane.f32.xlu0 %v3817
    %v3872 = vpop.xlane.xlu0 %3871
    %3873 = vmax.xlane.f32.xlu0 %v3820
    %v3874 = vpop.xlane.xlu0 %3873
    %3875 = vmax.xlane.f32.xlu0 %v3825
    %v3876 = vpop.xlane.xlu0 %3875
    %3877 = vmax.xlane.f32.xlu0 %v3828
    %v3878 = vpop.xlane.xlu0 %3877
    %3879 = vmax.xlane.f32.xlu0 %v3833
    %v3880 = vpop.xlane.xlu0 %3879
    %3881 = vmax.xlane.f32.xlu0 %v3836
    %v3882 = vpop.xlane.xlu0 %3881
    %3883 = vmax.xlane.f32.xlu0 %v3841
    %v3884 = vpop.xlane.xlu0 %3883
    %3885 = vmax.xlane.f32.xlu0 %v3844
    %v3886 = vpop.xlane.xlu0 %3885
    %3887 = vmax.xlane.f32.xlu0 %v3849
    %v3888 = vpop.xlane.xlu0 %3887
    %3889 = vmax.xlane.f32.xlu0 %v3852
    %v3890 = vpop.xlane.xlu0 %3889
    %3891 = vmax.xlane.f32.xlu0 %v3857
    %v3892 = vpop.xlane.xlu0 %3891
    %3893 = vmax.xlane.f32.xlu0 %v3860
    %v3894 = vpop.xlane.xlu0 %3893
    %v3895 = vsub.f32 %v3801, %v3864
    %v3896 = vsub.f32 %v3804, %v3866
    %v3897 = vsub.f32 %v3809, %v3868
    %v3898 = vsub.f32 %v3812, %v3870
    %v3899 = vsub.f32 %v3817, %v3872
    %v3900 = vsub.f32 %v3820, %v3874
    %v3901 = vsub.f32 %v3825, %v3876
    %v3902 = vsub.f32 %v3828, %v3878
    %v3903 = vsub.f32 %v3833, %v3880
    %v3904 = vsub.f32 %v3836, %v3882
    %v3905 = vsub.f32 %v3841, %v3884
    %v3906 = vsub.f32 %v3844, %v3886
    %v3907 = vsub.f32 %v3849, %v3888
    %v3908 = vsub.f32 %v3852, %v3890
    %v3909 = vsub.f32 %v3857, %v3892
    %v3910 = vsub.f32 %v3860, %v3894
    %v3911 = vmul.f32 %v3895, 1.442695
    %v3912 = vpow.pop %v3911
    %v3913 = vmul.f32 %v3896, 1.442695
    %v3914 = vpow.pop %v3913
    %v3915 = vmul.f32 %v3897, 1.442695
    %v3916 = vpow.pop %v3915
    %v3917 = vmul.f32 %v3898, 1.442695
    %v3918 = vpow.pop %v3917
    %v3919 = vmul.f32 %v3899, 1.442695
    %v3920 = vpow.pop %v3919
    %v3921 = vmul.f32 %v3900, 1.442695
    %v3922 = vpow.pop %v3921
    %v3923 = vmul.f32 %v3901, 1.442695
    %v3924 = vpow.pop %v3923
    %v3925 = vmul.f32 %v3902, 1.442695
    %v3926 = vpow.pop %v3925
    %v3927 = vmul.f32 %v3903, 1.442695
    %v3928 = vpow.pop %v3927
    %v3929 = vmul.f32 %v3904, 1.442695
    %v3930 = vpow.pop %v3929
    %v3931 = vmul.f32 %v3905, 1.442695
    %v3932 = vpow.pop %v3931
    %v3933 = vmul.f32 %v3906, 1.442695
    %v3934 = vpow.pop %v3933
    %v3935 = vmul.f32 %v3907, 1.442695
    %v3936 = vpow.pop %v3935
    %v3937 = vmul.f32 %v3908, 1.442695
    %v3938 = vpow.pop %v3937
    %v3939 = vmul.f32 %v3909, 1.442695
    %v3940 = vpow.pop %v3939
    %v3941 = vmul.f32 %v3910, 1.442695
    %v3942 = vpow.pop %v3941
    %3943 = vadd.xlane.f32.xlu0 %v3912
    %v3944 = vpop.xlane.xlu0 %3943
    %3945 = vadd.xlane.f32.xlu0 %v3914
    %v3946 = vpop.xlane.xlu0 %3945
    %3947 = vadd.xlane.f32.xlu0 %v3916
    %v3948 = vpop.xlane.xlu0 %3947
    %3949 = vadd.xlane.f32.xlu0 %v3918
    %v3950 = vpop.xlane.xlu0 %3949
    %3951 = vadd.xlane.f32.xlu0 %v3920
    %v3952 = vpop.xlane.xlu0 %3951
    %3953 = vadd.xlane.f32.xlu0 %v3922
    %v3954 = vpop.xlane.xlu0 %3953
    %3955 = vadd.xlane.f32.xlu0 %v3924
    %v3956 = vpop.xlane.xlu0 %3955
    %3957 = vadd.xlane.f32.xlu0 %v3926
    %v3958 = vpop.xlane.xlu0 %3957
    %3959 = vadd.xlane.f32.xlu0 %v3928
    %v3960 = vpop.xlane.xlu0 %3959
    %3961 = vadd.xlane.f32.xlu0 %v3930
    %v3962 = vpop.xlane.xlu0 %3961
    %3963 = vadd.xlane.f32.xlu0 %v3932
    %v3964 = vpop.xlane.xlu0 %3963
    %3965 = vadd.xlane.f32.xlu0 %v3934
    %v3966 = vpop.xlane.xlu0 %3965
    %3967 = vadd.xlane.f32.xlu0 %v3936
    %v3968 = vpop.xlane.xlu0 %3967
    %3969 = vadd.xlane.f32.xlu0 %v3938
    %v3970 = vpop.xlane.xlu0 %3969
    %3971 = vadd.xlane.f32.xlu0 %v3940
    %v3972 = vpop.xlane.xlu0 %3971
    %3973 = vadd.xlane.f32.xlu0 %v3942
    %v3974 = vpop.xlane.xlu0 %3973
    %v3975 = vrcp.pop %v3944
    %v3976 = vrcp.pop %v3946
    %v3977 = vrcp.pop %v3948
    %v3978 = vrcp.pop %v3950
    %v3979 = vrcp.pop %v3952
    %v3980 = vrcp.pop %v3954
    %v3981 = vrcp.pop %v3956
    %v3982 = vrcp.pop %v3958
    %v3983 = vrcp.pop %v3960
    %v3984 = vrcp.pop %v3962
    %v3985 = vrcp.pop %v3964
    %v3986 = vrcp.pop %v3966
    %v3987 = vrcp.pop %v3968
    %v3988 = vrcp.pop %v3970
    %v3989 = vrcp.pop %v3972
    %v3990 = vrcp.pop %v3974
    %v3991 = vmul.f32 %v3912, %v3975
    %v3992 = vmul.f32 %v3914, %v3976
    %v3993 = vmul.f32 %v3916, %v3977
    %v3994 = vmul.f32 %v3918, %v3978
    %v3995 = vmul.f32 %v3920, %v3979
    %v3996 = vmul.f32 %v3922, %v3980
    %v3997 = vmul.f32 %v3924, %v3981
    %v3998 = vmul.f32 %v3926, %v3982
    %v3999 = vmul.f32 %v3928, %v3983
    %v4000 = vmul.f32 %v3930, %v3984
    %v4001 = vmul.f32 %v3932, %v3985
    %v4002 = vmul.f32 %v3934, %v3986
    %v4003 = vmul.f32 %v3936, %v3987
    %v4004 = vmul.f32 %v3938, %v3988
    %v4005 = vmul.f32 %v3940, %v3989
    %v4006 = vmul.f32 %v3942, %v3990
    %v4007 = vpack.c.bf16 %v3992, %v3991
    %v4008 = vpack.c.bf16 %v3994, %v3993
    %v4009 = vpack.c.bf16 %v3996, %v3995
    %v4010 = vpack.c.bf16 %v3998, %v3997
    %v4011 = vpack.c.bf16 %v4000, %v3999
    %v4012 = vpack.c.bf16 %v4002, %v4001
    %v4013 = vpack.c.bf16 %v4004, %v4003
    %v4014 = vpack.c.bf16 %v4006, %v4005
    %4023 = vrot.lane.b32.xlu0 %v3646, 96
    %v4024 = vpop.permute.xlu0 %4023
    %4025 = vrot.lane.b32.xlu0 %v3647, 96
    %v4026 = vpop.permute.xlu0 %4025
    %4027 = vrot.lane.b32.xlu0 %v3648, 96
    %v4028 = vpop.permute.xlu0 %4027
    %4029 = vrot.lane.b32.xlu0 %v3649, 96
    %v4030 = vpop.permute.xlu0 %4029
    %4031 = vrot.lane.b32.xlu0 %v3650, 96
    %v4032 = vpop.permute.xlu0 %4031
    %4033 = vrot.lane.b32.xlu0 %v3651, 96
    %v4034 = vpop.permute.xlu0 %4033
    %4035 = vrot.lane.b32.xlu0 %v3652, 96
    %v4036 = vpop.permute.xlu0 %4035
    %4037 = vrot.lane.b32.xlu0 %v3653, 96
    %v4038 = vpop.permute.xlu0 %4037
    %4047 = vmatprep.subr.bf16.mxu0 0
    %4048 = vmatpush1.bf16.msra.mxu0 %v4024
    %4049 = vmatprep.subr.bf16.mxu0 0
    %4050 = vmatpush1.bf16.msra.mxu0 %v4026
    %4051 = vmatprep.subr.bf16.mxu0 0
    %4052 = vmatpush1.bf16.msra.mxu0 %v4028
    %4053 = vmatprep.subr.bf16.mxu0 0
    %4054 = vmatpush1.bf16.msra.mxu0 %v4030
    %4055 = vmatprep.subr.bf16.mxu0 0
    %4056 = vmatpush1.bf16.msra.mxu0 %v4032
    %4057 = vmatprep.subr.bf16.mxu0 0
    %4058 = vmatpush1.bf16.msra.mxu0 %v4034
    %4059 = vmatprep.subr.bf16.mxu0 0
    %4060 = vmatpush1.bf16.msra.mxu0 %v4036
    %4061 = vmatprep.subr.bf16.mxu0 0
    %4062 = vmatpush1.bf16.msra.mxu0 %v4038
    %4063 = vmatprep.subr.bf16.mxu0 0
    %4064 = vmatpush1.bf16.msra.mxu0 0
    %4065 = vmatprep.subr.bf16.mxu0 0
    %4066 = vmatpush1.bf16.msra.mxu0 0
    %4067 = vmatprep.subr.bf16.mxu0 0
    %4068 = vmatpush1.bf16.msra.mxu0 0
    %4069 = vmatprep.subr.bf16.mxu0 0
    %4070 = vmatpush1.bf16.msra.mxu0 0
    %4071 = vmatprep.subr.bf16.mxu0 0
    %4072 = vmatpush1.bf16.msra.mxu0 0
    %4073 = vmatprep.subr.bf16.mxu0 0
    %4074 = vmatpush1.bf16.msra.mxu0 0
    %4075 = vmatprep.subr.bf16.mxu0 0
    %4076 = vmatpush1.bf16.msra.mxu0 0
    %4077 = vmatprep.subr.bf16.mxu0 0
    %4078 = vmatpush1.bf16.msra.mxu0 0
    %4079 = vmatprep.mubr.bf16.mxu0 0
    %4080 = vmatmul.mubr.bf16.gmra.mrb[0].mxu0 %v4007
    %v4081 = vpop.f32.mrb[0].mxu0
    %v4082 = vadd.f32 0.0, %v4081
    %v4083 = vpop.f32.mrb[0].mxu0
    %v4084 = vpop.f32.mrb[0].mxu0
    %v4085 = vadd.f32 0.0, %v4084
    %v4086 = vpop.f32.mrb[0].mxu0
    %4087 = vmatprep.mubr.bf16.mxu0 0
    %4088 = vmatmul.mubr.bf16.gmra.mrb[0].mxu0 %v4008
    %v4089 = vpop.f32.mrb[0].mxu0
    %v4090 = vadd.f32 0.0, %v4089
    %v4091 = vpop.f32.mrb[0].mxu0
    %v4092 = vpop.f32.mrb[0].mxu0
    %v4093 = vadd.f32 0.0, %v4092
    %v4094 = vpop.f32.mrb[0].mxu0
    %4095 = vmatprep.mubr.bf16.mxu0 0
    %4096 = vmatmul.mubr.bf16.gmra.mrb[0].mxu0 %v4009
    %v4097 = vpop.f32.mrb[0].mxu0
    %v4098 = vadd.f32 0.0, %v4097
    %v4099 = vpop.f32.mrb[0].mxu0
    %v4100 = vpop.f32.mrb[0].mxu0
    %v4101 = vadd.f32 0.0, %v4100
    %v4102 = vpop.f32.mrb[0].mxu0
    %4103 = vmatprep.mubr.bf16.mxu0 0
    %4104 = vmatmul.mubr.bf16.gmra.mrb[0].mxu0 %v4010
    %v4105 = vpop.f32.mrb[0].mxu0
    %v4106 = vadd.f32 0.0, %v4105
    %v4107 = vpop.f32.mrb[0].mxu0
    %v4108 = vpop.f32.mrb[0].mxu0
    %v4109 = vadd.f32 0.0, %v4108
    %v4110 = vpop.f32.mrb[0].mxu0
    %4111 = vmatprep.mubr.bf16.mxu0 0
    %4112 = vmatmul.mubr.bf16.gmra.mrb[0].mxu0 %v4011
    %v4113 = vpop.f32.mrb[0].mxu0
    %v4114 = vadd.f32 0.0, %v4113
    %v4115 = vpop.f32.mrb[0].mxu0
    %v4116 = vpop.f32.mrb[0].mxu0
    %v4117 = vadd.f32 0.0, %v4116
    %v4118 = vpop.f32.mrb[0].mxu0
    %4119 = vmatprep.mubr.bf16.mxu0 0
    %4120 = vmatmul.mubr.bf16.gmra.mrb[0].mxu0 %v4012
    %v4121 = vpop.f32.mrb[0].mxu0
    %v4122 = vadd.f32 0.0, %v4121
    %v4123 = vpop.f32.mrb[0].mxu0
    %v4124 = vpop.f32.mrb[0].mxu0
    %v4125 = vadd.f32 0.0, %v4124
    %v4126 = vpop.f32.mrb[0].mxu0
    %4127 = vmatprep.mubr.bf16.mxu0 0
    %4128 = vmatmul.mubr.bf16.gmra.mrb[0].mxu0 %v4013
    %v4129 = vpop.f32.mrb[0].mxu0
    %v4130 = vadd.f32 0.0, %v4129
    %v4131 = vpop.f32.mrb[0].mxu0
    %v4132 = vpop.f32.mrb[0].mxu0
    %v4133 = vadd.f32 0.0, %v4132
    %v4134 = vpop.f32.mrb[0].mxu0
    %4135 = vmatprep.mubr.bf16.mxu0 0
    %4136 = vmatmul.mubr.bf16.gmra.mrb[0].mxu0 %v4014
    %v4137 = vpop.f32.mrb[0].mxu0
    %v4138 = vadd.f32 0.0, %v4137
    %v4139 = vpop.f32.mrb[0].mxu0
    %v4140 = vpop.f32.mrb[0].mxu0
    %v4141 = vadd.f32 0.0, %v4140
    %v4142 = vpop.f32.mrb[0].mxu0
    %4143 = vdwg.mxu0
    %v4144 = vpack.c.bf16 %v4085, %v4082
    %v4145 = vpack.c.bf16 %v4093, %v4090
    %v4146 = vpack.c.bf16 %v4101, %v4098
    %v4147 = vpack.c.bf16 %v4109, %v4106
    %v4148 = vpack.c.bf16 %v4117, %v4114
    %v4149 = vpack.c.bf16 %v4125, %v4122
    %v4150 = vpack.c.bf16 %v4133, %v4130
    %v4151 = vpack.c.bf16 %v4141, %v4138
    %4160 = vrot.lane.b32.xlu0 %v4144, 32
    %v4161 = vpop.permute.xlu0 %4160
    %4162 = vrot.lane.b32.xlu0 %v4145, 32
    %v4163 = vpop.permute.xlu0 %4162
    %4164 = vrot.lane.b32.xlu0 %v4146, 32
    %v4165 = vpop.permute.xlu0 %4164
    %4166 = vrot.lane.b32.xlu0 %v4147, 32
    %v4167 = vpop.permute.xlu0 %4166
    %4168 = vrot.lane.b32.xlu0 %v4148, 32
    %v4169 = vpop.permute.xlu0 %4168
    %4170 = vrot.lane.b32.xlu0 %v4149, 32
    %v4171 = vpop.permute.xlu0 %4170
    %4172 = vrot.lane.b32.xlu0 %v4150, 32
    %v4173 = vpop.permute.xlu0 %4172
    %4174 = vrot.lane.b32.xlu0 %v4151, 32
    %v4175 = vpop.permute.xlu0 %4174
    %4184 = vst.msk [vmem:[#allocation3 + $0x40] sm:$0xff] %vm2045, %v4161
    %4185 = vst.msk [vmem:[#allocation3 + $0x48] sm:$0xff] %vm2045, %v4163
    %4186 = vst.msk [vmem:[#allocation3 + $0x50] sm:$0xff] %vm2045, %v4165
    %4187 = vst.msk [vmem:[#allocation3 + $0x58] sm:$0xff] %vm2045, %v4167
    %4188 = vst.msk [vmem:[#allocation3 + $0x60] sm:$0xff] %vm2045, %v4169
    %4189 = vst.msk [vmem:[#allocation3 + $0x68] sm:$0xff] %vm2045, %v4171
    %4190 = vst.msk [vmem:[#allocation3 + $0x70] sm:$0xff] %vm2045, %v4173
    %4191 = vst.msk [vmem:[#allocation3 + $0x78] sm:$0xff] %vm2045, %v4175
    %v4192 = vld [vmem:[#allocation2 + $0xc0] sm:$0xff]
    %v4193 = vld [vmem:[#allocation2 + $0xd8] sm:$0xff]
    %v4194 = vld [vmem:[#allocation2 + $0xf0] sm:$0xff]
    %v4195 = vld [vmem:[#allocation2 + $0x108] sm:$0xff]
    %v4196 = vld [vmem:[#allocation2 + $0x120] sm:$0xff]
    %v4197 = vld [vmem:[#allocation2 + $0x138] sm:$0xff]
    %v4198 = vld [vmem:[#allocation2 + $0x150] sm:$0xff]
    %v4199 = vld [vmem:[#allocation2 + $0x168] sm:$0xff]
    %v4200 = vld [vmem:[#allocation2 + $0xc8] sm:$0xff]
    %v4201 = vld [vmem:[#allocation2 + $0xe0] sm:$0xff]
    %v4202 = vld [vmem:[#allocation2 + $0xf8] sm:$0xff]
    %v4203 = vld [vmem:[#allocation2 + $0x110] sm:$0xff]
    %v4204 = vld [vmem:[#allocation2 + $0x128] sm:$0xff]
    %v4205 = vld [vmem:[#allocation2 + $0x140] sm:$0xff]
    %v4206 = vld [vmem:[#allocation2 + $0x158] sm:$0xff]
    %v4207 = vld [vmem:[#allocation2 + $0x170] sm:$0xff]
    %v4208 = vld [vmem:[#allocation2 + $0xd0] sm:$0xff]
    %v4209 = vld [vmem:[#allocation2 + $0xe8] sm:$0xff]
    %v4210 = vld [vmem:[#allocation2 + $0x100] sm:$0xff]
    %v4211 = vld [vmem:[#allocation2 + $0x118] sm:$0xff]
    %v4212 = vld [vmem:[#allocation2 + $0x130] sm:$0xff]
    %v4213 = vld [vmem:[#allocation2 + $0x148] sm:$0xff]
    %v4214 = vld [vmem:[#allocation2 + $0x160] sm:$0xff]
    %v4215 = vld [vmem:[#allocation2 + $0x178] sm:$0xff]
    %v4216 = vld [vmem:[#allocation4] sm:$0xff]
    %v4217 = vld [vmem:[#allocation4 + $0x8] sm:$0xff]
    %v4218 = vld [vmem:[#allocation4 + $0x10] sm:$0xff]
    %v4219 = vld [vmem:[#allocation4 + $0x18] sm:$0xff]
    %v4220 = vld [vmem:[#allocation4 + $0x20] sm:$0xff]
    %v4221 = vld [vmem:[#allocation4 + $0x28] sm:$0xff]
    %v4222 = vld [vmem:[#allocation4 + $0x30] sm:$0xff]
    %v4223 = vld [vmem:[#allocation4 + $0x38] sm:$0xff]
    %v4224 = vld [vmem:[#allocation4 + $0x40] sm:$0xff]
    %v4225 = vld [vmem:[#allocation4 + $0x48] sm:$0xff]
    %v4226 = vld [vmem:[#allocation4 + $0x50] sm:$0xff]
    %v4227 = vld [vmem:[#allocation4 + $0x58] sm:$0xff]
    %v4228 = vld [vmem:[#allocation4 + $0x60] sm:$0xff]
    %v4229 = vld [vmem:[#allocation4 + $0x68] sm:$0xff]
    %v4230 = vld [vmem:[#allocation4 + $0x70] sm:$0xff]
    %v4231 = vld [vmem:[#allocation4 + $0x78] sm:$0xff]
    %4240 = vrot.lane.b32.xlu0 %v4192, 64
    %v4241 = vpop.permute.xlu0 %4240
    %4242 = vrot.lane.b32.xlu0 %v4193, 64
    %v4243 = vpop.permute.xlu0 %4242
    %4244 = vrot.lane.b32.xlu0 %v4194, 64
    %v4245 = vpop.permute.xlu0 %4244
    %4246 = vrot.lane.b32.xlu0 %v4195, 64
    %v4247 = vpop.permute.xlu0 %4246
    %4248 = vrot.lane.b32.xlu0 %v4196, 64
    %v4249 = vpop.permute.xlu0 %4248
    %4250 = vrot.lane.b32.xlu0 %v4197, 64
    %v4251 = vpop.permute.xlu0 %4250
    %4252 = vrot.lane.b32.xlu0 %v4198, 64
    %v4253 = vpop.permute.xlu0 %4252
    %4254 = vrot.lane.b32.xlu0 %v4199, 64
    %v4255 = vpop.permute.xlu0 %4254
    %4264 = vrot.lane.b32.xlu0 %v4200, 64
    %v4265 = vpop.permute.xlu0 %4264
    %4266 = vrot.lane.b32.xlu0 %v4201, 64
    %v4267 = vpop.permute.xlu0 %4266
    %4268 = vrot.lane.b32.xlu0 %v4202, 64
    %v4269 = vpop.permute.xlu0 %4268
    %4270 = vrot.lane.b32.xlu0 %v4203, 64
    %v4271 = vpop.permute.xlu0 %4270
    %4272 = vrot.lane.b32.xlu0 %v4204, 64
    %v4273 = vpop.permute.xlu0 %4272
    %4274 = vrot.lane.b32.xlu0 %v4205, 64
    %v4275 = vpop.permute.xlu0 %4274
    %4276 = vrot.lane.b32.xlu0 %v4206, 64
    %v4277 = vpop.permute.xlu0 %4276
    %4278 = vrot.lane.b32.xlu0 %v4207, 64
    %v4279 = vpop.permute.xlu0 %4278
    %v4281 = vsel %vm1080, %v4241, 0
    %v4284 = vsel %vm1080, %v4243, 0
    %v4287 = vsel %vm1080, %v4245, 0
    %v4290 = vsel %vm1080, %v4247, 0
    %v4293 = vsel %vm1080, %v4249, 0
    %v4296 = vsel %vm1080, %v4251, 0
    %v4299 = vsel %vm1080, %v4253, 0
    %v4302 = vsel %vm1080, %v4255, 0
    %v4305 = vsel %vm1080, %v4265, 0
    %v4308 = vsel %vm1080, %v4267, 0
    %v4311 = vsel %vm1080, %v4269, 0
    %v4314 = vsel %vm1080, %v4271, 0
    %v4317 = vsel %vm1080, %v4273, 0
    %v4320 = vsel %vm1080, %v4275, 0
    %v4323 = vsel %vm1080, %v4277, 0
    %v4326 = vsel %vm1080, %v4279, 0
    %4328 = vmatprep.subr.bf16.mxu0 0
    %4329 = vmatpush1.bf16.xpose.msra.mxu0 %v4305
    %4330 = vmatprep.subr.bf16.mxu0 0
    %4331 = vmatpush1.bf16.xpose.msra.mxu0 %v4308
    %4332 = vmatprep.subr.bf16.mxu0 0
    %4333 = vmatpush1.bf16.xpose.msra.mxu0 %v4311
    %4334 = vmatprep.subr.bf16.mxu0 0
    %4335 = vmatpush1.bf16.xpose.msra.mxu0 %v4314
    %4336 = vmatprep.subr.bf16.mxu0 0
    %4337 = vmatpush1.bf16.xpose.msra.mxu0 %v4317
    %4338 = vmatprep.subr.bf16.mxu0 0
    %4339 = vmatpush1.bf16.xpose.msra.mxu0 %v4320
    %4340 = vmatprep.subr.bf16.mxu0 0
    %4341 = vmatpush1.bf16.xpose.msra.mxu0 %v4323
    %4342 = vmatprep.subr.bf16.mxu0 0
    %4343 = vmatpush1.bf16.xpose.msra.mxu0 %v4326
    %4344 = vmatprep.subr.bf16.mxu0 0
    %4345 = vmatpush1.bf16.xpose.msra.mxu0 0
    %4346 = vmatprep.subr.bf16.mxu0 0
    %4347 = vmatpush1.bf16.xpose.msra.mxu0 0
    %4348 = vmatprep.subr.bf16.mxu0 0
    %4349 = vmatpush1.bf16.xpose.msra.mxu0 0
    %4350 = vmatprep.subr.bf16.mxu0 0
    %4351 = vmatpush1.bf16.xpose.msra.mxu0 0
    %4352 = vmatprep.subr.bf16.mxu0 0
    %4353 = vmatpush1.bf16.xpose.msra.mxu0 0
    %4354 = vmatprep.subr.bf16.mxu0 0
    %4355 = vmatpush1.bf16.xpose.msra.mxu0 0
    %4356 = vmatprep.subr.bf16.mxu0 0
    %4357 = vmatpush1.bf16.xpose.msra.mxu0 0
    %4358 = vmatprep.subr.bf16.mxu0 0
    %4359 = vmatpush1.bf16.xpose.msra.mxu0 0
    %4360 = vmatprep.mubr.bf16.mxu0 0
    %4361 = vmatmul.mubr.bf16.gmra.mrb[0].mxu0 %v4281
    %v4362 = vpop.f32.mrb[0].mxu0
    %v4363 = vadd.f32 %v4216, %v4362
    %v4364 = vpop.f32.mrb[0].mxu0
    %v4365 = vpop.f32.mrb[0].mxu0
    %v4366 = vadd.f32 %v4217, %v4365
    %v4367 = vpop.f32.mrb[0].mxu0
    %4368 = vmatprep.mubr.bf16.mxu0 0
    %4369 = vmatmul.mubr.bf16.gmra.mrb[0].mxu0 %v4284
    %v4370 = vpop.f32.mrb[0].mxu0
    %v4371 = vadd.f32 %v4218, %v4370
    %v4372 = vpop.f32.mrb[0].mxu0
    %v4373 = vpop.f32.mrb[0].mxu0
    %v4374 = vadd.f32 %v4219, %v4373
    %v4375 = vpop.f32.mrb[0].mxu0
    %4376 = vmatprep.mubr.bf16.mxu0 0
    %4377 = vmatmul.mubr.bf16.gmra.mrb[0].mxu0 %v4287
    %v4378 = vpop.f32.mrb[0].mxu0
    %v4379 = vadd.f32 %v4220, %v4378
    %v4380 = vpop.f32.mrb[0].mxu0
    %v4381 = vpop.f32.mrb[0].mxu0
    %v4382 = vadd.f32 %v4221, %v4381
    %v4383 = vpop.f32.mrb[0].mxu0
    %4384 = vmatprep.mubr.bf16.mxu0 0
    %4385 = vmatmul.mubr.bf16.gmra.mrb[0].mxu0 %v4290
    %v4386 = vpop.f32.mrb[0].mxu0
    %v4387 = vadd.f32 %v4222, %v4386
    %v4388 = vpop.f32.mrb[0].mxu0
    %v4389 = vpop.f32.mrb[0].mxu0
    %v4390 = vadd.f32 %v4223, %v4389
    %v4391 = vpop.f32.mrb[0].mxu0
    %4392 = vmatprep.mubr.bf16.mxu0 0
    %4393 = vmatmul.mubr.bf16.gmra.mrb[0].mxu0 %v4293
    %v4394 = vpop.f32.mrb[0].mxu0
    %v4395 = vadd.f32 %v4224, %v4394
    %v4396 = vpop.f32.mrb[0].mxu0
    %v4397 = vpop.f32.mrb[0].mxu0
    %v4398 = vadd.f32 %v4225, %v4397
    %v4399 = vpop.f32.mrb[0].mxu0
    %4400 = vmatprep.mubr.bf16.mxu0 0
    %4401 = vmatmul.mubr.bf16.gmra.mrb[0].mxu0 %v4296
    %v4402 = vpop.f32.mrb[0].mxu0
    %v4403 = vadd.f32 %v4226, %v4402
    %v4404 = vpop.f32.mrb[0].mxu0
    %v4405 = vpop.f32.mrb[0].mxu0
    %v4406 = vadd.f32 %v4227, %v4405
    %v4407 = vpop.f32.mrb[0].mxu0
    %4408 = vmatprep.mubr.bf16.mxu0 0
    %4409 = vmatmul.mubr.bf16.gmra.mrb[0].mxu0 %v4299
    %v4410 = vpop.f32.mrb[0].mxu0
    %v4411 = vadd.f32 %v4228, %v4410
    %v4412 = vpop.f32.mrb[0].mxu0
    %v4413 = vpop.f32.mrb[0].mxu0
    %v4414 = vadd.f32 %v4229, %v4413
    %v4415 = vpop.f32.mrb[0].mxu0
    %4416 = vmatprep.mubr.bf16.mxu0 0
    %4417 = vmatmul.mubr.bf16.gmra.mrb[0].mxu0 %v4302
    %v4418 = vpop.f32.mrb[0].mxu0
    %v4419 = vadd.f32 %v4230, %v4418
    %v4420 = vpop.f32.mrb[0].mxu0
    %v4421 = vpop.f32.mrb[0].mxu0
    %v4422 = vadd.f32 %v4231, %v4421
    %v4423 = vpop.f32.mrb[0].mxu0
    %4424 = vdwg.mxu0
    %4425 = vmax.xlane.f32.xlu0 %v4363
    %v4426 = vpop.xlane.xlu0 %4425
    %4427 = vmax.xlane.f32.xlu0 %v4366
    %v4428 = vpop.xlane.xlu0 %4427
    %4429 = vmax.xlane.f32.xlu0 %v4371
    %v4430 = vpop.xlane.xlu0 %4429
    %4431 = vmax.xlane.f32.xlu0 %v4374
    %v4432 = vpop.xlane.xlu0 %4431
    %4433 = vmax.xlane.f32.xlu0 %v4379
    %v4434 = vpop.xlane.xlu0 %4433
    %4435 = vmax.xlane.f32.xlu0 %v4382
    %v4436 = vpop.xlane.xlu0 %4435
    %4437 = vmax.xlane.f32.xlu0 %v4387
    %v4438 = vpop.xlane.xlu0 %4437
    %4439 = vmax.xlane.f32.xlu0 %v4390
    %v4440 = vpop.xlane.xlu0 %4439
    %4441 = vmax.xlane.f32.xlu0 %v4395
    %v4442 = vpop.xlane.xlu0 %4441
    %4443 = vmax.xlane.f32.xlu0 %v4398
    %v4444 = vpop.xlane.xlu0 %4443
    %4445 = vmax.xlane.f32.xlu0 %v4403
    %v4446 = vpop.xlane.xlu0 %4445
    %4447 = vmax.xlane.f32.xlu0 %v4406
    %v4448 = vpop.xlane.xlu0 %4447
    %4449 = vmax.xlane.f32.xlu0 %v4411
    %v4450 = vpop.xlane.xlu0 %4449
    %4451 = vmax.xlane.f32.xlu0 %v4414
    %v4452 = vpop.xlane.xlu0 %4451
    %4453 = vmax.xlane.f32.xlu0 %v4419
    %v4454 = vpop.xlane.xlu0 %4453
    %4455 = vmax.xlane.f32.xlu0 %v4422
    %v4456 = vpop.xlane.xlu0 %4455
    %v4457 = vsub.f32 %v4363, %v4426
    %v4458 = vsub.f32 %v4366, %v4428
    %v4459 = vsub.f32 %v4371, %v4430
    %v4460 = vsub.f32 %v4374, %v4432
    %v4461 = vsub.f32 %v4379, %v4434
    %v4462 = vsub.f32 %v4382, %v4436
    %v4463 = vsub.f32 %v4387, %v4438
    %v4464 = vsub.f32 %v4390, %v4440
    %v4465 = vsub.f32 %v4395, %v4442
    %v4466 = vsub.f32 %v4398, %v4444
    %v4467 = vsub.f32 %v4403, %v4446
    %v4468 = vsub.f32 %v4406, %v4448
    %v4469 = vsub.f32 %v4411, %v4450
    %v4470 = vsub.f32 %v4414, %v4452
    %v4471 = vsub.f32 %v4419, %v4454
    %v4472 = vsub.f32 %v4422, %v4456
    %v4473 = vmul.f32 %v4457, 1.442695
    %v4474 = vpow.pop %v4473
    %v4475 = vmul.f32 %v4458, 1.442695
    %v4476 = vpow.pop %v4475
    %v4477 = vmul.f32 %v4459, 1.442695
    %v4478 = vpow.pop %v4477
    %v4479 = vmul.f32 %v4460, 1.442695
    %v4480 = vpow.pop %v4479
    %v4481 = vmul.f32 %v4461, 1.442695
    %v4482 = vpow.pop %v4481
    %v4483 = vmul.f32 %v4462, 1.442695
    %v4484 = vpow.pop %v4483
    %v4485 = vmul.f32 %v4463, 1.442695
    %v4486 = vpow.pop %v4485
    %v4487 = vmul.f32 %v4464, 1.442695
    %v4488 = vpow.pop %v4487
    %v4489 = vmul.f32 %v4465, 1.442695
    %v4490 = vpow.pop %v4489
    %v4491 = vmul.f32 %v4466, 1.442695
    %v4492 = vpow.pop %v4491
    %v4493 = vmul.f32 %v4467, 1.442695
    %v4494 = vpow.pop %v4493
    %v4495 = vmul.f32 %v4468, 1.442695
    %v4496 = vpow.pop %v4495
    %v4497 = vmul.f32 %v4469, 1.442695
    %v4498 = vpow.pop %v4497
    %v4499 = vmul.f32 %v4470, 1.442695
    %v4500 = vpow.pop %v4499
    %v4501 = vmul.f32 %v4471, 1.442695
    %v4502 = vpow.pop %v4501
    %v4503 = vmul.f32 %v4472, 1.442695
    %v4504 = vpow.pop %v4503
    %4505 = vadd.xlane.f32.xlu0 %v4474
    %v4506 = vpop.xlane.xlu0 %4505
    %4507 = vadd.xlane.f32.xlu0 %v4476
    %v4508 = vpop.xlane.xlu0 %4507
    %4509 = vadd.xlane.f32.xlu0 %v4478
    %v4510 = vpop.xlane.xlu0 %4509
    %4511 = vadd.xlane.f32.xlu0 %v4480
    %v4512 = vpop.xlane.xlu0 %4511
    %4513 = vadd.xlane.f32.xlu0 %v4482
    %v4514 = vpop.xlane.xlu0 %4513
    %4515 = vadd.xlane.f32.xlu0 %v4484
    %v4516 = vpop.xlane.xlu0 %4515
    %4517 = vadd.xlane.f32.xlu0 %v4486
    %v4518 = vpop.xlane.xlu0 %4517
    %4519 = vadd.xlane.f32.xlu0 %v4488
    %v4520 = vpop.xlane.xlu0 %4519
    %4521 = vadd.xlane.f32.xlu0 %v4490
    %v4522 = vpop.xlane.xlu0 %4521
    %4523 = vadd.xlane.f32.xlu0 %v4492
    %v4524 = vpop.xlane.xlu0 %4523
    %4525 = vadd.xlane.f32.xlu0 %v4494
    %v4526 = vpop.xlane.xlu0 %4525
    %4527 = vadd.xlane.f32.xlu0 %v4496
    %v4528 = vpop.xlane.xlu0 %4527
    %4529 = vadd.xlane.f32.xlu0 %v4498
    %v4530 = vpop.xlane.xlu0 %4529
    %4531 = vadd.xlane.f32.xlu0 %v4500
    %v4532 = vpop.xlane.xlu0 %4531
    %4533 = vadd.xlane.f32.xlu0 %v4502
    %v4534 = vpop.xlane.xlu0 %4533
    %4535 = vadd.xlane.f32.xlu0 %v4504
    %v4536 = vpop.xlane.xlu0 %4535
    %v4537 = vrcp.pop %v4506
    %v4538 = vrcp.pop %v4508
    %v4539 = vrcp.pop %v4510
    %v4540 = vrcp.pop %v4512
    %v4541 = vrcp.pop %v4514
    %v4542 = vrcp.pop %v4516
    %v4543 = vrcp.pop %v4518
    %v4544 = vrcp.pop %v4520
    %v4545 = vrcp.pop %v4522
    %v4546 = vrcp.pop %v4524
    %v4547 = vrcp.pop %v4526
    %v4548 = vrcp.pop %v4528
    %v4549 = vrcp.pop %v4530
    %v4550 = vrcp.pop %v4532
    %v4551 = vrcp.pop %v4534
    %v4552 = vrcp.pop %v4536
    %v4553 = vmul.f32 %v4474, %v4537
    %v4554 = vmul.f32 %v4476, %v4538
    %v4555 = vmul.f32 %v4478, %v4539
    %v4556 = vmul.f32 %v4480, %v4540
    %v4557 = vmul.f32 %v4482, %v4541
    %v4558 = vmul.f32 %v4484, %v4542
    %v4559 = vmul.f32 %v4486, %v4543
    %v4560 = vmul.f32 %v4488, %v4544
    %v4561 = vmul.f32 %v4490, %v4545
    %v4562 = vmul.f32 %v4492, %v4546
    %v4563 = vmul.f32 %v4494, %v4547
    %v4564 = vmul.f32 %v4496, %v4548
    %v4565 = vmul.f32 %v4498, %v4549
    %v4566 = vmul.f32 %v4500, %v4550
    %v4567 = vmul.f32 %v4502, %v4551
    %v4568 = vmul.f32 %v4504, %v4552
    %v4569 = vpack.c.bf16 %v4554, %v4553
    %v4570 = vpack.c.bf16 %v4556, %v4555
    %v4571 = vpack.c.bf16 %v4558, %v4557
    %v4572 = vpack.c.bf16 %v4560, %v4559
    %v4573 = vpack.c.bf16 %v4562, %v4561
    %v4574 = vpack.c.bf16 %v4564, %v4563
    %v4575 = vpack.c.bf16 %v4566, %v4565
    %v4576 = vpack.c.bf16 %v4568, %v4567
    %4585 = vrot.lane.b32.xlu0 %v4208, 64
    %v4586 = vpop.permute.xlu0 %4585
    %4587 = vrot.lane.b32.xlu0 %v4209, 64
    %v4588 = vpop.permute.xlu0 %4587
    %4589 = vrot.lane.b32.xlu0 %v4210, 64
    %v4590 = vpop.permute.xlu0 %4589
    %4591 = vrot.lane.b32.xlu0 %v4211, 64
    %v4592 = vpop.permute.xlu0 %4591
    %4593 = vrot.lane.b32.xlu0 %v4212, 64
    %v4594 = vpop.permute.xlu0 %4593
    %4595 = vrot.lane.b32.xlu0 %v4213, 64
    %v4596 = vpop.permute.xlu0 %4595
    %4597 = vrot.lane.b32.xlu0 %v4214, 64
    %v4598 = vpop.permute.xlu0 %4597
    %4599 = vrot.lane.b32.xlu0 %v4215, 64
    %v4600 = vpop.permute.xlu0 %4599
    %4609 = vmatprep.subr.bf16.mxu0 0
    %4610 = vmatpush1.bf16.msra.mxu0 %v4586
    %4611 = vmatprep.subr.bf16.mxu0 0
    %4612 = vmatpush1.bf16.msra.mxu0 %v4588
    %4613 = vmatprep.subr.bf16.mxu0 0
    %4614 = vmatpush1.bf16.msra.mxu0 %v4590
    %4615 = vmatprep.subr.bf16.mxu0 0
    %4616 = vmatpush1.bf16.msra.mxu0 %v4592
    %4617 = vmatprep.subr.bf16.mxu0 0
    %4618 = vmatpush1.bf16.msra.mxu0 %v4594
    %4619 = vmatprep.subr.bf16.mxu0 0
    %4620 = vmatpush1.bf16.msra.mxu0 %v4596
    %4621 = vmatprep.subr.bf16.mxu0 0
    %4622 = vmatpush1.bf16.msra.mxu0 %v4598
    %4623 = vmatprep.subr.bf16.mxu0 0
    %4624 = vmatpush1.bf16.msra.mxu0 %v4600
    %4625 = vmatprep.subr.bf16.mxu0 0
    %4626 = vmatpush1.bf16.msra.mxu0 0
    %4627 = vmatprep.subr.bf16.mxu0 0
    %4628 = vmatpush1.bf16.msra.mxu0 0
    %4629 = vmatprep.subr.bf16.mxu0 0
    %4630 = vmatpush1.bf16.msra.mxu0 0
    %4631 = vmatprep.subr.bf16.mxu0 0
    %4632 = vmatpush1.bf16.msra.mxu0 0
    %4633 = vmatprep.subr.bf16.mxu0 0
    %4634 = vmatpush1.bf16.msra.mxu0 0
    %4635 = vmatprep.subr.bf16.mxu0 0
    %4636 = vmatpush1.bf16.msra.mxu0 0
    %4637 = vmatprep.subr.bf16.mxu0 0
    %4638 = vmatpush1.bf16.msra.mxu0 0
    %4639 = vmatprep.subr.bf16.mxu0 0
    %4640 = vmatpush1.bf16.msra.mxu0 0
    %4641 = vmatprep.mubr.bf16.mxu0 0
    %4642 = vmatmul.mubr.bf16.gmra.mrb[0].mxu0 %v4569
    %v4643 = vpop.f32.mrb[0].mxu0
    %v4644 = vadd.f32 0.0, %v4643
    %v4645 = vpop.f32.mrb[0].mxu0
    %v4646 = vpop.f32.mrb[0].mxu0
    %v4647 = vadd.f32 0.0, %v4646
    %v4648 = vpop.f32.mrb[0].mxu0
    %4649 = vmatprep.mubr.bf16.mxu0 0
    %4650 = vmatmul.mubr.bf16.gmra.mrb[0].mxu0 %v4570
    %v4651 = vpop.f32.mrb[0].mxu0
    %v4652 = vadd.f32 0.0, %v4651
    %v4653 = vpop.f32.mrb[0].mxu0
    %v4654 = vpop.f32.mrb[0].mxu0
    %v4655 = vadd.f32 0.0, %v4654
    %v4656 = vpop.f32.mrb[0].mxu0
    %4657 = vmatprep.mubr.bf16.mxu0 0
    %4658 = vmatmul.mubr.bf16.gmra.mrb[0].mxu0 %v4571
    %v4659 = vpop.f32.mrb[0].mxu0
    %v4660 = vadd.f32 0.0, %v4659
    %v4661 = vpop.f32.mrb[0].mxu0
    %v4662 = vpop.f32.mrb[0].mxu0
    %v4663 = vadd.f32 0.0, %v4662
    %v4664 = vpop.f32.mrb[0].mxu0
    %4665 = vmatprep.mubr.bf16.mxu0 0
    %4666 = vmatmul.mubr.bf16.gmra.mrb[0].mxu0 %v4572
    %v4667 = vpop.f32.mrb[0].mxu0
    %v4668 = vadd.f32 0.0, %v4667
    %v4669 = vpop.f32.mrb[0].mxu0
    %v4670 = vpop.f32.mrb[0].mxu0
    %v4671 = vadd.f32 0.0, %v4670
    %v4672 = vpop.f32.mrb[0].mxu0
    %4673 = vmatprep.mubr.bf16.mxu0 0
    %4674 = vmatmul.mubr.bf16.gmra.mrb[0].mxu0 %v4573
    %v4675 = vpop.f32.mrb[0].mxu0
    %v4676 = vadd.f32 0.0, %v4675
    %v4677 = vpop.f32.mrb[0].mxu0
    %v4678 = vpop.f32.mrb[0].mxu0
    %v4679 = vadd.f32 0.0, %v4678
    %v4680 = vpop.f32.mrb[0].mxu0
    %4681 = vmatprep.mubr.bf16.mxu0 0
    %4682 = vmatmul.mubr.bf16.gmra.mrb[0].mxu0 %v4574
    %v4683 = vpop.f32.mrb[0].mxu0
    %v4684 = vadd.f32 0.0, %v4683
    %v4685 = vpop.f32.mrb[0].mxu0
    %v4686 = vpop.f32.mrb[0].mxu0
    %v4687 = vadd.f32 0.0, %v4686
    %v4688 = vpop.f32.mrb[0].mxu0
    %4689 = vmatprep.mubr.bf16.mxu0 0
    %4690 = vmatmul.mubr.bf16.gmra.mrb[0].mxu0 %v4575
    %v4691 = vpop.f32.mrb[0].mxu0
    %v4692 = vadd.f32 0.0, %v4691
    %v4693 = vpop.f32.mrb[0].mxu0
    %v4694 = vpop.f32.mrb[0].mxu0
    %v4695 = vadd.f32 0.0, %v4694
    %v4696 = vpop.f32.mrb[0].mxu0
    %4697 = vmatprep.mubr.bf16.mxu0 0
    %4698 = vmatmul.mubr.bf16.gmra.mrb[0].mxu0 %v4576
    %v4699 = vpop.f32.mrb[0].mxu0
    %v4700 = vadd.f32 0.0, %v4699
    %v4701 = vpop.f32.mrb[0].mxu0
    %v4702 = vpop.f32.mrb[0].mxu0
    %v4703 = vadd.f32 0.0, %v4702
    %v4704 = vpop.f32.mrb[0].mxu0
    %4705 = vdwg.mxu0
    %v4706 = vpack.c.bf16 %v4647, %v4644
    %v4707 = vpack.c.bf16 %v4655, %v4652
    %v4708 = vpack.c.bf16 %v4663, %v4660
    %v4709 = vpack.c.bf16 %v4671, %v4668
    %v4710 = vpack.c.bf16 %v4679, %v4676
    %v4711 = vpack.c.bf16 %v4687, %v4684
    %v4712 = vpack.c.bf16 %v4695, %v4692
    %v4713 = vpack.c.bf16 %v4703, %v4700
    %4722 = vrot.lane.b32.xlu0 %v4706, 64
    %v4723 = vpop.permute.xlu0 %4722
    %4724 = vrot.lane.b32.xlu0 %v4707, 64
    %v4725 = vpop.permute.xlu0 %4724
    %4726 = vrot.lane.b32.xlu0 %v4708, 64
    %v4727 = vpop.permute.xlu0 %4726
    %4728 = vrot.lane.b32.xlu0 %v4709, 64
    %v4729 = vpop.permute.xlu0 %4728
    %4730 = vrot.lane.b32.xlu0 %v4710, 64
    %v4731 = vpop.permute.xlu0 %4730
    %4732 = vrot.lane.b32.xlu0 %v4711, 64
    %v4733 = vpop.permute.xlu0 %4732
    %4734 = vrot.lane.b32.xlu0 %v4712, 64
    %v4735 = vpop.permute.xlu0 %4734
    %4736 = vrot.lane.b32.xlu0 %v4713, 64
    %v4737 = vpop.permute.xlu0 %4736
    %4746 = vst.msk [vmem:[#allocation3 + $0x40] sm:$0xff] %vm2608, %v4723
    %4747 = vst.msk [vmem:[#allocation3 + $0x48] sm:$0xff] %vm2608, %v4725
    %4748 = vst.msk [vmem:[#allocation3 + $0x50] sm:$0xff] %vm2608, %v4727
    %4749 = vst.msk [vmem:[#allocation3 + $0x58] sm:$0xff] %vm2608, %v4729
    %4750 = vst.msk [vmem:[#allocation3 + $0x60] sm:$0xff] %vm2608, %v4731
    %4751 = vst.msk [vmem:[#allocation3 + $0x68] sm:$0xff] %vm2608, %v4733
    %4752 = vst.msk [vmem:[#allocation3 + $0x70] sm:$0xff] %vm2608, %v4735
    %4753 = vst.msk [vmem:[#allocation3 + $0x78] sm:$0xff] %vm2608, %v4737
    %v4754 = vld [vmem:[#allocation2 + $0xc0] sm:$0xff]
    %v4755 = vld [vmem:[#allocation2 + $0xd8] sm:$0xff]
    %v4756 = vld [vmem:[#allocation2 + $0xf0] sm:$0xff]
    %v4757 = vld [vmem:[#allocation2 + $0x108] sm:$0xff]
    %v4758 = vld [vmem:[#allocation2 + $0x120] sm:$0xff]
    %v4759 = vld [vmem:[#allocation2 + $0x138] sm:$0xff]
    %v4760 = vld [vmem:[#allocation2 + $0x150] sm:$0xff]
    %v4761 = vld [vmem:[#allocation2 + $0x168] sm:$0xff]
    %v4762 = vld [vmem:[#allocation2 + $0xc8] sm:$0xff]
    %v4763 = vld [vmem:[#allocation2 + $0xe0] sm:$0xff]
    %v4764 = vld [vmem:[#allocation2 + $0xf8] sm:$0xff]
    %v4765 = vld [vmem:[#allocation2 + $0x110] sm:$0xff]
    %v4766 = vld [vmem:[#allocation2 + $0x128] sm:$0xff]
    %v4767 = vld [vmem:[#allocation2 + $0x140] sm:$0xff]
    %v4768 = vld [vmem:[#allocation2 + $0x158] sm:$0xff]
    %v4769 = vld [vmem:[#allocation2 + $0x170] sm:$0xff]
    %v4770 = vld [vmem:[#allocation2 + $0xd0] sm:$0xff]
    %v4771 = vld [vmem:[#allocation2 + $0xe8] sm:$0xff]
    %v4772 = vld [vmem:[#allocation2 + $0x100] sm:$0xff]
    %v4773 = vld [vmem:[#allocation2 + $0x118] sm:$0xff]
    %v4774 = vld [vmem:[#allocation2 + $0x130] sm:$0xff]
    %v4775 = vld [vmem:[#allocation2 + $0x148] sm:$0xff]
    %v4776 = vld [vmem:[#allocation2 + $0x160] sm:$0xff]
    %v4777 = vld [vmem:[#allocation2 + $0x178] sm:$0xff]
    %v4778 = vld [vmem:[#allocation4] sm:$0xff]
    %v4779 = vld [vmem:[#allocation4 + $0x8] sm:$0xff]
    %v4780 = vld [vmem:[#allocation4 + $0x10] sm:$0xff]
    %v4781 = vld [vmem:[#allocation4 + $0x18] sm:$0xff]
    %v4782 = vld [vmem:[#allocation4 + $0x20] sm:$0xff]
    %v4783 = vld [vmem:[#allocation4 + $0x28] sm:$0xff]
    %v4784 = vld [vmem:[#allocation4 + $0x30] sm:$0xff]
    %v4785 = vld [vmem:[#allocation4 + $0x38] sm:$0xff]
    %v4786 = vld [vmem:[#allocation4 + $0x40] sm:$0xff]
    %v4787 = vld [vmem:[#allocation4 + $0x48] sm:$0xff]
    %v4788 = vld [vmem:[#allocation4 + $0x50] sm:$0xff]
    %v4789 = vld [vmem:[#allocation4 + $0x58] sm:$0xff]
    %v4790 = vld [vmem:[#allocation4 + $0x60] sm:$0xff]
    %v4791 = vld [vmem:[#allocation4 + $0x68] sm:$0xff]
    %v4792 = vld [vmem:[#allocation4 + $0x70] sm:$0xff]
    %v4793 = vld [vmem:[#allocation4 + $0x78] sm:$0xff]
    %4802 = vrot.lane.b32.xlu0 %v4754, 32
    %v4803 = vpop.permute.xlu0 %4802
    %4804 = vrot.lane.b32.xlu0 %v4755, 32
    %v4805 = vpop.permute.xlu0 %4804
    %4806 = vrot.lane.b32.xlu0 %v4756, 32
    %v4807 = vpop.permute.xlu0 %4806
    %4808 = vrot.lane.b32.xlu0 %v4757, 32
    %v4809 = vpop.permute.xlu0 %4808
    %4810 = vrot.lane.b32.xlu0 %v4758, 32
    %v4811 = vpop.permute.xlu0 %4810
    %4812 = vrot.lane.b32.xlu0 %v4759, 32
    %v4813 = vpop.permute.xlu0 %4812
    %4814 = vrot.lane.b32.xlu0 %v4760, 32
    %v4815 = vpop.permute.xlu0 %4814
    %4816 = vrot.lane.b32.xlu0 %v4761, 32
    %v4817 = vpop.permute.xlu0 %4816
    %4826 = vrot.lane.b32.xlu0 %v4762, 32
    %v4827 = vpop.permute.xlu0 %4826
    %4828 = vrot.lane.b32.xlu0 %v4763, 32
    %v4829 = vpop.permute.xlu0 %4828
    %4830 = vrot.lane.b32.xlu0 %v4764, 32
    %v4831 = vpop.permute.xlu0 %4830
    %4832 = vrot.lane.b32.xlu0 %v4765, 32
    %v4833 = vpop.permute.xlu0 %4832
    %4834 = vrot.lane.b32.xlu0 %v4766, 32
    %v4835 = vpop.permute.xlu0 %4834
    %4836 = vrot.lane.b32.xlu0 %v4767, 32
    %v4837 = vpop.permute.xlu0 %4836
    %4838 = vrot.lane.b32.xlu0 %v4768, 32
    %v4839 = vpop.permute.xlu0 %4838
    %4840 = vrot.lane.b32.xlu0 %v4769, 32
    %v4841 = vpop.permute.xlu0 %4840
    %v4843 = vsel %vm1080, %v4803, 0
    %v4846 = vsel %vm1080, %v4805, 0
    %v4849 = vsel %vm1080, %v4807, 0
    %v4852 = vsel %vm1080, %v4809, 0
    %v4855 = vsel %vm1080, %v4811, 0
    %v4858 = vsel %vm1080, %v4813, 0
    %v4861 = vsel %vm1080, %v4815, 0
    %v4864 = vsel %vm1080, %v4817, 0
    %v4867 = vsel %vm1080, %v4827, 0
    %v4870 = vsel %vm1080, %v4829, 0
    %v4873 = vsel %vm1080, %v4831, 0
    %v4876 = vsel %vm1080, %v4833, 0
    %v4879 = vsel %vm1080, %v4835, 0
    %v4882 = vsel %vm1080, %v4837, 0
    %v4885 = vsel %vm1080, %v4839, 0
    %v4888 = vsel %vm1080, %v4841, 0
    %4890 = vmatprep.subr.bf16.mxu0 0
    %4891 = vmatpush1.bf16.xpose.msra.mxu0 %v4867
    %4892 = vmatprep.subr.bf16.mxu0 0
    %4893 = vmatpush1.bf16.xpose.msra.mxu0 %v4870
    %4894 = vmatprep.subr.bf16.mxu0 0
    %4895 = vmatpush1.bf16.xpose.msra.mxu0 %v4873
    %4896 = vmatprep.subr.bf16.mxu0 0
    %4897 = vmatpush1.bf16.xpose.msra.mxu0 %v4876
    %4898 = vmatprep.subr.bf16.mxu0 0
    %4899 = vmatpush1.bf16.xpose.msra.mxu0 %v4879
    %4900 = vmatprep.subr.bf16.mxu0 0
    %4901 = vmatpush1.bf16.xpose.msra.mxu0 %v4882
    %4902 = vmatprep.subr.bf16.mxu0 0
    %4903 = vmatpush1.bf16.xpose.msra.mxu0 %v4885
    %4904 = vmatprep.subr.bf16.mxu0 0
    %4905 = vmatpush1.bf16.xpose.msra.mxu0 %v4888
    %4906 = vmatprep.subr.bf16.mxu0 0
    %4907 = vmatpush1.bf16.xpose.msra.mxu0 0
    %4908 = vmatprep.subr.bf16.mxu0 0
    %4909 = vmatpush1.bf16.xpose.msra.mxu0 0
    %4910 = vmatprep.subr.bf16.mxu0 0
    %4911 = vmatpush1.bf16.xpose.msra.mxu0 0
    %4912 = vmatprep.subr.bf16.mxu0 0
    %4913 = vmatpush1.bf16.xpose.msra.mxu0 0
    %4914 = vmatprep.subr.bf16.mxu0 0
    %4915 = vmatpush1.bf16.xpose.msra.mxu0 0
    %4916 = vmatprep.subr.bf16.mxu0 0
    %4917 = vmatpush1.bf16.xpose.msra.mxu0 0
    %4918 = vmatprep.subr.bf16.mxu0 0
    %4919 = vmatpush1.bf16.xpose.msra.mxu0 0
    %4920 = vmatprep.subr.bf16.mxu0 0
    %4921 = vmatpush1.bf16.xpose.msra.mxu0 0
    %4922 = vmatprep.mubr.bf16.mxu0 0
    %4923 = vmatmul.mubr.bf16.gmra.mrb[0].mxu0 %v4843
    %v4924 = vpop.f32.mrb[0].mxu0
    %v4925 = vadd.f32 %v4778, %v4924
    %v4926 = vpop.f32.mrb[0].mxu0
    %v4927 = vpop.f32.mrb[0].mxu0
    %v4928 = vadd.f32 %v4779, %v4927
    %v4929 = vpop.f32.mrb[0].mxu0
    %4930 = vmatprep.mubr.bf16.mxu0 0
    %4931 = vmatmul.mubr.bf16.gmra.mrb[0].mxu0 %v4846
    %v4932 = vpop.f32.mrb[0].mxu0
    %v4933 = vadd.f32 %v4780, %v4932
    %v4934 = vpop.f32.mrb[0].mxu0
    %v4935 = vpop.f32.mrb[0].mxu0
    %v4936 = vadd.f32 %v4781, %v4935
    %v4937 = vpop.f32.mrb[0].mxu0
    %4938 = vmatprep.mubr.bf16.mxu0 0
    %4939 = vmatmul.mubr.bf16.gmra.mrb[0].mxu0 %v4849
    %v4940 = vpop.f32.mrb[0].mxu0
    %v4941 = vadd.f32 %v4782, %v4940
    %v4942 = vpop.f32.mrb[0].mxu0
    %v4943 = vpop.f32.mrb[0].mxu0
    %v4944 = vadd.f32 %v4783, %v4943
    %v4945 = vpop.f32.mrb[0].mxu0
    %4946 = vmatprep.mubr.bf16.mxu0 0
    %4947 = vmatmul.mubr.bf16.gmra.mrb[0].mxu0 %v4852
    %v4948 = vpop.f32.mrb[0].mxu0
    %v4949 = vadd.f32 %v4784, %v4948
    %v4950 = vpop.f32.mrb[0].mxu0
    %v4951 = vpop.f32.mrb[0].mxu0
    %v4952 = vadd.f32 %v4785, %v4951
    %v4953 = vpop.f32.mrb[0].mxu0
    %4954 = vmatprep.mubr.bf16.mxu0 0
    %4955 = vmatmul.mubr.bf16.gmra.mrb[0].mxu0 %v4855
    %v4956 = vpop.f32.mrb[0].mxu0
    %v4957 = vadd.f32 %v4786, %v4956
    %v4958 = vpop.f32.mrb[0].mxu0
    %v4959 = vpop.f32.mrb[0].mxu0
    %v4960 = vadd.f32 %v4787, %v4959
    %v4961 = vpop.f32.mrb[0].mxu0
    %4962 = vmatprep.mubr.bf16.mxu0 0
    %4963 = vmatmul.mubr.bf16.gmra.mrb[0].mxu0 %v4858
    %v4964 = vpop.f32.mrb[0].mxu0
    %v4965 = vadd.f32 %v4788, %v4964
    %v4966 = vpop.f32.mrb[0].mxu0
    %v4967 = vpop.f32.mrb[0].mxu0
    %v4968 = vadd.f32 %v4789, %v4967
    %v4969 = vpop.f32.mrb[0].mxu0
    %4970 = vmatprep.mubr.bf16.mxu0 0
    %4971 = vmatmul.mubr.bf16.gmra.mrb[0].mxu0 %v4861
    %v4972 = vpop.f32.mrb[0].mxu0
    %v4973 = vadd.f32 %v4790, %v4972
    %v4974 = vpop.f32.mrb[0].mxu0
    %v4975 = vpop.f32.mrb[0].mxu0
    %v4976 = vadd.f32 %v4791, %v4975
    %v4977 = vpop.f32.mrb[0].mxu0
    %4978 = vmatprep.mubr.bf16.mxu0 0
    %4979 = vmatmul.mubr.bf16.gmra.mrb[0].mxu0 %v4864
    %v4980 = vpop.f32.mrb[0].mxu0
    %v4981 = vadd.f32 %v4792, %v4980
    %v4982 = vpop.f32.mrb[0].mxu0
    %v4983 = vpop.f32.mrb[0].mxu0
    %v4984 = vadd.f32 %v4793, %v4983
    %v4985 = vpop.f32.mrb[0].mxu0
    %4986 = vdwg.mxu0
    %4987 = vmax.xlane.f32.xlu0 %v4925
    %v4988 = vpop.xlane.xlu0 %4987
    %4989 = vmax.xlane.f32.xlu0 %v4928
    %v4990 = vpop.xlane.xlu0 %4989
    %4991 = vmax.xlane.f32.xlu0 %v4933
    %v4992 = vpop.xlane.xlu0 %4991
    %4993 = vmax.xlane.f32.xlu0 %v4936
    %v4994 = vpop.xlane.xlu0 %4993
    %4995 = vmax.xlane.f32.xlu0 %v4941
    %v4996 = vpop.xlane.xlu0 %4995
    %4997 = vmax.xlane.f32.xlu0 %v4944
    %v4998 = vpop.xlane.xlu0 %4997
    %4999 = vmax.xlane.f32.xlu0 %v4949
    %v5000 = vpop.xlane.xlu0 %4999
    %5001 = vmax.xlane.f32.xlu0 %v4952
    %v5002 = vpop.xlane.xlu0 %5001
    %5003 = vmax.xlane.f32.xlu0 %v4957
    %v5004 = vpop.xlane.xlu0 %5003
    %5005 = vmax.xlane.f32.xlu0 %v4960
    %v5006 = vpop.xlane.xlu0 %5005
    %5007 = vmax.xlane.f32.xlu0 %v4965
    %v5008 = vpop.xlane.xlu0 %5007
    %5009 = vmax.xlane.f32.xlu0 %v4968
    %v5010 = vpop.xlane.xlu0 %5009
    %5011 = vmax.xlane.f32.xlu0 %v4973
    %v5012 = vpop.xlane.xlu0 %5011
    %5013 = vmax.xlane.f32.xlu0 %v4976
    %v5014 = vpop.xlane.xlu0 %5013
    %5015 = vmax.xlane.f32.xlu0 %v4981
    %v5016 = vpop.xlane.xlu0 %5015
    %5017 = vmax.xlane.f32.xlu0 %v4984
    %v5018 = vpop.xlane.xlu0 %5017
    %v5019 = vsub.f32 %v4925, %v4988
    %v5020 = vsub.f32 %v4928, %v4990
    %v5021 = vsub.f32 %v4933, %v4992
    %v5022 = vsub.f32 %v4936, %v4994
    %v5023 = vsub.f32 %v4941, %v4996
    %v5024 = vsub.f32 %v4944, %v4998
    %v5025 = vsub.f32 %v4949, %v5000
    %v5026 = vsub.f32 %v4952, %v5002
    %v5027 = vsub.f32 %v4957, %v5004
    %v5028 = vsub.f32 %v4960, %v5006
    %v5029 = vsub.f32 %v4965, %v5008
    %v5030 = vsub.f32 %v4968, %v5010
    %v5031 = vsub.f32 %v4973, %v5012
    %v5032 = vsub.f32 %v4976, %v5014
    %v5033 = vsub.f32 %v4981, %v5016
    %v5034 = vsub.f32 %v4984, %v5018
    %v5035 = vmul.f32 %v5019, 1.442695
    %v5036 = vpow.pop %v5035
    %v5037 = vmul.f32 %v5020, 1.442695
    %v5038 = vpow.pop %v5037
    %v5039 = vmul.f32 %v5021, 1.442695
    %v5040 = vpow.pop %v5039
    %v5041 = vmul.f32 %v5022, 1.442695
    %v5042 = vpow.pop %v5041
    %v5043 = vmul.f32 %v5023, 1.442695
    %v5044 = vpow.pop %v5043
    %v5045 = vmul.f32 %v5024, 1.442695
    %v5046 = vpow.pop %v5045
    %v5047 = vmul.f32 %v5025, 1.442695
    %v5048 = vpow.pop %v5047
    %v5049 = vmul.f32 %v5026, 1.442695
    %v5050 = vpow.pop %v5049
    %v5051 = vmul.f32 %v5027, 1.442695
    %v5052 = vpow.pop %v5051
    %v5053 = vmul.f32 %v5028, 1.442695
    %v5054 = vpow.pop %v5053
    %v5055 = vmul.f32 %v5029, 1.442695
    %v5056 = vpow.pop %v5055
    %v5057 = vmul.f32 %v5030, 1.442695
    %v5058 = vpow.pop %v5057
    %v5059 = vmul.f32 %v5031, 1.442695
    %v5060 = vpow.pop %v5059
    %v5061 = vmul.f32 %v5032, 1.442695
    %v5062 = vpow.pop %v5061
    %v5063 = vmul.f32 %v5033, 1.442695
    %v5064 = vpow.pop %v5063
    %v5065 = vmul.f32 %v5034, 1.442695
    %v5066 = vpow.pop %v5065
    %5067 = vadd.xlane.f32.xlu0 %v5036
    %v5068 = vpop.xlane.xlu0 %5067
    %5069 = vadd.xlane.f32.xlu0 %v5038
    %v5070 = vpop.xlane.xlu0 %5069
    %5071 = vadd.xlane.f32.xlu0 %v5040
    %v5072 = vpop.xlane.xlu0 %5071
    %5073 = vadd.xlane.f32.xlu0 %v5042
    %v5074 = vpop.xlane.xlu0 %5073
    %5075 = vadd.xlane.f32.xlu0 %v5044
    %v5076 = vpop.xlane.xlu0 %5075
    %5077 = vadd.xlane.f32.xlu0 %v5046
    %v5078 = vpop.xlane.xlu0 %5077
    %5079 = vadd.xlane.f32.xlu0 %v5048
    %v5080 = vpop.xlane.xlu0 %5079
    %5081 = vadd.xlane.f32.xlu0 %v5050
    %v5082 = vpop.xlane.xlu0 %5081
    %5083 = vadd.xlane.f32.xlu0 %v5052
    %v5084 = vpop.xlane.xlu0 %5083
    %5085 = vadd.xlane.f32.xlu0 %v5054
    %v5086 = vpop.xlane.xlu0 %5085
    %5087 = vadd.xlane.f32.xlu0 %v5056
    %v5088 = vpop.xlane.xlu0 %5087
    %5089 = vadd.xlane.f32.xlu0 %v5058
    %v5090 = vpop.xlane.xlu0 %5089
    %5091 = vadd.xlane.f32.xlu0 %v5060
    %v5092 = vpop.xlane.xlu0 %5091
    %5093 = vadd.xlane.f32.xlu0 %v5062
    %v5094 = vpop.xlane.xlu0 %5093
    %5095 = vadd.xlane.f32.xlu0 %v5064
    %v5096 = vpop.xlane.xlu0 %5095
    %5097 = vadd.xlane.f32.xlu0 %v5066
    %v5098 = vpop.xlane.xlu0 %5097
    %v5099 = vrcp.pop %v5068
    %v5100 = vrcp.pop %v5070
    %v5101 = vrcp.pop %v5072
    %v5102 = vrcp.pop %v5074
    %v5103 = vrcp.pop %v5076
    %v5104 = vrcp.pop %v5078
    %v5105 = vrcp.pop %v5080
    %v5106 = vrcp.pop %v5082
    %v5107 = vrcp.pop %v5084
    %v5108 = vrcp.pop %v5086
    %v5109 = vrcp.pop %v5088
    %v5110 = vrcp.pop %v5090
    %v5111 = vrcp.pop %v5092
    %v5112 = vrcp.pop %v5094
    %v5113 = vrcp.pop %v5096
    %v5114 = vrcp.pop %v5098
    %v5115 = vmul.f32 %v5036, %v5099
    %v5116 = vmul.f32 %v5038, %v5100
    %v5117 = vmul.f32 %v5040, %v5101
    %v5118 = vmul.f32 %v5042, %v5102
    %v5119 = vmul.f32 %v5044, %v5103
    %v5120 = vmul.f32 %v5046, %v5104
    %v5121 = vmul.f32 %v5048, %v5105
    %v5122 = vmul.f32 %v5050, %v5106
    %v5123 = vmul.f32 %v5052, %v5107
    %v5124 = vmul.f32 %v5054, %v5108
    %v5125 = vmul.f32 %v5056, %v5109
    %v5126 = vmul.f32 %v5058, %v5110
    %v5127 = vmul.f32 %v5060, %v5111
    %v5128 = vmul.f32 %v5062, %v5112
    %v5129 = vmul.f32 %v5064, %v5113
    %v5130 = vmul.f32 %v5066, %v5114
    %v5131 = vpack.c.bf16 %v5116, %v5115
    %v5132 = vpack.c.bf16 %v5118, %v5117
    %v5133 = vpack.c.bf16 %v5120, %v5119
    %v5134 = vpack.c.bf16 %v5122, %v5121
    %v5135 = vpack.c.bf16 %v5124, %v5123
    %v5136 = vpack.c.bf16 %v5126, %v5125
    %v5137 = vpack.c.bf16 %v5128, %v5127
    %v5138 = vpack.c.bf16 %v5130, %v5129
    %5147 = vrot.lane.b32.xlu0 %v4770, 32
    %v5148 = vpop.permute.xlu0 %5147
    %5149 = vrot.lane.b32.xlu0 %v4771, 32
    %v5150 = vpop.permute.xlu0 %5149
    %5151 = vrot.lane.b32.xlu0 %v4772, 32
    %v5152 = vpop.permute.xlu0 %5151
    %5153 = vrot.lane.b32.xlu0 %v4773, 32
    %v5154 = vpop.permute.xlu0 %5153
    %5155 = vrot.lane.b32.xlu0 %v4774, 32
    %v5156 = vpop.permute.xlu0 %5155
    %5157 = vrot.lane.b32.xlu0 %v4775, 32
    %v5158 = vpop.permute.xlu0 %5157
    %5159 = vrot.lane.b32.xlu0 %v4776, 32
    %v5160 = vpop.permute.xlu0 %5159
    %5161 = vrot.lane.b32.xlu0 %v4777, 32
    %v5162 = vpop.permute.xlu0 %5161
    %5171 = vmatprep.subr.bf16.mxu0 0
    %5172 = vmatpush1.bf16.msra.mxu0 %v5148
    %5173 = vmatprep.subr.bf16.mxu0 0
    %5174 = vmatpush1.bf16.msra.mxu0 %v5150
    %5175 = vmatprep.subr.bf16.mxu0 0
    %5176 = vmatpush1.bf16.msra.mxu0 %v5152
    %5177 = vmatprep.subr.bf16.mxu0 0
    %5178 = vmatpush1.bf16.msra.mxu0 %v5154
    %5179 = vmatprep.subr.bf16.mxu0 0
    %5180 = vmatpush1.bf16.msra.mxu0 %v5156
    %5181 = vmatprep.subr.bf16.mxu0 0
    %5182 = vmatpush1.bf16.msra.mxu0 %v5158
    %5183 = vmatprep.subr.bf16.mxu0 0
    %5184 = vmatpush1.bf16.msra.mxu0 %v5160
    %5185 = vmatprep.subr.bf16.mxu0 0
    %5186 = vmatpush1.bf16.msra.mxu0 %v5162
    %5187 = vmatprep.subr.bf16.mxu0 0
    %5188 = vmatpush1.bf16.msra.mxu0 0
    %5189 = vmatprep.subr.bf16.mxu0 0
    %5190 = vmatpush1.bf16.msra.mxu0 0
    %5191 = vmatprep.subr.bf16.mxu0 0
    %5192 = vmatpush1.bf16.msra.mxu0 0
    %5193 = vmatprep.subr.bf16.mxu0 0
    %5194 = vmatpush1.bf16.msra.mxu0 0
    %5195 = vmatprep.subr.bf16.mxu0 0
    %5196 = vmatpush1.bf16.msra.mxu0 0
    %5197 = vmatprep.subr.bf16.mxu0 0
    %5198 = vmatpush1.bf16.msra.mxu0 0
    %5199 = vmatprep.subr.bf16.mxu0 0
    %5200 = vmatpush1.bf16.msra.mxu0 0
    %5201 = vmatprep.subr.bf16.mxu0 0
    %5202 = vmatpush1.bf16.msra.mxu0 0
    %5203 = vmatprep.mubr.bf16.mxu0 0
    %5204 = vmatmul.mubr.bf16.gmra.mrb[0].mxu0 %v5131
    %v5205 = vpop.f32.mrb[0].mxu0
    %v5206 = vadd.f32 0.0, %v5205
    %v5207 = vpop.f32.mrb[0].mxu0
    %v5208 = vpop.f32.mrb[0].mxu0
    %v5209 = vadd.f32 0.0, %v5208
    %v5210 = vpop.f32.mrb[0].mxu0
    %5211 = vmatprep.mubr.bf16.mxu0 0
    %5212 = vmatmul.mubr.bf16.gmra.mrb[0].mxu0 %v5132
    %v5213 = vpop.f32.mrb[0].mxu0
    %v5214 = vadd.f32 0.0, %v5213
    %v5215 = vpop.f32.mrb[0].mxu0
    %v5216 = vpop.f32.mrb[0].mxu0
    %v5217 = vadd.f32 0.0, %v5216
    %v5218 = vpop.f32.mrb[0].mxu0
    %5219 = vmatprep.mubr.bf16.mxu0 0
    %5220 = vmatmul.mubr.bf16.gmra.mrb[0].mxu0 %v5133
    %v5221 = vpop.f32.mrb[0].mxu0
    %v5222 = vadd.f32 0.0, %v5221
    %v5223 = vpop.f32.mrb[0].mxu0
    %v5224 = vpop.f32.mrb[0].mxu0
    %v5225 = vadd.f32 0.0, %v5224
    %v5226 = vpop.f32.mrb[0].mxu0
    %5227 = vmatprep.mubr.bf16.mxu0 0
    %5228 = vmatmul.mubr.bf16.gmra.mrb[0].mxu0 %v5134
    %v5229 = vpop.f32.mrb[0].mxu0
    %v5230 = vadd.f32 0.0, %v5229
    %v5231 = vpop.f32.mrb[0].mxu0
    %v5232 = vpop.f32.mrb[0].mxu0
    %v5233 = vadd.f32 0.0, %v5232
    %v5234 = vpop.f32.mrb[0].mxu0
    %5235 = vmatprep.mubr.bf16.mxu0 0
    %5236 = vmatmul.mubr.bf16.gmra.mrb[0].mxu0 %v5135
    %v5237 = vpop.f32.mrb[0].mxu0
    %v5238 = vadd.f32 0.0, %v5237
    %v5239 = vpop.f32.mrb[0].mxu0
    %v5240 = vpop.f32.mrb[0].mxu0
    %v5241 = vadd.f32 0.0, %v5240
    %v5242 = vpop.f32.mrb[0].mxu0
    %5243 = vmatprep.mubr.bf16.mxu0 0
    %5244 = vmatmul.mubr.bf16.gmra.mrb[0].mxu0 %v5136
    %v5245 = vpop.f32.mrb[0].mxu0
    %v5246 = vadd.f32 0.0, %v5245
    %v5247 = vpop.f32.mrb[0].mxu0
    %v5248 = vpop.f32.mrb[0].mxu0
    %v5249 = vadd.f32 0.0, %v5248
    %v5250 = vpop.f32.mrb[0].mxu0
    %5251 = vmatprep.mubr.bf16.mxu0 0
    %5252 = vmatmul.mubr.bf16.gmra.mrb[0].mxu0 %v5137
    %v5253 = vpop.f32.mrb[0].mxu0
    %v5254 = vadd.f32 0.0, %v5253
    %v5255 = vpop.f32.mrb[0].mxu0
    %v5256 = vpop.f32.mrb[0].mxu0
    %v5257 = vadd.f32 0.0, %v5256
    %v5258 = vpop.f32.mrb[0].mxu0
    %5259 = vmatprep.mubr.bf16.mxu0 0
    %5260 = vmatmul.mubr.bf16.gmra.mrb[0].mxu0 %v5138
    %v5261 = vpop.f32.mrb[0].mxu0
    %v5262 = vadd.f32 0.0, %v5261
    %v5263 = vpop.f32.mrb[0].mxu0
    %v5264 = vpop.f32.mrb[0].mxu0
    %v5265 = vadd.f32 0.0, %v5264
    %v5266 = vpop.f32.mrb[0].mxu0
    %5267 = vdwg.mxu0
    %v5268 = vpack.c.bf16 %v5209, %v5206
    %v5269 = vpack.c.bf16 %v5217, %v5214
    %v5270 = vpack.c.bf16 %v5225, %v5222
    %v5271 = vpack.c.bf16 %v5233, %v5230
    %v5272 = vpack.c.bf16 %v5241, %v5238
    %v5273 = vpack.c.bf16 %v5249, %v5246
    %v5274 = vpack.c.bf16 %v5257, %v5254
    %v5275 = vpack.c.bf16 %v5265, %v5262
    %5284 = vrot.lane.b32.xlu0 %v5268, 96
    %v5285 = vpop.permute.xlu0 %5284
    %5286 = vrot.lane.b32.xlu0 %v5269, 96
    %v5287 = vpop.permute.xlu0 %5286
    %5288 = vrot.lane.b32.xlu0 %v5270, 96
    %v5289 = vpop.permute.xlu0 %5288
    %5290 = vrot.lane.b32.xlu0 %v5271, 96
    %v5291 = vpop.permute.xlu0 %5290
    %5292 = vrot.lane.b32.xlu0 %v5272, 96
    %v5293 = vpop.permute.xlu0 %5292
    %5294 = vrot.lane.b32.xlu0 %v5273, 96
    %v5295 = vpop.permute.xlu0 %5294
    %5296 = vrot.lane.b32.xlu0 %v5274, 96
    %v5297 = vpop.permute.xlu0 %5296
    %5298 = vrot.lane.b32.xlu0 %v5275, 96
    %v5299 = vpop.permute.xlu0 %5298
    %5308 = vst.msk [vmem:[#allocation3 + $0x40] sm:$0xff] %vm3171, %v5285
    %5309 = vst.msk [vmem:[#allocation3 + $0x48] sm:$0xff] %vm3171, %v5287
    %5310 = vst.msk [vmem:[#allocation3 + $0x50] sm:$0xff] %vm3171, %v5289
    %5311 = vst.msk [vmem:[#allocation3 + $0x58] sm:$0xff] %vm3171, %v5291
    %5312 = vst.msk [vmem:[#allocation3 + $0x60] sm:$0xff] %vm3171, %v5293
    %5313 = vst.msk [vmem:[#allocation3 + $0x68] sm:$0xff] %vm3171, %v5295
    %5314 = vst.msk [vmem:[#allocation3 + $0x70] sm:$0xff] %vm3171, %v5297
    %5315 = vst.msk [vmem:[#allocation3 + $0x78] sm:$0xff] %vm3171, %v5299
    %v5316 = vld [vmem:[#allocation3] sm:$0xff]
    %v5317 = vld [vmem:[#allocation3 + $0x8] sm:$0xff]
    %v5318 = vld [vmem:[#allocation3 + $0x10] sm:$0xff]
    %v5319 = vld [vmem:[#allocation3 + $0x18] sm:$0xff]
    %v5320 = vld [vmem:[#allocation3 + $0x20] sm:$0xff]
    %v5321 = vld [vmem:[#allocation3 + $0x28] sm:$0xff]
    %v5322 = vld [vmem:[#allocation3 + $0x30] sm:$0xff]
    %v5323 = vld [vmem:[#allocation3 + $0x38] sm:$0xff]
    %v5324 = vld [vmem:[#allocation3 + $0x40] sm:$0xff]
    %v5325 = vld [vmem:[#allocation3 + $0x48] sm:$0xff]
    %v5326 = vld [vmem:[#allocation3 + $0x50] sm:$0xff]
    %v5327 = vld [vmem:[#allocation3 + $0x58] sm:$0xff]
    %v5328 = vld [vmem:[#allocation3 + $0x60] sm:$0xff]
    %v5329 = vld [vmem:[#allocation3 + $0x68] sm:$0xff]
    %v5330 = vld [vmem:[#allocation3 + $0x70] sm:$0xff]
    %v5331 = vld [vmem:[#allocation3 + $0x78] sm:$0xff]
    %v5332 = vld [vmem:[#allocation10] sm:$0xf]
    %v5333 = vld [vmem:[#allocation10 + $0x4] sm:$0xf]
    %v5334 = vld [vmem:[#allocation10 + $0x8] sm:$0xf]
    %v5335 = vld [vmem:[#allocation10 + $0xc] sm:$0xf]
    %v5336 = vld [vmem:[#allocation10 + $0x10] sm:$0xf]
    %v5337 = vld [vmem:[#allocation10 + $0x14] sm:$0xf]
    %v5338 = vld [vmem:[#allocation10 + $0x18] sm:$0xf]
    %v5339 = vld [vmem:[#allocation10 + $0x1c] sm:$0xf]
    %v5340 = vld [vmem:[#allocation10 + $0x20] sm:$0xf]
    %v5341 = vld [vmem:[#allocation10 + $0x24] sm:$0xf]
    %v5342 = vld [vmem:[#allocation10 + $0x28] sm:$0xf]
    %v5343 = vld [vmem:[#allocation10 + $0x2c] sm:$0xf]
    %v5344 = vld [vmem:[#allocation10 + $0x30] sm:$0xf]
    %v5345 = vld [vmem:[#allocation10 + $0x34] sm:$0xf]
    %v5346 = vld [vmem:[#allocation10 + $0x38] sm:$0xf]
    %v5347 = vld [vmem:[#allocation10 + $0x3c] sm:$0xf]
    %v5364 = vunpack.c.l.b16 %v5332
    %v5365 = vunpack.c.l.b16 %v5333
    %v5366 = vunpack.c.l.b16 %v5334
    %v5367 = vunpack.c.l.b16 %v5335
    %v5368 = vunpack.c.l.b16 %v5336
    %v5369 = vunpack.c.l.b16 %v5337
    %v5370 = vunpack.c.l.b16 %v5338
    %v5371 = vunpack.c.l.b16 %v5339
    %v5372 = vunpack.c.l.b16 %v5340
    %v5373 = vunpack.c.l.b16 %v5341
    %v5374 = vunpack.c.l.b16 %v5342
    %v5375 = vunpack.c.l.b16 %v5343
    %v5376 = vunpack.c.l.b16 %v5344
    %v5377 = vunpack.c.l.b16 %v5345
    %v5378 = vunpack.c.l.b16 %v5346
    %v5379 = vunpack.c.l.b16 %v5347
    %v5380 = vpack.c.b16 %v5365, %v5364
    %v5381 = vpack.c.b16 %v5367, %v5366
    %v5382 = vpack.c.b16 %v5369, %v5368
    %v5383 = vpack.c.b16 %v5371, %v5370
    %v5384 = vpack.c.b16 %v5373, %v5372
    %v5385 = vpack.c.b16 %v5375, %v5374
    %v5386 = vpack.c.b16 %v5377, %v5376
    %v5387 = vpack.c.b16 %v5379, %v5378
    %5396 = vmatprep.subr.bf16.mxu0 0
    %5397 = vmatpush1.bf16.msra.mxu0 %v5380
    %5398 = vmatprep.subr.bf16.mxu0 0
    %5399 = vmatpush1.bf16.msra.mxu0 %v5381
    %5400 = vmatprep.subr.bf16.mxu0 0
    %5401 = vmatpush1.bf16.msra.mxu0 %v5382
    %5402 = vmatprep.subr.bf16.mxu0 0
    %5403 = vmatpush1.bf16.msra.mxu0 %v5383
    %5404 = vmatprep.subr.bf16.mxu0 0
    %5405 = vmatpush1.bf16.msra.mxu0 %v5384
    %5406 = vmatprep.subr.bf16.mxu0 0
    %5407 = vmatpush1.bf16.msra.mxu0 %v5385
    %5408 = vmatprep.subr.bf16.mxu0 0
    %5409 = vmatpush1.bf16.msra.mxu0 %v5386
    %5410 = vmatprep.subr.bf16.mxu0 0
    %5411 = vmatpush1.bf16.msra.mxu0 %v5387
    %5412 = vmatprep.subr.bf16.mxu0 0
    %5413 = vmatpush1.bf16.msra.mxu0 0
    %5414 = vmatprep.subr.bf16.mxu0 0
    %5415 = vmatpush1.bf16.msra.mxu0 0
    %5416 = vmatprep.subr.bf16.mxu0 0
    %5417 = vmatpush1.bf16.msra.mxu0 0
    %5418 = vmatprep.subr.bf16.mxu0 0
    %5419 = vmatpush1.bf16.msra.mxu0 0
    %5420 = vmatprep.subr.bf16.mxu0 0
    %5421 = vmatpush1.bf16.msra.mxu0 0
    %5422 = vmatprep.subr.bf16.mxu0 0
    %5423 = vmatpush1.bf16.msra.mxu0 0
    %5424 = vmatprep.subr.bf16.mxu0 0
    %5425 = vmatpush1.bf16.msra.mxu0 0
    %5426 = vmatprep.subr.bf16.mxu0 0
    %5427 = vmatpush1.bf16.msra.mxu0 0
    %5428 = vmatprep.mubr.bf16.mxu0 0
    %5429 = vmatmul.mubr.bf16.gmra.mrb[0].mxu0 %v5316
    %v5430 = vpop.f32.mrb[0].mxu0
    %v5431 = vadd.f32 0.0, %v5430
    %v5432 = vpop.f32.mrb[0].mxu0
    %v5433 = vpop.f32.mrb[0].mxu0
    %v5434 = vadd.f32 0.0, %v5433
    %v5435 = vpop.f32.mrb[0].mxu0
    %5436 = vmatprep.mubr.bf16.mxu0 0
    %5437 = vmatmul.mubr.bf16.gmra.mrb[0].mxu0 %v5317
    %v5438 = vpop.f32.mrb[0].mxu0
    %v5439 = vadd.f32 0.0, %v5438
    %v5440 = vpop.f32.mrb[0].mxu0
    %v5441 = vpop.f32.mrb[0].mxu0
    %v5442 = vadd.f32 0.0, %v5441
    %v5443 = vpop.f32.mrb[0].mxu0
    %5444 = vmatprep.mubr.bf16.mxu0 0
    %5445 = vmatmul.mubr.bf16.gmra.mrb[0].mxu0 %v5318
    %v5446 = vpop.f32.mrb[0].mxu0
    %v5447 = vadd.f32 0.0, %v5446
    %v5448 = vpop.f32.mrb[0].mxu0
    %v5449 = vpop.f32.mrb[0].mxu0
    %v5450 = vadd.f32 0.0, %v5449
    %v5451 = vpop.f32.mrb[0].mxu0
    %5452 = vmatprep.mubr.bf16.mxu0 0
    %5453 = vmatmul.mubr.bf16.gmra.mrb[0].mxu0 %v5319
    %v5454 = vpop.f32.mrb[0].mxu0
    %v5455 = vadd.f32 0.0, %v5454
    %v5456 = vpop.f32.mrb[0].mxu0
    %v5457 = vpop.f32.mrb[0].mxu0
    %v5458 = vadd.f32 0.0, %v5457
    %v5459 = vpop.f32.mrb[0].mxu0
    %5460 = vmatprep.mubr.bf16.mxu0 0
    %5461 = vmatmul.mubr.bf16.gmra.mrb[0].mxu0 %v5320
    %v5462 = vpop.f32.mrb[0].mxu0
    %v5463 = vadd.f32 0.0, %v5462
    %v5464 = vpop.f32.mrb[0].mxu0
    %v5465 = vpop.f32.mrb[0].mxu0
    %v5466 = vadd.f32 0.0, %v5465
    %v5467 = vpop.f32.mrb[0].mxu0
    %5468 = vmatprep.mubr.bf16.mxu0 0
    %5469 = vmatmul.mubr.bf16.gmra.mrb[0].mxu0 %v5321
    %v5470 = vpop.f32.mrb[0].mxu0
    %v5471 = vadd.f32 0.0, %v5470
    %v5472 = vpop.f32.mrb[0].mxu0
    %v5473 = vpop.f32.mrb[0].mxu0
    %v5474 = vadd.f32 0.0, %v5473
    %v5475 = vpop.f32.mrb[0].mxu0
    %5476 = vmatprep.mubr.bf16.mxu0 0
    %5477 = vmatmul.mubr.bf16.gmra.mrb[0].mxu0 %v5322
    %v5478 = vpop.f32.mrb[0].mxu0
    %v5479 = vadd.f32 0.0, %v5478
    %v5480 = vpop.f32.mrb[0].mxu0
    %v5481 = vpop.f32.mrb[0].mxu0
    %v5482 = vadd.f32 0.0, %v5481
    %v5483 = vpop.f32.mrb[0].mxu0
    %5484 = vmatprep.mubr.bf16.mxu0 0
    %5485 = vmatmul.mubr.bf16.gmra.mrb[0].mxu0 %v5323
    %v5486 = vpop.f32.mrb[0].mxu0
    %v5487 = vadd.f32 0.0, %v5486
    %v5488 = vpop.f32.mrb[0].mxu0
    %v5489 = vpop.f32.mrb[0].mxu0
    %v5490 = vadd.f32 0.0, %v5489
    %v5491 = vpop.f32.mrb[0].mxu0
    %5492 = vmatprep.mubr.bf16.mxu0 0
    %5493 = vmatmul.mubr.bf16.gmra.mrb[0].mxu0 %v5324
    %v5494 = vpop.f32.mrb[0].mxu0
    %v5495 = vadd.f32 0.0, %v5494
    %v5496 = vpop.f32.mrb[0].mxu0
    %v5497 = vpop.f32.mrb[0].mxu0
    %v5498 = vadd.f32 0.0, %v5497
    %v5499 = vpop.f32.mrb[0].mxu0
    %5500 = vmatprep.mubr.bf16.mxu0 0
    %5501 = vmatmul.mubr.bf16.gmra.mrb[0].mxu0 %v5325
    %v5502 = vpop.f32.mrb[0].mxu0
    %v5503 = vadd.f32 0.0, %v5502
    %v5504 = vpop.f32.mrb[0].mxu0
    %v5505 = vpop.f32.mrb[0].mxu0
    %v5506 = vadd.f32 0.0, %v5505
    %v5507 = vpop.f32.mrb[0].mxu0
    %5508 = vmatprep.mubr.bf16.mxu0 0
    %5509 = vmatmul.mubr.bf16.gmra.mrb[0].mxu0 %v5326
    %v5510 = vpop.f32.mrb[0].mxu0
    %v5511 = vadd.f32 0.0, %v5510
    %v5512 = vpop.f32.mrb[0].mxu0
    %v5513 = vpop.f32.mrb[0].mxu0
    %v5514 = vadd.f32 0.0, %v5513
    %v5515 = vpop.f32.mrb[0].mxu0
    %5516 = vmatprep.mubr.bf16.mxu0 0
    %5517 = vmatmul.mubr.bf16.gmra.mrb[0].mxu0 %v5327
    %v5518 = vpop.f32.mrb[0].mxu0
    %v5519 = vadd.f32 0.0, %v5518
    %v5520 = vpop.f32.mrb[0].mxu0
    %v5521 = vpop.f32.mrb[0].mxu0
    %v5522 = vadd.f32 0.0, %v5521
    %v5523 = vpop.f32.mrb[0].mxu0
    %5524 = vmatprep.mubr.bf16.mxu0 0
    %5525 = vmatmul.mubr.bf16.gmra.mrb[0].mxu0 %v5328
    %v5526 = vpop.f32.mrb[0].mxu0
    %v5527 = vadd.f32 0.0, %v5526
    %v5528 = vpop.f32.mrb[0].mxu0
    %v5529 = vpop.f32.mrb[0].mxu0
    %v5530 = vadd.f32 0.0, %v5529
    %v5531 = vpop.f32.mrb[0].mxu0
    %5532 = vmatprep.mubr.bf16.mxu0 0
    %5533 = vmatmul.mubr.bf16.gmra.mrb[0].mxu0 %v5329
    %v5534 = vpop.f32.mrb[0].mxu0
    %v5535 = vadd.f32 0.0, %v5534
    %v5536 = vpop.f32.mrb[0].mxu0
    %v5537 = vpop.f32.mrb[0].mxu0
    %v5538 = vadd.f32 0.0, %v5537
    %v5539 = vpop.f32.mrb[0].mxu0
    %5540 = vmatprep.mubr.bf16.mxu0 0
    %5541 = vmatmul.mubr.bf16.gmra.mrb[0].mxu0 %v5330
    %v5542 = vpop.f32.mrb[0].mxu0
    %v5543 = vadd.f32 0.0, %v5542
    %v5544 = vpop.f32.mrb[0].mxu0
    %v5545 = vpop.f32.mrb[0].mxu0
    %v5546 = vadd.f32 0.0, %v5545
    %v5547 = vpop.f32.mrb[0].mxu0
    %5548 = vmatprep.mubr.bf16.mxu0 0
    %5549 = vmatmul.mubr.bf16.gmra.mrb[0].mxu0 %v5331
    %v5550 = vpop.f32.mrb[0].mxu0
    %v5551 = vadd.f32 0.0, %v5550
    %v5552 = vpop.f32.mrb[0].mxu0
    %v5553 = vpop.f32.mrb[0].mxu0
    %v5554 = vadd.f32 0.0, %v5553
    %v5555 = vpop.f32.mrb[0].mxu0
    %5556 = vdwg.mxu0
    %v5557 = vld [vmem:[#allocation5] sm:$0xff]
    %v5558 = vld [vmem:[#allocation5 + $0x8] sm:$0xff]
    %v5559 = vld [vmem:[#allocation5 + $0x10] sm:$0xff]
    %v5560 = vld [vmem:[#allocation5 + $0x18] sm:$0xff]
    %v5561 = vld [vmem:[#allocation5 + $0x20] sm:$0xff]
    %v5562 = vld [vmem:[#allocation5 + $0x28] sm:$0xff]
    %v5563 = vld [vmem:[#allocation5 + $0x30] sm:$0xff]
    %v5564 = vld [vmem:[#allocation5 + $0x38] sm:$0xff]
    %v5565 = vld [vmem:[#allocation5 + $0x40] sm:$0xff]
    %v5566 = vld [vmem:[#allocation5 + $0x48] sm:$0xff]
    %v5567 = vld [vmem:[#allocation5 + $0x50] sm:$0xff]
    %v5568 = vld [vmem:[#allocation5 + $0x58] sm:$0xff]
    %v5569 = vld [vmem:[#allocation5 + $0x60] sm:$0xff]
    %v5570 = vld [vmem:[#allocation5 + $0x68] sm:$0xff]
    %v5571 = vld [vmem:[#allocation5 + $0x70] sm:$0xff]
    %v5572 = vld [vmem:[#allocation5 + $0x78] sm:$0xff]
    %v5573 = vld [vmem:[#allocation5 + $0x80] sm:$0xff]
    %v5574 = vld [vmem:[#allocation5 + $0x88] sm:$0xff]
    %v5575 = vld [vmem:[#allocation5 + $0x90] sm:$0xff]
    %v5576 = vld [vmem:[#allocation5 + $0x98] sm:$0xff]
    %v5577 = vld [vmem:[#allocation5 + $0xa0] sm:$0xff]
    %v5578 = vld [vmem:[#allocation5 + $0xa8] sm:$0xff]
    %v5579 = vld [vmem:[#allocation5 + $0xb0] sm:$0xff]
    %v5580 = vld [vmem:[#allocation5 + $0xb8] sm:$0xff]
    %v5581 = vld [vmem:[#allocation5 + $0xc0] sm:$0xff]
    %v5582 = vld [vmem:[#allocation5 + $0xc8] sm:$0xff]
    %v5583 = vld [vmem:[#allocation5 + $0xd0] sm:$0xff]
    %v5584 = vld [vmem:[#allocation5 + $0xd8] sm:$0xff]
    %v5585 = vld [vmem:[#allocation5 + $0xe0] sm:$0xff]
    %v5586 = vld [vmem:[#allocation5 + $0xe8] sm:$0xff]
    %v5587 = vld [vmem:[#allocation5 + $0xf0] sm:$0xff]
    %v5588 = vld [vmem:[#allocation5 + $0xf8] sm:$0xff]
    %v5589 = vadd.f32 %v5557, %v5431
    %v5590 = vadd.f32 %v5558, %v5434
    %v5591 = vadd.f32 %v5559, %v5439
    %v5592 = vadd.f32 %v5560, %v5442
    %v5593 = vadd.f32 %v5561, %v5447
    %v5594 = vadd.f32 %v5562, %v5450
    %v5595 = vadd.f32 %v5563, %v5455
    %v5596 = vadd.f32 %v5564, %v5458
    %v5597 = vadd.f32 %v5565, %v5463
    %v5598 = vadd.f32 %v5566, %v5466
    %v5599 = vadd.f32 %v5567, %v5471
    %v5600 = vadd.f32 %v5568, %v5474
    %v5601 = vadd.f32 %v5569, %v5479
    %v5602 = vadd.f32 %v5570, %v5482
    %v5603 = vadd.f32 %v5571, %v5487
    %v5604 = vadd.f32 %v5572, %v5490
    %v5605 = vadd.f32 %v5573, %v5495
    %v5606 = vadd.f32 %v5574, %v5498
    %v5607 = vadd.f32 %v5575, %v5503
    %v5608 = vadd.f32 %v5576, %v5506
    %v5609 = vadd.f32 %v5577, %v5511
    %v5610 = vadd.f32 %v5578, %v5514
    %v5611 = vadd.f32 %v5579, %v5519
    %v5612 = vadd.f32 %v5580, %v5522
    %v5613 = vadd.f32 %v5581, %v5527
    %v5614 = vadd.f32 %v5582, %v5530
    %v5615 = vadd.f32 %v5583, %v5535
    %v5616 = vadd.f32 %v5584, %v5538
    %v5617 = vadd.f32 %v5585, %v5543
    %v5618 = vadd.f32 %v5586, %v5546
    %v5619 = vadd.f32 %v5587, %v5551
    %v5620 = vadd.f32 %v5588, %v5554
    %5621 = vst [vmem:[#allocation14] sm:$0xff] %v5589
    %5622 = vst [vmem:[#allocation14 + $0x8] sm:$0xff] %v5590
    %5623 = vst [vmem:[#allocation14 + $0x10] sm:$0xff] %v5591
    %5624 = vst [vmem:[#allocation14 + $0x18] sm:$0xff] %v5592
    %5625 = vst [vmem:[#allocation14 + $0x20] sm:$0xff] %v5593
    %5626 = vst [vmem:[#allocation14 + $0x28] sm:$0xff] %v5594
    %5627 = vst [vmem:[#allocation14 + $0x30] sm:$0xff] %v5595
    %5628 = vst [vmem:[#allocation14 + $0x38] sm:$0xff] %v5596
    %5629 = vst [vmem:[#allocation14 + $0x40] sm:$0xff] %v5597
    %5630 = vst [vmem:[#allocation14 + $0x48] sm:$0xff] %v5598
    %5631 = vst [vmem:[#allocation14 + $0x50] sm:$0xff] %v5599
    %5632 = vst [vmem:[#allocation14 + $0x58] sm:$0xff] %v5600
    %5633 = vst [vmem:[#allocation14 + $0x60] sm:$0xff] %v5601
    %5634 = vst [vmem:[#allocation14 + $0x68] sm:$0xff] %v5602
    %5635 = vst [vmem:[#allocation14 + $0x70] sm:$0xff] %v5603
    %5636 = vst [vmem:[#allocation14 + $0x78] sm:$0xff] %v5604
    %5637 = vst [vmem:[#allocation14 + $0x80] sm:$0xff] %v5605
    %5638 = vst [vmem:[#allocation14 + $0x88] sm:$0xff] %v5606
    %5639 = vst [vmem:[#allocation14 + $0x90] sm:$0xff] %v5607
    %5640 = vst [vmem:[#allocation14 + $0x98] sm:$0xff] %v5608
    %5641 = vst [vmem:[#allocation14 + $0xa0] sm:$0xff] %v5609
    %5642 = vst [vmem:[#allocation14 + $0xa8] sm:$0xff] %v5610
    %5643 = vst [vmem:[#allocation14 + $0xb0] sm:$0xff] %v5611
    %5644 = vst [vmem:[#allocation14 + $0xb8] sm:$0xff] %v5612
    %5645 = vst [vmem:[#allocation14 + $0xc0] sm:$0xff] %v5613
    %5646 = vst [vmem:[#allocation14 + $0xc8] sm:$0xff] %v5614
    %5647 = vst [vmem:[#allocation14 + $0xd0] sm:$0xff] %v5615
    %5648 = vst [vmem:[#allocation14 + $0xd8] sm:$0xff] %v5616
    %5649 = vst [vmem:[#allocation14 + $0xe0] sm:$0xff] %v5617
    %5650 = vst [vmem:[#allocation14 + $0xe8] sm:$0xff] %v5618
    %5651 = vst [vmem:[#allocation14 + $0xf0] sm:$0xff] %v5619
    %5652 = vst [vmem:[#allocation14 + $0xf8] sm:$0xff] %v5620
    %v5653 = vmul.f32 %v5589, %v5589
    %v5654 = vmul.f32 %v5590, %v5590
    %v5655 = vmul.f32 %v5591, %v5591
    %v5656 = vmul.f32 %v5592, %v5592
    %v5657 = vmul.f32 %v5593, %v5593
    %v5658 = vmul.f32 %v5594, %v5594
    %v5659 = vmul.f32 %v5595, %v5595
    %v5660 = vmul.f32 %v5596, %v5596
    %v5661 = vmul.f32 %v5597, %v5597
    %v5662 = vmul.f32 %v5598, %v5598
    %v5663 = vmul.f32 %v5599, %v5599
    %v5664 = vmul.f32 %v5600, %v5600
    %v5665 = vmul.f32 %v5601, %v5601
    %v5666 = vmul.f32 %v5602, %v5602
    %v5667 = vmul.f32 %v5603, %v5603
    %v5668 = vmul.f32 %v5604, %v5604
    %v5669 = vmul.f32 %v5605, %v5605
    %v5670 = vmul.f32 %v5606, %v5606
    %v5671 = vmul.f32 %v5607, %v5607
    %v5672 = vmul.f32 %v5608, %v5608
    %v5673 = vmul.f32 %v5609, %v5609
    %v5674 = vmul.f32 %v5610, %v5610
    %v5675 = vmul.f32 %v5611, %v5611
    %v5676 = vmul.f32 %v5612, %v5612
    %v5677 = vmul.f32 %v5613, %v5613
    %v5678 = vmul.f32 %v5614, %v5614
    %v5679 = vmul.f32 %v5615, %v5615
    %v5680 = vmul.f32 %v5616, %v5616
    %v5681 = vmul.f32 %v5617, %v5617
    %v5682 = vmul.f32 %v5618, %v5618
    %v5683 = vmul.f32 %v5619, %v5619
    %v5684 = vmul.f32 %v5620, %v5620
    %5685 = vadd.xlane.f32.xlu0 %v5653
    %v5686 = vpop.xlane.xlu0 %5685
    %5687 = vadd.xlane.f32.xlu0 %v5654
    %v5688 = vpop.xlane.xlu0 %5687
    %5689 = vadd.xlane.f32.xlu0 %v5655
    %v5690 = vpop.xlane.xlu0 %5689
    %5691 = vadd.xlane.f32.xlu0 %v5656
    %v5692 = vpop.xlane.xlu0 %5691
    %5693 = vadd.xlane.f32.xlu0 %v5657
    %v5694 = vpop.xlane.xlu0 %5693
    %5695 = vadd.xlane.f32.xlu0 %v5658
    %v5696 = vpop.xlane.xlu0 %5695
    %5697 = vadd.xlane.f32.xlu0 %v5659
    %v5698 = vpop.xlane.xlu0 %5697
    %5699 = vadd.xlane.f32.xlu0 %v5660
    %v5700 = vpop.xlane.xlu0 %5699
    %5701 = vadd.xlane.f32.xlu0 %v5661
    %v5702 = vpop.xlane.xlu0 %5701
    %5703 = vadd.xlane.f32.xlu0 %v5662
    %v5704 = vpop.xlane.xlu0 %5703
    %5705 = vadd.xlane.f32.xlu0 %v5663
    %v5706 = vpop.xlane.xlu0 %5705
    %5707 = vadd.xlane.f32.xlu0 %v5664
    %v5708 = vpop.xlane.xlu0 %5707
    %5709 = vadd.xlane.f32.xlu0 %v5665
    %v5710 = vpop.xlane.xlu0 %5709
    %5711 = vadd.xlane.f32.xlu0 %v5666
    %v5712 = vpop.xlane.xlu0 %5711
    %5713 = vadd.xlane.f32.xlu0 %v5667
    %v5714 = vpop.xlane.xlu0 %5713
    %5715 = vadd.xlane.f32.xlu0 %v5668
    %v5716 = vpop.xlane.xlu0 %5715
    %5717 = vadd.xlane.f32.xlu0 %v5669
    %v5718 = vpop.xlane.xlu0 %5717
    %5719 = vadd.xlane.f32.xlu0 %v5670
    %v5720 = vpop.xlane.xlu0 %5719
    %5721 = vadd.xlane.f32.xlu0 %v5671
    %v5722 = vpop.xlane.xlu0 %5721
    %5723 = vadd.xlane.f32.xlu0 %v5672
    %v5724 = vpop.xlane.xlu0 %5723
    %5725 = vadd.xlane.f32.xlu0 %v5673
    %v5726 = vpop.xlane.xlu0 %5725
    %5727 = vadd.xlane.f32.xlu0 %v5674
    %v5728 = vpop.xlane.xlu0 %5727
    %5729 = vadd.xlane.f32.xlu0 %v5675
    %v5730 = vpop.xlane.xlu0 %5729
    %5731 = vadd.xlane.f32.xlu0 %v5676
    %v5732 = vpop.xlane.xlu0 %5731
    %5733 = vadd.xlane.f32.xlu0 %v5677
    %v5734 = vpop.xlane.xlu0 %5733
    %5735 = vadd.xlane.f32.xlu0 %v5678
    %v5736 = vpop.xlane.xlu0 %5735
    %5737 = vadd.xlane.f32.xlu0 %v5679
    %v5738 = vpop.xlane.xlu0 %5737
    %5739 = vadd.xlane.f32.xlu0 %v5680
    %v5740 = vpop.xlane.xlu0 %5739
    %5741 = vadd.xlane.f32.xlu0 %v5681
    %v5742 = vpop.xlane.xlu0 %5741
    %5743 = vadd.xlane.f32.xlu0 %v5682
    %v5744 = vpop.xlane.xlu0 %5743
    %5745 = vadd.xlane.f32.xlu0 %v5683
    %v5746 = vpop.xlane.xlu0 %5745
    %5747 = vadd.xlane.f32.xlu0 %v5684
    %v5748 = vpop.xlane.xlu0 %5747
    %v5749 = vmul.f32 %v5686, %v285
    %v5750 = vmul.f32 %v5688, %v285
    %v5751 = vmul.f32 %v5690, %v285
    %v5752 = vmul.f32 %v5692, %v285
    %v5753 = vmul.f32 %v5694, %v285
    %v5754 = vmul.f32 %v5696, %v285
    %v5755 = vmul.f32 %v5698, %v285
    %v5756 = vmul.f32 %v5700, %v285
    %v5757 = vmul.f32 %v5702, %v285
    %v5758 = vmul.f32 %v5704, %v285
    %v5759 = vmul.f32 %v5706, %v285
    %v5760 = vmul.f32 %v5708, %v285
    %v5761 = vmul.f32 %v5710, %v285
    %v5762 = vmul.f32 %v5712, %v285
    %v5763 = vmul.f32 %v5714, %v285
    %v5764 = vmul.f32 %v5716, %v285
    %v5765 = vmul.f32 %v5718, %v285
    %v5766 = vmul.f32 %v5720, %v285
    %v5767 = vmul.f32 %v5722, %v285
    %v5768 = vmul.f32 %v5724, %v285
    %v5769 = vmul.f32 %v5726, %v285
    %v5770 = vmul.f32 %v5728, %v285
    %v5771 = vmul.f32 %v5730, %v285
    %v5772 = vmul.f32 %v5732, %v285
    %v5773 = vmul.f32 %v5734, %v285
    %v5774 = vmul.f32 %v5736, %v285
    %v5775 = vmul.f32 %v5738, %v285
    %v5776 = vmul.f32 %v5740, %v285
    %v5777 = vmul.f32 %v5742, %v285
    %v5778 = vmul.f32 %v5744, %v285
    %v5779 = vmul.f32 %v5746, %v285
    %v5780 = vmul.f32 %v5748, %v285
    %v5781 = vadd.f32 %v5749, 1e-05
    %v5782 = vadd.f32 %v5750, 1e-05
    %v5783 = vadd.f32 %v5751, 1e-05
    %v5784 = vadd.f32 %v5752, 1e-05
    %v5785 = vadd.f32 %v5753, 1e-05
    %v5786 = vadd.f32 %v5754, 1e-05
    %v5787 = vadd.f32 %v5755, 1e-05
    %v5788 = vadd.f32 %v5756, 1e-05
    %v5789 = vadd.f32 %v5757, 1e-05
    %v5790 = vadd.f32 %v5758, 1e-05
    %v5791 = vadd.f32 %v5759, 1e-05
    %v5792 = vadd.f32 %v5760, 1e-05
    %v5793 = vadd.f32 %v5761, 1e-05
    %v5794 = vadd.f32 %v5762, 1e-05
    %v5795 = vadd.f32 %v5763, 1e-05
    %v5796 = vadd.f32 %v5764, 1e-05
    %v5797 = vadd.f32 %v5765, 1e-05
    %v5798 = vadd.f32 %v5766, 1e-05
    %v5799 = vadd.f32 %v5767, 1e-05
    %v5800 = vadd.f32 %v5768, 1e-05
    %v5801 = vadd.f32 %v5769, 1e-05
    %v5802 = vadd.f32 %v5770, 1e-05
    %v5803 = vadd.f32 %v5771, 1e-05
    %v5804 = vadd.f32 %v5772, 1e-05
    %v5805 = vadd.f32 %v5773, 1e-05
    %v5806 = vadd.f32 %v5774, 1e-05
    %v5807 = vadd.f32 %v5775, 1e-05
    %v5808 = vadd.f32 %v5776, 1e-05
    %v5809 = vadd.f32 %v5777, 1e-05
    %v5810 = vadd.f32 %v5778, 1e-05
    %v5811 = vadd.f32 %v5779, 1e-05
    %v5812 = vadd.f32 %v5780, 1e-05
    %v5813 = vrsqrt.pop %v5781
    %v5814 = vrsqrt.pop %v5782
    %v5815 = vrsqrt.pop %v5783
    %v5816 = vrsqrt.pop %v5784
    %v5817 = vrsqrt.pop %v5785
    %v5818 = vrsqrt.pop %v5786
    %v5819 = vrsqrt.pop %v5787
    %v5820 = vrsqrt.pop %v5788
    %v5821 = vrsqrt.pop %v5789
    %v5822 = vrsqrt.pop %v5790
    %v5823 = vrsqrt.pop %v5791
    %v5824 = vrsqrt.pop %v5792
    %v5825 = vrsqrt.pop %v5793
    %v5826 = vrsqrt.pop %v5794
    %v5827 = vrsqrt.pop %v5795
    %v5828 = vrsqrt.pop %v5796
    %v5829 = vrsqrt.pop %v5797
    %v5830 = vrsqrt.pop %v5798
    %v5831 = vrsqrt.pop %v5799
    %v5832 = vrsqrt.pop %v5800
    %v5833 = vrsqrt.pop %v5801
    %v5834 = vrsqrt.pop %v5802
    %v5835 = vrsqrt.pop %v5803
    %v5836 = vrsqrt.pop %v5804
    %v5837 = vrsqrt.pop %v5805
    %v5838 = vrsqrt.pop %v5806
    %v5839 = vrsqrt.pop %v5807
    %v5840 = vrsqrt.pop %v5808
    %v5841 = vrsqrt.pop %v5809
    %v5842 = vrsqrt.pop %v5810
    %v5843 = vrsqrt.pop %v5811
    %v5844 = vrsqrt.pop %v5812
    %v5845 = vmul.f32 %v5589, %v5813
    %v5846 = vmul.f32 %v5590, %v5814
    %v5847 = vmul.f32 %v5591, %v5815
    %v5848 = vmul.f32 %v5592, %v5816
    %v5849 = vmul.f32 %v5593, %v5817
    %v5850 = vmul.f32 %v5594, %v5818
    %v5851 = vmul.f32 %v5595, %v5819
    %v5852 = vmul.f32 %v5596, %v5820
    %v5853 = vmul.f32 %v5597, %v5821
    %v5854 = vmul.f32 %v5598, %v5822
    %v5855 = vmul.f32 %v5599, %v5823
    %v5856 = vmul.f32 %v5600, %v5824
    %v5857 = vmul.f32 %v5601, %v5825
    %v5858 = vmul.f32 %v5602, %v5826
    %v5859 = vmul.f32 %v5603, %v5827
    %v5860 = vmul.f32 %v5604, %v5828
    %v5861 = vmul.f32 %v5605, %v5829
    %v5862 = vmul.f32 %v5606, %v5830
    %v5863 = vmul.f32 %v5607, %v5831
    %v5864 = vmul.f32 %v5608, %v5832
    %v5865 = vmul.f32 %v5609, %v5833
    %v5866 = vmul.f32 %v5610, %v5834
    %v5867 = vmul.f32 %v5611, %v5835
    %v5868 = vmul.f32 %v5612, %v5836
    %v5869 = vmul.f32 %v5613, %v5837
    %v5870 = vmul.f32 %v5614, %v5838
    %v5871 = vmul.f32 %v5615, %v5839
    %v5872 = vmul.f32 %v5616, %v5840
    %v5873 = vmul.f32 %v5617, %v5841
    %v5874 = vmul.f32 %v5618, %v5842
    %v5875 = vmul.f32 %v5619, %v5843
    %v5876 = vmul.f32 %v5620, %v5844
    %v5877 = vpack.c.bf16 %v5846, %v5845
    %v5878 = vpack.c.bf16 %v5848, %v5847
    %v5879 = vpack.c.bf16 %v5850, %v5849
    %v5880 = vpack.c.bf16 %v5852, %v5851
    %v5881 = vpack.c.bf16 %v5854, %v5853
    %v5882 = vpack.c.bf16 %v5856, %v5855
    %v5883 = vpack.c.bf16 %v5858, %v5857
    %v5884 = vpack.c.bf16 %v5860, %v5859
    %v5885 = vpack.c.bf16 %v5862, %v5861
    %v5886 = vpack.c.bf16 %v5864, %v5863
    %v5887 = vpack.c.bf16 %v5866, %v5865
    %v5888 = vpack.c.bf16 %v5868, %v5867
    %v5889 = vpack.c.bf16 %v5870, %v5869
    %v5890 = vpack.c.bf16 %v5872, %v5871
    %v5891 = vpack.c.bf16 %v5874, %v5873
    %v5892 = vpack.c.bf16 %v5876, %v5875
    %v5893 = vld [vmem:[#allocation11] sm:$0xff]
    %v5894 = vld [vmem:[#allocation11 + $0x8] sm:$0xff]
    %v5895 = vld [vmem:[#allocation11 + $0x10] sm:$0xff]
    %v5896 = vld [vmem:[#allocation11 + $0x18] sm:$0xff]
    %v5897 = vld [vmem:[#allocation11 + $0x20] sm:$0xff]
    %v5898 = vld [vmem:[#allocation11 + $0x28] sm:$0xff]
    %v5899 = vld [vmem:[#allocation11 + $0x30] sm:$0xff]
    %v5900 = vld [vmem:[#allocation11 + $0x38] sm:$0xff]
    %v5901 = vld [vmem:[#allocation11 + $0x40] sm:$0xff]
    %v5902 = vld [vmem:[#allocation11 + $0x48] sm:$0xff]
    %v5903 = vld [vmem:[#allocation11 + $0x50] sm:$0xff]
    %v5904 = vld [vmem:[#allocation11 + $0x58] sm:$0xff]
    %v5905 = vld [vmem:[#allocation11 + $0x60] sm:$0xff]
    %v5906 = vld [vmem:[#allocation11 + $0x68] sm:$0xff]
    %v5907 = vld [vmem:[#allocation11 + $0x70] sm:$0xff]
    %v5908 = vld [vmem:[#allocation11 + $0x78] sm:$0xff]
    %v5925 = vunpack.c.l.b16 %v5893
    %v5926 = vunpack.c.h.b16 %v5893
    %v5927 = vunpack.c.l.b16 %v5894
    %v5928 = vunpack.c.h.b16 %v5894
    %v5929 = vunpack.c.l.b16 %v5895
    %v5930 = vunpack.c.h.b16 %v5895
    %v5931 = vunpack.c.l.b16 %v5896
    %v5932 = vunpack.c.h.b16 %v5896
    %v5933 = vunpack.c.l.b16 %v5897
    %v5934 = vunpack.c.h.b16 %v5897
    %v5935 = vunpack.c.l.b16 %v5898
    %v5936 = vunpack.c.h.b16 %v5898
    %v5937 = vunpack.c.l.b16 %v5899
    %v5938 = vunpack.c.h.b16 %v5899
    %v5939 = vunpack.c.l.b16 %v5900
    %v5940 = vunpack.c.h.b16 %v5900
    %v5941 = vunpack.c.l.b16 %v5901
    %v5942 = vunpack.c.h.b16 %v5901
    %v5943 = vunpack.c.l.b16 %v5902
    %v5944 = vunpack.c.h.b16 %v5902
    %v5945 = vunpack.c.l.b16 %v5903
    %v5946 = vunpack.c.h.b16 %v5903
    %v5947 = vunpack.c.l.b16 %v5904
    %v5948 = vunpack.c.h.b16 %v5904
    %v5949 = vunpack.c.l.b16 %v5905
    %v5950 = vunpack.c.h.b16 %v5905
    %v5951 = vunpack.c.l.b16 %v5906
    %v5952 = vunpack.c.h.b16 %v5906
    %v5953 = vunpack.c.l.b16 %v5907
    %v5954 = vunpack.c.h.b16 %v5907
    %v5955 = vunpack.c.l.b16 %v5908
    %v5956 = vunpack.c.h.b16 %v5908
    %v5957 = vpack.c.b16 %v5927, %v5925
    %v5958 = vpack.c.b16 %v5928, %v5926
    %v5959 = vpack.c.b16 %v5931, %v5929
    %v5960 = vpack.c.b16 %v5932, %v5930
    %v5961 = vpack.c.b16 %v5935, %v5933
    %v5962 = vpack.c.b16 %v5936, %v5934
    %v5963 = vpack.c.b16 %v5939, %v5937
    %v5964 = vpack.c.b16 %v5940, %v5938
    %v5965 = vpack.c.b16 %v5943, %v5941
    %v5966 = vpack.c.b16 %v5944, %v5942
    %v5967 = vpack.c.b16 %v5947, %v5945
    %v5968 = vpack.c.b16 %v5948, %v5946
    %v5969 = vpack.c.b16 %v5951, %v5949
    %v5970 = vpack.c.b16 %v5952, %v5950
    %v5971 = vpack.c.b16 %v5955, %v5953
    %v5972 = vpack.c.b16 %v5956, %v5954
    %5989 = vmatprep.subr.bf16.mxu0 %v5958
    %5990 = vmatpush1.bf16.msra.mxu0 %v5957
    %5991 = vmatprep.subr.bf16.mxu0 %v5960
    %5992 = vmatpush1.bf16.msra.mxu0 %v5959
    %5993 = vmatprep.subr.bf16.mxu0 %v5962
    %5994 = vmatpush1.bf16.msra.mxu0 %v5961
    %5995 = vmatprep.subr.bf16.mxu0 %v5964
    %5996 = vmatpush1.bf16.msra.mxu0 %v5963
    %5997 = vmatprep.subr.bf16.mxu0 %v5966
    %5998 = vmatpush1.bf16.msra.mxu0 %v5965
    %5999 = vmatprep.subr.bf16.mxu0 %v5968
    %6000 = vmatpush1.bf16.msra.mxu0 %v5967
    %6001 = vmatprep.subr.bf16.mxu0 %v5970
    %6002 = vmatpush1.bf16.msra.mxu0 %v5969
    %6003 = vmatprep.subr.bf16.mxu0 %v5972
    %6004 = vmatpush1.bf16.msra.mxu0 %v5971
    %6005 = vmatprep.subr.bf16.mxu0 0
    %6006 = vmatpush1.bf16.msra.mxu0 0
    %6007 = vmatprep.subr.bf16.mxu0 0
    %6008 = vmatpush1.bf16.msra.mxu0 0
    %6009 = vmatprep.subr.bf16.mxu0 0
    %6010 = vmatpush1.bf16.msra.mxu0 0
    %6011 = vmatprep.subr.bf16.mxu0 0
    %6012 = vmatpush1.bf16.msra.mxu0 0
    %6013 = vmatprep.subr.bf16.mxu0 0
    %6014 = vmatpush1.bf16.msra.mxu0 0
    %6015 = vmatprep.subr.bf16.mxu0 0
    %6016 = vmatpush1.bf16.msra.mxu0 0
    %6017 = vmatprep.subr.bf16.mxu0 0
    %6018 = vmatpush1.bf16.msra.mxu0 0
    %6019 = vmatprep.subr.bf16.mxu0 0
    %6020 = vmatpush1.bf16.msra.mxu0 0
    %6021 = vmatprep.mubr.bf16.mxu0 0
    %6022 = vmatmul.mubr.bf16.gmra.mrb[0].mxu0 %v5877
    %v6023 = vpop.f32.mrb[0].mxu0
    %v6024 = vadd.f32 0.0, %v6023
    %v6025 = vpop.f32.mrb[0].mxu0
    %v6026 = vadd.f32 0.0, %v6025
    %v6027 = vpop.f32.mrb[0].mxu0
    %v6028 = vadd.f32 0.0, %v6027
    %v6029 = vpop.f32.mrb[0].mxu0
    %v6030 = vadd.f32 0.0, %v6029
    %6031 = vmatprep.mubr.bf16.mxu0 0
    %6032 = vmatmul.mubr.bf16.gmra.mrb[0].mxu0 %v5878
    %v6033 = vpop.f32.mrb[0].mxu0
    %v6034 = vadd.f32 0.0, %v6033
    %v6035 = vpop.f32.mrb[0].mxu0
    %v6036 = vadd.f32 0.0, %v6035
    %v6037 = vpop.f32.mrb[0].mxu0
    %v6038 = vadd.f32 0.0, %v6037
    %v6039 = vpop.f32.mrb[0].mxu0
    %v6040 = vadd.f32 0.0, %v6039
    %6041 = vmatprep.mubr.bf16.mxu0 0
    %6042 = vmatmul.mubr.bf16.gmra.mrb[0].mxu0 %v5879
    %v6043 = vpop.f32.mrb[0].mxu0
    %v6044 = vadd.f32 0.0, %v6043
    %v6045 = vpop.f32.mrb[0].mxu0
    %v6046 = vadd.f32 0.0, %v6045
    %v6047 = vpop.f32.mrb[0].mxu0
    %v6048 = vadd.f32 0.0, %v6047
    %v6049 = vpop.f32.mrb[0].mxu0
    %v6050 = vadd.f32 0.0, %v6049
    %6051 = vmatprep.mubr.bf16.mxu0 0
    %6052 = vmatmul.mubr.bf16.gmra.mrb[0].mxu0 %v5880
    %v6053 = vpop.f32.mrb[0].mxu0
    %v6054 = vadd.f32 0.0, %v6053
    %v6055 = vpop.f32.mrb[0].mxu0
    %v6056 = vadd.f32 0.0, %v6055
    %v6057 = vpop.f32.mrb[0].mxu0
    %v6058 = vadd.f32 0.0, %v6057
    %v6059 = vpop.f32.mrb[0].mxu0
    %v6060 = vadd.f32 0.0, %v6059
    %6061 = vmatprep.mubr.bf16.mxu0 0
    %6062 = vmatmul.mubr.bf16.gmra.mrb[0].mxu0 %v5881
    %v6063 = vpop.f32.mrb[0].mxu0
    %v6064 = vadd.f32 0.0, %v6063
    %v6065 = vpop.f32.mrb[0].mxu0
    %v6066 = vadd.f32 0.0, %v6065
    %v6067 = vpop.f32.mrb[0].mxu0
    %v6068 = vadd.f32 0.0, %v6067
    %v6069 = vpop.f32.mrb[0].mxu0
    %v6070 = vadd.f32 0.0, %v6069
    %6071 = vmatprep.mubr.bf16.mxu0 0
    %6072 = vmatmul.mubr.bf16.gmra.mrb[0].mxu0 %v5882
    %v6073 = vpop.f32.mrb[0].mxu0
    %v6074 = vadd.f32 0.0, %v6073
    %v6075 = vpop.f32.mrb[0].mxu0
    %v6076 = vadd.f32 0.0, %v6075
    %v6077 = vpop.f32.mrb[0].mxu0
    %v6078 = vadd.f32 0.0, %v6077
    %v6079 = vpop.f32.mrb[0].mxu0
    %v6080 = vadd.f32 0.0, %v6079
    %6081 = vmatprep.mubr.bf16.mxu0 0
    %6082 = vmatmul.mubr.bf16.gmra.mrb[0].mxu0 %v5883
    %v6083 = vpop.f32.mrb[0].mxu0
    %v6084 = vadd.f32 0.0, %v6083
    %v6085 = vpop.f32.mrb[0].mxu0
    %v6086 = vadd.f32 0.0, %v6085
    %v6087 = vpop.f32.mrb[0].mxu0
    %v6088 = vadd.f32 0.0, %v6087
    %v6089 = vpop.f32.mrb[0].mxu0
    %v6090 = vadd.f32 0.0, %v6089
    %6091 = vmatprep.mubr.bf16.mxu0 0
    %6092 = vmatmul.mubr.bf16.gmra.mrb[0].mxu0 %v5884
    %v6093 = vpop.f32.mrb[0].mxu0
    %v6094 = vadd.f32 0.0, %v6093
    %v6095 = vpop.f32.mrb[0].mxu0
    %v6096 = vadd.f32 0.0, %v6095
    %v6097 = vpop.f32.mrb[0].mxu0
    %v6098 = vadd.f32 0.0, %v6097
    %v6099 = vpop.f32.mrb[0].mxu0
    %v6100 = vadd.f32 0.0, %v6099
    %6101 = vmatprep.mubr.bf16.mxu0 0
    %6102 = vmatmul.mubr.bf16.gmra.mrb[0].mxu0 %v5885
    %v6103 = vpop.f32.mrb[0].mxu0
    %v6104 = vadd.f32 0.0, %v6103
    %v6105 = vpop.f32.mrb[0].mxu0
    %v6106 = vadd.f32 0.0, %v6105
    %v6107 = vpop.f32.mrb[0].mxu0
    %v6108 = vadd.f32 0.0, %v6107
    %v6109 = vpop.f32.mrb[0].mxu0
    %v6110 = vadd.f32 0.0, %v6109
    %6111 = vmatprep.mubr.bf16.mxu0 0
    %6112 = vmatmul.mubr.bf16.gmra.mrb[0].mxu0 %v5886
    %v6113 = vpop.f32.mrb[0].mxu0
    %v6114 = vadd.f32 0.0, %v6113
    %v6115 = vpop.f32.mrb[0].mxu0
    %v6116 = vadd.f32 0.0, %v6115
    %v6117 = vpop.f32.mrb[0].mxu0
    %v6118 = vadd.f32 0.0, %v6117
    %v6119 = vpop.f32.mrb[0].mxu0
    %v6120 = vadd.f32 0.0, %v6119
    %6121 = vmatprep.mubr.bf16.mxu0 0
    %6122 = vmatmul.mubr.bf16.gmra.mrb[0].mxu0 %v5887
    %v6123 = vpop.f32.mrb[0].mxu0
    %v6124 = vadd.f32 0.0, %v6123
    %v6125 = vpop.f32.mrb[0].mxu0
    %v6126 = vadd.f32 0.0, %v6125
    %v6127 = vpop.f32.mrb[0].mxu0
    %v6128 = vadd.f32 0.0, %v6127
    %v6129 = vpop.f32.mrb[0].mxu0
    %v6130 = vadd.f32 0.0, %v6129
    %6131 = vmatprep.mubr.bf16.mxu0 0
    %6132 = vmatmul.mubr.bf16.gmra.mrb[0].mxu0 %v5888
    %v6133 = vpop.f32.mrb[0].mxu0
    %v6134 = vadd.f32 0.0, %v6133
    %v6135 = vpop.f32.mrb[0].mxu0
    %v6136 = vadd.f32 0.0, %v6135
    %v6137 = vpop.f32.mrb[0].mxu0
    %v6138 = vadd.f32 0.0, %v6137
    %v6139 = vpop.f32.mrb[0].mxu0
    %v6140 = vadd.f32 0.0, %v6139
    %6141 = vmatprep.mubr.bf16.mxu0 0
    %6142 = vmatmul.mubr.bf16.gmra.mrb[0].mxu0 %v5889
    %v6143 = vpop.f32.mrb[0].mxu0
    %v6144 = vadd.f32 0.0, %v6143
    %v6145 = vpop.f32.mrb[0].mxu0
    %v6146 = vadd.f32 0.0, %v6145
    %v6147 = vpop.f32.mrb[0].mxu0
    %v6148 = vadd.f32 0.0, %v6147
    %v6149 = vpop.f32.mrb[0].mxu0
    %v6150 = vadd.f32 0.0, %v6149
    %6151 = vmatprep.mubr.bf16.mxu0 0
    %6152 = vmatmul.mubr.bf16.gmra.mrb[0].mxu0 %v5890
    %v6153 = vpop.f32.mrb[0].mxu0
    %v6154 = vadd.f32 0.0, %v6153
    %v6155 = vpop.f32.mrb[0].mxu0
    %v6156 = vadd.f32 0.0, %v6155
    %v6157 = vpop.f32.mrb[0].mxu0
    %v6158 = vadd.f32 0.0, %v6157
    %v6159 = vpop.f32.mrb[0].mxu0
    %v6160 = vadd.f32 0.0, %v6159
    %6161 = vmatprep.mubr.bf16.mxu0 0
    %6162 = vmatmul.mubr.bf16.gmra.mrb[0].mxu0 %v5891
    %v6163 = vpop.f32.mrb[0].mxu0
    %v6164 = vadd.f32 0.0, %v6163
    %v6165 = vpop.f32.mrb[0].mxu0
    %v6166 = vadd.f32 0.0, %v6165
    %v6167 = vpop.f32.mrb[0].mxu0
    %v6168 = vadd.f32 0.0, %v6167
    %v6169 = vpop.f32.mrb[0].mxu0
    %v6170 = vadd.f32 0.0, %v6169
    %6171 = vmatprep.mubr.bf16.mxu0 0
    %6172 = vmatmul.mubr.bf16.gmra.mrb[0].mxu0 %v5892
    %v6173 = vpop.f32.mrb[0].mxu0
    %v6174 = vadd.f32 0.0, %v6173
    %v6175 = vpop.f32.mrb[0].mxu0
    %v6176 = vadd.f32 0.0, %v6175
    %v6177 = vpop.f32.mrb[0].mxu0
    %v6178 = vadd.f32 0.0, %v6177
    %v6179 = vpop.f32.mrb[0].mxu0
    %v6180 = vadd.f32 0.0, %v6179
    %6181 = vdwg.mxu0
    %v6182 = vxor.u32 %v6024, 2147483648
    %v6183 = vxor.u32 %v6028, 2147483648
    %v6184 = vxor.u32 %v6034, 2147483648
    %v6185 = vxor.u32 %v6038, 2147483648
    %v6186 = vxor.u32 %v6044, 2147483648
    %v6187 = vxor.u32 %v6048, 2147483648
    %v6188 = vxor.u32 %v6054, 2147483648
    %v6189 = vxor.u32 %v6058, 2147483648
    %v6190 = vxor.u32 %v6064, 2147483648
    %v6191 = vxor.u32 %v6068, 2147483648
    %v6192 = vxor.u32 %v6074, 2147483648
    %v6193 = vxor.u32 %v6078, 2147483648
    %v6194 = vxor.u32 %v6084, 2147483648
    %v6195 = vxor.u32 %v6088, 2147483648
    %v6196 = vxor.u32 %v6094, 2147483648
    %v6197 = vxor.u32 %v6098, 2147483648
    %v6198 = vxor.u32 %v6104, 2147483648
    %v6199 = vxor.u32 %v6108, 2147483648
    %v6200 = vxor.u32 %v6114, 2147483648
    %v6201 = vxor.u32 %v6118, 2147483648
    %v6202 = vxor.u32 %v6124, 2147483648
    %v6203 = vxor.u32 %v6128, 2147483648
    %v6204 = vxor.u32 %v6134, 2147483648
    %v6205 = vxor.u32 %v6138, 2147483648
    %v6206 = vxor.u32 %v6144, 2147483648
    %v6207 = vxor.u32 %v6148, 2147483648
    %v6208 = vxor.u32 %v6154, 2147483648
    %v6209 = vxor.u32 %v6158, 2147483648
    %v6210 = vxor.u32 %v6164, 2147483648
    %v6211 = vxor.u32 %v6168, 2147483648
    %v6212 = vxor.u32 %v6174, 2147483648
    %v6213 = vxor.u32 %v6178, 2147483648
    %v6214 = vmul.f32 %v6182, 1.442695
    %v6215 = vpow.pop %v6214
    %v6216 = vmul.f32 %v6183, 1.442695
    %v6217 = vpow.pop %v6216
    %v6218 = vmul.f32 %v6184, 1.442695
    %v6219 = vpow.pop %v6218
    %v6220 = vmul.f32 %v6185, 1.442695
    %v6221 = vpow.pop %v6220
    %v6222 = vmul.f32 %v6186, 1.442695
    %v6223 = vpow.pop %v6222
    %v6224 = vmul.f32 %v6187, 1.442695
    %v6225 = vpow.pop %v6224
    %v6226 = vmul.f32 %v6188, 1.442695
    %v6227 = vpow.pop %v6226
    %v6228 = vmul.f32 %v6189, 1.442695
    %v6229 = vpow.pop %v6228
    %v6230 = vmul.f32 %v6190, 1.442695
    %v6231 = vpow.pop %v6230
    %v6232 = vmul.f32 %v6191, 1.442695
    %v6233 = vpow.pop %v6232
    %v6234 = vmul.f32 %v6192, 1.442695
    %v6235 = vpow.pop %v6234
    %v6236 = vmul.f32 %v6193, 1.442695
    %v6237 = vpow.pop %v6236
    %v6238 = vmul.f32 %v6194, 1.442695
    %v6239 = vpow.pop %v6238
    %v6240 = vmul.f32 %v6195, 1.442695
    %v6241 = vpow.pop %v6240
    %v6242 = vmul.f32 %v6196, 1.442695
    %v6243 = vpow.pop %v6242
    %v6244 = vmul.f32 %v6197, 1.442695
    %v6245 = vpow.pop %v6244
    %v6246 = vmul.f32 %v6198, 1.442695
    %v6247 = vpow.pop %v6246
    %v6248 = vmul.f32 %v6199, 1.442695
    %v6249 = vpow.pop %v6248
    %v6250 = vmul.f32 %v6200, 1.442695
    %v6251 = vpow.pop %v6250
    %v6252 = vmul.f32 %v6201, 1.442695
    %v6253 = vpow.pop %v6252
    %v6254 = vmul.f32 %v6202, 1.442695
    %v6255 = vpow.pop %v6254
    %v6256 = vmul.f32 %v6203, 1.442695
    %v6257 = vpow.pop %v6256
    %v6258 = vmul.f32 %v6204, 1.442695
    %v6259 = vpow.pop %v6258
    %v6260 = vmul.f32 %v6205, 1.442695
    %v6261 = vpow.pop %v6260
    %v6262 = vmul.f32 %v6206, 1.442695
    %v6263 = vpow.pop %v6262
    %v6264 = vmul.f32 %v6207, 1.442695
    %v6265 = vpow.pop %v6264
    %v6266 = vmul.f32 %v6208, 1.442695
    %v6267 = vpow.pop %v6266
    %v6268 = vmul.f32 %v6209, 1.442695
    %v6269 = vpow.pop %v6268
    %v6270 = vmul.f32 %v6210, 1.442695
    %v6271 = vpow.pop %v6270
    %v6272 = vmul.f32 %v6211, 1.442695
    %v6273 = vpow.pop %v6272
    %v6274 = vmul.f32 %v6212, 1.442695
    %v6275 = vpow.pop %v6274
    %v6276 = vmul.f32 %v6213, 1.442695
    %v6277 = vpow.pop %v6276
    %v6278 = vadd.f32 %v6215, 1.0
    %v6279 = vadd.f32 %v6217, 1.0
    %v6280 = vadd.f32 %v6219, 1.0
    %v6281 = vadd.f32 %v6221, 1.0
    %v6282 = vadd.f32 %v6223, 1.0
    %v6283 = vadd.f32 %v6225, 1.0
    %v6284 = vadd.f32 %v6227, 1.0
    %v6285 = vadd.f32 %v6229, 1.0
    %v6286 = vadd.f32 %v6231, 1.0
    %v6287 = vadd.f32 %v6233, 1.0
    %v6288 = vadd.f32 %v6235, 1.0
    %v6289 = vadd.f32 %v6237, 1.0
    %v6290 = vadd.f32 %v6239, 1.0
    %v6291 = vadd.f32 %v6241, 1.0
    %v6292 = vadd.f32 %v6243, 1.0
    %v6293 = vadd.f32 %v6245, 1.0
    %v6294 = vadd.f32 %v6247, 1.0
    %v6295 = vadd.f32 %v6249, 1.0
    %v6296 = vadd.f32 %v6251, 1.0
    %v6297 = vadd.f32 %v6253, 1.0
    %v6298 = vadd.f32 %v6255, 1.0
    %v6299 = vadd.f32 %v6257, 1.0
    %v6300 = vadd.f32 %v6259, 1.0
    %v6301 = vadd.f32 %v6261, 1.0
    %v6302 = vadd.f32 %v6263, 1.0
    %v6303 = vadd.f32 %v6265, 1.0
    %v6304 = vadd.f32 %v6267, 1.0
    %v6305 = vadd.f32 %v6269, 1.0
    %v6306 = vadd.f32 %v6271, 1.0
    %v6307 = vadd.f32 %v6273, 1.0
    %v6308 = vadd.f32 %v6275, 1.0
    %v6309 = vadd.f32 %v6277, 1.0
    %v6310 = vrcp.pop %v6278
    %v6311 = vmul.f32 1.0, %v6310
    %v6312 = vrcp.pop %v6279
    %v6313 = vmul.f32 1.0, %v6312
    %v6314 = vrcp.pop %v6280
    %v6315 = vmul.f32 1.0, %v6314
    %v6316 = vrcp.pop %v6281
    %v6317 = vmul.f32 1.0, %v6316
    %v6318 = vrcp.pop %v6282
    %v6319 = vmul.f32 1.0, %v6318
    %v6320 = vrcp.pop %v6283
    %v6321 = vmul.f32 1.0, %v6320
    %v6322 = vrcp.pop %v6284
    %v6323 = vmul.f32 1.0, %v6322
    %v6324 = vrcp.pop %v6285
    %v6325 = vmul.f32 1.0, %v6324
    %v6326 = vrcp.pop %v6286
    %v6327 = vmul.f32 1.0, %v6326
    %v6328 = vrcp.pop %v6287
    %v6329 = vmul.f32 1.0, %v6328
    %v6330 = vrcp.pop %v6288
    %v6331 = vmul.f32 1.0, %v6330
    %v6332 = vrcp.pop %v6289
    %v6333 = vmul.f32 1.0, %v6332
    %v6334 = vrcp.pop %v6290
    %v6335 = vmul.f32 1.0, %v6334
    %v6336 = vrcp.pop %v6291
    %v6337 = vmul.f32 1.0, %v6336
    %v6338 = vrcp.pop %v6292
    %v6339 = vmul.f32 1.0, %v6338
    %v6340 = vrcp.pop %v6293
    %v6341 = vmul.f32 1.0, %v6340
    %v6342 = vrcp.pop %v6294
    %v6343 = vmul.f32 1.0, %v6342
    %v6344 = vrcp.pop %v6295
    %v6345 = vmul.f32 1.0, %v6344
    %v6346 = vrcp.pop %v6296
    %v6347 = vmul.f32 1.0, %v6346
    %v6348 = vrcp.pop %v6297
    %v6349 = vmul.f32 1.0, %v6348
    %v6350 = vrcp.pop %v6298
    %v6351 = vmul.f32 1.0, %v6350
    %v6352 = vrcp.pop %v6299
    %v6353 = vmul.f32 1.0, %v6352
    %v6354 = vrcp.pop %v6300
    %v6355 = vmul.f32 1.0, %v6354
    %v6356 = vrcp.pop %v6301
    %v6357 = vmul.f32 1.0, %v6356
    %v6358 = vrcp.pop %v6302
    %v6359 = vmul.f32 1.0, %v6358
    %v6360 = vrcp.pop %v6303
    %v6361 = vmul.f32 1.0, %v6360
    %v6362 = vrcp.pop %v6304
    %v6363 = vmul.f32 1.0, %v6362
    %v6364 = vrcp.pop %v6305
    %v6365 = vmul.f32 1.0, %v6364
    %v6366 = vrcp.pop %v6306
    %v6367 = vmul.f32 1.0, %v6366
    %v6368 = vrcp.pop %v6307
    %v6369 = vmul.f32 1.0, %v6368
    %v6370 = vrcp.pop %v6308
    %v6371 = vmul.f32 1.0, %v6370
    %v6372 = vrcp.pop %v6309
    %v6373 = vmul.f32 1.0, %v6372
    %v6374 = vmul.f32 %v6024, %v6311
    %v6375 = vmul.f32 %v6028, %v6313
    %v6376 = vmul.f32 %v6034, %v6315
    %v6377 = vmul.f32 %v6038, %v6317
    %v6378 = vmul.f32 %v6044, %v6319
    %v6379 = vmul.f32 %v6048, %v6321
    %v6380 = vmul.f32 %v6054, %v6323
    %v6381 = vmul.f32 %v6058, %v6325
    %v6382 = vmul.f32 %v6064, %v6327
    %v6383 = vmul.f32 %v6068, %v6329
    %v6384 = vmul.f32 %v6074, %v6331
    %v6385 = vmul.f32 %v6078, %v6333
    %v6386 = vmul.f32 %v6084, %v6335
    %v6387 = vmul.f32 %v6088, %v6337
    %v6388 = vmul.f32 %v6094, %v6339
    %v6389 = vmul.f32 %v6098, %v6341
    %v6390 = vmul.f32 %v6104, %v6343
    %v6391 = vmul.f32 %v6108, %v6345
    %v6392 = vmul.f32 %v6114, %v6347
    %v6393 = vmul.f32 %v6118, %v6349
    %v6394 = vmul.f32 %v6124, %v6351
    %v6395 = vmul.f32 %v6128, %v6353
    %v6396 = vmul.f32 %v6134, %v6355
    %v6397 = vmul.f32 %v6138, %v6357
    %v6398 = vmul.f32 %v6144, %v6359
    %v6399 = vmul.f32 %v6148, %v6361
    %v6400 = vmul.f32 %v6154, %v6363
    %v6401 = vmul.f32 %v6158, %v6365
    %v6402 = vmul.f32 %v6164, %v6367
    %v6403 = vmul.f32 %v6168, %v6369
    %v6404 = vmul.f32 %v6174, %v6371
    %v6405 = vmul.f32 %v6178, %v6373
    %v6406 = vmul.f32 %v6374, %v6026
    %v6407 = vmul.f32 %v6375, %v6030
    %v6408 = vmul.f32 %v6376, %v6036
    %v6409 = vmul.f32 %v6377, %v6040
    %v6410 = vmul.f32 %v6378, %v6046
    %v6411 = vmul.f32 %v6379, %v6050
    %v6412 = vmul.f32 %v6380, %v6056
    %v6413 = vmul.f32 %v6381, %v6060
    %v6414 = vmul.f32 %v6382, %v6066
    %v6415 = vmul.f32 %v6383, %v6070
    %v6416 = vmul.f32 %v6384, %v6076
    %v6417 = vmul.f32 %v6385, %v6080
    %v6418 = vmul.f32 %v6386, %v6086
    %v6419 = vmul.f32 %v6387, %v6090
    %v6420 = vmul.f32 %v6388, %v6096
    %v6421 = vmul.f32 %v6389, %v6100
    %v6422 = vmul.f32 %v6390, %v6106
    %v6423 = vmul.f32 %v6391, %v6110
    %v6424 = vmul.f32 %v6392, %v6116
    %v6425 = vmul.f32 %v6393, %v6120
    %v6426 = vmul.f32 %v6394, %v6126
    %v6427 = vmul.f32 %v6395, %v6130
    %v6428 = vmul.f32 %v6396, %v6136
    %v6429 = vmul.f32 %v6397, %v6140
    %v6430 = vmul.f32 %v6398, %v6146
    %v6431 = vmul.f32 %v6399, %v6150
    %v6432 = vmul.f32 %v6400, %v6156
    %v6433 = vmul.f32 %v6401, %v6160
    %v6434 = vmul.f32 %v6402, %v6166
    %v6435 = vmul.f32 %v6403, %v6170
    %v6436 = vmul.f32 %v6404, %v6176
    %v6437 = vmul.f32 %v6405, %v6180
    %v6438 = vpack.c.bf16 %v6407, %v6406
    %v6439 = vpack.c.bf16 %v6409, %v6408
    %v6440 = vpack.c.bf16 %v6411, %v6410
    %v6441 = vpack.c.bf16 %v6413, %v6412
    %v6442 = vpack.c.bf16 %v6415, %v6414
    %v6443 = vpack.c.bf16 %v6417, %v6416
    %v6444 = vpack.c.bf16 %v6419, %v6418
    %v6445 = vpack.c.bf16 %v6421, %v6420
    %v6446 = vpack.c.bf16 %v6423, %v6422
    %v6447 = vpack.c.bf16 %v6425, %v6424
    %v6448 = vpack.c.bf16 %v6427, %v6426
    %v6449 = vpack.c.bf16 %v6429, %v6428
    %v6450 = vpack.c.bf16 %v6431, %v6430
    %v6451 = vpack.c.bf16 %v6433, %v6432
    %v6452 = vpack.c.bf16 %v6435, %v6434
    %v6453 = vpack.c.bf16 %v6437, %v6436
    %v6454 = vld [vmem:[#allocation13] sm:$0xf]
    %v6455 = vld [vmem:[#allocation13 + $0x4] sm:$0xf]
    %v6456 = vld [vmem:[#allocation13 + $0x8] sm:$0xf]
    %v6457 = vld [vmem:[#allocation13 + $0xc] sm:$0xf]
    %v6458 = vld [vmem:[#allocation13 + $0x10] sm:$0xf]
    %v6459 = vld [vmem:[#allocation13 + $0x14] sm:$0xf]
    %v6460 = vld [vmem:[#allocation13 + $0x18] sm:$0xf]
    %v6461 = vld [vmem:[#allocation13 + $0x1c] sm:$0xf]
    %v6462 = vld [vmem:[#allocation13 + $0x20] sm:$0xf]
    %v6463 = vld [vmem:[#allocation13 + $0x24] sm:$0xf]
    %v6464 = vld [vmem:[#allocation13 + $0x28] sm:$0xf]
    %v6465 = vld [vmem:[#allocation13 + $0x2c] sm:$0xf]
    %v6466 = vld [vmem:[#allocation13 + $0x30] sm:$0xf]
    %v6467 = vld [vmem:[#allocation13 + $0x34] sm:$0xf]
    %v6468 = vld [vmem:[#allocation13 + $0x38] sm:$0xf]
    %v6469 = vld [vmem:[#allocation13 + $0x3c] sm:$0xf]
    %v6486 = vunpack.c.l.b16 %v6454
    %v6487 = vunpack.c.l.b16 %v6455
    %v6488 = vunpack.c.l.b16 %v6456
    %v6489 = vunpack.c.l.b16 %v6457
    %v6490 = vunpack.c.l.b16 %v6458
    %v6491 = vunpack.c.l.b16 %v6459
    %v6492 = vunpack.c.l.b16 %v6460
    %v6493 = vunpack.c.l.b16 %v6461
    %v6494 = vunpack.c.l.b16 %v6462
    %v6495 = vunpack.c.l.b16 %v6463
    %v6496 = vunpack.c.l.b16 %v6464
    %v6497 = vunpack.c.l.b16 %v6465
    %v6498 = vunpack.c.l.b16 %v6466
    %v6499 = vunpack.c.l.b16 %v6467
    %v6500 = vunpack.c.l.b16 %v6468
    %v6501 = vunpack.c.l.b16 %v6469
    %v6502 = vpack.c.b16 %v6487, %v6486
    %v6503 = vpack.c.b16 %v6489, %v6488
    %v6504 = vpack.c.b16 %v6491, %v6490
    %v6505 = vpack.c.b16 %v6493, %v6492
    %v6506 = vpack.c.b16 %v6495, %v6494
    %v6507 = vpack.c.b16 %v6497, %v6496
    %v6508 = vpack.c.b16 %v6499, %v6498
    %v6509 = vpack.c.b16 %v6501, %v6500
    %6518 = vmatprep.subr.bf16.mxu0 0
    %6519 = vmatpush1.bf16.msra.mxu0 %v6502
    %6520 = vmatprep.subr.bf16.mxu0 0
    %6521 = vmatpush1.bf16.msra.mxu0 %v6503
    %6522 = vmatprep.subr.bf16.mxu0 0
    %6523 = vmatpush1.bf16.msra.mxu0 %v6504
    %6524 = vmatprep.subr.bf16.mxu0 0
    %6525 = vmatpush1.bf16.msra.mxu0 %v6505
    %6526 = vmatprep.subr.bf16.mxu0 0
    %6527 = vmatpush1.bf16.msra.mxu0 %v6506
    %6528 = vmatprep.subr.bf16.mxu0 0
    %6529 = vmatpush1.bf16.msra.mxu0 %v6507
    %6530 = vmatprep.subr.bf16.mxu0 0
    %6531 = vmatpush1.bf16.msra.mxu0 %v6508
    %6532 = vmatprep.subr.bf16.mxu0 0
    %6533 = vmatpush1.bf16.msra.mxu0 %v6509
    %6534 = vmatprep.subr.bf16.mxu0 0
    %6535 = vmatpush1.bf16.msra.mxu0 0
    %6536 = vmatprep.subr.bf16.mxu0 0
    %6537 = vmatpush1.bf16.msra.mxu0 0
    %6538 = vmatprep.subr.bf16.mxu0 0
    %6539 = vmatpush1.bf16.msra.mxu0 0
    %6540 = vmatprep.subr.bf16.mxu0 0
    %6541 = vmatpush1.bf16.msra.mxu0 0
    %6542 = vmatprep.subr.bf16.mxu0 0
    %6543 = vmatpush1.bf16.msra.mxu0 0
    %6544 = vmatprep.subr.bf16.mxu0 0
    %6545 = vmatpush1.bf16.msra.mxu0 0
    %6546 = vmatprep.subr.bf16.mxu0 0
    %6547 = vmatpush1.bf16.msra.mxu0 0
    %6548 = vmatprep.subr.bf16.mxu0 0
    %6549 = vmatpush1.bf16.msra.mxu0 0
    %6550 = vmatprep.mubr.bf16.mxu0 0
    %6551 = vmatmul.mubr.bf16.gmra.mrb[0].mxu0 %v6438
    %v6552 = vpop.f32.mrb[0].mxu0
    %v6553 = vadd.f32 0.0, %v6552
    %v6554 = vpop.f32.mrb[0].mxu0
    %v6555 = vpop.f32.mrb[0].mxu0
    %v6556 = vadd.f32 0.0, %v6555
    %v6557 = vpop.f32.mrb[0].mxu0
    %6558 = vmatprep.mubr.bf16.mxu0 0
    %6559 = vmatmul.mubr.bf16.gmra.mrb[0].mxu0 %v6439
    %v6560 = vpop.f32.mrb[0].mxu0
    %v6561 = vadd.f32 0.0, %v6560
    %v6562 = vpop.f32.mrb[0].mxu0
    %v6563 = vpop.f32.mrb[0].mxu0
    %v6564 = vadd.f32 0.0, %v6563
    %v6565 = vpop.f32.mrb[0].mxu0
    %6566 = vmatprep.mubr.bf16.mxu0 0
    %6567 = vmatmul.mubr.bf16.gmra.mrb[0].mxu0 %v6440
    %v6568 = vpop.f32.mrb[0].mxu0
    %v6569 = vadd.f32 0.0, %v6568
    %v6570 = vpop.f32.mrb[0].mxu0
    %v6571 = vpop.f32.mrb[0].mxu0
    %v6572 = vadd.f32 0.0, %v6571
    %v6573 = vpop.f32.mrb[0].mxu0
    %6574 = vmatprep.mubr.bf16.mxu0 0
    %6575 = vmatmul.mubr.bf16.gmra.mrb[0].mxu0 %v6441
    %v6576 = vpop.f32.mrb[0].mxu0
    %v6577 = vadd.f32 0.0, %v6576
    %v6578 = vpop.f32.mrb[0].mxu0
    %v6579 = vpop.f32.mrb[0].mxu0
    %v6580 = vadd.f32 0.0, %v6579
    %v6581 = vpop.f32.mrb[0].mxu0
    %6582 = vmatprep.mubr.bf16.mxu0 0
    %6583 = vmatmul.mubr.bf16.gmra.mrb[0].mxu0 %v6442
    %v6584 = vpop.f32.mrb[0].mxu0
    %v6585 = vadd.f32 0.0, %v6584
    %v6586 = vpop.f32.mrb[0].mxu0
    %v6587 = vpop.f32.mrb[0].mxu0
    %v6588 = vadd.f32 0.0, %v6587
    %v6589 = vpop.f32.mrb[0].mxu0
    %6590 = vmatprep.mubr.bf16.mxu0 0
    %6591 = vmatmul.mubr.bf16.gmra.mrb[0].mxu0 %v6443
    %v6592 = vpop.f32.mrb[0].mxu0
    %v6593 = vadd.f32 0.0, %v6592
    %v6594 = vpop.f32.mrb[0].mxu0
    %v6595 = vpop.f32.mrb[0].mxu0
    %v6596 = vadd.f32 0.0, %v6595
    %v6597 = vpop.f32.mrb[0].mxu0
    %6598 = vmatprep.mubr.bf16.mxu0 0
    %6599 = vmatmul.mubr.bf16.gmra.mrb[0].mxu0 %v6444
    %v6600 = vpop.f32.mrb[0].mxu0
    %v6601 = vadd.f32 0.0, %v6600
    %v6602 = vpop.f32.mrb[0].mxu0
    %v6603 = vpop.f32.mrb[0].mxu0
    %v6604 = vadd.f32 0.0, %v6603
    %v6605 = vpop.f32.mrb[0].mxu0
    %6606 = vmatprep.mubr.bf16.mxu0 0
    %6607 = vmatmul.mubr.bf16.gmra.mrb[0].mxu0 %v6445
    %v6608 = vpop.f32.mrb[0].mxu0
    %v6609 = vadd.f32 0.0, %v6608
    %v6610 = vpop.f32.mrb[0].mxu0
    %v6611 = vpop.f32.mrb[0].mxu0
    %v6612 = vadd.f32 0.0, %v6611
    %v6613 = vpop.f32.mrb[0].mxu0
    %6614 = vmatprep.mubr.bf16.mxu0 0
    %6615 = vmatmul.mubr.bf16.gmra.mrb[0].mxu0 %v6446
    %v6616 = vpop.f32.mrb[0].mxu0
    %v6617 = vadd.f32 0.0, %v6616
    %v6618 = vpop.f32.mrb[0].mxu0
    %v6619 = vpop.f32.mrb[0].mxu0
    %v6620 = vadd.f32 0.0, %v6619
    %v6621 = vpop.f32.mrb[0].mxu0
    %6622 = vmatprep.mubr.bf16.mxu0 0
    %6623 = vmatmul.mubr.bf16.gmra.mrb[0].mxu0 %v6447
    %v6624 = vpop.f32.mrb[0].mxu0
    %v6625 = vadd.f32 0.0, %v6624
    %v6626 = vpop.f32.mrb[0].mxu0
    %v6627 = vpop.f32.mrb[0].mxu0
    %v6628 = vadd.f32 0.0, %v6627
    %v6629 = vpop.f32.mrb[0].mxu0
    %6630 = vmatprep.mubr.bf16.mxu0 0
    %6631 = vmatmul.mubr.bf16.gmra.mrb[0].mxu0 %v6448
    %v6632 = vpop.f32.mrb[0].mxu0
    %v6633 = vadd.f32 0.0, %v6632
    %v6634 = vpop.f32.mrb[0].mxu0
    %v6635 = vpop.f32.mrb[0].mxu0
    %v6636 = vadd.f32 0.0, %v6635
    %v6637 = vpop.f32.mrb[0].mxu0
    %6638 = vmatprep.mubr.bf16.mxu0 0
    %6639 = vmatmul.mubr.bf16.gmra.mrb[0].mxu0 %v6449
    %v6640 = vpop.f32.mrb[0].mxu0
    %v6641 = vadd.f32 0.0, %v6640
    %v6642 = vpop.f32.mrb[0].mxu0
    %v6643 = vpop.f32.mrb[0].mxu0
    %v6644 = vadd.f32 0.0, %v6643
    %v6645 = vpop.f32.mrb[0].mxu0
    %6646 = vmatprep.mubr.bf16.mxu0 0
    %6647 = vmatmul.mubr.bf16.gmra.mrb[0].mxu0 %v6450
    %v6648 = vpop.f32.mrb[0].mxu0
    %v6649 = vadd.f32 0.0, %v6648
    %v6650 = vpop.f32.mrb[0].mxu0
    %v6651 = vpop.f32.mrb[0].mxu0
    %v6652 = vadd.f32 0.0, %v6651
    %v6653 = vpop.f32.mrb[0].mxu0
    %6654 = vmatprep.mubr.bf16.mxu0 0
    %6655 = vmatmul.mubr.bf16.gmra.mrb[0].mxu0 %v6451
    %v6656 = vpop.f32.mrb[0].mxu0
    %v6657 = vadd.f32 0.0, %v6656
    %v6658 = vpop.f32.mrb[0].mxu0
    %v6659 = vpop.f32.mrb[0].mxu0
    %v6660 = vadd.f32 0.0, %v6659
    %v6661 = vpop.f32.mrb[0].mxu0
    %6662 = vmatprep.mubr.bf16.mxu0 0
    %6663 = vmatmul.mubr.bf16.gmra.mrb[0].mxu0 %v6452
    %v6664 = vpop.f32.mrb[0].mxu0
    %v6665 = vadd.f32 0.0, %v6664
    %v6666 = vpop.f32.mrb[0].mxu0
    %v6667 = vpop.f32.mrb[0].mxu0
    %v6668 = vadd.f32 0.0, %v6667
    %v6669 = vpop.f32.mrb[0].mxu0
    %6670 = vmatprep.mubr.bf16.mxu0 0
    %6671 = vmatmul.mubr.bf16.gmra.mrb[0].mxu0 %v6453
    %v6672 = vpop.f32.mrb[0].mxu0
    %v6673 = vadd.f32 0.0, %v6672
    %v6674 = vpop.f32.mrb[0].mxu0
    %v6675 = vpop.f32.mrb[0].mxu0
    %v6676 = vadd.f32 0.0, %v6675
    %v6677 = vpop.f32.mrb[0].mxu0
    %6678 = vdwg.mxu0
    %v6679 = vld [vmem:[#allocation14] sm:$0xff]
    %v6680 = vld [vmem:[#allocation14 + $0x8] sm:$0xff]
    %v6681 = vld [vmem:[#allocation14 + $0x10] sm:$0xff]
    %v6682 = vld [vmem:[#allocation14 + $0x18] sm:$0xff]
    %v6683 = vld [vmem:[#allocation14 + $0x20] sm:$0xff]
    %v6684 = vld [vmem:[#allocation14 + $0x28] sm:$0xff]
    %v6685 = vld [vmem:[#allocation14 + $0x30] sm:$0xff]
    %v6686 = vld [vmem:[#allocation14 + $0x38] sm:$0xff]
    %v6687 = vld [vmem:[#allocation14 + $0x40] sm:$0xff]
    %v6688 = vld [vmem:[#allocation14 + $0x48] sm:$0xff]
    %v6689 = vld [vmem:[#allocation14 + $0x50] sm:$0xff]
    %v6690 = vld [vmem:[#allocation14 + $0x58] sm:$0xff]
    %v6691 = vld [vmem:[#allocation14 + $0x60] sm:$0xff]
    %v6692 = vld [vmem:[#allocation14 + $0x68] sm:$0xff]
    %v6693 = vld [vmem:[#allocation14 + $0x70] sm:$0xff]
    %v6694 = vld [vmem:[#allocation14 + $0x78] sm:$0xff]
    %v6695 = vld [vmem:[#allocation14 + $0x80] sm:$0xff]
    %v6696 = vld [vmem:[#allocation14 + $0x88] sm:$0xff]
    %v6697 = vld [vmem:[#allocation14 + $0x90] sm:$0xff]
    %v6698 = vld [vmem:[#allocation14 + $0x98] sm:$0xff]
    %v6699 = vld [vmem:[#allocation14 + $0xa0] sm:$0xff]
    %v6700 = vld [vmem:[#allocation14 + $0xa8] sm:$0xff]
    %v6701 = vld [vmem:[#allocation14 + $0xb0] sm:$0xff]
    %v6702 = vld [vmem:[#allocation14 + $0xb8] sm:$0xff]
    %v6703 = vld [vmem:[#allocation14 + $0xc0] sm:$0xff]
    %v6704 = vld [vmem:[#allocation14 + $0xc8] sm:$0xff]
    %v6705 = vld [vmem:[#allocation14 + $0xd0] sm:$0xff]
    %v6706 = vld [vmem:[#allocation14 + $0xd8] sm:$0xff]
    %v6707 = vld [vmem:[#allocation14 + $0xe0] sm:$0xff]
    %v6708 = vld [vmem:[#allocation14 + $0xe8] sm:$0xff]
    %v6709 = vld [vmem:[#allocation14 + $0xf0] sm:$0xff]
    %v6710 = vld [vmem:[#allocation14 + $0xf8] sm:$0xff]
    %v6711 = vadd.f32 %v6679, %v6553
    %v6712 = vadd.f32 %v6680, %v6556
    %v6713 = vadd.f32 %v6681, %v6561
    %v6714 = vadd.f32 %v6682, %v6564
    %v6715 = vadd.f32 %v6683, %v6569
    %v6716 = vadd.f32 %v6684, %v6572
    %v6717 = vadd.f32 %v6685, %v6577
    %v6718 = vadd.f32 %v6686, %v6580
    %v6719 = vadd.f32 %v6687, %v6585
    %v6720 = vadd.f32 %v6688, %v6588
    %v6721 = vadd.f32 %v6689, %v6593
    %v6722 = vadd.f32 %v6690, %v6596
    %v6723 = vadd.f32 %v6691, %v6601
    %v6724 = vadd.f32 %v6692, %v6604
    %v6725 = vadd.f32 %v6693, %v6609
    %v6726 = vadd.f32 %v6694, %v6612
    %v6727 = vadd.f32 %v6695, %v6617
    %v6728 = vadd.f32 %v6696, %v6620
    %v6729 = vadd.f32 %v6697, %v6625
    %v6730 = vadd.f32 %v6698, %v6628
    %v6731 = vadd.f32 %v6699, %v6633
    %v6732 = vadd.f32 %v6700, %v6636
    %v6733 = vadd.f32 %v6701, %v6641
    %v6734 = vadd.f32 %v6702, %v6644
    %v6735 = vadd.f32 %v6703, %v6649
    %v6736 = vadd.f32 %v6704, %v6652
    %v6737 = vadd.f32 %v6705, %v6657
    %v6738 = vadd.f32 %v6706, %v6660
    %v6739 = vadd.f32 %v6707, %v6665
    %v6740 = vadd.f32 %v6708, %v6668
    %v6741 = vadd.f32 %v6709, %v6673
    %v6742 = vadd.f32 %v6710, %v6676
    %6743 = vst [vmem:[#allocation14] sm:$0xff] %v6711
    %6744 = vst [vmem:[#allocation14 + $0x8] sm:$0xff] %v6712
    %6745 = vst [vmem:[#allocation14 + $0x10] sm:$0xff] %v6713
    %6746 = vst [vmem:[#allocation14 + $0x18] sm:$0xff] %v6714
    %6747 = vst [vmem:[#allocation14 + $0x20] sm:$0xff] %v6715
    %6748 = vst [vmem:[#allocation14 + $0x28] sm:$0xff] %v6716
    %6749 = vst [vmem:[#allocation14 + $0x30] sm:$0xff] %v6717
    %6750 = vst [vmem:[#allocation14 + $0x38] sm:$0xff] %v6718
    %6751 = vst [vmem:[#allocation14 + $0x40] sm:$0xff] %v6719
    %6752 = vst [vmem:[#allocation14 + $0x48] sm:$0xff] %v6720
    %6753 = vst [vmem:[#allocation14 + $0x50] sm:$0xff] %v6721
    %6754 = vst [vmem:[#allocation14 + $0x58] sm:$0xff] %v6722
    %6755 = vst [vmem:[#allocation14 + $0x60] sm:$0xff] %v6723
    %6756 = vst [vmem:[#allocation14 + $0x68] sm:$0xff] %v6724
    %6757 = vst [vmem:[#allocation14 + $0x70] sm:$0xff] %v6725
    %6758 = vst [vmem:[#allocation14 + $0x78] sm:$0xff] %v6726
    %6759 = vst [vmem:[#allocation14 + $0x80] sm:$0xff] %v6727
    %6760 = vst [vmem:[#allocation14 + $0x88] sm:$0xff] %v6728
    %6761 = vst [vmem:[#allocation14 + $0x90] sm:$0xff] %v6729
    %6762 = vst [vmem:[#allocation14 + $0x98] sm:$0xff] %v6730
    %6763 = vst [vmem:[#allocation14 + $0xa0] sm:$0xff] %v6731
    %6764 = vst [vmem:[#allocation14 + $0xa8] sm:$0xff] %v6732
    %6765 = vst [vmem:[#allocation14 + $0xb0] sm:$0xff] %v6733
    %6766 = vst [vmem:[#allocation14 + $0xb8] sm:$0xff] %v6734
    %6767 = vst [vmem:[#allocation14 + $0xc0] sm:$0xff] %v6735
    %6768 = vst [vmem:[#allocation14 + $0xc8] sm:$0xff] %v6736
    %6769 = vst [vmem:[#allocation14 + $0xd0] sm:$0xff] %v6737
    %6770 = vst [vmem:[#allocation14 + $0xd8] sm:$0xff] %v6738
    %6771 = vst [vmem:[#allocation14 + $0xe0] sm:$0xff] %v6739
    %6772 = vst [vmem:[#allocation14 + $0xe8] sm:$0xff] %v6740
    %6773 = vst [vmem:[#allocation14 + $0xf0] sm:$0xff] %v6741
    %6774 = vst [vmem:[#allocation14 + $0xf8] sm:$0xff] %v6742
    // Predicated region
    $region42: #{tpu_custom_call.1} parent=1 // pred_check
      _
    $region43: #{tpu_custom_call.1} parent=1 // pred_check_branch
      %6776 = sbr.rel (0) target = $region45
    $region44: #{tpu_custom_call.1} parent=1 // pred_region
      %s6778 = ssub.s32 4096, 4096
      %6779 = vsyncadd [#allocation7], %s6778
      %s6780 = sshll.u32 [#allocation14], 4
      %s6781 = int_to_ptr.vmem [resolvable:$true] %s6780
      %6786 = dma.vmem_to_hbm [thread:$0]  %s6781, 4096, %s5, [#allocation7], 128, 128, 8
    $region45: #{tpu_custom_call.1} parent=1 // pred_fallthru
      _
    // Predicated region
    $region46: #{tpu_custom_call.1} parent=1 // pred_check
      _
    $region47: #{tpu_custom_call.1} parent=1 // pred_check_branch
      %6788 = sbr.rel (0) target = $region49
    $region48: #{tpu_custom_call.1} parent=1 // pred_region
      %6789 = dma.done [#allocation7], 4096
    $region49: #{tpu_custom_call.1} parent=1 // pred_fallthru
      _
    %6790 = vsyncpa [#allocation6], 1
    %6791 = vsyncpa [#allocation9], 1
    %6792 = vsyncpa [#allocation12], 1
    %6793 = vsyncpa [#allocation7], 1

</llo_original>
